<compile_context>
chip_gen: v6e
topology: v6e:2x2x1
jax: 0.10.0
libtpu: 0.0.40
codegen_flags: <defaults>
</compile_context>

<pallas_src>
import functools

import jax
import jax.numpy as jnp
import numpy as np
from jax import lax
from jax.experimental import pallas as pl
from jax.experimental.pallas import tpu as pltpu

BN_EPS = 1e-3


# --------------------------------------------------------------------------
# Fused Inception kernel (one batch element per grid step)
# --------------------------------------------------------------------------
def _inception_kernel(x_ref,
                      w1_ref, s1_ref, t1_ref,      # fused 1x1 [b1 | b2a | b3a]
                      w2_ref, s2_ref, t2_ref,      # branch2 3x3
                      w3_ref, s3_ref, t3_ref,      # branch3 3x3
                      w4_ref, s4_ref, t4_ref,      # branch4 pool-proj 1x1
                      o_ref,
                      pad2_ref, pad3_ref, padp_ref, col2_ref, col3_ref,
                      *, ch1x1, ch3x3red, ch3x3, ch5x5red, ch5x5, pool_proj):
    _, H, W, Cin = x_ref.shape
    M = H * W

    x = x_ref[0]                                          # (H, W, Cin) f32
    x2d_bf = x.reshape(M, Cin).astype(jnp.bfloat16)

    # ---- fused 1x1 convs (b1 | b2a | b3a): one wide MXU matmul --------------
    y1 = jnp.dot(x2d_bf, w1_ref[...], preferred_element_type=jnp.float32)
    y1 = y1 * s1_ref[...] + t1_ref[...]                   # (M, ch1x1+c2r+c3r)

    # branch1 output (requantize=False -> no ReLU)
    o_ref[0, :, :, 0:ch1x1] = (
        y1[:, 0:ch1x1].reshape(H, W, ch1x1).astype(o_ref.dtype))

    # branch2/3 reduce outputs: ReLU, then build the 1-pixel zero halo in VMEM
    r2 = jnp.maximum(y1[:, ch1x1:ch1x1 + ch3x3red], 0.0)
    r3 = jnp.maximum(y1[:, ch1x1 + ch3x3red:ch1x1 + ch3x3red + ch5x5red], 0.0)

    pad2_ref[...] = jnp.zeros(pad2_ref.shape, pad2_ref.dtype)
    pad3_ref[...] = jnp.zeros(pad3_ref.shape, pad3_ref.dtype)
    pad2_ref[1:H + 1, 1:W + 1, :] = r2.reshape(H, W, ch3x3red)
    pad3_ref[1:H + 1, 1:W + 1, :] = r3.reshape(H, W, ch5x5red)

    # ---- 3x3 convs as ONE deep-K matmul each (im2col in VMEM scratch) ------
    p2 = pad2_ref[...]
    p3 = pad3_ref[...]
    for ky in range(3):
        for kx in range(3):
            k = ky * 3 + kx
            col2_ref[:, k * ch3x3red:(k + 1) * ch3x3red] = (
                p2[ky:ky + H, kx:kx + W, :].reshape(M, ch3x3red))
            col3_ref[:, k * ch5x5red:(k + 1) * ch5x5red] = (
                p3[ky:ky + H, kx:kx + W, :].reshape(M, ch5x5red))

    y2 = jnp.dot(col2_ref[...].astype(jnp.bfloat16), w2_ref[...],
                 preferred_element_type=jnp.float32)
    y2 = y2 * s2_ref[...] + t2_ref[...]
    off = ch1x1
    o_ref[0, :, :, off:off + ch3x3] = (
        y2.reshape(H, W, ch3x3).astype(o_ref.dtype))

    y3 = jnp.dot(col3_ref[...].astype(jnp.bfloat16), w3_ref[...],
                 preferred_element_type=jnp.float32)
    y3 = y3 * s3_ref[...] + t3_ref[...]
    off += ch3x3
    o_ref[0, :, :, off:off + ch5x5] = (
        y3.reshape(H, W, ch5x5).astype(o_ref.dtype))

    # ---- branch4: separable 3x3/s1/p1 max-pool (-inf halo) + 1x1 conv ------
    padp_ref[...] = jnp.full(padp_ref.shape, -jnp.inf, padp_ref.dtype)
    padp_ref[1:H + 1, 1:W + 1, :] = x
    pp = padp_ref[...]
    rowm = jnp.maximum(jnp.maximum(pp[:, 0:W, :], pp[:, 1:W + 1, :]),
                       pp[:, 2:W + 2, :])                 # (H+2, W, Cin)
    pooled = jnp.maximum(jnp.maximum(rowm[0:H], rowm[1:H + 1]),
                         rowm[2:H + 2])                   # (H, W, Cin)
    y4 = jnp.dot(pooled.reshape(M, Cin).astype(jnp.bfloat16), w4_ref[...],
                 preferred_element_type=jnp.float32)
    y4 = y4 * s4_ref[...] + t4_ref[...]
    off += ch5x5
    o_ref[0, :, :, off:off + pool_proj] = (
        y4.reshape(H, W, pool_proj).astype(o_ref.dtype))


# --------------------------------------------------------------------------
# Wrapper
# --------------------------------------------------------------------------
def inception_forward(x_nchw, params):
    # layout: NCHW at the boundary (PyTorch convention), NHWC inside.
    x = jnp.transpose(x_nchw, (0, 2, 3, 1))
    N, H, W, Cin = x.shape

    b1, b2a, b2b = params["b1"], params["b2a"], params["b2b"]
    b3a, b3b, b4 = params["b3a"], params["b3b"], params["b4"]

    ch1x1 = b1["w_mm"].shape[1]
    ch3x3red = b2a["w_mm"].shape[1]
    ch3x3 = b2b["w_mm"].shape[1]
    ch5x5red = b3a["w_mm"].shape[1]
    ch5x5 = b3b["w_mm"].shape[1]
    pool_proj = b4["w_mm"].shape[1]
    cf = ch1x1 + ch3x3red + ch5x5red
    ctot = ch1x1 + ch3x3 + ch5x5 + pool_proj

    # fused shared-input 1x1 weights / folded BN params (b1 | b2a | b3a)
    w1 = jnp.concatenate([b1["w_mm"], b2a["w_mm"], b3a["w_mm"]],
                         axis=1).astype(jnp.bfloat16)
    s1 = jnp.concatenate([b1["scale"], b2a["scale"], b3a["scale"]]).reshape(1, cf)
    t1 = jnp.concatenate([b1["shift"], b2a["shift"], b3a["shift"]]).reshape(1, cf)

    w2 = b2b["w_mm"].astype(jnp.bfloat16)
    s2 = b2b["scale"].reshape(1, ch3x3)
    t2 = b2b["shift"].reshape(1, ch3x3)
    w3 = b3b["w_mm"].astype(jnp.bfloat16)
    s3 = b3b["scale"].reshape(1, ch5x5)
    t3 = b3b["shift"].reshape(1, ch5x5)
    w4 = b4["w_mm"].astype(jnp.bfloat16)
    s4 = b4["scale"].reshape(1, pool_proj)
    t4 = b4["shift"].reshape(1, pool_proj)

    kernel = functools.partial(
        _inception_kernel,
        ch1x1=ch1x1, ch3x3red=ch3x3red, ch3x3=ch3x3,
        ch5x5red=ch5x5red, ch5x5=ch5x5, pool_proj=pool_proj)

    resident = lambda n: (0, 0)   # weights / scales stay resident in VMEM

    grid_spec = pltpu.PrefetchScalarGridSpec(
        num_scalar_prefetch=0,
        grid=(N,),
        in_specs=[
            pl.BlockSpec((1, H, W, Cin), lambda n: (n, 0, 0, 0)),
            pl.BlockSpec((Cin, cf), resident),
            pl.BlockSpec((1, cf), resident),
            pl.BlockSpec((1, cf), resident),
            pl.BlockSpec((9 * ch3x3red, ch3x3), resident),
            pl.BlockSpec((1, ch3x3), resident),
            pl.BlockSpec((1, ch3x3), resident),
            pl.BlockSpec((9 * ch5x5red, ch5x5), resident),
            pl.BlockSpec((1, ch5x5), resident),
            pl.BlockSpec((1, ch5x5), resident),
            pl.BlockSpec((Cin, pool_proj), resident),
            pl.BlockSpec((1, pool_proj), resident),
            pl.BlockSpec((1, pool_proj), resident),
        ],
        out_specs=pl.BlockSpec((1, H, W, ctot), lambda n: (n, 0, 0, 0)),
        scratch_shapes=[
            pltpu.VMEM((H + 2, W + 2, ch3x3red), jnp.float32),   # pad2
            pltpu.VMEM((H + 2, W + 2, ch5x5red), jnp.float32),   # pad3
            pltpu.VMEM((H + 2, W + 2, Cin), jnp.float32),        # pool pad
            pltpu.VMEM((H * W, 9 * ch3x3red), jnp.float32),      # im2col b2
            pltpu.VMEM((H * W, 9 * ch5x5red), jnp.float32),      # im2col b3
        ],
    )

    m_total = N * H * W
    flops = 2 * m_total * (Cin * cf
                           + 9 * ch3x3red * ch3x3
                           + 9 * ch5x5red * ch5x5
                           + Cin * pool_proj)
    bytes_accessed = (N * H * W * Cin * 4 + N * H * W * ctot * 4
                      + 2 * (w1.size + w2.size + w3.size + w4.size)
                      + 4 * 2 * (cf + ch3x3 + ch5x5 + pool_proj))

    out_nhwc = pl.pallas_call(
        kernel,
        out_shape=jax.ShapeDtypeStruct((N, H, W, ctot), x.dtype),
        grid_spec=grid_spec,
        compiler_params=pltpu.CompilerParams(
            dimension_semantics=("parallel",),
            vmem_limit_bytes=48 * 1024 * 1024),
        cost_estimate=pl.CostEstimate(flops=int(flops), transcendentals=0,
                                      bytes_accessed=int(bytes_accessed)),
    )(x, w1, s1, t1, w2, s2, t2, w3, s3, t3, w4, s4, t4)

    # out_quant (QuantIdentity) is identity in float semantics.
    return jnp.transpose(out_nhwc, (0, 3, 1, 2))


# --------------------------------------------------------------------------
# Deterministic parameter setup (BasicConv2d: conv(bias) + BatchNorm2d eval)
# --------------------------------------------------------------------------
def make_conv_bn_params(key, cin, cout, k):
    kw_, kb, kg, kbe, km, kv = jax.random.split(key, 6)
    w = jax.random.normal(kw_, (cout, cin, k, k), jnp.float32) / np.sqrt(cin * k * k)
    bias = jax.random.normal(kb, (cout,), jnp.float32) * 0.1
    gamma = jax.random.uniform(kg, (cout,), jnp.float32, 0.5, 1.5)
    beta = jax.random.normal(kbe, (cout,), jnp.float32) * 0.1
    mean = jax.random.normal(km, (cout,), jnp.float32) * 0.1
    var = jax.random.uniform(kv, (cout,), jnp.float32, 0.5, 1.5)
    scale = gamma / jnp.sqrt(var + BN_EPS)
    shift = beta - mean * scale + bias * scale          # BN + conv bias folded
    w_hwio = jnp.transpose(w, (2, 3, 1, 0))             # (k, k, cin, cout)
    w_mm = w_hwio.reshape(k * k * cin, cout)            # rows ordered (ky, kx, ci)
    return dict(w_hwio=w_hwio, w_mm=w_mm, scale=scale, shift=shift)


def init_inception_params(key, in_channels, ch1x1, ch3x3red, ch3x3,
                          ch5x5red, ch5x5, pool_proj):
    ks = jax.random.split(key, 6)
    return {
        "b1":  make_conv_bn_params(ks[0], in_channels, ch1x1, 1),
        "b2a": make_conv_bn_params(ks[1], in_channels, ch3x3red, 1),
        "b2b": make_conv_bn_params(ks[2], ch3x3red, ch3x3, 3),
        "b3a": make_conv_bn_params(ks[3], in_channels, ch5x5red, 1),
        "b3b": make_conv_bn_params(ks[4], ch5x5red, ch5x5, 3),
        "b4":  make_conv_bn_params(ks[5], in_channels, pool_proj, 1),
    }


# --------------------------------------------------------------------------
# Pure-JAX reference (for correctness check)
# --------------------------------------------------------------------------
def _ref_conv_bn(x_nhwc, p, relu, padding):
    y = lax.conv_general_dilated(
        x_nhwc, p["w_hwio"], window_strides=(1, 1), padding=padding,
        dimension_numbers=("NHWC", "HWIO", "NHWC"),
        precision=lax.Precision.HIGHEST)
    y = y * p["scale"] + p["shift"]
    if relu:
        y = jnp.maximum(y, 0.0)
    return y


def inception_reference(x_nchw, params):
    x = jnp.transpose(x_nchw, (0, 2, 3, 1))
    b1 = _ref_conv_bn(x, params["b1"], False, "VALID")
    b2 = _ref_conv_bn(_ref_conv_bn(x, params["b2a"], True, "VALID"),
                      params["b2b"], False, "SAME")
    b3 = _ref_conv_bn(_ref_conv_bn(x, params["b3a"], True, "VALID"),
                      params["b3b"], False, "SAME")
    pooled = lax.reduce_window(x, -jnp.inf, lax.max,
                               window_dimensions=(1, 3, 3, 1),
                               window_strides=(1, 1, 1, 1),
                               padding=((0, 0), (1, 1), (1, 1), (0, 0)))
    b4 = _ref_conv_bn(pooled, params["b4"], False, "VALID")
    out = jnp.concatenate([b1, b2, b3, b4], axis=-1)
    return jnp.transpose(out, (0, 3, 1, 2))


# --------------------------------------------------------------------------
if __name__ == "__main__":
    key = jax.random.PRNGKey(0)
    k_x, k_p = jax.random.split(key)

    N, C, H, W = 2, 8, 16, 16
    ch1x1, ch3x3red, ch3x3, ch5x5red, ch5x5, pool_proj = 16, 8, 16, 8, 16, 16

    x = jax.random.normal(k_x, (N, C, H, W), jnp.float32)
    params = init_inception_params(k_p, C, ch1x1, ch3x3red, ch3x3,
                                   ch5x5red, ch5x5, pool_proj)

    out = jax.jit(inception_forward)(x, params)
    out = jax.block_until_ready(out)

    assert out.shape == (N, ch1x1 + ch3x3 + ch5x5 + pool_proj, H, W), out.shape

    ref = inception_reference(x, params)
    np.testing.assert_allclose(np.asarray(out), np.asarray(ref),
                               rtol=2e-2, atol=3e-2)

    print("KERNEL_OK")
</pallas_src>

<mosaic_0001>
module attributes {stable_mosaic.version = 11 : i64} {
  func.func @_inception_kernel(%arg0: i32, %arg1: memref<1x16x16x8xf32, #tpu.memory_space<vmem>>, %arg2: memref<8x32xbf16, #tpu.memory_space<vmem>>, %arg3: memref<1x32xf32, #tpu.memory_space<vmem>>, %arg4: memref<1x32xf32, #tpu.memory_space<vmem>>, %arg5: memref<72x16xbf16, #tpu.memory_space<vmem>>, %arg6: memref<1x16xf32, #tpu.memory_space<vmem>>, %arg7: memref<1x16xf32, #tpu.memory_space<vmem>>, %arg8: memref<72x16xbf16, #tpu.memory_space<vmem>>, %arg9: memref<1x16xf32, #tpu.memory_space<vmem>>, %arg10: memref<1x16xf32, #tpu.memory_space<vmem>>, %arg11: memref<8x16xbf16, #tpu.memory_space<vmem>>, %arg12: memref<1x16xf32, #tpu.memory_space<vmem>>, %arg13: memref<1x16xf32, #tpu.memory_space<vmem>>, %arg14: memref<1x16x16x64xf32, #tpu.memory_space<vmem>>, %arg15: memref<18x18x8xf32, #tpu.memory_space<vmem>>, %arg16: memref<18x18x8xf32, #tpu.memory_space<vmem>>, %arg17: memref<18x18x8xf32, #tpu.memory_space<vmem>>, %arg18: memref<256x72xf32, #tpu.memory_space<vmem>>, %arg19: memref<256x72xf32, #tpu.memory_space<vmem>>) attributes {dimension_semantics = [#tpu.dimension_semantics<parallel>], iteration_bounds = array<i64: 2>, scalar_prefetch = 0 : i64, scratch_operands = 5 : i64, tpu.core_type = #tpu.core_type<tc>, window_params = [{transform_indices = @transform_0, window_bounds = array<i64: 1, 16, 16, 8>}, {pipeline_mode = #tpu.pipeline_mode<synchronous>, transform_indices = @transform_1, window_bounds = array<i64: 8, 32>}, {pipeline_mode = #tpu.pipeline_mode<synchronous>, transform_indices = @transform_2, window_bounds = array<i64: 1, 32>}, {pipeline_mode = #tpu.pipeline_mode<synchronous>, transform_indices = @transform_3, window_bounds = array<i64: 1, 32>}, {pipeline_mode = #tpu.pipeline_mode<synchronous>, transform_indices = @transform_4, window_bounds = array<i64: 72, 16>}, {pipeline_mode = #tpu.pipeline_mode<synchronous>, transform_indices = @transform_5, window_bounds = array<i64: 1, 16>}, {pipeline_mode = #tpu.pipeline_mode<synchronous>, transform_indices = @transform_6, window_bounds = array<i64: 1, 16>}, {pipeline_mode = #tpu.pipeline_mode<synchronous>, transform_indices = @transform_7, window_bounds = array<i64: 72, 16>}, {pipeline_mode = #tpu.pipeline_mode<synchronous>, transform_indices = @transform_8, window_bounds = array<i64: 1, 16>}, {pipeline_mode = #tpu.pipeline_mode<synchronous>, transform_indices = @transform_9, window_bounds = array<i64: 1, 16>}, {pipeline_mode = #tpu.pipeline_mode<synchronous>, transform_indices = @transform_10, window_bounds = array<i64: 8, 16>}, {pipeline_mode = #tpu.pipeline_mode<synchronous>, transform_indices = @transform_11, window_bounds = array<i64: 1, 16>}, {pipeline_mode = #tpu.pipeline_mode<synchronous>, transform_indices = @transform_12, window_bounds = array<i64: 1, 16>}, {transform_indices = @transform_13, window_bounds = array<i64: 1, 16, 16, 64>}]} {
    %c0 = arith.constant 0 : index
    %c0_0 = arith.constant 0 : index
    %c0_1 = arith.constant 0 : index
    %c0_2 = arith.constant 0 : index
    %0 = vector.load %arg1[%c0, %c0_0, %c0_1, %c0_2] : memref<1x16x16x8xf32, #tpu.memory_space<vmem>>, vector<1x16x16x8xf32>
    %1 = vector.shape_cast %0 : vector<1x16x16x8xf32> to vector<16x16x8xf32>
    %2 = vector.shape_cast %1 : vector<16x16x8xf32> to vector<256x8xf32>
    %3 = arith.truncf %2 : vector<256x8xf32> to vector<256x8xbf16>
    %c0_3 = arith.constant 0 : index
    %c0_4 = arith.constant 0 : index
    %4 = vector.load %arg2[%c0_3, %c0_4] : memref<8x32xbf16, #tpu.memory_space<vmem>>, vector<8x32xbf16>
    %cst = arith.constant dense<0.000000e+00> : vector<256x32xf32>
    %5 = tpu.matmul %3, %4, %cst {dimension_numbers = #tpu.dot_dimension_numbers<[1], [0], [0], [1], [0, 0, 1, 1], [], []>} : vector<256x8xbf16>, vector<8x32xbf16>, vector<256x32xf32> -> vector<256x32xf32>
    %c0_5 = arith.constant 0 : index
    %c0_6 = arith.constant 0 : index
    %6 = vector.load %arg3[%c0_5, %c0_6] : memref<1x32xf32, #tpu.memory_space<vmem>>, vector<1x32xf32>
    %7 = vector.broadcast %6 : vector<1x32xf32> to vector<256x32xf32>
    %8 = arith.mulf %5, %7 : vector<256x32xf32>
    %c0_7 = arith.constant 0 : index
    %c0_8 = arith.constant 0 : index
    %9 = vector.load %arg4[%c0_7, %c0_8] : memref<1x32xf32, #tpu.memory_space<vmem>>, vector<1x32xf32>
    %10 = vector.broadcast %9 : vector<1x32xf32> to vector<256x32xf32>
    %11 = arith.addf %8, %10 : vector<256x32xf32>
    %12 = vector.extract_strided_slice %11 {offsets = [0, 0], sizes = [256, 16], strides = [1, 1]} : vector<256x32xf32> to vector<256x16xf32>
    %13 = vector.shape_cast %12 : vector<256x16xf32> to vector<16x16x16xf32>
    %c0_9 = arith.constant 0 : index
    %c0_10 = arith.constant 0 : index
    %c0_11 = arith.constant 0 : index
    %c0_12 = arith.constant 0 : index
    %14 = vector.load %arg14[%c0_9, %c0_10, %c0_11, %c0_12] : memref<1x16x16x64xf32, #tpu.memory_space<vmem>>, vector<1x16x16x16xf32>
    %15 = vector.shape_cast %14 : vector<1x16x16x16xf32> to vector<16x16x16xf32>
    %16 = vector.shape_cast %13 : vector<16x16x16xf32> to vector<1x16x16x16xf32>
    tpu.vector_store %arg14[%c0_9, %c0_10, %c0_11, %c0_12], %16 {strides = array<i32>} : memref<1x16x16x64xf32, #tpu.memory_space<vmem>>, vector<1x16x16x16xf32>,
    %17 = vector.extract_strided_slice %11 {offsets = [0, 16], sizes = [256, 8], strides = [1, 1]} : vector<256x32xf32> to vector<256x8xf32>
    %cst_13 = arith.constant 0.000000e+00 : f32
    %18 = vector.broadcast %cst_13 : f32 to vector<256x8xf32>
    %19 = arith.maximumf %17, %18 : vector<256x8xf32>
    %20 = vector.extract_strided_slice %11 {offsets = [0, 24], sizes = [256, 8], strides = [1, 1]} : vector<256x32xf32> to vector<256x8xf32>
    %cst_14 = arith.constant 0.000000e+00 : f32
    %21 = vector.broadcast %cst_14 : f32 to vector<256x8xf32>
    %22 = arith.maximumf %20, %21 : vector<256x8xf32>
    %cst_15 = arith.constant 0.000000e+00 : f32
    %23 = vector.broadcast %cst_15 : f32 to vector<18x18x8xf32>
    %c0_16 = arith.constant 0 : index
    %c0_17 = arith.constant 0 : index
    %c0_18 = arith.constant 0 : index
    %24 = vector.load %arg15[%c0_16, %c0_17, %c0_18] : memref<18x18x8xf32, #tpu.memory_space<vmem>>, vector<18x18x8xf32>
    tpu.vector_store %arg15[%c0_16, %c0_17, %c0_18], %23 {strides = array<i32>} : memref<18x18x8xf32, #tpu.memory_space<vmem>>, vector<18x18x8xf32>,
    %cst_19 = arith.constant 0.000000e+00 : f32
    %25 = vector.broadcast %cst_19 : f32 to vector<18x18x8xf32>
    %c0_20 = arith.constant 0 : index
    %c0_21 = arith.constant 0 : index
    %c0_22 = arith.constant 0 : index
    %26 = vector.load %arg16[%c0_20, %c0_21, %c0_22] : memref<18x18x8xf32, #tpu.memory_space<vmem>>, vector<18x18x8xf32>
    tpu.vector_store %arg16[%c0_20, %c0_21, %c0_22], %25 {strides = array<i32>} : memref<18x18x8xf32, #tpu.memory_space<vmem>>, vector<18x18x8xf32>,
    %27 = vector.shape_cast %19 : vector<256x8xf32> to vector<16x16x8xf32>
    %c1 = arith.constant 1 : index
    %c1_23 = arith.constant 1 : index
    %c0_24 = arith.constant 0 : index
    %28 = vector.load %arg15[%c1, %c1_23, %c0_24] : memref<18x18x8xf32, #tpu.memory_space<vmem>>, vector<16x16x8xf32>
    tpu.vector_store %arg15[%c1, %c1_23, %c0_24], %27 {strides = array<i32>} : memref<18x18x8xf32, #tpu.memory_space<vmem>>, vector<16x16x8xf32>,
    %29 = vector.shape_cast %22 : vector<256x8xf32> to vector<16x16x8xf32>
    %c1_25 = arith.constant 1 : index
    %c1_26 = arith.constant 1 : index
    %c0_27 = arith.constant 0 : index
    %30 = vector.load %arg16[%c1_25, %c1_26, %c0_27] : memref<18x18x8xf32, #tpu.memory_space<vmem>>, vector<16x16x8xf32>
    tpu.vector_store %arg16[%c1_25, %c1_26, %c0_27], %29 {strides = array<i32>} : memref<18x18x8xf32, #tpu.memory_space<vmem>>, vector<16x16x8xf32>,
    %c0_28 = arith.constant 0 : index
    %c0_29 = arith.constant 0 : index
    %c0_30 = arith.constant 0 : index
    %31 = vector.load %arg15[%c0_28, %c0_29, %c0_30] : memref<18x18x8xf32, #tpu.memory_space<vmem>>, vector<18x18x8xf32>
    %c0_31 = arith.constant 0 : index
    %c0_32 = arith.constant 0 : index
    %c0_33 = arith.constant 0 : index
    %32 = vector.load %arg16[%c0_31, %c0_32, %c0_33] : memref<18x18x8xf32, #tpu.memory_space<vmem>>, vector<18x18x8xf32>
    %33 = vector.extract_strided_slice %31 {offsets = [0, 0, 0], sizes = [16, 16, 8], strides = [1, 1, 1]} : vector<18x18x8xf32> to vector<16x16x8xf32>
    %34 = vector.shape_cast %33 : vector<16x16x8xf32> to vector<256x8xf32>
    %c0_34 = arith.constant 0 : index
    %c0_35 = arith.constant 0 : index
    %35 = vector.load %arg18[%c0_34, %c0_35] : memref<256x72xf32, #tpu.memory_space<vmem>>, vector<256x8xf32>
    tpu.vector_store %arg18[%c0_34, %c0_35], %34 {strides = array<i32>} : memref<256x72xf32, #tpu.memory_space<vmem>>, vector<256x8xf32>,
    %36 = vector.extract_strided_slice %32 {offsets = [0, 0, 0], sizes = [16, 16, 8], strides = [1, 1, 1]} : vector<18x18x8xf32> to vector<16x16x8xf32>
    %37 = vector.shape_cast %36 : vector<16x16x8xf32> to vector<256x8xf32>
    %c0_36 = arith.constant 0 : index
    %c0_37 = arith.constant 0 : index
    %38 = vector.load %arg19[%c0_36, %c0_37] : memref<256x72xf32, #tpu.memory_space<vmem>>, vector<256x8xf32>
    tpu.vector_store %arg19[%c0_36, %c0_37], %37 {strides = array<i32>} : memref<256x72xf32, #tpu.memory_space<vmem>>, vector<256x8xf32>,
    %39 = vector.extract_strided_slice %31 {offsets = [0, 1, 0], sizes = [16, 16, 8], strides = [1, 1, 1]} : vector<18x18x8xf32> to vector<16x16x8xf32>
    %40 = vector.shape_cast %39 : vector<16x16x8xf32> to vector<256x8xf32>
    %c0_38 = arith.constant 0 : index
    %c8 = arith.constant 8 : index
    %41 = vector.load %arg18[%c0_38, %c8] : memref<256x72xf32, #tpu.memory_space<vmem>>, vector<256x8xf32>
    tpu.vector_store %arg18[%c0_38, %c8], %40 {strides = array<i32>} : memref<256x72xf32, #tpu.memory_space<vmem>>, vector<256x8xf32>,
    %42 = vector.extract_strided_slice %32 {offsets = [0, 1, 0], sizes = [16, 16, 8], strides = [1, 1, 1]} : vector<18x18x8xf32> to vector<16x16x8xf32>
    %43 = vector.shape_cast %42 : vector<16x16x8xf32> to vector<256x8xf32>
    %c0_39 = arith.constant 0 : index
    %c8_40 = arith.constant 8 : index
    %44 = vector.load %arg19[%c0_39, %c8_40] : memref<256x72xf32, #tpu.memory_space<vmem>>, vector<256x8xf32>
    tpu.vector_store %arg19[%c0_39, %c8_40], %43 {strides = array<i32>} : memref<256x72xf32, #tpu.memory_space<vmem>>, vector<256x8xf32>,
    %45 = vector.extract_strided_slice %31 {offsets = [0, 2, 0], sizes = [16, 16, 8], strides = [1, 1, 1]} : vector<18x18x8xf32> to vector<16x16x8xf32>
    %46 = vector.shape_cast %45 : vector<16x16x8xf32> to vector<256x8xf32>
    %c0_41 = arith.constant 0 : index
    %c16 = arith.constant 16 : index
    %47 = vector.load %arg18[%c0_41, %c16] : memref<256x72xf32, #tpu.memory_space<vmem>>, vector<256x8xf32>
    tpu.vector_store %arg18[%c0_41, %c16], %46 {strides = array<i32>} : memref<256x72xf32, #tpu.memory_space<vmem>>, vector<256x8xf32>,
    %48 = vector.extract_strided_slice %32 {offsets = [0, 2, 0], sizes = [16, 16, 8], strides = [1, 1, 1]} : vector<18x18x8xf32> to vector<16x16x8xf32>
    %49 = vector.shape_cast %48 : vector<16x16x8xf32> to vector<256x8xf32>
    %c0_42 = arith.constant 0 : index
    %c16_43 = arith.constant 16 : index
    %50 = vector.load %arg19[%c0_42, %c16_43] : memref<256x72xf32, #tpu.memory_space<vmem>>, vector<256x8xf32>
    tpu.vector_store %arg19[%c0_42, %c16_43], %49 {strides = array<i32>} : memref<256x72xf32, #tpu.memory_space<vmem>>, vector<256x8xf32>,
    %51 = vector.extract_strided_slice %31 {offsets = [1, 0, 0], sizes = [16, 16, 8], strides = [1, 1, 1]} : vector<18x18x8xf32> to vector<16x16x8xf32>
    %52 = vector.shape_cast %51 : vector<16x16x8xf32> to vector<256x8xf32>
    %c0_44 = arith.constant 0 : index
    %c24 = arith.constant 24 : index
    %53 = vector.load %arg18[%c0_44, %c24] : memref<256x72xf32, #tpu.memory_space<vmem>>, vector<256x8xf32>
    tpu.vector_store %arg18[%c0_44, %c24], %52 {strides = array<i32>} : memref<256x72xf32, #tpu.memory_space<vmem>>, vector<256x8xf32>,
    %54 = vector.extract_strided_slice %32 {offsets = [1, 0, 0], sizes = [16, 16, 8], strides = [1, 1, 1]} : vector<18x18x8xf32> to vector<16x16x8xf32>
    %55 = vector.shape_cast %54 : vector<16x16x8xf32> to vector<256x8xf32>
    %c0_45 = arith.constant 0 : index
    %c24_46 = arith.constant 24 : index
    %56 = vector.load %arg19[%c0_45, %c24_46] : memref<256x72xf32, #tpu.memory_space<vmem>>, vector<256x8xf32>
    tpu.vector_store %arg19[%c0_45, %c24_46], %55 {strides = array<i32>} : memref<256x72xf32, #tpu.memory_space<vmem>>, vector<256x8xf32>,
    %57 = vector.extract_strided_slice %31 {offsets = [1, 1, 0], sizes = [16, 16, 8], strides = [1, 1, 1]} : vector<18x18x8xf32> to vector<16x16x8xf32>
    %58 = vector.shape_cast %57 : vector<16x16x8xf32> to vector<256x8xf32>
    %c0_47 = arith.constant 0 : index
    %c32 = arith.constant 32 : index
    %59 = vector.load %arg18[%c0_47, %c32] : memref<256x72xf32, #tpu.memory_space<vmem>>, vector<256x8xf32>
    tpu.vector_store %arg18[%c0_47, %c32], %58 {strides = array<i32>} : memref<256x72xf32, #tpu.memory_space<vmem>>, vector<256x8xf32>,
    %60 = vector.extract_strided_slice %32 {offsets = [1, 1, 0], sizes = [16, 16, 8], strides = [1, 1, 1]} : vector<18x18x8xf32> to vector<16x16x8xf32>
    %61 = vector.shape_cast %60 : vector<16x16x8xf32> to vector<256x8xf32>
    %c0_48 = arith.constant 0 : index
    %c32_49 = arith.constant 32 : index
    %62 = vector.load %arg19[%c0_48, %c32_49] : memref<256x72xf32, #tpu.memory_space<vmem>>, vector<256x8xf32>
    tpu.vector_store %arg19[%c0_48, %c32_49], %61 {strides = array<i32>} : memref<256x72xf32, #tpu.memory_space<vmem>>, vector<256x8xf32>,
    %63 = vector.extract_strided_slice %31 {offsets = [1, 2, 0], sizes = [16, 16, 8], strides = [1, 1, 1]} : vector<18x18x8xf32> to vector<16x16x8xf32>
    %64 = vector.shape_cast %63 : vector<16x16x8xf32> to vector<256x8xf32>
    %c0_50 = arith.constant 0 : index
    %c40 = arith.constant 40 : index
    %65 = vector.load %arg18[%c0_50, %c40] : memref<256x72xf32, #tpu.memory_space<vmem>>, vector<256x8xf32>
    tpu.vector_store %arg18[%c0_50, %c40], %64 {strides = array<i32>} : memref<256x72xf32, #tpu.memory_space<vmem>>, vector<256x8xf32>,
    %66 = vector.extract_strided_slice %32 {offsets = [1, 2, 0], sizes = [16, 16, 8], strides = [1, 1, 1]} : vector<18x18x8xf32> to vector<16x16x8xf32>
    %67 = vector.shape_cast %66 : vector<16x16x8xf32> to vector<256x8xf32>
    %c0_51 = arith.constant 0 : index
    %c40_52 = arith.constant 40 : index
    %68 = vector.load %arg19[%c0_51, %c40_52] : memref<256x72xf32, #tpu.memory_space<vmem>>, vector<256x8xf32>
    tpu.vector_store %arg19[%c0_51, %c40_52], %67 {strides = array<i32>} : memref<256x72xf32, #tpu.memory_space<vmem>>, vector<256x8xf32>,
    %69 = vector.extract_strided_slice %31 {offsets = [2, 0, 0], sizes = [16, 16, 8], strides = [1, 1, 1]} : vector<18x18x8xf32> to vector<16x16x8xf32>
    %70 = vector.shape_cast %69 : vector<16x16x8xf32> to vector<256x8xf32>
    %c0_53 = arith.constant 0 : index
    %c48 = arith.constant 48 : index
    %71 = vector.load %arg18[%c0_53, %c48] : memref<256x72xf32, #tpu.memory_space<vmem>>, vector<256x8xf32>
    tpu.vector_store %arg18[%c0_53, %c48], %70 {strides = array<i32>} : memref<256x72xf32, #tpu.memory_space<vmem>>, vector<256x8xf32>,
    %72 = vector.extract_strided_slice %32 {offsets = [2, 0, 0], sizes = [16, 16, 8], strides = [1, 1, 1]} : vector<18x18x8xf32> to vector<16x16x8xf32>
    %73 = vector.shape_cast %72 : vector<16x16x8xf32> to vector<256x8xf32>
    %c0_54 = arith.constant 0 : index
    %c48_55 = arith.constant 48 : index
    %74 = vector.load %arg19[%c0_54, %c48_55] : memref<256x72xf32, #tpu.memory_space<vmem>>, vector<256x8xf32>
    tpu.vector_store %arg19[%c0_54, %c48_55], %73 {strides = array<i32>} : memref<256x72xf32, #tpu.memory_space<vmem>>, vector<256x8xf32>,
    %75 = vector.extract_strided_slice %31 {offsets = [2, 1, 0], sizes = [16, 16, 8], strides = [1, 1, 1]} : vector<18x18x8xf32> to vector<16x16x8xf32>
    %76 = vector.shape_cast %75 : vector<16x16x8xf32> to vector<256x8xf32>
    %c0_56 = arith.constant 0 : index
    %c56 = arith.constant 56 : index
    %77 = vector.load %arg18[%c0_56, %c56] : memref<256x72xf32, #tpu.memory_space<vmem>>, vector<256x8xf32>
    tpu.vector_store %arg18[%c0_56, %c56], %76 {strides = array<i32>} : memref<256x72xf32, #tpu.memory_space<vmem>>, vector<256x8xf32>,
    %78 = vector.extract_strided_slice %32 {offsets = [2, 1, 0], sizes = [16, 16, 8], strides = [1, 1, 1]} : vector<18x18x8xf32> to vector<16x16x8xf32>
    %79 = vector.shape_cast %78 : vector<16x16x8xf32> to vector<256x8xf32>
    %c0_57 = arith.constant 0 : index
    %c56_58 = arith.constant 56 : index
    %80 = vector.load %arg19[%c0_57, %c56_58] : memref<256x72xf32, #tpu.memory_space<vmem>>, vector<256x8xf32>
    tpu.vector_store %arg19[%c0_57, %c56_58], %79 {strides = array<i32>} : memref<256x72xf32, #tpu.memory_space<vmem>>, vector<256x8xf32>,
    %81 = vector.extract_strided_slice %31 {offsets = [2, 2, 0], sizes = [16, 16, 8], strides = [1, 1, 1]} : vector<18x18x8xf32> to vector<16x16x8xf32>
    %82 = vector.shape_cast %81 : vector<16x16x8xf32> to vector<256x8xf32>
    %c0_59 = arith.constant 0 : index
    %c64 = arith.constant 64 : index
    %83 = vector.load %arg18[%c0_59, %c64] : memref<256x72xf32, #tpu.memory_space<vmem>>, vector<256x8xf32>
    tpu.vector_store %arg18[%c0_59, %c64], %82 {strides = array<i32>} : memref<256x72xf32, #tpu.memory_space<vmem>>, vector<256x8xf32>,
    %84 = vector.extract_strided_slice %32 {offsets = [2, 2, 0], sizes = [16, 16, 8], strides = [1, 1, 1]} : vector<18x18x8xf32> to vector<16x16x8xf32>
    %85 = vector.shape_cast %84 : vector<16x16x8xf32> to vector<256x8xf32>
    %c0_60 = arith.constant 0 : index
    %c64_61 = arith.constant 64 : index
    %86 = vector.load %arg19[%c0_60, %c64_61] : memref<256x72xf32, #tpu.memory_space<vmem>>, vector<256x8xf32>
    tpu.vector_store %arg19[%c0_60, %c64_61], %85 {strides = array<i32>} : memref<256x72xf32, #tpu.memory_space<vmem>>, vector<256x8xf32>,
    %c0_62 = arith.constant 0 : index
    %c0_63 = arith.constant 0 : index
    %87 = vector.load %arg18[%c0_62, %c0_63] : memref<256x72xf32, #tpu.memory_space<vmem>>, vector<256x72xf32>
    %88 = arith.truncf %87 : vector<256x72xf32> to vector<256x72xbf16>
    %c0_64 = arith.constant 0 : index
    %c0_65 = arith.constant 0 : index
    %89 = vector.load %arg5[%c0_64, %c0_65] : memref<72x16xbf16, #tpu.memory_space<vmem>>, vector<72x16xbf16>
    %cst_66 = arith.constant dense<0.000000e+00> : vector<256x16xf32>
    %90 = tpu.matmul %88, %89, %cst_66 {dimension_numbers = #tpu.dot_dimension_numbers<[1], [0], [0], [1], [0, 0, 1, 1], [], []>} : vector<256x72xbf16>, vector<72x16xbf16>, vector<256x16xf32> -> vector<256x16xf32>
    %c0_67 = arith.constant 0 : index
    %c0_68 = arith.constant 0 : index
    %91 = vector.load %arg6[%c0_67, %c0_68] : memref<1x16xf32, #tpu.memory_space<vmem>>, vector<1x16xf32>
    %92 = vector.broadcast %91 : vector<1x16xf32> to vector<256x16xf32>
    %93 = arith.mulf %90, %92 : vector<256x16xf32>
    %c0_69 = arith.constant 0 : index
    %c0_70 = arith.constant 0 : index
    %94 = vector.load %arg7[%c0_69, %c0_70] : memref<1x16xf32, #tpu.memory_space<vmem>>, vector<1x16xf32>
    %95 = vector.broadcast %94 : vector<1x16xf32> to vector<256x16xf32>
    %96 = arith.addf %93, %95 : vector<256x16xf32>
    %97 = vector.shape_cast %96 : vector<256x16xf32> to vector<16x16x16xf32>
    %c0_71 = arith.constant 0 : index
    %c0_72 = arith.constant 0 : index
    %c0_73 = arith.constant 0 : index
    %c16_74 = arith.constant 16 : index
    %98 = vector.load %arg14[%c0_71, %c0_72, %c0_73, %c16_74] : memref<1x16x16x64xf32, #tpu.memory_space<vmem>>, vector<1x16x16x16xf32>
    %99 = vector.shape_cast %98 : vector<1x16x16x16xf32> to vector<16x16x16xf32>
    %100 = vector.shape_cast %97 : vector<16x16x16xf32> to vector<1x16x16x16xf32>
    tpu.vector_store %arg14[%c0_71, %c0_72, %c0_73, %c16_74], %100 {strides = array<i32>} : memref<1x16x16x64xf32, #tpu.memory_space<vmem>>, vector<1x16x16x16xf32>,
    %c0_75 = arith.constant 0 : index
    %c0_76 = arith.constant 0 : index
    %101 = vector.load %arg19[%c0_75, %c0_76] : memref<256x72xf32, #tpu.memory_space<vmem>>, vector<256x72xf32>
    %102 = arith.truncf %101 : vector<256x72xf32> to vector<256x72xbf16>
    %c0_77 = arith.constant 0 : index
    %c0_78 = arith.constant 0 : index
    %103 = vector.load %arg8[%c0_77, %c0_78] : memref<72x16xbf16, #tpu.memory_space<vmem>>, vector<72x16xbf16>
    %cst_79 = arith.constant dense<0.000000e+00> : vector<256x16xf32>
    %104 = tpu.matmul %102, %103, %cst_79 {dimension_numbers = #tpu.dot_dimension_numbers<[1], [0], [0], [1], [0, 0, 1, 1], [], []>} : vector<256x72xbf16>, vector<72x16xbf16>, vector<256x16xf32> -> vector<256x16xf32>
    %c0_80 = arith.constant 0 : index
    %c0_81 = arith.constant 0 : index
    %105 = vector.load %arg9[%c0_80, %c0_81] : memref<1x16xf32, #tpu.memory_space<vmem>>, vector<1x16xf32>
    %106 = vector.broadcast %105 : vector<1x16xf32> to vector<256x16xf32>
    %107 = arith.mulf %104, %106 : vector<256x16xf32>
    %c0_82 = arith.constant 0 : index
    %c0_83 = arith.constant 0 : index
    %108 = vector.load %arg10[%c0_82, %c0_83] : memref<1x16xf32, #tpu.memory_space<vmem>>, vector<1x16xf32>
    %109 = vector.broadcast %108 : vector<1x16xf32> to vector<256x16xf32>
    %110 = arith.addf %107, %109 : vector<256x16xf32>
    %111 = vector.shape_cast %110 : vector<256x16xf32> to vector<16x16x16xf32>
    %c0_84 = arith.constant 0 : index
    %c0_85 = arith.constant 0 : index
    %c0_86 = arith.constant 0 : index
    %c32_87 = arith.constant 32 : index
    %112 = vector.load %arg14[%c0_84, %c0_85, %c0_86, %c32_87] : memref<1x16x16x64xf32, #tpu.memory_space<vmem>>, vector<1x16x16x16xf32>
    %113 = vector.shape_cast %112 : vector<1x16x16x16xf32> to vector<16x16x16xf32>
    %114 = vector.shape_cast %111 : vector<16x16x16xf32> to vector<1x16x16x16xf32>
    tpu.vector_store %arg14[%c0_84, %c0_85, %c0_86, %c32_87], %114 {strides = array<i32>} : memref<1x16x16x64xf32, #tpu.memory_space<vmem>>, vector<1x16x16x16xf32>,
    %cst_88 = arith.constant 0xFF800000 : f32
    %115 = vector.broadcast %cst_88 : f32 to vector<18x18x8xf32>
    %c0_89 = arith.constant 0 : index
    %c0_90 = arith.constant 0 : index
    %c0_91 = arith.constant 0 : index
    %116 = vector.load %arg17[%c0_89, %c0_90, %c0_91] : memref<18x18x8xf32, #tpu.memory_space<vmem>>, vector<18x18x8xf32>
    tpu.vector_store %arg17[%c0_89, %c0_90, %c0_91], %115 {strides = array<i32>} : memref<18x18x8xf32, #tpu.memory_space<vmem>>, vector<18x18x8xf32>,
    %c1_92 = arith.constant 1 : index
    %c1_93 = arith.constant 1 : index
    %c0_94 = arith.constant 0 : index
    %117 = vector.load %arg17[%c1_92, %c1_93, %c0_94] : memref<18x18x8xf32, #tpu.memory_space<vmem>>, vector<16x16x8xf32>
    tpu.vector_store %arg17[%c1_92, %c1_93, %c0_94], %1 {strides = array<i32>} : memref<18x18x8xf32, #tpu.memory_space<vmem>>, vector<16x16x8xf32>,
    %c0_95 = arith.constant 0 : index
    %c0_96 = arith.constant 0 : index
    %c0_97 = arith.constant 0 : index
    %118 = vector.load %arg17[%c0_95, %c0_96, %c0_97] : memref<18x18x8xf32, #tpu.memory_space<vmem>>, vector<18x18x8xf32>
    %119 = vector.extract_strided_slice %118 {offsets = [0, 0, 0], sizes = [18, 16, 8], strides = [1, 1, 1]} : vector<18x18x8xf32> to vector<18x16x8xf32>
    %120 = vector.extract_strided_slice %118 {offsets = [0, 1, 0], sizes = [18, 16, 8], strides = [1, 1, 1]} : vector<18x18x8xf32> to vector<18x16x8xf32>
    %121 = arith.maximumf %119, %120 : vector<18x16x8xf32>
    %122 = vector.extract_strided_slice %118 {offsets = [0, 2, 0], sizes = [18, 16, 8], strides = [1, 1, 1]} : vector<18x18x8xf32> to vector<18x16x8xf32>
    %123 = arith.maximumf %121, %122 : vector<18x16x8xf32>
    %124 = vector.extract_strided_slice %123 {offsets = [0, 0, 0], sizes = [16, 16, 8], strides = [1, 1, 1]} : vector<18x16x8xf32> to vector<16x16x8xf32>
    %125 = vector.extract_strided_slice %123 {offsets = [1, 0, 0], sizes = [16, 16, 8], strides = [1, 1, 1]} : vector<18x16x8xf32> to vector<16x16x8xf32>
    %126 = arith.maximumf %124, %125 : vector<16x16x8xf32>
    %127 = vector.extract_strided_slice %123 {offsets = [2, 0, 0], sizes = [16, 16, 8], strides = [1, 1, 1]} : vector<18x16x8xf32> to vector<16x16x8xf32>
    %128 = arith.maximumf %126, %127 : vector<16x16x8xf32>
    %129 = vector.shape_cast %128 : vector<16x16x8xf32> to vector<256x8xf32>
    %130 = arith.truncf %129 : vector<256x8xf32> to vector<256x8xbf16>
    %c0_98 = arith.constant 0 : index
    %c0_99 = arith.constant 0 : index
    %131 = vector.load %arg11[%c0_98, %c0_99] : memref<8x16xbf16, #tpu.memory_space<vmem>>, vector<8x16xbf16>
    %cst_100 = arith.constant dense<0.000000e+00> : vector<256x16xf32>
    %132 = tpu.matmul %130, %131, %cst_100 {dimension_numbers = #tpu.dot_dimension_numbers<[1], [0], [0], [1], [0, 0, 1, 1], [], []>} : vector<256x8xbf16>, vector<8x16xbf16>, vector<256x16xf32> -> vector<256x16xf32>
    %c0_101 = arith.constant 0 : index
    %c0_102 = arith.constant 0 : index
    %133 = vector.load %arg12[%c0_101, %c0_102] : memref<1x16xf32, #tpu.memory_space<vmem>>, vector<1x16xf32>
    %134 = vector.broadcast %133 : vector<1x16xf32> to vector<256x16xf32>
    %135 = arith.mulf %132, %134 : vector<256x16xf32>
    %c0_103 = arith.constant 0 : index
    %c0_104 = arith.constant 0 : index
    %136 = vector.load %arg13[%c0_103, %c0_104] : memref<1x16xf32, #tpu.memory_space<vmem>>, vector<1x16xf32>
    %137 = vector.broadcast %136 : vector<1x16xf32> to vector<256x16xf32>
    %138 = arith.addf %135, %137 : vector<256x16xf32>
    %139 = vector.shape_cast %138 : vector<256x16xf32> to vector<16x16x16xf32>
    %c0_105 = arith.constant 0 : index
    %c0_106 = arith.constant 0 : index
    %c0_107 = arith.constant 0 : index
    %c48_108 = arith.constant 48 : index
    %140 = vector.load %arg14[%c0_105, %c0_106, %c0_107, %c48_108] : memref<1x16x16x64xf32, #tpu.memory_space<vmem>>, vector<1x16x16x16xf32>
    %141 = vector.shape_cast %140 : vector<1x16x16x16xf32> to vector<16x16x16xf32>
    %142 = vector.shape_cast %139 : vector<16x16x16xf32> to vector<1x16x16x16xf32>
    tpu.vector_store %arg14[%c0_105, %c0_106, %c0_107, %c48_108], %142 {strides = array<i32>} : memref<1x16x16x64xf32, #tpu.memory_space<vmem>>, vector<1x16x16x16xf32>,
    return
  }
  func.func @transform_0(%arg0: i32) -> (i32, i32, i32, i32) {
    %c0_i32 = arith.constant 0 : i32
    %c0_i32_0 = arith.constant 0 : i32
    %c0_i32_1 = arith.constant 0 : i32
    %c0_i32_2 = arith.constant 0 : i32
    return %arg0, %c0_i32, %c0_i32_0, %c0_i32_1 : i32, i32, i32, i32
  }
  func.func @transform_1(%arg0: i32) -> (i32, i32) {
    %c0_i32 = arith.constant 0 : i32
    %c0_i32_0 = arith.constant 0 : i32
    %c0_i32_1 = arith.constant 0 : i32
    return %c0_i32, %c0_i32_0 : i32, i32
  }
  func.func @transform_2(%arg0: i32) -> (i32, i32) {
    %c0_i32 = arith.constant 0 : i32
    %c0_i32_0 = arith.constant 0 : i32
    %c0_i32_1 = arith.constant 0 : i32
    return %c0_i32, %c0_i32_0 : i32, i32
  }
  func.func @transform_3(%arg0: i32) -> (i32, i32) {
    %c0_i32 = arith.constant 0 : i32
    %c0_i32_0 = arith.constant 0 : i32
    %c0_i32_1 = arith.constant 0 : i32
    return %c0_i32, %c0_i32_0 : i32, i32
  }
  func.func @transform_4(%arg0: i32) -> (i32, i32) {
    %c0_i32 = arith.constant 0 : i32
    %c0_i32_0 = arith.constant 0 : i32
    %c0_i32_1 = arith.constant 0 : i32
    return %c0_i32, %c0_i32_0 : i32, i32
  }
  func.func @transform_5(%arg0: i32) -> (i32, i32) {
    %c0_i32 = arith.constant 0 : i32
    %c0_i32_0 = arith.constant 0 : i32
    %c0_i32_1 = arith.constant 0 : i32
    return %c0_i32, %c0_i32_0 : i32, i32
  }
  func.func @transform_6(%arg0: i32) -> (i32, i32) {
    %c0_i32 = arith.constant 0 : i32
    %c0_i32_0 = arith.constant 0 : i32
    %c0_i32_1 = arith.constant 0 : i32
    return %c0_i32, %c0_i32_0 : i32, i32
  }
  func.func @transform_7(%arg0: i32) -> (i32, i32) {
    %c0_i32 = arith.constant 0 : i32
    %c0_i32_0 = arith.constant 0 : i32
    %c0_i32_1 = arith.constant 0 : i32
    return %c0_i32, %c0_i32_0 : i32, i32
  }
  func.func @transform_8(%arg0: i32) -> (i32, i32) {
    %c0_i32 = arith.constant 0 : i32
    %c0_i32_0 = arith.constant 0 : i32
    %c0_i32_1 = arith.constant 0 : i32
    return %c0_i32, %c0_i32_0 : i32, i32
  }
  func.func @transform_9(%arg0: i32) -> (i32, i32) {
    %c0_i32 = arith.constant 0 : i32
    %c0_i32_0 = arith.constant 0 : i32
    %c0_i32_1 = arith.constant 0 : i32
    return %c0_i32, %c0_i32_0 : i32, i32
  }
  func.func @transform_10(%arg0: i32) -> (i32, i32) {
    %c0_i32 = arith.constant 0 : i32
    %c0_i32_0 = arith.constant 0 : i32
    %c0_i32_1 = arith.constant 0 : i32
    return %c0_i32, %c0_i32_0 : i32, i32
  }
  func.func @transform_11(%arg0: i32) -> (i32, i32) {
    %c0_i32 = arith.constant 0 : i32
    %c0_i32_0 = arith.constant 0 : i32
    %c0_i32_1 = arith.constant 0 : i32
    return %c0_i32, %c0_i32_0 : i32, i32
  }
  func.func @transform_12(%arg0: i32) -> (i32, i32) {
    %c0_i32 = arith.constant 0 : i32
    %c0_i32_0 = arith.constant 0 : i32
    %c0_i32_1 = arith.constant 0 : i32
    return %c0_i32, %c0_i32_0 : i32, i32
  }
  func.func @transform_13(%arg0: i32) -> (i32, i32, i32, i32) {
    %c0_i32 = arith.constant 0 : i32
    %c0_i32_0 = arith.constant 0 : i32
    %c0_i32_1 = arith.constant 0 : i32
    %c0_i32_2 = arith.constant 0 : i32
    return %arg0, %c0_i32, %c0_i32_0, %c0_i32_1 : i32, i32, i32, i32
  }
}

</mosaic_0001>

<llo_original>
// kernel: inception_forward.1
$region0: #{inception_forward.1}
  #allocation0 [shape = 'u32[]', space=smem, size = 0x4, offset = 0x4, fixed_abs, tag = 'smem constant byte address 0x4 - core index']
  #allocation1 [shape = 'u32[144,128]{1,0:T(1,128)}', space=vmem, size = 0x12000, scoped, tag = 'internal scratch']
  #allocation2 [shape = 'f32[18,18,8]{2,1,0:T(8,128)}', space=vmem, size = 0x36000, scoped, tag = 'scratch operand']
  #allocation3 [shape = 'f32[18,18,8]{2,1,0:T(8,128)}', space=vmem, size = 0x36000, scoped, tag = 'scratch operand']
  #allocation4 [shape = 'f32[18,18,8]{2,1,0:T(8,128)}', space=vmem, size = 0x36000, scoped, tag = 'scratch operand']
  #allocation5 [shape = 'f32[256,72]{1,0:T(8,128)}', space=vmem, size = 0x20000, scoped, tag = 'scratch operand']
  #allocation6 [shape = 'f32[256,72]{1,0:T(8,128)}', space=vmem, size = 0x20000, scoped, tag = 'scratch operand']
  %s0 = inlined_call_operand.vmem [shape: f32[2,16,16,8], index: 0, kind: input, shape index: {}]
  %s1 = inlined_call_operand.vmem [shape: bf16[8,32], index: 1, kind: input, shape index: {}]
  %s2 = inlined_call_operand.vmem [shape: f32[1,32], index: 2, kind: input, shape index: {}]
  %s3 = inlined_call_operand.vmem [shape: f32[1,32], index: 3, kind: input, shape index: {}]
  %s4 = inlined_call_operand.vmem [shape: bf16[72,16], index: 4, kind: input, shape index: {}]
  %s5 = inlined_call_operand.vmem [shape: f32[1,16], index: 5, kind: input, shape index: {}]
  %s6 = inlined_call_operand.vmem [shape: f32[1,16], index: 6, kind: input, shape index: {}]
  %s7 = inlined_call_operand.vmem [shape: bf16[72,16], index: 7, kind: input, shape index: {}]
  %s8 = inlined_call_operand.vmem [shape: f32[1,16], index: 8, kind: input, shape index: {}]
  %s9 = inlined_call_operand.vmem [shape: f32[1,16], index: 9, kind: input, shape index: {}]
  %s10 = inlined_call_operand.vmem [shape: bf16[8,16], index: 10, kind: input, shape index: {}]
  %s11 = inlined_call_operand.vmem [shape: f32[1,16], index: 11, kind: input, shape index: {}]
  %s12 = inlined_call_operand.vmem [shape: f32[1,16], index: 12, kind: input, shape index: {}]
  %s13 = inlined_call_operand.hbm [shape: f32[2,16,16,64], index: 13, kind: output, shape index: {}]
  %s14 = sld [smem:[#allocation0]]
  $region85: #{inception_forward.1} parent=0
    _
  %s16 = ssub.s32 1, %s14
  %s17 = scalar_select 0, %s16, %s14
  $region1: #{inception_forward.1} parent=0
    #allocation7 [shape = 'u8[262144]{0}', space=vmem, size = 0x40000, scoped, tag = 'output window, operand 0']
    #allocation8 [shape = 's32[2]{0}', space=sflag, size = 0x8, scoped, tag = 'scoped memory for inception_forward.1']
    %18 = vsyncpa [#allocation8], 0
    %s19 = scalar_lea.sflag [#allocation8], 1
    %20 = vsyncpa %s19, 0
    loop: start=0, step=1, limit=4
    $region2: #{inception_forward.1} parent=1 // loop_pre_header
      _
    $region3: #{inception_forward.1} parent=1 // loop_header
      %s22 = sphi 0, %s26
      %p23 = scmp.ge.s32.totalorder %s22, 4
      %s32 = sphi 0, %s34
      %s35 = sphi 0, %s32
      %s36 = sphi 0, %s35
      %s52 = sphi 0, %s36
      %s56 = sphi 0, %s56
      %s58 = sphi 0, %s56
      %s59 = sphi 0, %s58
      %s73 = sphi 0, %s59
      %s77 = sphi 0, %s77
      %s79 = sphi 0, %s77
      %s80 = sphi 0, %s79
      %s94 = sphi 0, %s80
      %s98 = sphi 0, %s98
      %s100 = sphi 0, %s98
      %s101 = sphi 0, %s100
      %s115 = sphi 0, %s101
      %s119 = sphi 0, %s119
      %s121 = sphi 0, %s119
      %s122 = sphi 0, %s121
      %s136 = sphi 0, %s122
      %s140 = sphi 0, %s140
      %s142 = sphi 0, %s140
      %s143 = sphi 0, %s142
      %s157 = sphi 0, %s143
      %s161 = sphi 0, %s161
      %s163 = sphi 0, %s161
      %s164 = sphi 0, %s163
      %s178 = sphi 0, %s164
      %s182 = sphi 0, %s182
      %s184 = sphi 0, %s182
      %s185 = sphi 0, %s184
      %s199 = sphi 0, %s185
      %s203 = sphi 0, %s203
      %s205 = sphi 0, %s203
      %s206 = sphi 0, %s205
      %s220 = sphi 0, %s206
      %s224 = sphi 0, %s224
      %s226 = sphi 0, %s224
      %s227 = sphi 0, %s226
      %s241 = sphi 0, %s227
      %s245 = sphi 0, %s245
      %s247 = sphi 0, %s245
      %s248 = sphi 0, %s247
      %s262 = sphi 0, %s248
      %s266 = sphi 0, %s266
      %s268 = sphi 0, %s266
      %s269 = sphi 0, %s268
      %s283 = sphi 0, %s269
      %s287 = sphi 0, %s287
      %s289 = sphi 0, %s287
      %s290 = sphi 0, %s289
      %s304 = sphi 0, %s290
      %s310 = sphi 0, %s312
      %s313 = sphi 0, %s310
      %s314 = sphi 0, %s313
      %s330 = sphi 0, %s314
    $region4: #{inception_forward.1} parent=1 // loop_header_branch
      %25 = sbr.rel (%p23) target = $region8
    $region5: #{inception_forward.1} parent=1 // loop_body
      %s27 = ssub.s32 %s22, 1
      %s28 = ssub.s32 %s22, 2
      %s29 = sadd.s32 %s22, 1
      %s30 = ssub.s32 %s22, %s29
      %p31 = scmp.eq.s32.totalorder %s30, 0
      %s33 = sadd.s32 %s32, 1
      %s34 = scalar_select %p31, %s32, %s33
      %p37 = pneg %p31
      %p38 = scmp.eq.s32.totalorder %s22, 1
      %p39 = por %p37, %p38
      %p40 = scmp.ne.s32.totalorder %s32, %s35
      %p41 = scmp.eq.s32.totalorder %s22, 0
      %p42 = por %p40, %p41
      %p43 = scmp.ne.s32.totalorder %s32, %s35
      %p44 = scmp.eq.s32.totalorder %s27, 1
      %p45 = por %p43, %p44
      %p46 = scmp.ne.s32.totalorder %s35, %s36
      %p47 = scmp.eq.s32.totalorder %s27, 0
      %p48 = por %p46, %p47
      %p49 = scmp.ne.s32.totalorder %s35, %s36
      %p50 = scmp.eq.s32.totalorder %s28, 1
      %p51 = por %p49, %p50
      %p53 = scmp.ne.s32.totalorder %s36, %s52
      %p54 = scmp.eq.s32.totalorder %s28, 0
      %p55 = por %p53, %p54
      %s57 = sadd.s32 %s56, 1
      %p60 = scmp.eq.s32.totalorder %s22, 1
      %p61 = scmp.ne.s32.totalorder %s56, %s58
      %p62 = scmp.eq.s32.totalorder %s22, 0
      %p63 = por %p61, %p62
      %p64 = scmp.ne.s32.totalorder %s56, %s58
      %p65 = scmp.eq.s32.totalorder %s27, 1
      %p66 = por %p64, %p65
      %p67 = scmp.ne.s32.totalorder %s58, %s59
      %p68 = scmp.eq.s32.totalorder %s27, 0
      %p69 = por %p67, %p68
      %p70 = scmp.ne.s32.totalorder %s58, %s59
      %p71 = scmp.eq.s32.totalorder %s28, 1
      %p72 = por %p70, %p71
      %p74 = scmp.ne.s32.totalorder %s59, %s73
      %p75 = scmp.eq.s32.totalorder %s28, 0
      %p76 = por %p74, %p75
      %s78 = sadd.s32 %s77, 1
      %p81 = scmp.eq.s32.totalorder %s22, 1
      %p82 = scmp.ne.s32.totalorder %s77, %s79
      %p83 = scmp.eq.s32.totalorder %s22, 0
      %p84 = por %p82, %p83
      %p85 = scmp.ne.s32.totalorder %s77, %s79
      %p86 = scmp.eq.s32.totalorder %s27, 1
      %p87 = por %p85, %p86
      %p88 = scmp.ne.s32.totalorder %s79, %s80
      %p89 = scmp.eq.s32.totalorder %s27, 0
      %p90 = por %p88, %p89
      %p91 = scmp.ne.s32.totalorder %s79, %s80
      %p92 = scmp.eq.s32.totalorder %s28, 1
      %p93 = por %p91, %p92
      %p95 = scmp.ne.s32.totalorder %s80, %s94
      %p96 = scmp.eq.s32.totalorder %s28, 0
      %p97 = por %p95, %p96
      %s99 = sadd.s32 %s98, 1
      %p102 = scmp.eq.s32.totalorder %s22, 1
      %p103 = scmp.ne.s32.totalorder %s98, %s100
      %p104 = scmp.eq.s32.totalorder %s22, 0
      %p105 = por %p103, %p104
      %p106 = scmp.ne.s32.totalorder %s98, %s100
      %p107 = scmp.eq.s32.totalorder %s27, 1
      %p108 = por %p106, %p107
      %p109 = scmp.ne.s32.totalorder %s100, %s101
      %p110 = scmp.eq.s32.totalorder %s27, 0
      %p111 = por %p109, %p110
      %p112 = scmp.ne.s32.totalorder %s100, %s101
      %p113 = scmp.eq.s32.totalorder %s28, 1
      %p114 = por %p112, %p113
      %p116 = scmp.ne.s32.totalorder %s101, %s115
      %p117 = scmp.eq.s32.totalorder %s28, 0
      %p118 = por %p116, %p117
      %s120 = sadd.s32 %s119, 1
      %p123 = scmp.eq.s32.totalorder %s22, 1
      %p124 = scmp.ne.s32.totalorder %s119, %s121
      %p125 = scmp.eq.s32.totalorder %s22, 0
      %p126 = por %p124, %p125
      %p127 = scmp.ne.s32.totalorder %s119, %s121
      %p128 = scmp.eq.s32.totalorder %s27, 1
      %p129 = por %p127, %p128
      %p130 = scmp.ne.s32.totalorder %s121, %s122
      %p131 = scmp.eq.s32.totalorder %s27, 0
      %p132 = por %p130, %p131
      %p133 = scmp.ne.s32.totalorder %s121, %s122
      %p134 = scmp.eq.s32.totalorder %s28, 1
      %p135 = por %p133, %p134
      %p137 = scmp.ne.s32.totalorder %s122, %s136
      %p138 = scmp.eq.s32.totalorder %s28, 0
      %p139 = por %p137, %p138
      %s141 = sadd.s32 %s140, 1
      %p144 = scmp.eq.s32.totalorder %s22, 1
      %p145 = scmp.ne.s32.totalorder %s140, %s142
      %p146 = scmp.eq.s32.totalorder %s22, 0
      %p147 = por %p145, %p146
      %p148 = scmp.ne.s32.totalorder %s140, %s142
      %p149 = scmp.eq.s32.totalorder %s27, 1
      %p150 = por %p148, %p149
      %p151 = scmp.ne.s32.totalorder %s142, %s143
      %p152 = scmp.eq.s32.totalorder %s27, 0
      %p153 = por %p151, %p152
      %p154 = scmp.ne.s32.totalorder %s142, %s143
      %p155 = scmp.eq.s32.totalorder %s28, 1
      %p156 = por %p154, %p155
      %p158 = scmp.ne.s32.totalorder %s143, %s157
      %p159 = scmp.eq.s32.totalorder %s28, 0
      %p160 = por %p158, %p159
      %s162 = sadd.s32 %s161, 1
      %p165 = scmp.eq.s32.totalorder %s22, 1
      %p166 = scmp.ne.s32.totalorder %s161, %s163
      %p167 = scmp.eq.s32.totalorder %s22, 0
      %p168 = por %p166, %p167
      %p169 = scmp.ne.s32.totalorder %s161, %s163
      %p170 = scmp.eq.s32.totalorder %s27, 1
      %p171 = por %p169, %p170
      %p172 = scmp.ne.s32.totalorder %s163, %s164
      %p173 = scmp.eq.s32.totalorder %s27, 0
      %p174 = por %p172, %p173
      %p175 = scmp.ne.s32.totalorder %s163, %s164
      %p176 = scmp.eq.s32.totalorder %s28, 1
      %p177 = por %p175, %p176
      %p179 = scmp.ne.s32.totalorder %s164, %s178
      %p180 = scmp.eq.s32.totalorder %s28, 0
      %p181 = por %p179, %p180
      %s183 = sadd.s32 %s182, 1
      %p186 = scmp.eq.s32.totalorder %s22, 1
      %p187 = scmp.ne.s32.totalorder %s182, %s184
      %p188 = scmp.eq.s32.totalorder %s22, 0
      %p189 = por %p187, %p188
      %p190 = scmp.ne.s32.totalorder %s182, %s184
      %p191 = scmp.eq.s32.totalorder %s27, 1
      %p192 = por %p190, %p191
      %p193 = scmp.ne.s32.totalorder %s184, %s185
      %p194 = scmp.eq.s32.totalorder %s27, 0
      %p195 = por %p193, %p194
      %p196 = scmp.ne.s32.totalorder %s184, %s185
      %p197 = scmp.eq.s32.totalorder %s28, 1
      %p198 = por %p196, %p197
      %p200 = scmp.ne.s32.totalorder %s185, %s199
      %p201 = scmp.eq.s32.totalorder %s28, 0
      %p202 = por %p200, %p201
      %s204 = sadd.s32 %s203, 1
      %p207 = scmp.eq.s32.totalorder %s22, 1
      %p208 = scmp.ne.s32.totalorder %s203, %s205
      %p209 = scmp.eq.s32.totalorder %s22, 0
      %p210 = por %p208, %p209
      %p211 = scmp.ne.s32.totalorder %s203, %s205
      %p212 = scmp.eq.s32.totalorder %s27, 1
      %p213 = por %p211, %p212
      %p214 = scmp.ne.s32.totalorder %s205, %s206
      %p215 = scmp.eq.s32.totalorder %s27, 0
      %p216 = por %p214, %p215
      %p217 = scmp.ne.s32.totalorder %s205, %s206
      %p218 = scmp.eq.s32.totalorder %s28, 1
      %p219 = por %p217, %p218
      %p221 = scmp.ne.s32.totalorder %s206, %s220
      %p222 = scmp.eq.s32.totalorder %s28, 0
      %p223 = por %p221, %p222
      %s225 = sadd.s32 %s224, 1
      %p228 = scmp.eq.s32.totalorder %s22, 1
      %p229 = scmp.ne.s32.totalorder %s224, %s226
      %p230 = scmp.eq.s32.totalorder %s22, 0
      %p231 = por %p229, %p230
      %p232 = scmp.ne.s32.totalorder %s224, %s226
      %p233 = scmp.eq.s32.totalorder %s27, 1
      %p234 = por %p232, %p233
      %p235 = scmp.ne.s32.totalorder %s226, %s227
      %p236 = scmp.eq.s32.totalorder %s27, 0
      %p237 = por %p235, %p236
      %p238 = scmp.ne.s32.totalorder %s226, %s227
      %p239 = scmp.eq.s32.totalorder %s28, 1
      %p240 = por %p238, %p239
      %p242 = scmp.ne.s32.totalorder %s227, %s241
      %p243 = scmp.eq.s32.totalorder %s28, 0
      %p244 = por %p242, %p243
      %s246 = sadd.s32 %s245, 1
      %p249 = scmp.eq.s32.totalorder %s22, 1
      %p250 = scmp.ne.s32.totalorder %s245, %s247
      %p251 = scmp.eq.s32.totalorder %s22, 0
      %p252 = por %p250, %p251
      %p253 = scmp.ne.s32.totalorder %s245, %s247
      %p254 = scmp.eq.s32.totalorder %s27, 1
      %p255 = por %p253, %p254
      %p256 = scmp.ne.s32.totalorder %s247, %s248
      %p257 = scmp.eq.s32.totalorder %s27, 0
      %p258 = por %p256, %p257
      %p259 = scmp.ne.s32.totalorder %s247, %s248
      %p260 = scmp.eq.s32.totalorder %s28, 1
      %p261 = por %p259, %p260
      %p263 = scmp.ne.s32.totalorder %s248, %s262
      %p264 = scmp.eq.s32.totalorder %s28, 0
      %p265 = por %p263, %p264
      %s267 = sadd.s32 %s266, 1
      %p270 = scmp.eq.s32.totalorder %s22, 1
      %p271 = scmp.ne.s32.totalorder %s266, %s268
      %p272 = scmp.eq.s32.totalorder %s22, 0
      %p273 = por %p271, %p272
      %p274 = scmp.ne.s32.totalorder %s266, %s268
      %p275 = scmp.eq.s32.totalorder %s27, 1
      %p276 = por %p274, %p275
      %p277 = scmp.ne.s32.totalorder %s268, %s269
      %p278 = scmp.eq.s32.totalorder %s27, 0
      %p279 = por %p277, %p278
      %p280 = scmp.ne.s32.totalorder %s268, %s269
      %p281 = scmp.eq.s32.totalorder %s28, 1
      %p282 = por %p280, %p281
      %p284 = scmp.ne.s32.totalorder %s269, %s283
      %p285 = scmp.eq.s32.totalorder %s28, 0
      %p286 = por %p284, %p285
      %s288 = sadd.s32 %s287, 1
      %p291 = scmp.eq.s32.totalorder %s22, 1
      %p292 = scmp.ne.s32.totalorder %s287, %s289
      %p293 = scmp.eq.s32.totalorder %s22, 0
      %p294 = por %p292, %p293
      %p295 = scmp.ne.s32.totalorder %s287, %s289
      %p296 = scmp.eq.s32.totalorder %s27, 1
      %p297 = por %p295, %p296
      %p298 = scmp.ne.s32.totalorder %s289, %s290
      %p299 = scmp.eq.s32.totalorder %s27, 0
      %p300 = por %p298, %p299
      %p301 = scmp.ne.s32.totalorder %s289, %s290
      %p302 = scmp.eq.s32.totalorder %s28, 1
      %p303 = por %p301, %p302
      %p305 = scmp.ne.s32.totalorder %s290, %s304
      %p306 = scmp.eq.s32.totalorder %s28, 0
      %p307 = por %p305, %p306
      %s308 = ssub.s32 %s22, %s29
      %p309 = scmp.eq.s32.totalorder %s308, 0
      %s311 = sadd.s32 %s310, 1
      %s312 = scalar_select %p309, %s310, %s311
      %p315 = pneg %p309
      %p316 = scmp.eq.s32.totalorder %s22, 1
      %p317 = por %p315, %p316
      %p318 = scmp.ne.s32.totalorder %s310, %s313
      %p319 = scmp.eq.s32.totalorder %s22, 0
      %p320 = por %p318, %p319
      %p321 = scmp.ne.s32.totalorder %s310, %s313
      %p322 = scmp.eq.s32.totalorder %s27, 1
      %p323 = por %p321, %p322
      %p324 = scmp.ne.s32.totalorder %s313, %s314
      %p325 = scmp.eq.s32.totalorder %s27, 0
      %p326 = por %p324, %p325
      %p327 = scmp.ne.s32.totalorder %s313, %s314
      %p328 = scmp.eq.s32.totalorder %s28, 1
      %p329 = por %p327, %p328
      %p331 = scmp.ne.s32.totalorder %s314, %s330
      %p332 = scmp.eq.s32.totalorder %s28, 0
      %p333 = por %p331, %p332
      %p334 = scmp.le.s32.totalorder 1, %s22
      %p335 = scmp.lt.s32.totalorder %s22, 3
      %p336 = pnand %p334, %p335
      %p337 = pneg %p336
      // Predicated region
      $region9: #{inception_forward.1} parent=5 // pred_check
        _
      $region10: #{inception_forward.1} parent=5 // pred_check_branch
        %339 = sbr.rel (%p336) target = $region12
      $region11: #{inception_forward.1} parent=5 // pred_region
        %s340 = ssub.s32 %s22, 1
        // Predicated region
        $region13: #{inception_forward.1} parent=11 // pred_check
          %p341 = pneg %p69
        $region14: #{inception_forward.1} parent=11 // pred_check_branch
          %343 = sbr.rel (%p341) target = $region16
        $region15: #{inception_forward.1} parent=11 // pred_region
          _
        $region16: #{inception_forward.1} parent=11 // pred_fallthru
          _
        // Predicated region
        $region17: #{inception_forward.1} parent=11 // pred_check
          %p344 = pneg %p90
        $region18: #{inception_forward.1} parent=11 // pred_check_branch
          %346 = sbr.rel (%p344) target = $region20
        $region19: #{inception_forward.1} parent=11 // pred_region
          _
        $region20: #{inception_forward.1} parent=11 // pred_fallthru
          _
        // Predicated region
        $region21: #{inception_forward.1} parent=11 // pred_check
          %p347 = pneg %p111
        $region22: #{inception_forward.1} parent=11 // pred_check_branch
          %349 = sbr.rel (%p347) target = $region24
        $region23: #{inception_forward.1} parent=11 // pred_region
          _
        $region24: #{inception_forward.1} parent=11 // pred_fallthru
          _
        // Predicated region
        $region25: #{inception_forward.1} parent=11 // pred_check
          %p350 = pneg %p132
        $region26: #{inception_forward.1} parent=11 // pred_check_branch
          %352 = sbr.rel (%p350) target = $region28
        $region27: #{inception_forward.1} parent=11 // pred_region
          _
        $region28: #{inception_forward.1} parent=11 // pred_fallthru
          _
        // Predicated region
        $region29: #{inception_forward.1} parent=11 // pred_check
          %p353 = pneg %p153
        $region30: #{inception_forward.1} parent=11 // pred_check_branch
          %355 = sbr.rel (%p353) target = $region32
        $region31: #{inception_forward.1} parent=11 // pred_region
          _
        $region32: #{inception_forward.1} parent=11 // pred_fallthru
          _
        // Predicated region
        $region33: #{inception_forward.1} parent=11 // pred_check
          %p356 = pneg %p174
        $region34: #{inception_forward.1} parent=11 // pred_check_branch
          %358 = sbr.rel (%p356) target = $region36
        $region35: #{inception_forward.1} parent=11 // pred_region
          _
        $region36: #{inception_forward.1} parent=11 // pred_fallthru
          _
        // Predicated region
        $region37: #{inception_forward.1} parent=11 // pred_check
          %p359 = pneg %p195
        $region38: #{inception_forward.1} parent=11 // pred_check_branch
          %361 = sbr.rel (%p359) target = $region40
        $region39: #{inception_forward.1} parent=11 // pred_region
          _
        $region40: #{inception_forward.1} parent=11 // pred_fallthru
          _
        // Predicated region
        $region41: #{inception_forward.1} parent=11 // pred_check
          %p362 = pneg %p216
        $region42: #{inception_forward.1} parent=11 // pred_check_branch
          %364 = sbr.rel (%p362) target = $region44
        $region43: #{inception_forward.1} parent=11 // pred_region
          _
        $region44: #{inception_forward.1} parent=11 // pred_fallthru
          _
        // Predicated region
        $region45: #{inception_forward.1} parent=11 // pred_check
          %p365 = pneg %p237
        $region46: #{inception_forward.1} parent=11 // pred_check_branch
          %367 = sbr.rel (%p365) target = $region48
        $region47: #{inception_forward.1} parent=11 // pred_region
          _
        $region48: #{inception_forward.1} parent=11 // pred_fallthru
          _
        // Predicated region
        $region49: #{inception_forward.1} parent=11 // pred_check
          %p368 = pneg %p258
        $region50: #{inception_forward.1} parent=11 // pred_check_branch
          %370 = sbr.rel (%p368) target = $region52
        $region51: #{inception_forward.1} parent=11 // pred_region
          _
        $region52: #{inception_forward.1} parent=11 // pred_fallthru
          _
        // Predicated region
        $region53: #{inception_forward.1} parent=11 // pred_check
          %p371 = pneg %p279
        $region54: #{inception_forward.1} parent=11 // pred_check_branch
          %373 = sbr.rel (%p371) target = $region56
        $region55: #{inception_forward.1} parent=11 // pred_region
          _
        $region56: #{inception_forward.1} parent=11 // pred_fallthru
          _
        // Predicated region
        $region57: #{inception_forward.1} parent=11 // pred_check
          %p374 = pneg %p300
        $region58: #{inception_forward.1} parent=11 // pred_check_branch
          %376 = sbr.rel (%p374) target = $region60
        $region59: #{inception_forward.1} parent=11 // pred_region
          _
        $region60: #{inception_forward.1} parent=11 // pred_fallthru
          _
      $region12: #{inception_forward.1} parent=5 // pred_fallthru
        _
      %p377 = scmp.lt.s32.totalorder %s22, 2
      // Predicated region
      $region61: #{inception_forward.1} parent=5 // pred_check
        %p378 = pneg %p377
      $region62: #{inception_forward.1} parent=5 // pred_check_branch
        %380 = sbr.rel (%p378) target = $region64
      $region63: #{inception_forward.1} parent=5 // pred_region
        // Predicated region
        $region65: #{inception_forward.1} parent=63 // pred_check
          %p381 = pneg %p42
        $region66: #{inception_forward.1} parent=63 // pred_check_branch
          %383 = sbr.rel (%p381) target = $region68
        $region67: #{inception_forward.1} parent=63 // pred_region
          %p384 = scmp.lt.s32.totalorder %s22, 1
          %s385 = scalar_select %p384, %s22, 1
          %s386 = smul.addr %s385, 32
          %s387 = smul.addr %s386, 8
          %s388 = scalar_lea.vmem %s0, %s387
        $region68: #{inception_forward.1} parent=63 // pred_fallthru
          _
      $region64: #{inception_forward.1} parent=5 // pred_fallthru
        _
      %p389 = scmp.le.s32.totalorder 1, %s22
      %p390 = scmp.lt.s32.totalorder %s22, 3
      %p391 = pnand %p389, %p390
      %p392 = pneg %p391
      // Predicated region
      $region69: #{inception_forward.1} parent=5 // pred_check
        _
      $region70: #{inception_forward.1} parent=5 // pred_check_branch
        %394 = sbr.rel (%p391) target = $region72
      $region71: #{inception_forward.1} parent=5 // pred_region
        %s395 = ssub.s32 %s22, 1
        %p396 = scmp.lt.s32.totalorder %s27, 1
        %s397 = scalar_select %p396, %s27, 1
        %s398 = smul.addr %s397, 32
        %s399 = smul.addr %s398, 8
        %s400 = scalar_lea.vmem %s0, %s399
        %p401 = pneg %p48
        %p402 = pneg %p45
        %p403 = pneg %p69
        %p404 = pneg %p66
        %p405 = pneg %p90
        %p406 = pneg %p87
        %p407 = pneg %p111
        %p408 = pneg %p108
        %p409 = pneg %p132
        %p410 = pneg %p129
        %p411 = pneg %p153
        %p412 = pneg %p150
        %p413 = pneg %p174
        %p414 = pneg %p171
        %p415 = pneg %p195
        %p416 = pneg %p192
        %p417 = pneg %p216
        %p418 = pneg %p213
        %p419 = pneg %p237
        %p420 = pneg %p234
        %p421 = pneg %p258
        %p422 = pneg %p255
        %p423 = pneg %p279
        %p424 = pneg %p276
        %p425 = pneg %p300
        %p426 = pneg %p297
        %p427 = pneg %p326
        %p428 = pneg %p323
        %s429 = sand.u32 %s313, 1
        %s430 = scalar_lea.sflag [#allocation8], %s429
        %s431 = sand.u32 %s313, 1
        %s432 = smul.addr %s431, 256
        %s433 = scalar_lea.vmem [#allocation7], %s432
        %p434 = scmp.lt.s32.totalorder %s27, 1
        %s435 = scalar_select %p434, %s27, 1
        %s436 = smul.addr %s435, 32
        %s437 = smul.addr %s436, 8
        %s438 = scalar_lea.vmem %s0, %s437
        %v440 = vld [vmem:[%s438] sm:$0xff]
        %v441 = vld [vmem:[%s438 + $0x8] sm:$0xff]
        %v442 = vld [vmem:[%s438 + $0x10] sm:$0xff]
        %v443 = vld [vmem:[%s438 + $0x18] sm:$0xff]
        %v444 = vld [vmem:[%s438 + $0x20] sm:$0xff]
        %v445 = vld [vmem:[%s438 + $0x28] sm:$0xff]
        %v446 = vld [vmem:[%s438 + $0x30] sm:$0xff]
        %v447 = vld [vmem:[%s438 + $0x38] sm:$0xff]
        %v448 = vld [vmem:[%s438 + $0x40] sm:$0xff]
        %v449 = vld [vmem:[%s438 + $0x48] sm:$0xff]
        %v450 = vld [vmem:[%s438 + $0x50] sm:$0xff]
        %v451 = vld [vmem:[%s438 + $0x58] sm:$0xff]
        %v452 = vld [vmem:[%s438 + $0x60] sm:$0xff]
        %v453 = vld [vmem:[%s438 + $0x68] sm:$0xff]
        %v454 = vld [vmem:[%s438 + $0x70] sm:$0xff]
        %v455 = vld [vmem:[%s438 + $0x78] sm:$0xff]
        %v456 = vld [vmem:[%s438 + $0x80] sm:$0xff]
        %v457 = vld [vmem:[%s438 + $0x88] sm:$0xff]
        %v458 = vld [vmem:[%s438 + $0x90] sm:$0xff]
        %v459 = vld [vmem:[%s438 + $0x98] sm:$0xff]
        %v460 = vld [vmem:[%s438 + $0xa0] sm:$0xff]
        %v461 = vld [vmem:[%s438 + $0xa8] sm:$0xff]
        %v462 = vld [vmem:[%s438 + $0xb0] sm:$0xff]
        %v463 = vld [vmem:[%s438 + $0xb8] sm:$0xff]
        %v464 = vld [vmem:[%s438 + $0xc0] sm:$0xff]
        %v465 = vld [vmem:[%s438 + $0xc8] sm:$0xff]
        %v466 = vld [vmem:[%s438 + $0xd0] sm:$0xff]
        %v467 = vld [vmem:[%s438 + $0xd8] sm:$0xff]
        %v468 = vld [vmem:[%s438 + $0xe0] sm:$0xff]
        %v469 = vld [vmem:[%s438 + $0xe8] sm:$0xff]
        %v470 = vld [vmem:[%s438 + $0xf0] sm:$0xff]
        %v471 = vld [vmem:[%s438 + $0xf8] sm:$0xff]
        %v472 = vpack.c.bf16 %v441, %v440
        %v473 = vpack.c.bf16 %v443, %v442
        %v474 = vpack.c.bf16 %v445, %v444
        %v475 = vpack.c.bf16 %v447, %v446
        %v476 = vpack.c.bf16 %v449, %v448
        %v477 = vpack.c.bf16 %v451, %v450
        %v478 = vpack.c.bf16 %v453, %v452
        %v479 = vpack.c.bf16 %v455, %v454
        %v480 = vpack.c.bf16 %v457, %v456
        %v481 = vpack.c.bf16 %v459, %v458
        %v482 = vpack.c.bf16 %v461, %v460
        %v483 = vpack.c.bf16 %v463, %v462
        %v484 = vpack.c.bf16 %v465, %v464
        %v485 = vpack.c.bf16 %v467, %v466
        %v486 = vpack.c.bf16 %v469, %v468
        %v487 = vpack.c.bf16 %v471, %v470
        %v488 = vld [vmem:[%s1] sm:$0xf]
        %vm489 = vcmask 64512
        %v491 = vsel %vm489, %v472, 0
        %v494 = vsel %vm489, %v473, 0
        %v497 = vsel %vm489, %v474, 0
        %v500 = vsel %vm489, %v475, 0
        %v503 = vsel %vm489, %v476, 0
        %v506 = vsel %vm489, %v477, 0
        %v509 = vsel %vm489, %v478, 0
        %v512 = vsel %vm489, %v479, 0
        %v515 = vsel %vm489, %v480, 0
        %v518 = vsel %vm489, %v481, 0
        %v521 = vsel %vm489, %v482, 0
        %v524 = vsel %vm489, %v483, 0
        %v527 = vsel %vm489, %v484, 0
        %v530 = vsel %vm489, %v485, 0
        %v533 = vsel %vm489, %v486, 0
        %v536 = vsel %vm489, %v487, 0
        %vm538 = vcmask 1043456
        %v540 = vsel %vm538, %v488, 0
        %542 = vmatprep.subr.bf16.mxu0 0
        %543 = vmatpush1.bf16.msra.mxu0 0
        %544 = vmatprep.subr.bf16.mxu0 0
        %545 = vmatpush1.bf16.msra.mxu0 0
        %546 = vmatprep.subr.bf16.mxu0 0
        %547 = vmatpush1.bf16.msra.mxu0 0
        %548 = vmatprep.subr.bf16.mxu0 0
        %549 = vmatpush1.bf16.msra.mxu0 0
        %550 = vmatprep.subr.bf16.mxu0 0
        %551 = vmatpush1.bf16.msra.mxu0 0
        %552 = vmatprep.subr.bf16.mxu0 0
        %553 = vmatpush1.bf16.msra.mxu0 0
        %554 = vmatprep.subr.bf16.mxu0 0
        %555 = vmatpush1.bf16.msra.mxu0 0
        %556 = vmatprep.subr.bf16.mxu0 0
        %557 = vmatpush1.bf16.msra.mxu0 %v540
        %558 = vmatprep.subr.bf16.mxu0 0
        %559 = vmatpush2.bf16.msra.mxu0 0
        %560 = vmatprep.subr.bf16.mxu0 0
        %561 = vmatpush2.bf16.msra.mxu0 0
        %562 = vmatprep.subr.bf16.mxu0 0
        %563 = vmatpush2.bf16.msra.mxu0 0
        %564 = vmatprep.subr.bf16.mxu0 0
        %565 = vmatpush2.bf16.msra.mxu0 0
        %566 = vmatprep.subr.bf16.mxu0 0
        %567 = vmatpush2.bf16.msra.mxu0 0
        %568 = vmatprep.subr.bf16.mxu0 0
        %569 = vmatpush2.bf16.msra.mxu0 0
        %570 = vmatprep.subr.bf16.mxu0 0
        %571 = vmatpush2.bf16.msra.mxu0 0
        %572 = vmatprep.subr.bf16.mxu0 0
        %573 = vmatpush2.bf16.msra.mxu0 0
        %574 = vmatprep.mubr.bf16.mxu0 0
        %575 = vmatmul.mubr.bf16.gmra.mxu0 %v491
        %v576 = vpop.f32.mrf.mxu0
        %v577 = vadd.f32 0.0, %v576
        %v578 = vpop.f32.mrf.mxu0
        %v579 = vpop.f32.mrf.mxu0
        %v580 = vadd.f32 0.0, %v579
        %v581 = vpop.f32.mrf.mxu0
        %582 = vmatprep.mubr.bf16.mxu0 0
        %583 = vmatmul.mubr.bf16.gmra.mxu0 %v494
        %v584 = vpop.f32.mrf.mxu0
        %v585 = vadd.f32 0.0, %v584
        %v586 = vpop.f32.mrf.mxu0
        %v587 = vpop.f32.mrf.mxu0
        %v588 = vadd.f32 0.0, %v587
        %v589 = vpop.f32.mrf.mxu0
        %590 = vmatprep.mubr.bf16.mxu0 0
        %591 = vmatmul.mubr.bf16.gmra.mxu0 %v497
        %v592 = vpop.f32.mrf.mxu0
        %v593 = vadd.f32 0.0, %v592
        %v594 = vpop.f32.mrf.mxu0
        %v595 = vpop.f32.mrf.mxu0
        %v596 = vadd.f32 0.0, %v595
        %v597 = vpop.f32.mrf.mxu0
        %598 = vmatprep.mubr.bf16.mxu0 0
        %599 = vmatmul.mubr.bf16.gmra.mxu0 %v500
        %v600 = vpop.f32.mrf.mxu0
        %v601 = vadd.f32 0.0, %v600
        %v602 = vpop.f32.mrf.mxu0
        %v603 = vpop.f32.mrf.mxu0
        %v604 = vadd.f32 0.0, %v603
        %v605 = vpop.f32.mrf.mxu0
        %606 = vmatprep.mubr.bf16.mxu0 0
        %607 = vmatmul.mubr.bf16.gmra.mxu0 %v503
        %v608 = vpop.f32.mrf.mxu0
        %v609 = vadd.f32 0.0, %v608
        %v610 = vpop.f32.mrf.mxu0
        %v611 = vpop.f32.mrf.mxu0
        %v612 = vadd.f32 0.0, %v611
        %v613 = vpop.f32.mrf.mxu0
        %614 = vmatprep.mubr.bf16.mxu0 0
        %615 = vmatmul.mubr.bf16.gmra.mxu0 %v506
        %v616 = vpop.f32.mrf.mxu0
        %v617 = vadd.f32 0.0, %v616
        %v618 = vpop.f32.mrf.mxu0
        %v619 = vpop.f32.mrf.mxu0
        %v620 = vadd.f32 0.0, %v619
        %v621 = vpop.f32.mrf.mxu0
        %622 = vmatprep.mubr.bf16.mxu0 0
        %623 = vmatmul.mubr.bf16.gmra.mxu0 %v509
        %v624 = vpop.f32.mrf.mxu0
        %v625 = vadd.f32 0.0, %v624
        %v626 = vpop.f32.mrf.mxu0
        %v627 = vpop.f32.mrf.mxu0
        %v628 = vadd.f32 0.0, %v627
        %v629 = vpop.f32.mrf.mxu0
        %630 = vmatprep.mubr.bf16.mxu0 0
        %631 = vmatmul.mubr.bf16.gmra.mxu0 %v512
        %v632 = vpop.f32.mrf.mxu0
        %v633 = vadd.f32 0.0, %v632
        %v634 = vpop.f32.mrf.mxu0
        %v635 = vpop.f32.mrf.mxu0
        %v636 = vadd.f32 0.0, %v635
        %v637 = vpop.f32.mrf.mxu0
        %638 = vmatprep.mubr.bf16.mxu0 0
        %639 = vmatmul.mubr.bf16.gmra.mxu0 %v515
        %v640 = vpop.f32.mrf.mxu0
        %v641 = vadd.f32 0.0, %v640
        %v642 = vpop.f32.mrf.mxu0
        %v643 = vpop.f32.mrf.mxu0
        %v644 = vadd.f32 0.0, %v643
        %v645 = vpop.f32.mrf.mxu0
        %646 = vmatprep.mubr.bf16.mxu0 0
        %647 = vmatmul.mubr.bf16.gmra.mxu0 %v518
        %v648 = vpop.f32.mrf.mxu0
        %v649 = vadd.f32 0.0, %v648
        %v650 = vpop.f32.mrf.mxu0
        %v651 = vpop.f32.mrf.mxu0
        %v652 = vadd.f32 0.0, %v651
        %v653 = vpop.f32.mrf.mxu0
        %654 = vmatprep.mubr.bf16.mxu0 0
        %655 = vmatmul.mubr.bf16.gmra.mxu0 %v521
        %v656 = vpop.f32.mrf.mxu0
        %v657 = vadd.f32 0.0, %v656
        %v658 = vpop.f32.mrf.mxu0
        %v659 = vpop.f32.mrf.mxu0
        %v660 = vadd.f32 0.0, %v659
        %v661 = vpop.f32.mrf.mxu0
        %662 = vmatprep.mubr.bf16.mxu0 0
        %663 = vmatmul.mubr.bf16.gmra.mxu0 %v524
        %v664 = vpop.f32.mrf.mxu0
        %v665 = vadd.f32 0.0, %v664
        %v666 = vpop.f32.mrf.mxu0
        %v667 = vpop.f32.mrf.mxu0
        %v668 = vadd.f32 0.0, %v667
        %v669 = vpop.f32.mrf.mxu0
        %670 = vmatprep.mubr.bf16.mxu0 0
        %671 = vmatmul.mubr.bf16.gmra.mxu0 %v527
        %v672 = vpop.f32.mrf.mxu0
        %v673 = vadd.f32 0.0, %v672
        %v674 = vpop.f32.mrf.mxu0
        %v675 = vpop.f32.mrf.mxu0
        %v676 = vadd.f32 0.0, %v675
        %v677 = vpop.f32.mrf.mxu0
        %678 = vmatprep.mubr.bf16.mxu0 0
        %679 = vmatmul.mubr.bf16.gmra.mxu0 %v530
        %v680 = vpop.f32.mrf.mxu0
        %v681 = vadd.f32 0.0, %v680
        %v682 = vpop.f32.mrf.mxu0
        %v683 = vpop.f32.mrf.mxu0
        %v684 = vadd.f32 0.0, %v683
        %v685 = vpop.f32.mrf.mxu0
        %686 = vmatprep.mubr.bf16.mxu0 0
        %687 = vmatmul.mubr.bf16.gmra.mxu0 %v533
        %v688 = vpop.f32.mrf.mxu0
        %v689 = vadd.f32 0.0, %v688
        %v690 = vpop.f32.mrf.mxu0
        %v691 = vpop.f32.mrf.mxu0
        %v692 = vadd.f32 0.0, %v691
        %v693 = vpop.f32.mrf.mxu0
        %694 = vmatprep.mubr.bf16.mxu0 0
        %695 = vmatmul.mubr.bf16.gmra.mxu0 %v536
        %v696 = vpop.f32.mrf.mxu0
        %v697 = vadd.f32 0.0, %v696
        %v698 = vpop.f32.mrf.mxu0
        %v699 = vpop.f32.mrf.mxu0
        %v700 = vadd.f32 0.0, %v699
        %v701 = vpop.f32.mrf.mxu0
        %702 = vdwg.mxu0
        %v703 = vld [vmem:[%s2] sm:$0x1]
        %v705 = vlaneseq
        %v706 = vshrl.u32 %v705, 7
        %v707 = vsub.s32 0, %v706
        %v708 = vrot.slane %v703, %v707
        %v710 = vmul.f32 %v577, %v708
        %v711 = vmul.f32 %v580, %v708
        %v712 = vmul.f32 %v585, %v708
        %v713 = vmul.f32 %v588, %v708
        %v714 = vmul.f32 %v593, %v708
        %v715 = vmul.f32 %v596, %v708
        %v716 = vmul.f32 %v601, %v708
        %v717 = vmul.f32 %v604, %v708
        %v718 = vmul.f32 %v609, %v708
        %v719 = vmul.f32 %v612, %v708
        %v720 = vmul.f32 %v617, %v708
        %v721 = vmul.f32 %v620, %v708
        %v722 = vmul.f32 %v625, %v708
        %v723 = vmul.f32 %v628, %v708
        %v724 = vmul.f32 %v633, %v708
        %v725 = vmul.f32 %v636, %v708
        %v726 = vmul.f32 %v641, %v708
        %v727 = vmul.f32 %v644, %v708
        %v728 = vmul.f32 %v649, %v708
        %v729 = vmul.f32 %v652, %v708
        %v730 = vmul.f32 %v657, %v708
        %v731 = vmul.f32 %v660, %v708
        %v732 = vmul.f32 %v665, %v708
        %v733 = vmul.f32 %v668, %v708
        %v734 = vmul.f32 %v673, %v708
        %v735 = vmul.f32 %v676, %v708
        %v736 = vmul.f32 %v681, %v708
        %v737 = vmul.f32 %v684, %v708
        %v738 = vmul.f32 %v689, %v708
        %v739 = vmul.f32 %v692, %v708
        %v740 = vmul.f32 %v697, %v708
        %v741 = vmul.f32 %v700, %v708
        %v742 = vld [vmem:[%s3] sm:$0x1]
        %v744 = vlaneseq
        %v745 = vshrl.u32 %v744, 7
        %v746 = vsub.s32 0, %v745
        %v747 = vrot.slane %v742, %v746
        %v749 = vadd.f32 %v710, %v747
        %v750 = vadd.f32 %v711, %v747
        %v751 = vadd.f32 %v712, %v747
        %v752 = vadd.f32 %v713, %v747
        %v753 = vadd.f32 %v714, %v747
        %v754 = vadd.f32 %v715, %v747
        %v755 = vadd.f32 %v716, %v747
        %v756 = vadd.f32 %v717, %v747
        %v757 = vadd.f32 %v718, %v747
        %v758 = vadd.f32 %v719, %v747
        %v759 = vadd.f32 %v720, %v747
        %v760 = vadd.f32 %v721, %v747
        %v761 = vadd.f32 %v722, %v747
        %v762 = vadd.f32 %v723, %v747
        %v763 = vadd.f32 %v724, %v747
        %v764 = vadd.f32 %v725, %v747
        %v765 = vadd.f32 %v726, %v747
        %v766 = vadd.f32 %v727, %v747
        %v767 = vadd.f32 %v728, %v747
        %v768 = vadd.f32 %v729, %v747
        %v769 = vadd.f32 %v730, %v747
        %v770 = vadd.f32 %v731, %v747
        %v771 = vadd.f32 %v732, %v747
        %v772 = vadd.f32 %v733, %v747
        %v773 = vadd.f32 %v734, %v747
        %v774 = vadd.f32 %v735, %v747
        %v775 = vadd.f32 %v736, %v747
        %v776 = vadd.f32 %v737, %v747
        %v777 = vadd.f32 %v738, %v747
        %v778 = vadd.f32 %v739, %v747
        %v779 = vadd.f32 %v740, %v747
        %v780 = vadd.f32 %v741, %v747
        %vm781 = vcmask 130048
        %782 = vst.msk [vmem:[%s433] sm:$0xff] %vm781, %v749
        %783 = vst.msk [vmem:[%s433 + $0x8] sm:$0xff] %vm781, %v750
        %784 = vst.msk [vmem:[%s433 + $0x10] sm:$0xff] %vm781, %v751
        %785 = vst.msk [vmem:[%s433 + $0x18] sm:$0xff] %vm781, %v752
        %786 = vst.msk [vmem:[%s433 + $0x20] sm:$0xff] %vm781, %v753
        %787 = vst.msk [vmem:[%s433 + $0x28] sm:$0xff] %vm781, %v754
        %788 = vst.msk [vmem:[%s433 + $0x30] sm:$0xff] %vm781, %v755
        %789 = vst.msk [vmem:[%s433 + $0x38] sm:$0xff] %vm781, %v756
        %790 = vst.msk [vmem:[%s433 + $0x40] sm:$0xff] %vm781, %v757
        %791 = vst.msk [vmem:[%s433 + $0x48] sm:$0xff] %vm781, %v758
        %792 = vst.msk [vmem:[%s433 + $0x50] sm:$0xff] %vm781, %v759
        %793 = vst.msk [vmem:[%s433 + $0x58] sm:$0xff] %vm781, %v760
        %794 = vst.msk [vmem:[%s433 + $0x60] sm:$0xff] %vm781, %v761
        %795 = vst.msk [vmem:[%s433 + $0x68] sm:$0xff] %vm781, %v762
        %796 = vst.msk [vmem:[%s433 + $0x70] sm:$0xff] %vm781, %v763
        %797 = vst.msk [vmem:[%s433 + $0x78] sm:$0xff] %vm781, %v764
        %798 = vst.msk [vmem:[%s433 + $0x80] sm:$0xff] %vm781, %v765
        %799 = vst.msk [vmem:[%s433 + $0x88] sm:$0xff] %vm781, %v766
        %800 = vst.msk [vmem:[%s433 + $0x90] sm:$0xff] %vm781, %v767
        %801 = vst.msk [vmem:[%s433 + $0x98] sm:$0xff] %vm781, %v768
        %802 = vst.msk [vmem:[%s433 + $0xa0] sm:$0xff] %vm781, %v769
        %803 = vst.msk [vmem:[%s433 + $0xa8] sm:$0xff] %vm781, %v770
        %804 = vst.msk [vmem:[%s433 + $0xb0] sm:$0xff] %vm781, %v771
        %805 = vst.msk [vmem:[%s433 + $0xb8] sm:$0xff] %vm781, %v772
        %806 = vst.msk [vmem:[%s433 + $0xc0] sm:$0xff] %vm781, %v773
        %807 = vst.msk [vmem:[%s433 + $0xc8] sm:$0xff] %vm781, %v774
        %808 = vst.msk [vmem:[%s433 + $0xd0] sm:$0xff] %vm781, %v775
        %809 = vst.msk [vmem:[%s433 + $0xd8] sm:$0xff] %vm781, %v776
        %810 = vst.msk [vmem:[%s433 + $0xe0] sm:$0xff] %vm781, %v777
        %811 = vst.msk [vmem:[%s433 + $0xe8] sm:$0xff] %vm781, %v778
        %812 = vst.msk [vmem:[%s433 + $0xf0] sm:$0xff] %vm781, %v779
        %813 = vst.msk [vmem:[%s433 + $0xf8] sm:$0xff] %vm781, %v780
        %v814 = vmax.f32 %v749, 0.0
        %v815 = vmax.f32 %v750, 0.0
        %v816 = vmax.f32 %v751, 0.0
        %v817 = vmax.f32 %v752, 0.0
        %v818 = vmax.f32 %v753, 0.0
        %v819 = vmax.f32 %v754, 0.0
        %v820 = vmax.f32 %v755, 0.0
        %v821 = vmax.f32 %v756, 0.0
        %v822 = vmax.f32 %v757, 0.0
        %v823 = vmax.f32 %v758, 0.0
        %v824 = vmax.f32 %v759, 0.0
        %v825 = vmax.f32 %v760, 0.0
        %v826 = vmax.f32 %v761, 0.0
        %v827 = vmax.f32 %v762, 0.0
        %v828 = vmax.f32 %v763, 0.0
        %v829 = vmax.f32 %v764, 0.0
        %v830 = vmax.f32 %v765, 0.0
        %v831 = vmax.f32 %v766, 0.0
        %v832 = vmax.f32 %v767, 0.0
        %v833 = vmax.f32 %v768, 0.0
        %v834 = vmax.f32 %v769, 0.0
        %v835 = vmax.f32 %v770, 0.0
        %v836 = vmax.f32 %v771, 0.0
        %v837 = vmax.f32 %v772, 0.0
        %v838 = vmax.f32 %v773, 0.0
        %v839 = vmax.f32 %v774, 0.0
        %v840 = vmax.f32 %v775, 0.0
        %v841 = vmax.f32 %v776, 0.0
        %v842 = vmax.f32 %v777, 0.0
        %v843 = vmax.f32 %v778, 0.0
        %v844 = vmax.f32 %v779, 0.0
        %v845 = vmax.f32 %v780, 0.0
        %846 = vst.msk [vmem:[#allocation2] sm:$0xff] %vm489, 0.0
        %847 = vst.msk [vmem:[#allocation2 + $0x8] sm:$0xff] %vm489, 0.0
        %vm848 = vcmask 58368
        %849 = vst.msk [vmem:[#allocation2 + $0x10] sm:$0x3] %vm848, 0.0
        %850 = vst.msk [vmem:[#allocation2 + $0x18] sm:$0xff] %vm489, 0.0
        %851 = vst.msk [vmem:[#allocation2 + $0x20] sm:$0xff] %vm489, 0.0
        %852 = vst.msk [vmem:[#allocation2 + $0x28] sm:$0x3] %vm848, 0.0
        %853 = vst.msk [vmem:[#allocation2 + $0x30] sm:$0xff] %vm489, 0.0
        %854 = vst.msk [vmem:[#allocation2 + $0x38] sm:$0xff] %vm489, 0.0
        %855 = vst.msk [vmem:[#allocation2 + $0x40] sm:$0x3] %vm848, 0.0
        %856 = vst.msk [vmem:[#allocation2 + $0x48] sm:$0xff] %vm489, 0.0
        %857 = vst.msk [vmem:[#allocation2 + $0x50] sm:$0xff] %vm489, 0.0
        %858 = vst.msk [vmem:[#allocation2 + $0x58] sm:$0x3] %vm848, 0.0
        %859 = vst.msk [vmem:[#allocation2 + $0x60] sm:$0xff] %vm489, 0.0
        %860 = vst.msk [vmem:[#allocation2 + $0x68] sm:$0xff] %vm489, 0.0
        %861 = vst.msk [vmem:[#allocation2 + $0x70] sm:$0x3] %vm848, 0.0
        %862 = vst.msk [vmem:[#allocation2 + $0x78] sm:$0xff] %vm489, 0.0
        %863 = vst.msk [vmem:[#allocation2 + $0x80] sm:$0xff] %vm489, 0.0
        %864 = vst.msk [vmem:[#allocation2 + $0x88] sm:$0x3] %vm848, 0.0
        %865 = vst.msk [vmem:[#allocation2 + $0x90] sm:$0xff] %vm489, 0.0
        %866 = vst.msk [vmem:[#allocation2 + $0x98] sm:$0xff] %vm489, 0.0
        %867 = vst.msk [vmem:[#allocation2 + $0xa0] sm:$0x3] %vm848, 0.0
        %868 = vst.msk [vmem:[#allocation2 + $0xa8] sm:$0xff] %vm489, 0.0
        %869 = vst.msk [vmem:[#allocation2 + $0xb0] sm:$0xff] %vm489, 0.0
        %870 = vst.msk [vmem:[#allocation2 + $0xb8] sm:$0x3] %vm848, 0.0
        %871 = vst.msk [vmem:[#allocation2 + $0xc0] sm:$0xff] %vm489, 0.0
        %872 = vst.msk [vmem:[#allocation2 + $0xc8] sm:$0xff] %vm489, 0.0
        %873 = vst.msk [vmem:[#allocation2 + $0xd0] sm:$0x3] %vm848, 0.0
        %874 = vst.msk [vmem:[#allocation2 + $0xd8] sm:$0xff] %vm489, 0.0
        %875 = vst.msk [vmem:[#allocation2 + $0xe0] sm:$0xff] %vm489, 0.0
        %876 = vst.msk [vmem:[#allocation2 + $0xe8] sm:$0x3] %vm848, 0.0
        %877 = vst.msk [vmem:[#allocation2 + $0xf0] sm:$0xff] %vm489, 0.0
        %878 = vst.msk [vmem:[#allocation2 + $0xf8] sm:$0xff] %vm489, 0.0
        %879 = vst.msk [vmem:[#allocation2 + $0x100] sm:$0x3] %vm848, 0.0
        %880 = vst.msk [vmem:[#allocation2 + $0x108] sm:$0xff] %vm489, 0.0
        %881 = vst.msk [vmem:[#allocation2 + $0x110] sm:$0xff] %vm489, 0.0
        %882 = vst.msk [vmem:[#allocation2 + $0x118] sm:$0x3] %vm848, 0.0
        %883 = vst.msk [vmem:[#allocation2 + $0x120] sm:$0xff] %vm489, 0.0
        %884 = vst.msk [vmem:[#allocation2 + $0x128] sm:$0xff] %vm489, 0.0
        %885 = vst.msk [vmem:[#allocation2 + $0x130] sm:$0x3] %vm848, 0.0
        %886 = vst.msk [vmem:[#allocation2 + $0x138] sm:$0xff] %vm489, 0.0
        %887 = vst.msk [vmem:[#allocation2 + $0x140] sm:$0xff] %vm489, 0.0
        %888 = vst.msk [vmem:[#allocation2 + $0x148] sm:$0x3] %vm848, 0.0
        %889 = vst.msk [vmem:[#allocation2 + $0x150] sm:$0xff] %vm489, 0.0
        %890 = vst.msk [vmem:[#allocation2 + $0x158] sm:$0xff] %vm489, 0.0
        %891 = vst.msk [vmem:[#allocation2 + $0x160] sm:$0x3] %vm848, 0.0
        %892 = vst.msk [vmem:[#allocation2 + $0x168] sm:$0xff] %vm489, 0.0
        %893 = vst.msk [vmem:[#allocation2 + $0x170] sm:$0xff] %vm489, 0.0
        %894 = vst.msk [vmem:[#allocation2 + $0x178] sm:$0x3] %vm848, 0.0
        %895 = vst.msk [vmem:[#allocation2 + $0x180] sm:$0xff] %vm489, 0.0
        %896 = vst.msk [vmem:[#allocation2 + $0x188] sm:$0xff] %vm489, 0.0
        %897 = vst.msk [vmem:[#allocation2 + $0x190] sm:$0x3] %vm848, 0.0
        %898 = vst.msk [vmem:[#allocation2 + $0x198] sm:$0xff] %vm489, 0.0
        %899 = vst.msk [vmem:[#allocation2 + $0x1a0] sm:$0xff] %vm489, 0.0
        %900 = vst.msk [vmem:[#allocation2 + $0x1a8] sm:$0x3] %vm848, 0.0
        %901 = vst.msk [vmem:[#allocation3] sm:$0xff] %vm489, 0.0
        %902 = vst.msk [vmem:[#allocation3 + $0x8] sm:$0xff] %vm489, 0.0
        %903 = vst.msk [vmem:[#allocation3 + $0x10] sm:$0x3] %vm848, 0.0
        %904 = vst.msk [vmem:[#allocation3 + $0x18] sm:$0xff] %vm489, 0.0
        %905 = vst.msk [vmem:[#allocation3 + $0x20] sm:$0xff] %vm489, 0.0
        %906 = vst.msk [vmem:[#allocation3 + $0x28] sm:$0x3] %vm848, 0.0
        %907 = vst.msk [vmem:[#allocation3 + $0x30] sm:$0xff] %vm489, 0.0
        %908 = vst.msk [vmem:[#allocation3 + $0x38] sm:$0xff] %vm489, 0.0
        %909 = vst.msk [vmem:[#allocation3 + $0x40] sm:$0x3] %vm848, 0.0
        %910 = vst.msk [vmem:[#allocation3 + $0x48] sm:$0xff] %vm489, 0.0
        %911 = vst.msk [vmem:[#allocation3 + $0x50] sm:$0xff] %vm489, 0.0
        %912 = vst.msk [vmem:[#allocation3 + $0x58] sm:$0x3] %vm848, 0.0
        %913 = vst.msk [vmem:[#allocation3 + $0x60] sm:$0xff] %vm489, 0.0
        %914 = vst.msk [vmem:[#allocation3 + $0x68] sm:$0xff] %vm489, 0.0
        %915 = vst.msk [vmem:[#allocation3 + $0x70] sm:$0x3] %vm848, 0.0
        %916 = vst.msk [vmem:[#allocation3 + $0x78] sm:$0xff] %vm489, 0.0
        %917 = vst.msk [vmem:[#allocation3 + $0x80] sm:$0xff] %vm489, 0.0
        %918 = vst.msk [vmem:[#allocation3 + $0x88] sm:$0x3] %vm848, 0.0
        %919 = vst.msk [vmem:[#allocation3 + $0x90] sm:$0xff] %vm489, 0.0
        %920 = vst.msk [vmem:[#allocation3 + $0x98] sm:$0xff] %vm489, 0.0
        %921 = vst.msk [vmem:[#allocation3 + $0xa0] sm:$0x3] %vm848, 0.0
        %922 = vst.msk [vmem:[#allocation3 + $0xa8] sm:$0xff] %vm489, 0.0
        %923 = vst.msk [vmem:[#allocation3 + $0xb0] sm:$0xff] %vm489, 0.0
        %924 = vst.msk [vmem:[#allocation3 + $0xb8] sm:$0x3] %vm848, 0.0
        %925 = vst.msk [vmem:[#allocation3 + $0xc0] sm:$0xff] %vm489, 0.0
        %926 = vst.msk [vmem:[#allocation3 + $0xc8] sm:$0xff] %vm489, 0.0
        %927 = vst.msk [vmem:[#allocation3 + $0xd0] sm:$0x3] %vm848, 0.0
        %928 = vst.msk [vmem:[#allocation3 + $0xd8] sm:$0xff] %vm489, 0.0
        %929 = vst.msk [vmem:[#allocation3 + $0xe0] sm:$0xff] %vm489, 0.0
        %930 = vst.msk [vmem:[#allocation3 + $0xe8] sm:$0x3] %vm848, 0.0
        %931 = vst.msk [vmem:[#allocation3 + $0xf0] sm:$0xff] %vm489, 0.0
        %932 = vst.msk [vmem:[#allocation3 + $0xf8] sm:$0xff] %vm489, 0.0
        %933 = vst.msk [vmem:[#allocation3 + $0x100] sm:$0x3] %vm848, 0.0
        %934 = vst.msk [vmem:[#allocation3 + $0x108] sm:$0xff] %vm489, 0.0
        %935 = vst.msk [vmem:[#allocation3 + $0x110] sm:$0xff] %vm489, 0.0
        %936 = vst.msk [vmem:[#allocation3 + $0x118] sm:$0x3] %vm848, 0.0
        %937 = vst.msk [vmem:[#allocation3 + $0x120] sm:$0xff] %vm489, 0.0
        %938 = vst.msk [vmem:[#allocation3 + $0x128] sm:$0xff] %vm489, 0.0
        %939 = vst.msk [vmem:[#allocation3 + $0x130] sm:$0x3] %vm848, 0.0
        %940 = vst.msk [vmem:[#allocation3 + $0x138] sm:$0xff] %vm489, 0.0
        %941 = vst.msk [vmem:[#allocation3 + $0x140] sm:$0xff] %vm489, 0.0
        %942 = vst.msk [vmem:[#allocation3 + $0x148] sm:$0x3] %vm848, 0.0
        %943 = vst.msk [vmem:[#allocation3 + $0x150] sm:$0xff] %vm489, 0.0
        %944 = vst.msk [vmem:[#allocation3 + $0x158] sm:$0xff] %vm489, 0.0
        %945 = vst.msk [vmem:[#allocation3 + $0x160] sm:$0x3] %vm848, 0.0
        %946 = vst.msk [vmem:[#allocation3 + $0x168] sm:$0xff] %vm489, 0.0
        %947 = vst.msk [vmem:[#allocation3 + $0x170] sm:$0xff] %vm489, 0.0
        %948 = vst.msk [vmem:[#allocation3 + $0x178] sm:$0x3] %vm848, 0.0
        %949 = vst.msk [vmem:[#allocation3 + $0x180] sm:$0xff] %vm489, 0.0
        %950 = vst.msk [vmem:[#allocation3 + $0x188] sm:$0xff] %vm489, 0.0
        %951 = vst.msk [vmem:[#allocation3 + $0x190] sm:$0x3] %vm848, 0.0
        %952 = vst.msk [vmem:[#allocation3 + $0x198] sm:$0xff] %vm489, 0.0
        %953 = vst.msk [vmem:[#allocation3 + $0x1a0] sm:$0xff] %vm489, 0.0
        %954 = vst.msk [vmem:[#allocation3 + $0x1a8] sm:$0x3] %vm848, 0.0
        %987 = vrot.lane.b32.xlu0 %v814, 112
        %v988 = vpop.permute.xlu0 %987
        %989 = vrot.lane.b32.xlu0 %v815, 112
        %v990 = vpop.permute.xlu0 %989
        %991 = vrot.lane.b32.xlu0 %v816, 112
        %v992 = vpop.permute.xlu0 %991
        %993 = vrot.lane.b32.xlu0 %v817, 112
        %v994 = vpop.permute.xlu0 %993
        %995 = vrot.lane.b32.xlu0 %v818, 112
        %v996 = vpop.permute.xlu0 %995
        %997 = vrot.lane.b32.xlu0 %v819, 112
        %v998 = vpop.permute.xlu0 %997
        %999 = vrot.lane.b32.xlu0 %v820, 112
        %v1000 = vpop.permute.xlu0 %999
        %1001 = vrot.lane.b32.xlu0 %v821, 112
        %v1002 = vpop.permute.xlu0 %1001
        %1003 = vrot.lane.b32.xlu0 %v822, 112
        %v1004 = vpop.permute.xlu0 %1003
        %1005 = vrot.lane.b32.xlu0 %v823, 112
        %v1006 = vpop.permute.xlu0 %1005
        %1007 = vrot.lane.b32.xlu0 %v824, 112
        %v1008 = vpop.permute.xlu0 %1007
        %1009 = vrot.lane.b32.xlu0 %v825, 112
        %v1010 = vpop.permute.xlu0 %1009
        %1011 = vrot.lane.b32.xlu0 %v826, 112
        %v1012 = vpop.permute.xlu0 %1011
        %1013 = vrot.lane.b32.xlu0 %v827, 112
        %v1014 = vpop.permute.xlu0 %1013
        %1015 = vrot.lane.b32.xlu0 %v828, 112
        %v1016 = vpop.permute.xlu0 %1015
        %1017 = vrot.lane.b32.xlu0 %v829, 112
        %v1018 = vpop.permute.xlu0 %1017
        %1019 = vrot.lane.b32.xlu0 %v830, 112
        %v1020 = vpop.permute.xlu0 %1019
        %1021 = vrot.lane.b32.xlu0 %v831, 112
        %v1022 = vpop.permute.xlu0 %1021
        %1023 = vrot.lane.b32.xlu0 %v832, 112
        %v1024 = vpop.permute.xlu0 %1023
        %1025 = vrot.lane.b32.xlu0 %v833, 112
        %v1026 = vpop.permute.xlu0 %1025
        %1027 = vrot.lane.b32.xlu0 %v834, 112
        %v1028 = vpop.permute.xlu0 %1027
        %1029 = vrot.lane.b32.xlu0 %v835, 112
        %v1030 = vpop.permute.xlu0 %1029
        %1031 = vrot.lane.b32.xlu0 %v836, 112
        %v1032 = vpop.permute.xlu0 %1031
        %1033 = vrot.lane.b32.xlu0 %v837, 112
        %v1034 = vpop.permute.xlu0 %1033
        %1035 = vrot.lane.b32.xlu0 %v838, 112
        %v1036 = vpop.permute.xlu0 %1035
        %1037 = vrot.lane.b32.xlu0 %v839, 112
        %v1038 = vpop.permute.xlu0 %1037
        %1039 = vrot.lane.b32.xlu0 %v840, 112
        %v1040 = vpop.permute.xlu0 %1039
        %1041 = vrot.lane.b32.xlu0 %v841, 112
        %v1042 = vpop.permute.xlu0 %1041
        %1043 = vrot.lane.b32.xlu0 %v842, 112
        %v1044 = vpop.permute.xlu0 %1043
        %1045 = vrot.lane.b32.xlu0 %v843, 112
        %v1046 = vpop.permute.xlu0 %1045
        %1047 = vrot.lane.b32.xlu0 %v844, 112
        %v1048 = vpop.permute.xlu0 %1047
        %1049 = vrot.lane.b32.xlu0 %v845, 112
        %v1050 = vpop.permute.xlu0 %1049
        %s1083 = scalar_lea.vmem [#allocation2], 24
        %1084 = vst.msk [vmem:[%s1083 + $0x1] sm:$0xff] %vm489, %v988
        %1085 = vst.msk [vmem:[%s1083 + $0x9] sm:$0xff] %vm489, %v990
        %1086 = vst.msk [vmem:[%s1083 + $0x19] sm:$0xff] %vm489, %v992
        %1087 = vst.msk [vmem:[%s1083 + $0x21] sm:$0xff] %vm489, %v994
        %1088 = vst.msk [vmem:[%s1083 + $0x31] sm:$0xff] %vm489, %v996
        %1089 = vst.msk [vmem:[%s1083 + $0x39] sm:$0xff] %vm489, %v998
        %1090 = vst.msk [vmem:[%s1083 + $0x49] sm:$0xff] %vm489, %v1000
        %1091 = vst.msk [vmem:[%s1083 + $0x51] sm:$0xff] %vm489, %v1002
        %1092 = vst.msk [vmem:[%s1083 + $0x61] sm:$0xff] %vm489, %v1004
        %1093 = vst.msk [vmem:[%s1083 + $0x69] sm:$0xff] %vm489, %v1006
        %1094 = vst.msk [vmem:[%s1083 + $0x79] sm:$0xff] %vm489, %v1008
        %1095 = vst.msk [vmem:[%s1083 + $0x81] sm:$0xff] %vm489, %v1010
        %1096 = vst.msk [vmem:[%s1083 + $0x91] sm:$0xff] %vm489, %v1012
        %1097 = vst.msk [vmem:[%s1083 + $0x99] sm:$0xff] %vm489, %v1014
        %1098 = vst.msk [vmem:[%s1083 + $0xa9] sm:$0xff] %vm489, %v1016
        %1099 = vst.msk [vmem:[%s1083 + $0xb1] sm:$0xff] %vm489, %v1018
        %1100 = vst.msk [vmem:[%s1083 + $0xc1] sm:$0xff] %vm489, %v1020
        %1101 = vst.msk [vmem:[%s1083 + $0xc9] sm:$0xff] %vm489, %v1022
        %1102 = vst.msk [vmem:[%s1083 + $0xd9] sm:$0xff] %vm489, %v1024
        %1103 = vst.msk [vmem:[%s1083 + $0xe1] sm:$0xff] %vm489, %v1026
        %1104 = vst.msk [vmem:[%s1083 + $0xf1] sm:$0xff] %vm489, %v1028
        %1105 = vst.msk [vmem:[%s1083 + $0xf9] sm:$0xff] %vm489, %v1030
        %1106 = vst.msk [vmem:[%s1083 + $0x109] sm:$0xff] %vm489, %v1032
        %1107 = vst.msk [vmem:[%s1083 + $0x111] sm:$0xff] %vm489, %v1034
        %1108 = vst.msk [vmem:[%s1083 + $0x121] sm:$0xff] %vm489, %v1036
        %1109 = vst.msk [vmem:[%s1083 + $0x129] sm:$0xff] %vm489, %v1038
        %1110 = vst.msk [vmem:[%s1083 + $0x139] sm:$0xff] %vm489, %v1040
        %1111 = vst.msk [vmem:[%s1083 + $0x141] sm:$0xff] %vm489, %v1042
        %1112 = vst.msk [vmem:[%s1083 + $0x151] sm:$0xff] %vm489, %v1044
        %1113 = vst.msk [vmem:[%s1083 + $0x159] sm:$0xff] %vm489, %v1046
        %1114 = vst.msk [vmem:[%s1083 + $0x169] sm:$0xff] %vm489, %v1048
        %1115 = vst.msk [vmem:[%s1083 + $0x171] sm:$0xff] %vm489, %v1050
        %1116 = vrot.lane.b32.xlu0 %v814, 104
        %v1117 = vpop.permute.xlu0 %1116
        %1118 = vrot.lane.b32.xlu0 %v815, 104
        %v1119 = vpop.permute.xlu0 %1118
        %1120 = vrot.lane.b32.xlu0 %v816, 104
        %v1121 = vpop.permute.xlu0 %1120
        %1122 = vrot.lane.b32.xlu0 %v817, 104
        %v1123 = vpop.permute.xlu0 %1122
        %1124 = vrot.lane.b32.xlu0 %v818, 104
        %v1125 = vpop.permute.xlu0 %1124
        %1126 = vrot.lane.b32.xlu0 %v819, 104
        %v1127 = vpop.permute.xlu0 %1126
        %1128 = vrot.lane.b32.xlu0 %v820, 104
        %v1129 = vpop.permute.xlu0 %1128
        %1130 = vrot.lane.b32.xlu0 %v821, 104
        %v1131 = vpop.permute.xlu0 %1130
        %1132 = vrot.lane.b32.xlu0 %v822, 104
        %v1133 = vpop.permute.xlu0 %1132
        %1134 = vrot.lane.b32.xlu0 %v823, 104
        %v1135 = vpop.permute.xlu0 %1134
        %1136 = vrot.lane.b32.xlu0 %v824, 104
        %v1137 = vpop.permute.xlu0 %1136
        %1138 = vrot.lane.b32.xlu0 %v825, 104
        %v1139 = vpop.permute.xlu0 %1138
        %1140 = vrot.lane.b32.xlu0 %v826, 104
        %v1141 = vpop.permute.xlu0 %1140
        %1142 = vrot.lane.b32.xlu0 %v827, 104
        %v1143 = vpop.permute.xlu0 %1142
        %1144 = vrot.lane.b32.xlu0 %v828, 104
        %v1145 = vpop.permute.xlu0 %1144
        %1146 = vrot.lane.b32.xlu0 %v829, 104
        %v1147 = vpop.permute.xlu0 %1146
        %1148 = vrot.lane.b32.xlu0 %v830, 104
        %v1149 = vpop.permute.xlu0 %1148
        %1150 = vrot.lane.b32.xlu0 %v831, 104
        %v1151 = vpop.permute.xlu0 %1150
        %1152 = vrot.lane.b32.xlu0 %v832, 104
        %v1153 = vpop.permute.xlu0 %1152
        %1154 = vrot.lane.b32.xlu0 %v833, 104
        %v1155 = vpop.permute.xlu0 %1154
        %1156 = vrot.lane.b32.xlu0 %v834, 104
        %v1157 = vpop.permute.xlu0 %1156
        %1158 = vrot.lane.b32.xlu0 %v835, 104
        %v1159 = vpop.permute.xlu0 %1158
        %1160 = vrot.lane.b32.xlu0 %v836, 104
        %v1161 = vpop.permute.xlu0 %1160
        %1162 = vrot.lane.b32.xlu0 %v837, 104
        %v1163 = vpop.permute.xlu0 %1162
        %1164 = vrot.lane.b32.xlu0 %v838, 104
        %v1165 = vpop.permute.xlu0 %1164
        %1166 = vrot.lane.b32.xlu0 %v839, 104
        %v1167 = vpop.permute.xlu0 %1166
        %1168 = vrot.lane.b32.xlu0 %v840, 104
        %v1169 = vpop.permute.xlu0 %1168
        %1170 = vrot.lane.b32.xlu0 %v841, 104
        %v1171 = vpop.permute.xlu0 %1170
        %1172 = vrot.lane.b32.xlu0 %v842, 104
        %v1173 = vpop.permute.xlu0 %1172
        %1174 = vrot.lane.b32.xlu0 %v843, 104
        %v1175 = vpop.permute.xlu0 %1174
        %1176 = vrot.lane.b32.xlu0 %v844, 104
        %v1177 = vpop.permute.xlu0 %1176
        %1178 = vrot.lane.b32.xlu0 %v845, 104
        %v1179 = vpop.permute.xlu0 %1178
        %s1212 = scalar_lea.vmem [#allocation3], 24
        %1213 = vst.msk [vmem:[%s1212 + $0x1] sm:$0xff] %vm489, %v1117
        %1214 = vst.msk [vmem:[%s1212 + $0x9] sm:$0xff] %vm489, %v1119
        %1215 = vst.msk [vmem:[%s1212 + $0x19] sm:$0xff] %vm489, %v1121
        %1216 = vst.msk [vmem:[%s1212 + $0x21] sm:$0xff] %vm489, %v1123
        %1217 = vst.msk [vmem:[%s1212 + $0x31] sm:$0xff] %vm489, %v1125
        %1218 = vst.msk [vmem:[%s1212 + $0x39] sm:$0xff] %vm489, %v1127
        %1219 = vst.msk [vmem:[%s1212 + $0x49] sm:$0xff] %vm489, %v1129
        %1220 = vst.msk [vmem:[%s1212 + $0x51] sm:$0xff] %vm489, %v1131
        %1221 = vst.msk [vmem:[%s1212 + $0x61] sm:$0xff] %vm489, %v1133
        %1222 = vst.msk [vmem:[%s1212 + $0x69] sm:$0xff] %vm489, %v1135
        %1223 = vst.msk [vmem:[%s1212 + $0x79] sm:$0xff] %vm489, %v1137
        %1224 = vst.msk [vmem:[%s1212 + $0x81] sm:$0xff] %vm489, %v1139
        %1225 = vst.msk [vmem:[%s1212 + $0x91] sm:$0xff] %vm489, %v1141
        %1226 = vst.msk [vmem:[%s1212 + $0x99] sm:$0xff] %vm489, %v1143
        %1227 = vst.msk [vmem:[%s1212 + $0xa9] sm:$0xff] %vm489, %v1145
        %1228 = vst.msk [vmem:[%s1212 + $0xb1] sm:$0xff] %vm489, %v1147
        %1229 = vst.msk [vmem:[%s1212 + $0xc1] sm:$0xff] %vm489, %v1149
        %1230 = vst.msk [vmem:[%s1212 + $0xc9] sm:$0xff] %vm489, %v1151
        %1231 = vst.msk [vmem:[%s1212 + $0xd9] sm:$0xff] %vm489, %v1153
        %1232 = vst.msk [vmem:[%s1212 + $0xe1] sm:$0xff] %vm489, %v1155
        %1233 = vst.msk [vmem:[%s1212 + $0xf1] sm:$0xff] %vm489, %v1157
        %1234 = vst.msk [vmem:[%s1212 + $0xf9] sm:$0xff] %vm489, %v1159
        %1235 = vst.msk [vmem:[%s1212 + $0x109] sm:$0xff] %vm489, %v1161
        %1236 = vst.msk [vmem:[%s1212 + $0x111] sm:$0xff] %vm489, %v1163
        %1237 = vst.msk [vmem:[%s1212 + $0x121] sm:$0xff] %vm489, %v1165
        %1238 = vst.msk [vmem:[%s1212 + $0x129] sm:$0xff] %vm489, %v1167
        %1239 = vst.msk [vmem:[%s1212 + $0x139] sm:$0xff] %vm489, %v1169
        %1240 = vst.msk [vmem:[%s1212 + $0x141] sm:$0xff] %vm489, %v1171
        %1241 = vst.msk [vmem:[%s1212 + $0x151] sm:$0xff] %vm489, %v1173
        %1242 = vst.msk [vmem:[%s1212 + $0x159] sm:$0xff] %vm489, %v1175
        %1243 = vst.msk [vmem:[%s1212 + $0x169] sm:$0xff] %vm489, %v1177
        %1244 = vst.msk [vmem:[%s1212 + $0x171] sm:$0xff] %vm489, %v1179
        %v1245 = vld [vmem:[#allocation2] sm:$0xff]
        %v1246 = vld [vmem:[#allocation2 + $0x8] sm:$0xff]
        %v1247 = vld [vmem:[#allocation2 + $0x10] sm:$0x3]
        %v1248 = vld [vmem:[#allocation2 + $0x18] sm:$0xff]
        %v1249 = vld [vmem:[#allocation2 + $0x20] sm:$0xff]
        %v1250 = vld [vmem:[#allocation2 + $0x28] sm:$0x3]
        %v1251 = vld [vmem:[#allocation2 + $0x30] sm:$0xff]
        %v1252 = vld [vmem:[#allocation2 + $0x38] sm:$0xff]
        %v1253 = vld [vmem:[#allocation2 + $0x40] sm:$0x3]
        %v1254 = vld [vmem:[#allocation2 + $0x48] sm:$0xff]
        %v1255 = vld [vmem:[#allocation2 + $0x50] sm:$0xff]
        %v1256 = vld [vmem:[#allocation2 + $0x58] sm:$0x3]
        %v1257 = vld [vmem:[#allocation2 + $0x60] sm:$0xff]
        %v1258 = vld [vmem:[#allocation2 + $0x68] sm:$0xff]
        %v1259 = vld [vmem:[#allocation2 + $0x70] sm:$0x3]
        %v1260 = vld [vmem:[#allocation2 + $0x78] sm:$0xff]
        %v1261 = vld [vmem:[#allocation2 + $0x80] sm:$0xff]
        %v1262 = vld [vmem:[#allocation2 + $0x88] sm:$0x3]
        %v1263 = vld [vmem:[#allocation2 + $0x90] sm:$0xff]
        %v1264 = vld [vmem:[#allocation2 + $0x98] sm:$0xff]
        %v1265 = vld [vmem:[#allocation2 + $0xa0] sm:$0x3]
        %v1266 = vld [vmem:[#allocation2 + $0xa8] sm:$0xff]
        %v1267 = vld [vmem:[#allocation2 + $0xb0] sm:$0xff]
        %v1268 = vld [vmem:[#allocation2 + $0xb8] sm:$0x3]
        %v1269 = vld [vmem:[#allocation2 + $0xc0] sm:$0xff]
        %v1270 = vld [vmem:[#allocation2 + $0xc8] sm:$0xff]
        %v1271 = vld [vmem:[#allocation2 + $0xd0] sm:$0x3]
        %v1272 = vld [vmem:[#allocation2 + $0xd8] sm:$0xff]
        %v1273 = vld [vmem:[#allocation2 + $0xe0] sm:$0xff]
        %v1274 = vld [vmem:[#allocation2 + $0xe8] sm:$0x3]
        %v1275 = vld [vmem:[#allocation2 + $0xf0] sm:$0xff]
        %v1276 = vld [vmem:[#allocation2 + $0xf8] sm:$0xff]
        %v1277 = vld [vmem:[#allocation2 + $0x100] sm:$0x3]
        %v1278 = vld [vmem:[#allocation2 + $0x108] sm:$0xff]
        %v1279 = vld [vmem:[#allocation2 + $0x110] sm:$0xff]
        %v1280 = vld [vmem:[#allocation2 + $0x118] sm:$0x3]
        %v1281 = vld [vmem:[#allocation2 + $0x120] sm:$0xff]
        %v1282 = vld [vmem:[#allocation2 + $0x128] sm:$0xff]
        %v1283 = vld [vmem:[#allocation2 + $0x130] sm:$0x3]
        %v1284 = vld [vmem:[#allocation2 + $0x138] sm:$0xff]
        %v1285 = vld [vmem:[#allocation2 + $0x140] sm:$0xff]
        %v1286 = vld [vmem:[#allocation2 + $0x148] sm:$0x3]
        %v1287 = vld [vmem:[#allocation2 + $0x150] sm:$0xff]
        %v1288 = vld [vmem:[#allocation2 + $0x158] sm:$0xff]
        %v1289 = vld [vmem:[#allocation2 + $0x160] sm:$0x3]
        %v1290 = vld [vmem:[#allocation2 + $0x168] sm:$0xff]
        %v1291 = vld [vmem:[#allocation2 + $0x170] sm:$0xff]
        %v1292 = vld [vmem:[#allocation2 + $0x178] sm:$0x3]
        %v1293 = vld [vmem:[#allocation2 + $0x180] sm:$0xff]
        %v1294 = vld [vmem:[#allocation2 + $0x188] sm:$0xff]
        %v1295 = vld [vmem:[#allocation2 + $0x190] sm:$0x3]
        %v1296 = vld [vmem:[#allocation2 + $0x198] sm:$0xff]
        %v1297 = vld [vmem:[#allocation2 + $0x1a0] sm:$0xff]
        %v1298 = vld [vmem:[#allocation2 + $0x1a8] sm:$0x3]
        %v1299 = vld [vmem:[#allocation3] sm:$0xff]
        %v1300 = vld [vmem:[#allocation3 + $0x8] sm:$0xff]
        %v1301 = vld [vmem:[#allocation3 + $0x10] sm:$0x3]
        %v1302 = vld [vmem:[#allocation3 + $0x18] sm:$0xff]
        %v1303 = vld [vmem:[#allocation3 + $0x20] sm:$0xff]
        %v1304 = vld [vmem:[#allocation3 + $0x28] sm:$0x3]
        %v1305 = vld [vmem:[#allocation3 + $0x30] sm:$0xff]
        %v1306 = vld [vmem:[#allocation3 + $0x38] sm:$0xff]
        %v1307 = vld [vmem:[#allocation3 + $0x40] sm:$0x3]
        %v1308 = vld [vmem:[#allocation3 + $0x48] sm:$0xff]
        %v1309 = vld [vmem:[#allocation3 + $0x50] sm:$0xff]
        %v1310 = vld [vmem:[#allocation3 + $0x58] sm:$0x3]
        %v1311 = vld [vmem:[#allocation3 + $0x60] sm:$0xff]
        %v1312 = vld [vmem:[#allocation3 + $0x68] sm:$0xff]
        %v1313 = vld [vmem:[#allocation3 + $0x70] sm:$0x3]
        %v1314 = vld [vmem:[#allocation3 + $0x78] sm:$0xff]
        %v1315 = vld [vmem:[#allocation3 + $0x80] sm:$0xff]
        %v1316 = vld [vmem:[#allocation3 + $0x88] sm:$0x3]
        %v1317 = vld [vmem:[#allocation3 + $0x90] sm:$0xff]
        %v1318 = vld [vmem:[#allocation3 + $0x98] sm:$0xff]
        %v1319 = vld [vmem:[#allocation3 + $0xa0] sm:$0x3]
        %v1320 = vld [vmem:[#allocation3 + $0xa8] sm:$0xff]
        %v1321 = vld [vmem:[#allocation3 + $0xb0] sm:$0xff]
        %v1322 = vld [vmem:[#allocation3 + $0xb8] sm:$0x3]
        %v1323 = vld [vmem:[#allocation3 + $0xc0] sm:$0xff]
        %v1324 = vld [vmem:[#allocation3 + $0xc8] sm:$0xff]
        %v1325 = vld [vmem:[#allocation3 + $0xd0] sm:$0x3]
        %v1326 = vld [vmem:[#allocation3 + $0xd8] sm:$0xff]
        %v1327 = vld [vmem:[#allocation3 + $0xe0] sm:$0xff]
        %v1328 = vld [vmem:[#allocation3 + $0xe8] sm:$0x3]
        %v1329 = vld [vmem:[#allocation3 + $0xf0] sm:$0xff]
        %v1330 = vld [vmem:[#allocation3 + $0xf8] sm:$0xff]
        %v1331 = vld [vmem:[#allocation3 + $0x100] sm:$0x3]
        %v1332 = vld [vmem:[#allocation3 + $0x108] sm:$0xff]
        %v1333 = vld [vmem:[#allocation3 + $0x110] sm:$0xff]
        %v1334 = vld [vmem:[#allocation3 + $0x118] sm:$0x3]
        %v1335 = vld [vmem:[#allocation3 + $0x120] sm:$0xff]
        %v1336 = vld [vmem:[#allocation3 + $0x128] sm:$0xff]
        %v1337 = vld [vmem:[#allocation3 + $0x130] sm:$0x3]
        %v1338 = vld [vmem:[#allocation3 + $0x138] sm:$0xff]
        %v1339 = vld [vmem:[#allocation3 + $0x140] sm:$0xff]
        %v1340 = vld [vmem:[#allocation3 + $0x148] sm:$0x3]
        %v1341 = vld [vmem:[#allocation3 + $0x150] sm:$0xff]
        %v1342 = vld [vmem:[#allocation3 + $0x158] sm:$0xff]
        %v1343 = vld [vmem:[#allocation3 + $0x160] sm:$0x3]
        %v1344 = vld [vmem:[#allocation3 + $0x168] sm:$0xff]
        %v1345 = vld [vmem:[#allocation3 + $0x170] sm:$0xff]
        %v1346 = vld [vmem:[#allocation3 + $0x178] sm:$0x3]
        %v1347 = vld [vmem:[#allocation3 + $0x180] sm:$0xff]
        %v1348 = vld [vmem:[#allocation3 + $0x188] sm:$0xff]
        %v1349 = vld [vmem:[#allocation3 + $0x190] sm:$0x3]
        %v1350 = vld [vmem:[#allocation3 + $0x198] sm:$0xff]
        %v1351 = vld [vmem:[#allocation3 + $0x1a0] sm:$0xff]
        %v1352 = vld [vmem:[#allocation3 + $0x1a8] sm:$0x3]
        %1353 = vst.msk [vmem:[#allocation5] sm:$0xff] %vm489, %v1245
        %1354 = vst.msk [vmem:[#allocation5 + $0x8] sm:$0xff] %vm489, %v1246
        %1355 = vst.msk [vmem:[#allocation5 + $0x10] sm:$0xff] %vm489, %v1248
        %1356 = vst.msk [vmem:[#allocation5 + $0x18] sm:$0xff] %vm489, %v1249
        %1357 = vst.msk [vmem:[#allocation5 + $0x20] sm:$0xff] %vm489, %v1251
        %1358 = vst.msk [vmem:[#allocation5 + $0x28] sm:$0xff] %vm489, %v1252
        %1359 = vst.msk [vmem:[#allocation5 + $0x30] sm:$0xff] %vm489, %v1254
        %1360 = vst.msk [vmem:[#allocation5 + $0x38] sm:$0xff] %vm489, %v1255
        %1361 = vst.msk [vmem:[#allocation5 + $0x40] sm:$0xff] %vm489, %v1257
        %1362 = vst.msk [vmem:[#allocation5 + $0x48] sm:$0xff] %vm489, %v1258
        %1363 = vst.msk [vmem:[#allocation5 + $0x50] sm:$0xff] %vm489, %v1260
        %1364 = vst.msk [vmem:[#allocation5 + $0x58] sm:$0xff] %vm489, %v1261
        %1365 = vst.msk [vmem:[#allocation5 + $0x60] sm:$0xff] %vm489, %v1263
        %1366 = vst.msk [vmem:[#allocation5 + $0x68] sm:$0xff] %vm489, %v1264
        %1367 = vst.msk [vmem:[#allocation5 + $0x70] sm:$0xff] %vm489, %v1266
        %1368 = vst.msk [vmem:[#allocation5 + $0x78] sm:$0xff] %vm489, %v1267
        %1369 = vst.msk [vmem:[#allocation5 + $0x80] sm:$0xff] %vm489, %v1269
        %1370 = vst.msk [vmem:[#allocation5 + $0x88] sm:$0xff] %vm489, %v1270
        %1371 = vst.msk [vmem:[#allocation5 + $0x90] sm:$0xff] %vm489, %v1272
        %1372 = vst.msk [vmem:[#allocation5 + $0x98] sm:$0xff] %vm489, %v1273
        %1373 = vst.msk [vmem:[#allocation5 + $0xa0] sm:$0xff] %vm489, %v1275
        %1374 = vst.msk [vmem:[#allocation5 + $0xa8] sm:$0xff] %vm489, %v1276
        %1375 = vst.msk [vmem:[#allocation5 + $0xb0] sm:$0xff] %vm489, %v1278
        %1376 = vst.msk [vmem:[#allocation5 + $0xb8] sm:$0xff] %vm489, %v1279
        %1377 = vst.msk [vmem:[#allocation5 + $0xc0] sm:$0xff] %vm489, %v1281
        %1378 = vst.msk [vmem:[#allocation5 + $0xc8] sm:$0xff] %vm489, %v1282
        %1379 = vst.msk [vmem:[#allocation5 + $0xd0] sm:$0xff] %vm489, %v1284
        %1380 = vst.msk [vmem:[#allocation5 + $0xd8] sm:$0xff] %vm489, %v1285
        %1381 = vst.msk [vmem:[#allocation5 + $0xe0] sm:$0xff] %vm489, %v1287
        %1382 = vst.msk [vmem:[#allocation5 + $0xe8] sm:$0xff] %vm489, %v1288
        %1383 = vst.msk [vmem:[#allocation5 + $0xf0] sm:$0xff] %vm489, %v1290
        %1384 = vst.msk [vmem:[#allocation5 + $0xf8] sm:$0xff] %vm489, %v1291
        %1385 = vst.msk [vmem:[#allocation6] sm:$0xff] %vm489, %v1299
        %1386 = vst.msk [vmem:[#allocation6 + $0x8] sm:$0xff] %vm489, %v1300
        %1387 = vst.msk [vmem:[#allocation6 + $0x10] sm:$0xff] %vm489, %v1302
        %1388 = vst.msk [vmem:[#allocation6 + $0x18] sm:$0xff] %vm489, %v1303
        %1389 = vst.msk [vmem:[#allocation6 + $0x20] sm:$0xff] %vm489, %v1305
        %1390 = vst.msk [vmem:[#allocation6 + $0x28] sm:$0xff] %vm489, %v1306
        %1391 = vst.msk [vmem:[#allocation6 + $0x30] sm:$0xff] %vm489, %v1308
        %1392 = vst.msk [vmem:[#allocation6 + $0x38] sm:$0xff] %vm489, %v1309
        %1393 = vst.msk [vmem:[#allocation6 + $0x40] sm:$0xff] %vm489, %v1311
        %1394 = vst.msk [vmem:[#allocation6 + $0x48] sm:$0xff] %vm489, %v1312
        %1395 = vst.msk [vmem:[#allocation6 + $0x50] sm:$0xff] %vm489, %v1314
        %1396 = vst.msk [vmem:[#allocation6 + $0x58] sm:$0xff] %vm489, %v1315
        %1397 = vst.msk [vmem:[#allocation6 + $0x60] sm:$0xff] %vm489, %v1317
        %1398 = vst.msk [vmem:[#allocation6 + $0x68] sm:$0xff] %vm489, %v1318
        %1399 = vst.msk [vmem:[#allocation6 + $0x70] sm:$0xff] %vm489, %v1320
        %1400 = vst.msk [vmem:[#allocation6 + $0x78] sm:$0xff] %vm489, %v1321
        %1401 = vst.msk [vmem:[#allocation6 + $0x80] sm:$0xff] %vm489, %v1323
        %1402 = vst.msk [vmem:[#allocation6 + $0x88] sm:$0xff] %vm489, %v1324
        %1403 = vst.msk [vmem:[#allocation6 + $0x90] sm:$0xff] %vm489, %v1326
        %1404 = vst.msk [vmem:[#allocation6 + $0x98] sm:$0xff] %vm489, %v1327
        %1405 = vst.msk [vmem:[#allocation6 + $0xa0] sm:$0xff] %vm489, %v1329
        %1406 = vst.msk [vmem:[#allocation6 + $0xa8] sm:$0xff] %vm489, %v1330
        %1407 = vst.msk [vmem:[#allocation6 + $0xb0] sm:$0xff] %vm489, %v1332
        %1408 = vst.msk [vmem:[#allocation6 + $0xb8] sm:$0xff] %vm489, %v1333
        %1409 = vst.msk [vmem:[#allocation6 + $0xc0] sm:$0xff] %vm489, %v1335
        %1410 = vst.msk [vmem:[#allocation6 + $0xc8] sm:$0xff] %vm489, %v1336
        %1411 = vst.msk [vmem:[#allocation6 + $0xd0] sm:$0xff] %vm489, %v1338
        %1412 = vst.msk [vmem:[#allocation6 + $0xd8] sm:$0xff] %vm489, %v1339
        %1413 = vst.msk [vmem:[#allocation6 + $0xe0] sm:$0xff] %vm489, %v1341
        %1414 = vst.msk [vmem:[#allocation6 + $0xe8] sm:$0xff] %vm489, %v1342
        %1415 = vst.msk [vmem:[#allocation6 + $0xf0] sm:$0xff] %vm489, %v1344
        %1416 = vst.msk [vmem:[#allocation6 + $0xf8] sm:$0xff] %vm489, %v1345
        %vm1465 = vcmask 1046528
        %v1466 = vrot.slane %v1245, 1
        %v1467 = vrot.slane %v1246, 1
        %v1468 = vsel %vm1465, %v1466, %v1467
        %v1469 = vrot.slane %v1247, 1
        %v1470 = vsel %vm1465, %v1467, %v1469
        %v1471 = vrot.slane %v1248, 1
        %v1472 = vrot.slane %v1249, 1
        %v1473 = vsel %vm1465, %v1471, %v1472
        %v1474 = vrot.slane %v1250, 1
        %v1475 = vsel %vm1465, %v1472, %v1474
        %v1476 = vrot.slane %v1251, 1
        %v1477 = vrot.slane %v1252, 1
        %v1478 = vsel %vm1465, %v1476, %v1477
        %v1479 = vrot.slane %v1253, 1
        %v1480 = vsel %vm1465, %v1477, %v1479
        %v1481 = vrot.slane %v1254, 1
        %v1482 = vrot.slane %v1255, 1
        %v1483 = vsel %vm1465, %v1481, %v1482
        %v1484 = vrot.slane %v1256, 1
        %v1485 = vsel %vm1465, %v1482, %v1484
        %v1486 = vrot.slane %v1257, 1
        %v1487 = vrot.slane %v1258, 1
        %v1488 = vsel %vm1465, %v1486, %v1487
        %v1489 = vrot.slane %v1259, 1
        %v1490 = vsel %vm1465, %v1487, %v1489
        %v1491 = vrot.slane %v1260, 1
        %v1492 = vrot.slane %v1261, 1
        %v1493 = vsel %vm1465, %v1491, %v1492
        %v1494 = vrot.slane %v1262, 1
        %v1495 = vsel %vm1465, %v1492, %v1494
        %v1496 = vrot.slane %v1263, 1
        %v1497 = vrot.slane %v1264, 1
        %v1498 = vsel %vm1465, %v1496, %v1497
        %v1499 = vrot.slane %v1265, 1
        %v1500 = vsel %vm1465, %v1497, %v1499
        %v1501 = vrot.slane %v1266, 1
        %v1502 = vrot.slane %v1267, 1
        %v1503 = vsel %vm1465, %v1501, %v1502
        %v1504 = vrot.slane %v1268, 1
        %v1505 = vsel %vm1465, %v1502, %v1504
        %v1506 = vrot.slane %v1269, 1
        %v1507 = vrot.slane %v1270, 1
        %v1508 = vsel %vm1465, %v1506, %v1507
        %v1509 = vrot.slane %v1271, 1
        %v1510 = vsel %vm1465, %v1507, %v1509
        %v1511 = vrot.slane %v1272, 1
        %v1512 = vrot.slane %v1273, 1
        %v1513 = vsel %vm1465, %v1511, %v1512
        %v1514 = vrot.slane %v1274, 1
        %v1515 = vsel %vm1465, %v1512, %v1514
        %v1516 = vrot.slane %v1275, 1
        %v1517 = vrot.slane %v1276, 1
        %v1518 = vsel %vm1465, %v1516, %v1517
        %v1519 = vrot.slane %v1277, 1
        %v1520 = vsel %vm1465, %v1517, %v1519
        %v1521 = vrot.slane %v1278, 1
        %v1522 = vrot.slane %v1279, 1
        %v1523 = vsel %vm1465, %v1521, %v1522
        %v1524 = vrot.slane %v1280, 1
        %v1525 = vsel %vm1465, %v1522, %v1524
        %v1526 = vrot.slane %v1281, 1
        %v1527 = vrot.slane %v1282, 1
        %v1528 = vsel %vm1465, %v1526, %v1527
        %v1529 = vrot.slane %v1283, 1
        %v1530 = vsel %vm1465, %v1527, %v1529
        %v1531 = vrot.slane %v1284, 1
        %v1532 = vrot.slane %v1285, 1
        %v1533 = vsel %vm1465, %v1531, %v1532
        %v1534 = vrot.slane %v1286, 1
        %v1535 = vsel %vm1465, %v1532, %v1534
        %v1536 = vrot.slane %v1287, 1
        %v1537 = vrot.slane %v1288, 1
        %v1538 = vsel %vm1465, %v1536, %v1537
        %v1539 = vrot.slane %v1289, 1
        %v1540 = vsel %vm1465, %v1537, %v1539
        %v1541 = vrot.slane %v1290, 1
        %v1542 = vrot.slane %v1291, 1
        %v1543 = vsel %vm1465, %v1541, %v1542
        %v1544 = vrot.slane %v1292, 1
        %v1545 = vsel %vm1465, %v1542, %v1544
        %1546 = vrot.lane.b32.xlu0 %v1468, 8
        %v1547 = vpop.permute.xlu0 %1546
        %1548 = vrot.lane.b32.xlu0 %v1470, 8
        %v1549 = vpop.permute.xlu0 %1548
        %1550 = vrot.lane.b32.xlu0 %v1473, 8
        %v1551 = vpop.permute.xlu0 %1550
        %1552 = vrot.lane.b32.xlu0 %v1475, 8
        %v1553 = vpop.permute.xlu0 %1552
        %1554 = vrot.lane.b32.xlu0 %v1478, 8
        %v1555 = vpop.permute.xlu0 %1554
        %1556 = vrot.lane.b32.xlu0 %v1480, 8
        %v1557 = vpop.permute.xlu0 %1556
        %1558 = vrot.lane.b32.xlu0 %v1483, 8
        %v1559 = vpop.permute.xlu0 %1558
        %1560 = vrot.lane.b32.xlu0 %v1485, 8
        %v1561 = vpop.permute.xlu0 %1560
        %1562 = vrot.lane.b32.xlu0 %v1488, 8
        %v1563 = vpop.permute.xlu0 %1562
        %1564 = vrot.lane.b32.xlu0 %v1490, 8
        %v1565 = vpop.permute.xlu0 %1564
        %1566 = vrot.lane.b32.xlu0 %v1493, 8
        %v1567 = vpop.permute.xlu0 %1566
        %1568 = vrot.lane.b32.xlu0 %v1495, 8
        %v1569 = vpop.permute.xlu0 %1568
        %1570 = vrot.lane.b32.xlu0 %v1498, 8
        %v1571 = vpop.permute.xlu0 %1570
        %1572 = vrot.lane.b32.xlu0 %v1500, 8
        %v1573 = vpop.permute.xlu0 %1572
        %1574 = vrot.lane.b32.xlu0 %v1503, 8
        %v1575 = vpop.permute.xlu0 %1574
        %1576 = vrot.lane.b32.xlu0 %v1505, 8
        %v1577 = vpop.permute.xlu0 %1576
        %1578 = vrot.lane.b32.xlu0 %v1508, 8
        %v1579 = vpop.permute.xlu0 %1578
        %1580 = vrot.lane.b32.xlu0 %v1510, 8
        %v1581 = vpop.permute.xlu0 %1580
        %1582 = vrot.lane.b32.xlu0 %v1513, 8
        %v1583 = vpop.permute.xlu0 %1582
        %1584 = vrot.lane.b32.xlu0 %v1515, 8
        %v1585 = vpop.permute.xlu0 %1584
        %1586 = vrot.lane.b32.xlu0 %v1518, 8
        %v1587 = vpop.permute.xlu0 %1586
        %1588 = vrot.lane.b32.xlu0 %v1520, 8
        %v1589 = vpop.permute.xlu0 %1588
        %1590 = vrot.lane.b32.xlu0 %v1523, 8
        %v1591 = vpop.permute.xlu0 %1590
        %1592 = vrot.lane.b32.xlu0 %v1525, 8
        %v1593 = vpop.permute.xlu0 %1592
        %1594 = vrot.lane.b32.xlu0 %v1528, 8
        %v1595 = vpop.permute.xlu0 %1594
        %1596 = vrot.lane.b32.xlu0 %v1530, 8
        %v1597 = vpop.permute.xlu0 %1596
        %1598 = vrot.lane.b32.xlu0 %v1533, 8
        %v1599 = vpop.permute.xlu0 %1598
        %1600 = vrot.lane.b32.xlu0 %v1535, 8
        %v1601 = vpop.permute.xlu0 %1600
        %1602 = vrot.lane.b32.xlu0 %v1538, 8
        %v1603 = vpop.permute.xlu0 %1602
        %1604 = vrot.lane.b32.xlu0 %v1540, 8
        %v1605 = vpop.permute.xlu0 %1604
        %1606 = vrot.lane.b32.xlu0 %v1543, 8
        %v1607 = vpop.permute.xlu0 %1606
        %1608 = vrot.lane.b32.xlu0 %v1545, 8
        %v1609 = vpop.permute.xlu0 %1608
        %vm1642 = vcmask 130112
        %1643 = vst.msk [vmem:[#allocation5] sm:$0xff] %vm1642, %v1547
        %1644 = vst.msk [vmem:[#allocation5 + $0x8] sm:$0xff] %vm1642, %v1549
        %1645 = vst.msk [vmem:[#allocation5 + $0x10] sm:$0xff] %vm1642, %v1551
        %1646 = vst.msk [vmem:[#allocation5 + $0x18] sm:$0xff] %vm1642, %v1553
        %1647 = vst.msk [vmem:[#allocation5 + $0x20] sm:$0xff] %vm1642, %v1555
        %1648 = vst.msk [vmem:[#allocation5 + $0x28] sm:$0xff] %vm1642, %v1557
        %1649 = vst.msk [vmem:[#allocation5 + $0x30] sm:$0xff] %vm1642, %v1559
        %1650 = vst.msk [vmem:[#allocation5 + $0x38] sm:$0xff] %vm1642, %v1561
        %1651 = vst.msk [vmem:[#allocation5 + $0x40] sm:$0xff] %vm1642, %v1563
        %1652 = vst.msk [vmem:[#allocation5 + $0x48] sm:$0xff] %vm1642, %v1565
        %1653 = vst.msk [vmem:[#allocation5 + $0x50] sm:$0xff] %vm1642, %v1567
        %1654 = vst.msk [vmem:[#allocation5 + $0x58] sm:$0xff] %vm1642, %v1569
        %1655 = vst.msk [vmem:[#allocation5 + $0x60] sm:$0xff] %vm1642, %v1571
        %1656 = vst.msk [vmem:[#allocation5 + $0x68] sm:$0xff] %vm1642, %v1573
        %1657 = vst.msk [vmem:[#allocation5 + $0x70] sm:$0xff] %vm1642, %v1575
        %1658 = vst.msk [vmem:[#allocation5 + $0x78] sm:$0xff] %vm1642, %v1577
        %1659 = vst.msk [vmem:[#allocation5 + $0x80] sm:$0xff] %vm1642, %v1579
        %1660 = vst.msk [vmem:[#allocation5 + $0x88] sm:$0xff] %vm1642, %v1581
        %1661 = vst.msk [vmem:[#allocation5 + $0x90] sm:$0xff] %vm1642, %v1583
        %1662 = vst.msk [vmem:[#allocation5 + $0x98] sm:$0xff] %vm1642, %v1585
        %1663 = vst.msk [vmem:[#allocation5 + $0xa0] sm:$0xff] %vm1642, %v1587
        %1664 = vst.msk [vmem:[#allocation5 + $0xa8] sm:$0xff] %vm1642, %v1589
        %1665 = vst.msk [vmem:[#allocation5 + $0xb0] sm:$0xff] %vm1642, %v1591
        %1666 = vst.msk [vmem:[#allocation5 + $0xb8] sm:$0xff] %vm1642, %v1593
        %1667 = vst.msk [vmem:[#allocation5 + $0xc0] sm:$0xff] %vm1642, %v1595
        %1668 = vst.msk [vmem:[#allocation5 + $0xc8] sm:$0xff] %vm1642, %v1597
        %1669 = vst.msk [vmem:[#allocation5 + $0xd0] sm:$0xff] %vm1642, %v1599
        %1670 = vst.msk [vmem:[#allocation5 + $0xd8] sm:$0xff] %vm1642, %v1601
        %1671 = vst.msk [vmem:[#allocation5 + $0xe0] sm:$0xff] %vm1642, %v1603
        %1672 = vst.msk [vmem:[#allocation5 + $0xe8] sm:$0xff] %vm1642, %v1605
        %1673 = vst.msk [vmem:[#allocation5 + $0xf0] sm:$0xff] %vm1642, %v1607
        %1674 = vst.msk [vmem:[#allocation5 + $0xf8] sm:$0xff] %vm1642, %v1609
        %v1723 = vrot.slane %v1299, 1
        %v1724 = vrot.slane %v1300, 1
        %v1725 = vsel %vm1465, %v1723, %v1724
        %v1726 = vrot.slane %v1301, 1
        %v1727 = vsel %vm1465, %v1724, %v1726
        %v1728 = vrot.slane %v1302, 1
        %v1729 = vrot.slane %v1303, 1
        %v1730 = vsel %vm1465, %v1728, %v1729
        %v1731 = vrot.slane %v1304, 1
        %v1732 = vsel %vm1465, %v1729, %v1731
        %v1733 = vrot.slane %v1305, 1
        %v1734 = vrot.slane %v1306, 1
        %v1735 = vsel %vm1465, %v1733, %v1734
        %v1736 = vrot.slane %v1307, 1
        %v1737 = vsel %vm1465, %v1734, %v1736
        %v1738 = vrot.slane %v1308, 1
        %v1739 = vrot.slane %v1309, 1
        %v1740 = vsel %vm1465, %v1738, %v1739
        %v1741 = vrot.slane %v1310, 1
        %v1742 = vsel %vm1465, %v1739, %v1741
        %v1743 = vrot.slane %v1311, 1
        %v1744 = vrot.slane %v1312, 1
        %v1745 = vsel %vm1465, %v1743, %v1744
        %v1746 = vrot.slane %v1313, 1
        %v1747 = vsel %vm1465, %v1744, %v1746
        %v1748 = vrot.slane %v1314, 1
        %v1749 = vrot.slane %v1315, 1
        %v1750 = vsel %vm1465, %v1748, %v1749
        %v1751 = vrot.slane %v1316, 1
        %v1752 = vsel %vm1465, %v1749, %v1751
        %v1753 = vrot.slane %v1317, 1
        %v1754 = vrot.slane %v1318, 1
        %v1755 = vsel %vm1465, %v1753, %v1754
        %v1756 = vrot.slane %v1319, 1
        %v1757 = vsel %vm1465, %v1754, %v1756
        %v1758 = vrot.slane %v1320, 1
        %v1759 = vrot.slane %v1321, 1
        %v1760 = vsel %vm1465, %v1758, %v1759
        %v1761 = vrot.slane %v1322, 1
        %v1762 = vsel %vm1465, %v1759, %v1761
        %v1763 = vrot.slane %v1323, 1
        %v1764 = vrot.slane %v1324, 1
        %v1765 = vsel %vm1465, %v1763, %v1764
        %v1766 = vrot.slane %v1325, 1
        %v1767 = vsel %vm1465, %v1764, %v1766
        %v1768 = vrot.slane %v1326, 1
        %v1769 = vrot.slane %v1327, 1
        %v1770 = vsel %vm1465, %v1768, %v1769
        %v1771 = vrot.slane %v1328, 1
        %v1772 = vsel %vm1465, %v1769, %v1771
        %v1773 = vrot.slane %v1329, 1
        %v1774 = vrot.slane %v1330, 1
        %v1775 = vsel %vm1465, %v1773, %v1774
        %v1776 = vrot.slane %v1331, 1
        %v1777 = vsel %vm1465, %v1774, %v1776
        %v1778 = vrot.slane %v1332, 1
        %v1779 = vrot.slane %v1333, 1
        %v1780 = vsel %vm1465, %v1778, %v1779
        %v1781 = vrot.slane %v1334, 1
        %v1782 = vsel %vm1465, %v1779, %v1781
        %v1783 = vrot.slane %v1335, 1
        %v1784 = vrot.slane %v1336, 1
        %v1785 = vsel %vm1465, %v1783, %v1784
        %v1786 = vrot.slane %v1337, 1
        %v1787 = vsel %vm1465, %v1784, %v1786
        %v1788 = vrot.slane %v1338, 1
        %v1789 = vrot.slane %v1339, 1
        %v1790 = vsel %vm1465, %v1788, %v1789
        %v1791 = vrot.slane %v1340, 1
        %v1792 = vsel %vm1465, %v1789, %v1791
        %v1793 = vrot.slane %v1341, 1
        %v1794 = vrot.slane %v1342, 1
        %v1795 = vsel %vm1465, %v1793, %v1794
        %v1796 = vrot.slane %v1343, 1
        %v1797 = vsel %vm1465, %v1794, %v1796
        %v1798 = vrot.slane %v1344, 1
        %v1799 = vrot.slane %v1345, 1
        %v1800 = vsel %vm1465, %v1798, %v1799
        %v1801 = vrot.slane %v1346, 1
        %v1802 = vsel %vm1465, %v1799, %v1801
        %1803 = vrot.lane.b32.xlu0 %v1725, 8
        %v1804 = vpop.permute.xlu0 %1803
        %1805 = vrot.lane.b32.xlu0 %v1727, 8
        %v1806 = vpop.permute.xlu0 %1805
        %1807 = vrot.lane.b32.xlu0 %v1730, 8
        %v1808 = vpop.permute.xlu0 %1807
        %1809 = vrot.lane.b32.xlu0 %v1732, 8
        %v1810 = vpop.permute.xlu0 %1809
        %1811 = vrot.lane.b32.xlu0 %v1735, 8
        %v1812 = vpop.permute.xlu0 %1811
        %1813 = vrot.lane.b32.xlu0 %v1737, 8
        %v1814 = vpop.permute.xlu0 %1813
        %1815 = vrot.lane.b32.xlu0 %v1740, 8
        %v1816 = vpop.permute.xlu0 %1815
        %1817 = vrot.lane.b32.xlu0 %v1742, 8
        %v1818 = vpop.permute.xlu0 %1817
        %1819 = vrot.lane.b32.xlu0 %v1745, 8
        %v1820 = vpop.permute.xlu0 %1819
        %1821 = vrot.lane.b32.xlu0 %v1747, 8
        %v1822 = vpop.permute.xlu0 %1821
        %1823 = vrot.lane.b32.xlu0 %v1750, 8
        %v1824 = vpop.permute.xlu0 %1823
        %1825 = vrot.lane.b32.xlu0 %v1752, 8
        %v1826 = vpop.permute.xlu0 %1825
        %1827 = vrot.lane.b32.xlu0 %v1755, 8
        %v1828 = vpop.permute.xlu0 %1827
        %1829 = vrot.lane.b32.xlu0 %v1757, 8
        %v1830 = vpop.permute.xlu0 %1829
        %1831 = vrot.lane.b32.xlu0 %v1760, 8
        %v1832 = vpop.permute.xlu0 %1831
        %1833 = vrot.lane.b32.xlu0 %v1762, 8
        %v1834 = vpop.permute.xlu0 %1833
        %1835 = vrot.lane.b32.xlu0 %v1765, 8
        %v1836 = vpop.permute.xlu0 %1835
        %1837 = vrot.lane.b32.xlu0 %v1767, 8
        %v1838 = vpop.permute.xlu0 %1837
        %1839 = vrot.lane.b32.xlu0 %v1770, 8
        %v1840 = vpop.permute.xlu0 %1839
        %1841 = vrot.lane.b32.xlu0 %v1772, 8
        %v1842 = vpop.permute.xlu0 %1841
        %1843 = vrot.lane.b32.xlu0 %v1775, 8
        %v1844 = vpop.permute.xlu0 %1843
        %1845 = vrot.lane.b32.xlu0 %v1777, 8
        %v1846 = vpop.permute.xlu0 %1845
        %1847 = vrot.lane.b32.xlu0 %v1780, 8
        %v1848 = vpop.permute.xlu0 %1847
        %1849 = vrot.lane.b32.xlu0 %v1782, 8
        %v1850 = vpop.permute.xlu0 %1849
        %1851 = vrot.lane.b32.xlu0 %v1785, 8
        %v1852 = vpop.permute.xlu0 %1851
        %1853 = vrot.lane.b32.xlu0 %v1787, 8
        %v1854 = vpop.permute.xlu0 %1853
        %1855 = vrot.lane.b32.xlu0 %v1790, 8
        %v1856 = vpop.permute.xlu0 %1855
        %1857 = vrot.lane.b32.xlu0 %v1792, 8
        %v1858 = vpop.permute.xlu0 %1857
        %1859 = vrot.lane.b32.xlu0 %v1795, 8
        %v1860 = vpop.permute.xlu0 %1859
        %1861 = vrot.lane.b32.xlu0 %v1797, 8
        %v1862 = vpop.permute.xlu0 %1861
        %1863 = vrot.lane.b32.xlu0 %v1800, 8
        %v1864 = vpop.permute.xlu0 %1863
        %1865 = vrot.lane.b32.xlu0 %v1802, 8
        %v1866 = vpop.permute.xlu0 %1865
        %1899 = vst.msk [vmem:[#allocation6] sm:$0xff] %vm1642, %v1804
        %1900 = vst.msk [vmem:[#allocation6 + $0x8] sm:$0xff] %vm1642, %v1806
        %1901 = vst.msk [vmem:[#allocation6 + $0x10] sm:$0xff] %vm1642, %v1808
        %1902 = vst.msk [vmem:[#allocation6 + $0x18] sm:$0xff] %vm1642, %v1810
        %1903 = vst.msk [vmem:[#allocation6 + $0x20] sm:$0xff] %vm1642, %v1812
        %1904 = vst.msk [vmem:[#allocation6 + $0x28] sm:$0xff] %vm1642, %v1814
        %1905 = vst.msk [vmem:[#allocation6 + $0x30] sm:$0xff] %vm1642, %v1816
        %1906 = vst.msk [vmem:[#allocation6 + $0x38] sm:$0xff] %vm1642, %v1818
        %1907 = vst.msk [vmem:[#allocation6 + $0x40] sm:$0xff] %vm1642, %v1820
        %1908 = vst.msk [vmem:[#allocation6 + $0x48] sm:$0xff] %vm1642, %v1822
        %1909 = vst.msk [vmem:[#allocation6 + $0x50] sm:$0xff] %vm1642, %v1824
        %1910 = vst.msk [vmem:[#allocation6 + $0x58] sm:$0xff] %vm1642, %v1826
        %1911 = vst.msk [vmem:[#allocation6 + $0x60] sm:$0xff] %vm1642, %v1828
        %1912 = vst.msk [vmem:[#allocation6 + $0x68] sm:$0xff] %vm1642, %v1830
        %1913 = vst.msk [vmem:[#allocation6 + $0x70] sm:$0xff] %vm1642, %v1832
        %1914 = vst.msk [vmem:[#allocation6 + $0x78] sm:$0xff] %vm1642, %v1834
        %1915 = vst.msk [vmem:[#allocation6 + $0x80] sm:$0xff] %vm1642, %v1836
        %1916 = vst.msk [vmem:[#allocation6 + $0x88] sm:$0xff] %vm1642, %v1838
        %1917 = vst.msk [vmem:[#allocation6 + $0x90] sm:$0xff] %vm1642, %v1840
        %1918 = vst.msk [vmem:[#allocation6 + $0x98] sm:$0xff] %vm1642, %v1842
        %1919 = vst.msk [vmem:[#allocation6 + $0xa0] sm:$0xff] %vm1642, %v1844
        %1920 = vst.msk [vmem:[#allocation6 + $0xa8] sm:$0xff] %vm1642, %v1846
        %1921 = vst.msk [vmem:[#allocation6 + $0xb0] sm:$0xff] %vm1642, %v1848
        %1922 = vst.msk [vmem:[#allocation6 + $0xb8] sm:$0xff] %vm1642, %v1850
        %1923 = vst.msk [vmem:[#allocation6 + $0xc0] sm:$0xff] %vm1642, %v1852
        %1924 = vst.msk [vmem:[#allocation6 + $0xc8] sm:$0xff] %vm1642, %v1854
        %1925 = vst.msk [vmem:[#allocation6 + $0xd0] sm:$0xff] %vm1642, %v1856
        %1926 = vst.msk [vmem:[#allocation6 + $0xd8] sm:$0xff] %vm1642, %v1858
        %1927 = vst.msk [vmem:[#allocation6 + $0xe0] sm:$0xff] %vm1642, %v1860
        %1928 = vst.msk [vmem:[#allocation6 + $0xe8] sm:$0xff] %vm1642, %v1862
        %1929 = vst.msk [vmem:[#allocation6 + $0xf0] sm:$0xff] %vm1642, %v1864
        %1930 = vst.msk [vmem:[#allocation6 + $0xf8] sm:$0xff] %vm1642, %v1866
        %vm1931 = vcmask 1045504
        %v1932 = vrot.slane %v1245, 2
        %v1933 = vrot.slane %v1246, 2
        %v1934 = vsel %vm1931, %v1932, %v1933
        %v1935 = vrot.slane %v1247, 2
        %v1936 = vsel %vm1931, %v1933, %v1935
        %v1937 = vrot.slane %v1248, 2
        %v1938 = vrot.slane %v1249, 2
        %v1939 = vsel %vm1931, %v1937, %v1938
        %v1940 = vrot.slane %v1250, 2
        %v1941 = vsel %vm1931, %v1938, %v1940
        %v1942 = vrot.slane %v1251, 2
        %v1943 = vrot.slane %v1252, 2
        %v1944 = vsel %vm1931, %v1942, %v1943
        %v1945 = vrot.slane %v1253, 2
        %v1946 = vsel %vm1931, %v1943, %v1945
        %v1947 = vrot.slane %v1254, 2
        %v1948 = vrot.slane %v1255, 2
        %v1949 = vsel %vm1931, %v1947, %v1948
        %v1950 = vrot.slane %v1256, 2
        %v1951 = vsel %vm1931, %v1948, %v1950
        %v1952 = vrot.slane %v1257, 2
        %v1953 = vrot.slane %v1258, 2
        %v1954 = vsel %vm1931, %v1952, %v1953
        %v1955 = vrot.slane %v1259, 2
        %v1956 = vsel %vm1931, %v1953, %v1955
        %v1957 = vrot.slane %v1260, 2
        %v1958 = vrot.slane %v1261, 2
        %v1959 = vsel %vm1931, %v1957, %v1958
        %v1960 = vrot.slane %v1262, 2
        %v1961 = vsel %vm1931, %v1958, %v1960
        %v1962 = vrot.slane %v1263, 2
        %v1963 = vrot.slane %v1264, 2
        %v1964 = vsel %vm1931, %v1962, %v1963
        %v1965 = vrot.slane %v1265, 2
        %v1966 = vsel %vm1931, %v1963, %v1965
        %v1967 = vrot.slane %v1266, 2
        %v1968 = vrot.slane %v1267, 2
        %v1969 = vsel %vm1931, %v1967, %v1968
        %v1970 = vrot.slane %v1268, 2
        %v1971 = vsel %vm1931, %v1968, %v1970
        %v1972 = vrot.slane %v1269, 2
        %v1973 = vrot.slane %v1270, 2
        %v1974 = vsel %vm1931, %v1972, %v1973
        %v1975 = vrot.slane %v1271, 2
        %v1976 = vsel %vm1931, %v1973, %v1975
        %v1977 = vrot.slane %v1272, 2
        %v1978 = vrot.slane %v1273, 2
        %v1979 = vsel %vm1931, %v1977, %v1978
        %v1980 = vrot.slane %v1274, 2
        %v1981 = vsel %vm1931, %v1978, %v1980
        %v1982 = vrot.slane %v1275, 2
        %v1983 = vrot.slane %v1276, 2
        %v1984 = vsel %vm1931, %v1982, %v1983
        %v1985 = vrot.slane %v1277, 2
        %v1986 = vsel %vm1931, %v1983, %v1985
        %v1987 = vrot.slane %v1278, 2
        %v1988 = vrot.slane %v1279, 2
        %v1989 = vsel %vm1931, %v1987, %v1988
        %v1990 = vrot.slane %v1280, 2
        %v1991 = vsel %vm1931, %v1988, %v1990
        %v1992 = vrot.slane %v1281, 2
        %v1993 = vrot.slane %v1282, 2
        %v1994 = vsel %vm1931, %v1992, %v1993
        %v1995 = vrot.slane %v1283, 2
        %v1996 = vsel %vm1931, %v1993, %v1995
        %v1997 = vrot.slane %v1284, 2
        %v1998 = vrot.slane %v1285, 2
        %v1999 = vsel %vm1931, %v1997, %v1998
        %v2000 = vrot.slane %v1286, 2
        %v2001 = vsel %vm1931, %v1998, %v2000
        %v2002 = vrot.slane %v1287, 2
        %v2003 = vrot.slane %v1288, 2
        %v2004 = vsel %vm1931, %v2002, %v2003
        %v2005 = vrot.slane %v1289, 2
        %v2006 = vsel %vm1931, %v2003, %v2005
        %v2007 = vrot.slane %v1290, 2
        %v2008 = vrot.slane %v1291, 2
        %v2009 = vsel %vm1931, %v2007, %v2008
        %v2010 = vrot.slane %v1292, 2
        %v2011 = vsel %vm1931, %v2008, %v2010
        %2012 = vrot.lane.b32.xlu0 %v1934, 16
        %v2013 = vpop.permute.xlu0 %2012
        %2014 = vrot.lane.b32.xlu0 %v1936, 16
        %v2015 = vpop.permute.xlu0 %2014
        %2016 = vrot.lane.b32.xlu0 %v1939, 16
        %v2017 = vpop.permute.xlu0 %2016
        %2018 = vrot.lane.b32.xlu0 %v1941, 16
        %v2019 = vpop.permute.xlu0 %2018
        %2020 = vrot.lane.b32.xlu0 %v1944, 16
        %v2021 = vpop.permute.xlu0 %2020
        %2022 = vrot.lane.b32.xlu0 %v1946, 16
        %v2023 = vpop.permute.xlu0 %2022
        %2024 = vrot.lane.b32.xlu0 %v1949, 16
        %v2025 = vpop.permute.xlu0 %2024
        %2026 = vrot.lane.b32.xlu0 %v1951, 16
        %v2027 = vpop.permute.xlu0 %2026
        %2028 = vrot.lane.b32.xlu0 %v1954, 16
        %v2029 = vpop.permute.xlu0 %2028
        %2030 = vrot.lane.b32.xlu0 %v1956, 16
        %v2031 = vpop.permute.xlu0 %2030
        %2032 = vrot.lane.b32.xlu0 %v1959, 16
        %v2033 = vpop.permute.xlu0 %2032
        %2034 = vrot.lane.b32.xlu0 %v1961, 16
        %v2035 = vpop.permute.xlu0 %2034
        %2036 = vrot.lane.b32.xlu0 %v1964, 16
        %v2037 = vpop.permute.xlu0 %2036
        %2038 = vrot.lane.b32.xlu0 %v1966, 16
        %v2039 = vpop.permute.xlu0 %2038
        %2040 = vrot.lane.b32.xlu0 %v1969, 16
        %v2041 = vpop.permute.xlu0 %2040
        %2042 = vrot.lane.b32.xlu0 %v1971, 16
        %v2043 = vpop.permute.xlu0 %2042
        %2044 = vrot.lane.b32.xlu0 %v1974, 16
        %v2045 = vpop.permute.xlu0 %2044
        %2046 = vrot.lane.b32.xlu0 %v1976, 16
        %v2047 = vpop.permute.xlu0 %2046
        %2048 = vrot.lane.b32.xlu0 %v1979, 16
        %v2049 = vpop.permute.xlu0 %2048
        %2050 = vrot.lane.b32.xlu0 %v1981, 16
        %v2051 = vpop.permute.xlu0 %2050
        %2052 = vrot.lane.b32.xlu0 %v1984, 16
        %v2053 = vpop.permute.xlu0 %2052
        %2054 = vrot.lane.b32.xlu0 %v1986, 16
        %v2055 = vpop.permute.xlu0 %2054
        %2056 = vrot.lane.b32.xlu0 %v1989, 16
        %v2057 = vpop.permute.xlu0 %2056
        %2058 = vrot.lane.b32.xlu0 %v1991, 16
        %v2059 = vpop.permute.xlu0 %2058
        %2060 = vrot.lane.b32.xlu0 %v1994, 16
        %v2061 = vpop.permute.xlu0 %2060
        %2062 = vrot.lane.b32.xlu0 %v1996, 16
        %v2063 = vpop.permute.xlu0 %2062
        %2064 = vrot.lane.b32.xlu0 %v1999, 16
        %v2065 = vpop.permute.xlu0 %2064
        %2066 = vrot.lane.b32.xlu0 %v2001, 16
        %v2067 = vpop.permute.xlu0 %2066
        %2068 = vrot.lane.b32.xlu0 %v2004, 16
        %v2069 = vpop.permute.xlu0 %2068
        %2070 = vrot.lane.b32.xlu0 %v2006, 16
        %v2071 = vpop.permute.xlu0 %2070
        %2072 = vrot.lane.b32.xlu0 %v2009, 16
        %v2073 = vpop.permute.xlu0 %2072
        %2074 = vrot.lane.b32.xlu0 %v2011, 16
        %v2075 = vpop.permute.xlu0 %2074
        %vm2108 = vcmask 195712
        %2109 = vst.msk [vmem:[#allocation5] sm:$0xff] %vm2108, %v2013
        %2110 = vst.msk [vmem:[#allocation5 + $0x8] sm:$0xff] %vm2108, %v2015
        %2111 = vst.msk [vmem:[#allocation5 + $0x10] sm:$0xff] %vm2108, %v2017
        %2112 = vst.msk [vmem:[#allocation5 + $0x18] sm:$0xff] %vm2108, %v2019
        %2113 = vst.msk [vmem:[#allocation5 + $0x20] sm:$0xff] %vm2108, %v2021
        %2114 = vst.msk [vmem:[#allocation5 + $0x28] sm:$0xff] %vm2108, %v2023
        %2115 = vst.msk [vmem:[#allocation5 + $0x30] sm:$0xff] %vm2108, %v2025
        %2116 = vst.msk [vmem:[#allocation5 + $0x38] sm:$0xff] %vm2108, %v2027
        %2117 = vst.msk [vmem:[#allocation5 + $0x40] sm:$0xff] %vm2108, %v2029
        %2118 = vst.msk [vmem:[#allocation5 + $0x48] sm:$0xff] %vm2108, %v2031
        %2119 = vst.msk [vmem:[#allocation5 + $0x50] sm:$0xff] %vm2108, %v2033
        %2120 = vst.msk [vmem:[#allocation5 + $0x58] sm:$0xff] %vm2108, %v2035
        %2121 = vst.msk [vmem:[#allocation5 + $0x60] sm:$0xff] %vm2108, %v2037
        %2122 = vst.msk [vmem:[#allocation5 + $0x68] sm:$0xff] %vm2108, %v2039
        %2123 = vst.msk [vmem:[#allocation5 + $0x70] sm:$0xff] %vm2108, %v2041
        %2124 = vst.msk [vmem:[#allocation5 + $0x78] sm:$0xff] %vm2108, %v2043
        %2125 = vst.msk [vmem:[#allocation5 + $0x80] sm:$0xff] %vm2108, %v2045
        %2126 = vst.msk [vmem:[#allocation5 + $0x88] sm:$0xff] %vm2108, %v2047
        %2127 = vst.msk [vmem:[#allocation5 + $0x90] sm:$0xff] %vm2108, %v2049
        %2128 = vst.msk [vmem:[#allocation5 + $0x98] sm:$0xff] %vm2108, %v2051
        %2129 = vst.msk [vmem:[#allocation5 + $0xa0] sm:$0xff] %vm2108, %v2053
        %2130 = vst.msk [vmem:[#allocation5 + $0xa8] sm:$0xff] %vm2108, %v2055
        %2131 = vst.msk [vmem:[#allocation5 + $0xb0] sm:$0xff] %vm2108, %v2057
        %2132 = vst.msk [vmem:[#allocation5 + $0xb8] sm:$0xff] %vm2108, %v2059
        %2133 = vst.msk [vmem:[#allocation5 + $0xc0] sm:$0xff] %vm2108, %v2061
        %2134 = vst.msk [vmem:[#allocation5 + $0xc8] sm:$0xff] %vm2108, %v2063
        %2135 = vst.msk [vmem:[#allocation5 + $0xd0] sm:$0xff] %vm2108, %v2065
        %2136 = vst.msk [vmem:[#allocation5 + $0xd8] sm:$0xff] %vm2108, %v2067
        %2137 = vst.msk [vmem:[#allocation5 + $0xe0] sm:$0xff] %vm2108, %v2069
        %2138 = vst.msk [vmem:[#allocation5 + $0xe8] sm:$0xff] %vm2108, %v2071
        %2139 = vst.msk [vmem:[#allocation5 + $0xf0] sm:$0xff] %vm2108, %v2073
        %2140 = vst.msk [vmem:[#allocation5 + $0xf8] sm:$0xff] %vm2108, %v2075
        %v2141 = vrot.slane %v1299, 2
        %v2142 = vrot.slane %v1300, 2
        %v2143 = vsel %vm1931, %v2141, %v2142
        %v2144 = vrot.slane %v1301, 2
        %v2145 = vsel %vm1931, %v2142, %v2144
        %v2146 = vrot.slane %v1302, 2
        %v2147 = vrot.slane %v1303, 2
        %v2148 = vsel %vm1931, %v2146, %v2147
        %v2149 = vrot.slane %v1304, 2
        %v2150 = vsel %vm1931, %v2147, %v2149
        %v2151 = vrot.slane %v1305, 2
        %v2152 = vrot.slane %v1306, 2
        %v2153 = vsel %vm1931, %v2151, %v2152
        %v2154 = vrot.slane %v1307, 2
        %v2155 = vsel %vm1931, %v2152, %v2154
        %v2156 = vrot.slane %v1308, 2
        %v2157 = vrot.slane %v1309, 2
        %v2158 = vsel %vm1931, %v2156, %v2157
        %v2159 = vrot.slane %v1310, 2
        %v2160 = vsel %vm1931, %v2157, %v2159
        %v2161 = vrot.slane %v1311, 2
        %v2162 = vrot.slane %v1312, 2
        %v2163 = vsel %vm1931, %v2161, %v2162
        %v2164 = vrot.slane %v1313, 2
        %v2165 = vsel %vm1931, %v2162, %v2164
        %v2166 = vrot.slane %v1314, 2
        %v2167 = vrot.slane %v1315, 2
        %v2168 = vsel %vm1931, %v2166, %v2167
        %v2169 = vrot.slane %v1316, 2
        %v2170 = vsel %vm1931, %v2167, %v2169
        %v2171 = vrot.slane %v1317, 2
        %v2172 = vrot.slane %v1318, 2
        %v2173 = vsel %vm1931, %v2171, %v2172
        %v2174 = vrot.slane %v1319, 2
        %v2175 = vsel %vm1931, %v2172, %v2174
        %v2176 = vrot.slane %v1320, 2
        %v2177 = vrot.slane %v1321, 2
        %v2178 = vsel %vm1931, %v2176, %v2177
        %v2179 = vrot.slane %v1322, 2
        %v2180 = vsel %vm1931, %v2177, %v2179
        %v2181 = vrot.slane %v1323, 2
        %v2182 = vrot.slane %v1324, 2
        %v2183 = vsel %vm1931, %v2181, %v2182
        %v2184 = vrot.slane %v1325, 2
        %v2185 = vsel %vm1931, %v2182, %v2184
        %v2186 = vrot.slane %v1326, 2
        %v2187 = vrot.slane %v1327, 2
        %v2188 = vsel %vm1931, %v2186, %v2187
        %v2189 = vrot.slane %v1328, 2
        %v2190 = vsel %vm1931, %v2187, %v2189
        %v2191 = vrot.slane %v1329, 2
        %v2192 = vrot.slane %v1330, 2
        %v2193 = vsel %vm1931, %v2191, %v2192
        %v2194 = vrot.slane %v1331, 2
        %v2195 = vsel %vm1931, %v2192, %v2194
        %v2196 = vrot.slane %v1332, 2
        %v2197 = vrot.slane %v1333, 2
        %v2198 = vsel %vm1931, %v2196, %v2197
        %v2199 = vrot.slane %v1334, 2
        %v2200 = vsel %vm1931, %v2197, %v2199
        %v2201 = vrot.slane %v1335, 2
        %v2202 = vrot.slane %v1336, 2
        %v2203 = vsel %vm1931, %v2201, %v2202
        %v2204 = vrot.slane %v1337, 2
        %v2205 = vsel %vm1931, %v2202, %v2204
        %v2206 = vrot.slane %v1338, 2
        %v2207 = vrot.slane %v1339, 2
        %v2208 = vsel %vm1931, %v2206, %v2207
        %v2209 = vrot.slane %v1340, 2
        %v2210 = vsel %vm1931, %v2207, %v2209
        %v2211 = vrot.slane %v1341, 2
        %v2212 = vrot.slane %v1342, 2
        %v2213 = vsel %vm1931, %v2211, %v2212
        %v2214 = vrot.slane %v1343, 2
        %v2215 = vsel %vm1931, %v2212, %v2214
        %v2216 = vrot.slane %v1344, 2
        %v2217 = vrot.slane %v1345, 2
        %v2218 = vsel %vm1931, %v2216, %v2217
        %v2219 = vrot.slane %v1346, 2
        %v2220 = vsel %vm1931, %v2217, %v2219
        %2221 = vrot.lane.b32.xlu0 %v2143, 16
        %v2222 = vpop.permute.xlu0 %2221
        %2223 = vrot.lane.b32.xlu0 %v2145, 16
        %v2224 = vpop.permute.xlu0 %2223
        %2225 = vrot.lane.b32.xlu0 %v2148, 16
        %v2226 = vpop.permute.xlu0 %2225
        %2227 = vrot.lane.b32.xlu0 %v2150, 16
        %v2228 = vpop.permute.xlu0 %2227
        %2229 = vrot.lane.b32.xlu0 %v2153, 16
        %v2230 = vpop.permute.xlu0 %2229
        %2231 = vrot.lane.b32.xlu0 %v2155, 16
        %v2232 = vpop.permute.xlu0 %2231
        %2233 = vrot.lane.b32.xlu0 %v2158, 16
        %v2234 = vpop.permute.xlu0 %2233
        %2235 = vrot.lane.b32.xlu0 %v2160, 16
        %v2236 = vpop.permute.xlu0 %2235
        %2237 = vrot.lane.b32.xlu0 %v2163, 16
        %v2238 = vpop.permute.xlu0 %2237
        %2239 = vrot.lane.b32.xlu0 %v2165, 16
        %v2240 = vpop.permute.xlu0 %2239
        %2241 = vrot.lane.b32.xlu0 %v2168, 16
        %v2242 = vpop.permute.xlu0 %2241
        %2243 = vrot.lane.b32.xlu0 %v2170, 16
        %v2244 = vpop.permute.xlu0 %2243
        %2245 = vrot.lane.b32.xlu0 %v2173, 16
        %v2246 = vpop.permute.xlu0 %2245
        %2247 = vrot.lane.b32.xlu0 %v2175, 16
        %v2248 = vpop.permute.xlu0 %2247
        %2249 = vrot.lane.b32.xlu0 %v2178, 16
        %v2250 = vpop.permute.xlu0 %2249
        %2251 = vrot.lane.b32.xlu0 %v2180, 16
        %v2252 = vpop.permute.xlu0 %2251
        %2253 = vrot.lane.b32.xlu0 %v2183, 16
        %v2254 = vpop.permute.xlu0 %2253
        %2255 = vrot.lane.b32.xlu0 %v2185, 16
        %v2256 = vpop.permute.xlu0 %2255
        %2257 = vrot.lane.b32.xlu0 %v2188, 16
        %v2258 = vpop.permute.xlu0 %2257
        %2259 = vrot.lane.b32.xlu0 %v2190, 16
        %v2260 = vpop.permute.xlu0 %2259
        %2261 = vrot.lane.b32.xlu0 %v2193, 16
        %v2262 = vpop.permute.xlu0 %2261
        %2263 = vrot.lane.b32.xlu0 %v2195, 16
        %v2264 = vpop.permute.xlu0 %2263
        %2265 = vrot.lane.b32.xlu0 %v2198, 16
        %v2266 = vpop.permute.xlu0 %2265
        %2267 = vrot.lane.b32.xlu0 %v2200, 16
        %v2268 = vpop.permute.xlu0 %2267
        %2269 = vrot.lane.b32.xlu0 %v2203, 16
        %v2270 = vpop.permute.xlu0 %2269
        %2271 = vrot.lane.b32.xlu0 %v2205, 16
        %v2272 = vpop.permute.xlu0 %2271
        %2273 = vrot.lane.b32.xlu0 %v2208, 16
        %v2274 = vpop.permute.xlu0 %2273
        %2275 = vrot.lane.b32.xlu0 %v2210, 16
        %v2276 = vpop.permute.xlu0 %2275
        %2277 = vrot.lane.b32.xlu0 %v2213, 16
        %v2278 = vpop.permute.xlu0 %2277
        %2279 = vrot.lane.b32.xlu0 %v2215, 16
        %v2280 = vpop.permute.xlu0 %2279
        %2281 = vrot.lane.b32.xlu0 %v2218, 16
        %v2282 = vpop.permute.xlu0 %2281
        %2283 = vrot.lane.b32.xlu0 %v2220, 16
        %v2284 = vpop.permute.xlu0 %2283
        %2317 = vst.msk [vmem:[#allocation6] sm:$0xff] %vm2108, %v2222
        %2318 = vst.msk [vmem:[#allocation6 + $0x8] sm:$0xff] %vm2108, %v2224
        %2319 = vst.msk [vmem:[#allocation6 + $0x10] sm:$0xff] %vm2108, %v2226
        %2320 = vst.msk [vmem:[#allocation6 + $0x18] sm:$0xff] %vm2108, %v2228
        %2321 = vst.msk [vmem:[#allocation6 + $0x20] sm:$0xff] %vm2108, %v2230
        %2322 = vst.msk [vmem:[#allocation6 + $0x28] sm:$0xff] %vm2108, %v2232
        %2323 = vst.msk [vmem:[#allocation6 + $0x30] sm:$0xff] %vm2108, %v2234
        %2324 = vst.msk [vmem:[#allocation6 + $0x38] sm:$0xff] %vm2108, %v2236
        %2325 = vst.msk [vmem:[#allocation6 + $0x40] sm:$0xff] %vm2108, %v2238
        %2326 = vst.msk [vmem:[#allocation6 + $0x48] sm:$0xff] %vm2108, %v2240
        %2327 = vst.msk [vmem:[#allocation6 + $0x50] sm:$0xff] %vm2108, %v2242
        %2328 = vst.msk [vmem:[#allocation6 + $0x58] sm:$0xff] %vm2108, %v2244
        %2329 = vst.msk [vmem:[#allocation6 + $0x60] sm:$0xff] %vm2108, %v2246
        %2330 = vst.msk [vmem:[#allocation6 + $0x68] sm:$0xff] %vm2108, %v2248
        %2331 = vst.msk [vmem:[#allocation6 + $0x70] sm:$0xff] %vm2108, %v2250
        %2332 = vst.msk [vmem:[#allocation6 + $0x78] sm:$0xff] %vm2108, %v2252
        %2333 = vst.msk [vmem:[#allocation6 + $0x80] sm:$0xff] %vm2108, %v2254
        %2334 = vst.msk [vmem:[#allocation6 + $0x88] sm:$0xff] %vm2108, %v2256
        %2335 = vst.msk [vmem:[#allocation6 + $0x90] sm:$0xff] %vm2108, %v2258
        %2336 = vst.msk [vmem:[#allocation6 + $0x98] sm:$0xff] %vm2108, %v2260
        %2337 = vst.msk [vmem:[#allocation6 + $0xa0] sm:$0xff] %vm2108, %v2262
        %2338 = vst.msk [vmem:[#allocation6 + $0xa8] sm:$0xff] %vm2108, %v2264
        %2339 = vst.msk [vmem:[#allocation6 + $0xb0] sm:$0xff] %vm2108, %v2266
        %2340 = vst.msk [vmem:[#allocation6 + $0xb8] sm:$0xff] %vm2108, %v2268
        %2341 = vst.msk [vmem:[#allocation6 + $0xc0] sm:$0xff] %vm2108, %v2270
        %2342 = vst.msk [vmem:[#allocation6 + $0xc8] sm:$0xff] %vm2108, %v2272
        %2343 = vst.msk [vmem:[#allocation6 + $0xd0] sm:$0xff] %vm2108, %v2274
        %2344 = vst.msk [vmem:[#allocation6 + $0xd8] sm:$0xff] %vm2108, %v2276
        %2345 = vst.msk [vmem:[#allocation6 + $0xe0] sm:$0xff] %vm2108, %v2278
        %2346 = vst.msk [vmem:[#allocation6 + $0xe8] sm:$0xff] %vm2108, %v2280
        %2347 = vst.msk [vmem:[#allocation6 + $0xf0] sm:$0xff] %vm2108, %v2282
        %2348 = vst.msk [vmem:[#allocation6 + $0xf8] sm:$0xff] %vm2108, %v2284
        %2351 = vrot.lane.b32.xlu0 %v1248, 24
        %v2352 = vpop.permute.xlu0 %2351
        %2353 = vrot.lane.b32.xlu0 %v1249, 24
        %v2354 = vpop.permute.xlu0 %2353
        %2355 = vrot.lane.b32.xlu0 %v1251, 24
        %v2356 = vpop.permute.xlu0 %2355
        %2357 = vrot.lane.b32.xlu0 %v1252, 24
        %v2358 = vpop.permute.xlu0 %2357
        %2359 = vrot.lane.b32.xlu0 %v1254, 24
        %v2360 = vpop.permute.xlu0 %2359
        %2361 = vrot.lane.b32.xlu0 %v1255, 24
        %v2362 = vpop.permute.xlu0 %2361
        %2363 = vrot.lane.b32.xlu0 %v1257, 24
        %v2364 = vpop.permute.xlu0 %2363
        %2365 = vrot.lane.b32.xlu0 %v1258, 24
        %v2366 = vpop.permute.xlu0 %2365
        %2367 = vrot.lane.b32.xlu0 %v1260, 24
        %v2368 = vpop.permute.xlu0 %2367
        %2369 = vrot.lane.b32.xlu0 %v1261, 24
        %v2370 = vpop.permute.xlu0 %2369
        %2371 = vrot.lane.b32.xlu0 %v1263, 24
        %v2372 = vpop.permute.xlu0 %2371
        %2373 = vrot.lane.b32.xlu0 %v1264, 24
        %v2374 = vpop.permute.xlu0 %2373
        %2375 = vrot.lane.b32.xlu0 %v1266, 24
        %v2376 = vpop.permute.xlu0 %2375
        %2377 = vrot.lane.b32.xlu0 %v1267, 24
        %v2378 = vpop.permute.xlu0 %2377
        %2379 = vrot.lane.b32.xlu0 %v1269, 24
        %v2380 = vpop.permute.xlu0 %2379
        %2381 = vrot.lane.b32.xlu0 %v1270, 24
        %v2382 = vpop.permute.xlu0 %2381
        %2383 = vrot.lane.b32.xlu0 %v1272, 24
        %v2384 = vpop.permute.xlu0 %2383
        %2385 = vrot.lane.b32.xlu0 %v1273, 24
        %v2386 = vpop.permute.xlu0 %2385
        %2387 = vrot.lane.b32.xlu0 %v1275, 24
        %v2388 = vpop.permute.xlu0 %2387
        %2389 = vrot.lane.b32.xlu0 %v1276, 24
        %v2390 = vpop.permute.xlu0 %2389
        %2391 = vrot.lane.b32.xlu0 %v1278, 24
        %v2392 = vpop.permute.xlu0 %2391
        %2393 = vrot.lane.b32.xlu0 %v1279, 24
        %v2394 = vpop.permute.xlu0 %2393
        %2395 = vrot.lane.b32.xlu0 %v1281, 24
        %v2396 = vpop.permute.xlu0 %2395
        %2397 = vrot.lane.b32.xlu0 %v1282, 24
        %v2398 = vpop.permute.xlu0 %2397
        %2399 = vrot.lane.b32.xlu0 %v1284, 24
        %v2400 = vpop.permute.xlu0 %2399
        %2401 = vrot.lane.b32.xlu0 %v1285, 24
        %v2402 = vpop.permute.xlu0 %2401
        %2403 = vrot.lane.b32.xlu0 %v1287, 24
        %v2404 = vpop.permute.xlu0 %2403
        %2405 = vrot.lane.b32.xlu0 %v1288, 24
        %v2406 = vpop.permute.xlu0 %2405
        %2407 = vrot.lane.b32.xlu0 %v1290, 24
        %v2408 = vpop.permute.xlu0 %2407
        %2409 = vrot.lane.b32.xlu0 %v1291, 24
        %v2410 = vpop.permute.xlu0 %2409
        %2411 = vrot.lane.b32.xlu0 %v1293, 24
        %v2412 = vpop.permute.xlu0 %2411
        %2413 = vrot.lane.b32.xlu0 %v1294, 24
        %v2414 = vpop.permute.xlu0 %2413
        %vm2447 = vcmask 261312
        %2448 = vst.msk [vmem:[#allocation5] sm:$0xff] %vm2447, %v2352
        %2449 = vst.msk [vmem:[#allocation5 + $0x8] sm:$0xff] %vm2447, %v2354
        %2450 = vst.msk [vmem:[#allocation5 + $0x10] sm:$0xff] %vm2447, %v2356
        %2451 = vst.msk [vmem:[#allocation5 + $0x18] sm:$0xff] %vm2447, %v2358
        %2452 = vst.msk [vmem:[#allocation5 + $0x20] sm:$0xff] %vm2447, %v2360
        %2453 = vst.msk [vmem:[#allocation5 + $0x28] sm:$0xff] %vm2447, %v2362
        %2454 = vst.msk [vmem:[#allocation5 + $0x30] sm:$0xff] %vm2447, %v2364
        %2455 = vst.msk [vmem:[#allocation5 + $0x38] sm:$0xff] %vm2447, %v2366
        %2456 = vst.msk [vmem:[#allocation5 + $0x40] sm:$0xff] %vm2447, %v2368
        %2457 = vst.msk [vmem:[#allocation5 + $0x48] sm:$0xff] %vm2447, %v2370
        %2458 = vst.msk [vmem:[#allocation5 + $0x50] sm:$0xff] %vm2447, %v2372
        %2459 = vst.msk [vmem:[#allocation5 + $0x58] sm:$0xff] %vm2447, %v2374
        %2460 = vst.msk [vmem:[#allocation5 + $0x60] sm:$0xff] %vm2447, %v2376
        %2461 = vst.msk [vmem:[#allocation5 + $0x68] sm:$0xff] %vm2447, %v2378
        %2462 = vst.msk [vmem:[#allocation5 + $0x70] sm:$0xff] %vm2447, %v2380
        %2463 = vst.msk [vmem:[#allocation5 + $0x78] sm:$0xff] %vm2447, %v2382
        %2464 = vst.msk [vmem:[#allocation5 + $0x80] sm:$0xff] %vm2447, %v2384
        %2465 = vst.msk [vmem:[#allocation5 + $0x88] sm:$0xff] %vm2447, %v2386
        %2466 = vst.msk [vmem:[#allocation5 + $0x90] sm:$0xff] %vm2447, %v2388
        %2467 = vst.msk [vmem:[#allocation5 + $0x98] sm:$0xff] %vm2447, %v2390
        %2468 = vst.msk [vmem:[#allocation5 + $0xa0] sm:$0xff] %vm2447, %v2392
        %2469 = vst.msk [vmem:[#allocation5 + $0xa8] sm:$0xff] %vm2447, %v2394
        %2470 = vst.msk [vmem:[#allocation5 + $0xb0] sm:$0xff] %vm2447, %v2396
        %2471 = vst.msk [vmem:[#allocation5 + $0xb8] sm:$0xff] %vm2447, %v2398
        %2472 = vst.msk [vmem:[#allocation5 + $0xc0] sm:$0xff] %vm2447, %v2400
        %2473 = vst.msk [vmem:[#allocation5 + $0xc8] sm:$0xff] %vm2447, %v2402
        %2474 = vst.msk [vmem:[#allocation5 + $0xd0] sm:$0xff] %vm2447, %v2404
        %2475 = vst.msk [vmem:[#allocation5 + $0xd8] sm:$0xff] %vm2447, %v2406
        %2476 = vst.msk [vmem:[#allocation5 + $0xe0] sm:$0xff] %vm2447, %v2408
        %2477 = vst.msk [vmem:[#allocation5 + $0xe8] sm:$0xff] %vm2447, %v2410
        %2478 = vst.msk [vmem:[#allocation5 + $0xf0] sm:$0xff] %vm2447, %v2412
        %2479 = vst.msk [vmem:[#allocation5 + $0xf8] sm:$0xff] %vm2447, %v2414
        %2482 = vrot.lane.b32.xlu0 %v1302, 24
        %v2483 = vpop.permute.xlu0 %2482
        %2484 = vrot.lane.b32.xlu0 %v1303, 24
        %v2485 = vpop.permute.xlu0 %2484
        %2486 = vrot.lane.b32.xlu0 %v1305, 24
        %v2487 = vpop.permute.xlu0 %2486
        %2488 = vrot.lane.b32.xlu0 %v1306, 24
        %v2489 = vpop.permute.xlu0 %2488
        %2490 = vrot.lane.b32.xlu0 %v1308, 24
        %v2491 = vpop.permute.xlu0 %2490
        %2492 = vrot.lane.b32.xlu0 %v1309, 24
        %v2493 = vpop.permute.xlu0 %2492
        %2494 = vrot.lane.b32.xlu0 %v1311, 24
        %v2495 = vpop.permute.xlu0 %2494
        %2496 = vrot.lane.b32.xlu0 %v1312, 24
        %v2497 = vpop.permute.xlu0 %2496
        %2498 = vrot.lane.b32.xlu0 %v1314, 24
        %v2499 = vpop.permute.xlu0 %2498
        %2500 = vrot.lane.b32.xlu0 %v1315, 24
        %v2501 = vpop.permute.xlu0 %2500
        %2502 = vrot.lane.b32.xlu0 %v1317, 24
        %v2503 = vpop.permute.xlu0 %2502
        %2504 = vrot.lane.b32.xlu0 %v1318, 24
        %v2505 = vpop.permute.xlu0 %2504
        %2506 = vrot.lane.b32.xlu0 %v1320, 24
        %v2507 = vpop.permute.xlu0 %2506
        %2508 = vrot.lane.b32.xlu0 %v1321, 24
        %v2509 = vpop.permute.xlu0 %2508
        %2510 = vrot.lane.b32.xlu0 %v1323, 24
        %v2511 = vpop.permute.xlu0 %2510
        %2512 = vrot.lane.b32.xlu0 %v1324, 24
        %v2513 = vpop.permute.xlu0 %2512
        %2514 = vrot.lane.b32.xlu0 %v1326, 24
        %v2515 = vpop.permute.xlu0 %2514
        %2516 = vrot.lane.b32.xlu0 %v1327, 24
        %v2517 = vpop.permute.xlu0 %2516
        %2518 = vrot.lane.b32.xlu0 %v1329, 24
        %v2519 = vpop.permute.xlu0 %2518
        %2520 = vrot.lane.b32.xlu0 %v1330, 24
        %v2521 = vpop.permute.xlu0 %2520
        %2522 = vrot.lane.b32.xlu0 %v1332, 24
        %v2523 = vpop.permute.xlu0 %2522
        %2524 = vrot.lane.b32.xlu0 %v1333, 24
        %v2525 = vpop.permute.xlu0 %2524
        %2526 = vrot.lane.b32.xlu0 %v1335, 24
        %v2527 = vpop.permute.xlu0 %2526
        %2528 = vrot.lane.b32.xlu0 %v1336, 24
        %v2529 = vpop.permute.xlu0 %2528
        %2530 = vrot.lane.b32.xlu0 %v1338, 24
        %v2531 = vpop.permute.xlu0 %2530
        %2532 = vrot.lane.b32.xlu0 %v1339, 24
        %v2533 = vpop.permute.xlu0 %2532
        %2534 = vrot.lane.b32.xlu0 %v1341, 24
        %v2535 = vpop.permute.xlu0 %2534
        %2536 = vrot.lane.b32.xlu0 %v1342, 24
        %v2537 = vpop.permute.xlu0 %2536
        %2538 = vrot.lane.b32.xlu0 %v1344, 24
        %v2539 = vpop.permute.xlu0 %2538
        %2540 = vrot.lane.b32.xlu0 %v1345, 24
        %v2541 = vpop.permute.xlu0 %2540
        %2542 = vrot.lane.b32.xlu0 %v1347, 24
        %v2543 = vpop.permute.xlu0 %2542
        %2544 = vrot.lane.b32.xlu0 %v1348, 24
        %v2545 = vpop.permute.xlu0 %2544
        %2578 = vst.msk [vmem:[#allocation6] sm:$0xff] %vm2447, %v2483
        %2579 = vst.msk [vmem:[#allocation6 + $0x8] sm:$0xff] %vm2447, %v2485
        %2580 = vst.msk [vmem:[#allocation6 + $0x10] sm:$0xff] %vm2447, %v2487
        %2581 = vst.msk [vmem:[#allocation6 + $0x18] sm:$0xff] %vm2447, %v2489
        %2582 = vst.msk [vmem:[#allocation6 + $0x20] sm:$0xff] %vm2447, %v2491
        %2583 = vst.msk [vmem:[#allocation6 + $0x28] sm:$0xff] %vm2447, %v2493
        %2584 = vst.msk [vmem:[#allocation6 + $0x30] sm:$0xff] %vm2447, %v2495
        %2585 = vst.msk [vmem:[#allocation6 + $0x38] sm:$0xff] %vm2447, %v2497
        %2586 = vst.msk [vmem:[#allocation6 + $0x40] sm:$0xff] %vm2447, %v2499
        %2587 = vst.msk [vmem:[#allocation6 + $0x48] sm:$0xff] %vm2447, %v2501
        %2588 = vst.msk [vmem:[#allocation6 + $0x50] sm:$0xff] %vm2447, %v2503
        %2589 = vst.msk [vmem:[#allocation6 + $0x58] sm:$0xff] %vm2447, %v2505
        %2590 = vst.msk [vmem:[#allocation6 + $0x60] sm:$0xff] %vm2447, %v2507
        %2591 = vst.msk [vmem:[#allocation6 + $0x68] sm:$0xff] %vm2447, %v2509
        %2592 = vst.msk [vmem:[#allocation6 + $0x70] sm:$0xff] %vm2447, %v2511
        %2593 = vst.msk [vmem:[#allocation6 + $0x78] sm:$0xff] %vm2447, %v2513
        %2594 = vst.msk [vmem:[#allocation6 + $0x80] sm:$0xff] %vm2447, %v2515
        %2595 = vst.msk [vmem:[#allocation6 + $0x88] sm:$0xff] %vm2447, %v2517
        %2596 = vst.msk [vmem:[#allocation6 + $0x90] sm:$0xff] %vm2447, %v2519
        %2597 = vst.msk [vmem:[#allocation6 + $0x98] sm:$0xff] %vm2447, %v2521
        %2598 = vst.msk [vmem:[#allocation6 + $0xa0] sm:$0xff] %vm2447, %v2523
        %2599 = vst.msk [vmem:[#allocation6 + $0xa8] sm:$0xff] %vm2447, %v2525
        %2600 = vst.msk [vmem:[#allocation6 + $0xb0] sm:$0xff] %vm2447, %v2527
        %2601 = vst.msk [vmem:[#allocation6 + $0xb8] sm:$0xff] %vm2447, %v2529
        %2602 = vst.msk [vmem:[#allocation6 + $0xc0] sm:$0xff] %vm2447, %v2531
        %2603 = vst.msk [vmem:[#allocation6 + $0xc8] sm:$0xff] %vm2447, %v2533
        %2604 = vst.msk [vmem:[#allocation6 + $0xd0] sm:$0xff] %vm2447, %v2535
        %2605 = vst.msk [vmem:[#allocation6 + $0xd8] sm:$0xff] %vm2447, %v2537
        %2606 = vst.msk [vmem:[#allocation6 + $0xe0] sm:$0xff] %vm2447, %v2539
        %2607 = vst.msk [vmem:[#allocation6 + $0xe8] sm:$0xff] %vm2447, %v2541
        %2608 = vst.msk [vmem:[#allocation6 + $0xf0] sm:$0xff] %vm2447, %v2543
        %2609 = vst.msk [vmem:[#allocation6 + $0xf8] sm:$0xff] %vm2447, %v2545
        %v2611 = vrot.slane %v1293, 1
        %v2612 = vrot.slane %v1294, 1
        %v2613 = vsel %vm1465, %v2611, %v2612
        %v2614 = vrot.slane %v1295, 1
        %v2615 = vsel %vm1465, %v2612, %v2614
        %2616 = vrot.lane.b32.xlu0 %v1473, 32
        %v2617 = vpop.permute.xlu0 %2616
        %2618 = vrot.lane.b32.xlu0 %v1475, 32
        %v2619 = vpop.permute.xlu0 %2618
        %2620 = vrot.lane.b32.xlu0 %v1478, 32
        %v2621 = vpop.permute.xlu0 %2620
        %2622 = vrot.lane.b32.xlu0 %v1480, 32
        %v2623 = vpop.permute.xlu0 %2622
        %2624 = vrot.lane.b32.xlu0 %v1483, 32
        %v2625 = vpop.permute.xlu0 %2624
        %2626 = vrot.lane.b32.xlu0 %v1485, 32
        %v2627 = vpop.permute.xlu0 %2626
        %2628 = vrot.lane.b32.xlu0 %v1488, 32
        %v2629 = vpop.permute.xlu0 %2628
        %2630 = vrot.lane.b32.xlu0 %v1490, 32
        %v2631 = vpop.permute.xlu0 %2630
        %2632 = vrot.lane.b32.xlu0 %v1493, 32
        %v2633 = vpop.permute.xlu0 %2632
        %2634 = vrot.lane.b32.xlu0 %v1495, 32
        %v2635 = vpop.permute.xlu0 %2634
        %2636 = vrot.lane.b32.xlu0 %v1498, 32
        %v2637 = vpop.permute.xlu0 %2636
        %2638 = vrot.lane.b32.xlu0 %v1500, 32
        %v2639 = vpop.permute.xlu0 %2638
        %2640 = vrot.lane.b32.xlu0 %v1503, 32
        %v2641 = vpop.permute.xlu0 %2640
        %2642 = vrot.lane.b32.xlu0 %v1505, 32
        %v2643 = vpop.permute.xlu0 %2642
        %2644 = vrot.lane.b32.xlu0 %v1508, 32
        %v2645 = vpop.permute.xlu0 %2644
        %2646 = vrot.lane.b32.xlu0 %v1510, 32
        %v2647 = vpop.permute.xlu0 %2646
        %2648 = vrot.lane.b32.xlu0 %v1513, 32
        %v2649 = vpop.permute.xlu0 %2648
        %2650 = vrot.lane.b32.xlu0 %v1515, 32
        %v2651 = vpop.permute.xlu0 %2650
        %2652 = vrot.lane.b32.xlu0 %v1518, 32
        %v2653 = vpop.permute.xlu0 %2652
        %2654 = vrot.lane.b32.xlu0 %v1520, 32
        %v2655 = vpop.permute.xlu0 %2654
        %2656 = vrot.lane.b32.xlu0 %v1523, 32
        %v2657 = vpop.permute.xlu0 %2656
        %2658 = vrot.lane.b32.xlu0 %v1525, 32
        %v2659 = vpop.permute.xlu0 %2658
        %2660 = vrot.lane.b32.xlu0 %v1528, 32
        %v2661 = vpop.permute.xlu0 %2660
        %2662 = vrot.lane.b32.xlu0 %v1530, 32
        %v2663 = vpop.permute.xlu0 %2662
        %2664 = vrot.lane.b32.xlu0 %v1533, 32
        %v2665 = vpop.permute.xlu0 %2664
        %2666 = vrot.lane.b32.xlu0 %v1535, 32
        %v2667 = vpop.permute.xlu0 %2666
        %2668 = vrot.lane.b32.xlu0 %v1538, 32
        %v2669 = vpop.permute.xlu0 %2668
        %2670 = vrot.lane.b32.xlu0 %v1540, 32
        %v2671 = vpop.permute.xlu0 %2670
        %2672 = vrot.lane.b32.xlu0 %v1543, 32
        %v2673 = vpop.permute.xlu0 %2672
        %2674 = vrot.lane.b32.xlu0 %v1545, 32
        %v2675 = vpop.permute.xlu0 %2674
        %2676 = vrot.lane.b32.xlu0 %v2613, 32
        %v2677 = vpop.permute.xlu0 %2676
        %2678 = vrot.lane.b32.xlu0 %v2615, 32
        %v2679 = vpop.permute.xlu0 %2678
        %vm2712 = vcmask 326912
        %2713 = vst.msk [vmem:[#allocation5] sm:$0xff] %vm2712, %v2617
        %2714 = vst.msk [vmem:[#allocation5 + $0x8] sm:$0xff] %vm2712, %v2619
        %2715 = vst.msk [vmem:[#allocation5 + $0x10] sm:$0xff] %vm2712, %v2621
        %2716 = vst.msk [vmem:[#allocation5 + $0x18] sm:$0xff] %vm2712, %v2623
        %2717 = vst.msk [vmem:[#allocation5 + $0x20] sm:$0xff] %vm2712, %v2625
        %2718 = vst.msk [vmem:[#allocation5 + $0x28] sm:$0xff] %vm2712, %v2627
        %2719 = vst.msk [vmem:[#allocation5 + $0x30] sm:$0xff] %vm2712, %v2629
        %2720 = vst.msk [vmem:[#allocation5 + $0x38] sm:$0xff] %vm2712, %v2631
        %2721 = vst.msk [vmem:[#allocation5 + $0x40] sm:$0xff] %vm2712, %v2633
        %2722 = vst.msk [vmem:[#allocation5 + $0x48] sm:$0xff] %vm2712, %v2635
        %2723 = vst.msk [vmem:[#allocation5 + $0x50] sm:$0xff] %vm2712, %v2637
        %2724 = vst.msk [vmem:[#allocation5 + $0x58] sm:$0xff] %vm2712, %v2639
        %2725 = vst.msk [vmem:[#allocation5 + $0x60] sm:$0xff] %vm2712, %v2641
        %2726 = vst.msk [vmem:[#allocation5 + $0x68] sm:$0xff] %vm2712, %v2643
        %2727 = vst.msk [vmem:[#allocation5 + $0x70] sm:$0xff] %vm2712, %v2645
        %2728 = vst.msk [vmem:[#allocation5 + $0x78] sm:$0xff] %vm2712, %v2647
        %2729 = vst.msk [vmem:[#allocation5 + $0x80] sm:$0xff] %vm2712, %v2649
        %2730 = vst.msk [vmem:[#allocation5 + $0x88] sm:$0xff] %vm2712, %v2651
        %2731 = vst.msk [vmem:[#allocation5 + $0x90] sm:$0xff] %vm2712, %v2653
        %2732 = vst.msk [vmem:[#allocation5 + $0x98] sm:$0xff] %vm2712, %v2655
        %2733 = vst.msk [vmem:[#allocation5 + $0xa0] sm:$0xff] %vm2712, %v2657
        %2734 = vst.msk [vmem:[#allocation5 + $0xa8] sm:$0xff] %vm2712, %v2659
        %2735 = vst.msk [vmem:[#allocation5 + $0xb0] sm:$0xff] %vm2712, %v2661
        %2736 = vst.msk [vmem:[#allocation5 + $0xb8] sm:$0xff] %vm2712, %v2663
        %2737 = vst.msk [vmem:[#allocation5 + $0xc0] sm:$0xff] %vm2712, %v2665
        %2738 = vst.msk [vmem:[#allocation5 + $0xc8] sm:$0xff] %vm2712, %v2667
        %2739 = vst.msk [vmem:[#allocation5 + $0xd0] sm:$0xff] %vm2712, %v2669
        %2740 = vst.msk [vmem:[#allocation5 + $0xd8] sm:$0xff] %vm2712, %v2671
        %2741 = vst.msk [vmem:[#allocation5 + $0xe0] sm:$0xff] %vm2712, %v2673
        %2742 = vst.msk [vmem:[#allocation5 + $0xe8] sm:$0xff] %vm2712, %v2675
        %2743 = vst.msk [vmem:[#allocation5 + $0xf0] sm:$0xff] %vm2712, %v2677
        %2744 = vst.msk [vmem:[#allocation5 + $0xf8] sm:$0xff] %vm2712, %v2679
        %v2746 = vrot.slane %v1347, 1
        %v2747 = vrot.slane %v1348, 1
        %v2748 = vsel %vm1465, %v2746, %v2747
        %v2749 = vrot.slane %v1349, 1
        %v2750 = vsel %vm1465, %v2747, %v2749
        %2751 = vrot.lane.b32.xlu0 %v1730, 32
        %v2752 = vpop.permute.xlu0 %2751
        %2753 = vrot.lane.b32.xlu0 %v1732, 32
        %v2754 = vpop.permute.xlu0 %2753
        %2755 = vrot.lane.b32.xlu0 %v1735, 32
        %v2756 = vpop.permute.xlu0 %2755
        %2757 = vrot.lane.b32.xlu0 %v1737, 32
        %v2758 = vpop.permute.xlu0 %2757
        %2759 = vrot.lane.b32.xlu0 %v1740, 32
        %v2760 = vpop.permute.xlu0 %2759
        %2761 = vrot.lane.b32.xlu0 %v1742, 32
        %v2762 = vpop.permute.xlu0 %2761
        %2763 = vrot.lane.b32.xlu0 %v1745, 32
        %v2764 = vpop.permute.xlu0 %2763
        %2765 = vrot.lane.b32.xlu0 %v1747, 32
        %v2766 = vpop.permute.xlu0 %2765
        %2767 = vrot.lane.b32.xlu0 %v1750, 32
        %v2768 = vpop.permute.xlu0 %2767
        %2769 = vrot.lane.b32.xlu0 %v1752, 32
        %v2770 = vpop.permute.xlu0 %2769
        %2771 = vrot.lane.b32.xlu0 %v1755, 32
        %v2772 = vpop.permute.xlu0 %2771
        %2773 = vrot.lane.b32.xlu0 %v1757, 32
        %v2774 = vpop.permute.xlu0 %2773
        %2775 = vrot.lane.b32.xlu0 %v1760, 32
        %v2776 = vpop.permute.xlu0 %2775
        %2777 = vrot.lane.b32.xlu0 %v1762, 32
        %v2778 = vpop.permute.xlu0 %2777
        %2779 = vrot.lane.b32.xlu0 %v1765, 32
        %v2780 = vpop.permute.xlu0 %2779
        %2781 = vrot.lane.b32.xlu0 %v1767, 32
        %v2782 = vpop.permute.xlu0 %2781
        %2783 = vrot.lane.b32.xlu0 %v1770, 32
        %v2784 = vpop.permute.xlu0 %2783
        %2785 = vrot.lane.b32.xlu0 %v1772, 32
        %v2786 = vpop.permute.xlu0 %2785
        %2787 = vrot.lane.b32.xlu0 %v1775, 32
        %v2788 = vpop.permute.xlu0 %2787
        %2789 = vrot.lane.b32.xlu0 %v1777, 32
        %v2790 = vpop.permute.xlu0 %2789
        %2791 = vrot.lane.b32.xlu0 %v1780, 32
        %v2792 = vpop.permute.xlu0 %2791
        %2793 = vrot.lane.b32.xlu0 %v1782, 32
        %v2794 = vpop.permute.xlu0 %2793
        %2795 = vrot.lane.b32.xlu0 %v1785, 32
        %v2796 = vpop.permute.xlu0 %2795
        %2797 = vrot.lane.b32.xlu0 %v1787, 32
        %v2798 = vpop.permute.xlu0 %2797
        %2799 = vrot.lane.b32.xlu0 %v1790, 32
        %v2800 = vpop.permute.xlu0 %2799
        %2801 = vrot.lane.b32.xlu0 %v1792, 32
        %v2802 = vpop.permute.xlu0 %2801
        %2803 = vrot.lane.b32.xlu0 %v1795, 32
        %v2804 = vpop.permute.xlu0 %2803
        %2805 = vrot.lane.b32.xlu0 %v1797, 32
        %v2806 = vpop.permute.xlu0 %2805
        %2807 = vrot.lane.b32.xlu0 %v1800, 32
        %v2808 = vpop.permute.xlu0 %2807
        %2809 = vrot.lane.b32.xlu0 %v1802, 32
        %v2810 = vpop.permute.xlu0 %2809
        %2811 = vrot.lane.b32.xlu0 %v2748, 32
        %v2812 = vpop.permute.xlu0 %2811
        %2813 = vrot.lane.b32.xlu0 %v2750, 32
        %v2814 = vpop.permute.xlu0 %2813
        %2847 = vst.msk [vmem:[#allocation6] sm:$0xff] %vm2712, %v2752
        %2848 = vst.msk [vmem:[#allocation6 + $0x8] sm:$0xff] %vm2712, %v2754
        %2849 = vst.msk [vmem:[#allocation6 + $0x10] sm:$0xff] %vm2712, %v2756
        %2850 = vst.msk [vmem:[#allocation6 + $0x18] sm:$0xff] %vm2712, %v2758
        %2851 = vst.msk [vmem:[#allocation6 + $0x20] sm:$0xff] %vm2712, %v2760
        %2852 = vst.msk [vmem:[#allocation6 + $0x28] sm:$0xff] %vm2712, %v2762
        %2853 = vst.msk [vmem:[#allocation6 + $0x30] sm:$0xff] %vm2712, %v2764
        %2854 = vst.msk [vmem:[#allocation6 + $0x38] sm:$0xff] %vm2712, %v2766
        %2855 = vst.msk [vmem:[#allocation6 + $0x40] sm:$0xff] %vm2712, %v2768
        %2856 = vst.msk [vmem:[#allocation6 + $0x48] sm:$0xff] %vm2712, %v2770
        %2857 = vst.msk [vmem:[#allocation6 + $0x50] sm:$0xff] %vm2712, %v2772
        %2858 = vst.msk [vmem:[#allocation6 + $0x58] sm:$0xff] %vm2712, %v2774
        %2859 = vst.msk [vmem:[#allocation6 + $0x60] sm:$0xff] %vm2712, %v2776
        %2860 = vst.msk [vmem:[#allocation6 + $0x68] sm:$0xff] %vm2712, %v2778
        %2861 = vst.msk [vmem:[#allocation6 + $0x70] sm:$0xff] %vm2712, %v2780
        %2862 = vst.msk [vmem:[#allocation6 + $0x78] sm:$0xff] %vm2712, %v2782
        %2863 = vst.msk [vmem:[#allocation6 + $0x80] sm:$0xff] %vm2712, %v2784
        %2864 = vst.msk [vmem:[#allocation6 + $0x88] sm:$0xff] %vm2712, %v2786
        %2865 = vst.msk [vmem:[#allocation6 + $0x90] sm:$0xff] %vm2712, %v2788
        %2866 = vst.msk [vmem:[#allocation6 + $0x98] sm:$0xff] %vm2712, %v2790
        %2867 = vst.msk [vmem:[#allocation6 + $0xa0] sm:$0xff] %vm2712, %v2792
        %2868 = vst.msk [vmem:[#allocation6 + $0xa8] sm:$0xff] %vm2712, %v2794
        %2869 = vst.msk [vmem:[#allocation6 + $0xb0] sm:$0xff] %vm2712, %v2796
        %2870 = vst.msk [vmem:[#allocation6 + $0xb8] sm:$0xff] %vm2712, %v2798
        %2871 = vst.msk [vmem:[#allocation6 + $0xc0] sm:$0xff] %vm2712, %v2800
        %2872 = vst.msk [vmem:[#allocation6 + $0xc8] sm:$0xff] %vm2712, %v2802
        %2873 = vst.msk [vmem:[#allocation6 + $0xd0] sm:$0xff] %vm2712, %v2804
        %2874 = vst.msk [vmem:[#allocation6 + $0xd8] sm:$0xff] %vm2712, %v2806
        %2875 = vst.msk [vmem:[#allocation6 + $0xe0] sm:$0xff] %vm2712, %v2808
        %2876 = vst.msk [vmem:[#allocation6 + $0xe8] sm:$0xff] %vm2712, %v2810
        %2877 = vst.msk [vmem:[#allocation6 + $0xf0] sm:$0xff] %vm2712, %v2812
        %2878 = vst.msk [vmem:[#allocation6 + $0xf8] sm:$0xff] %vm2712, %v2814
        %v2879 = vrot.slane %v1293, 2
        %v2880 = vrot.slane %v1294, 2
        %v2881 = vsel %vm1931, %v2879, %v2880
        %v2882 = vrot.slane %v1295, 2
        %v2883 = vsel %vm1931, %v2880, %v2882
        %2884 = vrot.lane.b32.xlu0 %v1939, 40
        %v2885 = vpop.permute.xlu0 %2884
        %2886 = vrot.lane.b32.xlu0 %v1941, 40
        %v2887 = vpop.permute.xlu0 %2886
        %2888 = vrot.lane.b32.xlu0 %v1944, 40
        %v2889 = vpop.permute.xlu0 %2888
        %2890 = vrot.lane.b32.xlu0 %v1946, 40
        %v2891 = vpop.permute.xlu0 %2890
        %2892 = vrot.lane.b32.xlu0 %v1949, 40
        %v2893 = vpop.permute.xlu0 %2892
        %2894 = vrot.lane.b32.xlu0 %v1951, 40
        %v2895 = vpop.permute.xlu0 %2894
        %2896 = vrot.lane.b32.xlu0 %v1954, 40
        %v2897 = vpop.permute.xlu0 %2896
        %2898 = vrot.lane.b32.xlu0 %v1956, 40
        %v2899 = vpop.permute.xlu0 %2898
        %2900 = vrot.lane.b32.xlu0 %v1959, 40
        %v2901 = vpop.permute.xlu0 %2900
        %2902 = vrot.lane.b32.xlu0 %v1961, 40
        %v2903 = vpop.permute.xlu0 %2902
        %2904 = vrot.lane.b32.xlu0 %v1964, 40
        %v2905 = vpop.permute.xlu0 %2904
        %2906 = vrot.lane.b32.xlu0 %v1966, 40
        %v2907 = vpop.permute.xlu0 %2906
        %2908 = vrot.lane.b32.xlu0 %v1969, 40
        %v2909 = vpop.permute.xlu0 %2908
        %2910 = vrot.lane.b32.xlu0 %v1971, 40
        %v2911 = vpop.permute.xlu0 %2910
        %2912 = vrot.lane.b32.xlu0 %v1974, 40
        %v2913 = vpop.permute.xlu0 %2912
        %2914 = vrot.lane.b32.xlu0 %v1976, 40
        %v2915 = vpop.permute.xlu0 %2914
        %2916 = vrot.lane.b32.xlu0 %v1979, 40
        %v2917 = vpop.permute.xlu0 %2916
        %2918 = vrot.lane.b32.xlu0 %v1981, 40
        %v2919 = vpop.permute.xlu0 %2918
        %2920 = vrot.lane.b32.xlu0 %v1984, 40
        %v2921 = vpop.permute.xlu0 %2920
        %2922 = vrot.lane.b32.xlu0 %v1986, 40
        %v2923 = vpop.permute.xlu0 %2922
        %2924 = vrot.lane.b32.xlu0 %v1989, 40
        %v2925 = vpop.permute.xlu0 %2924
        %2926 = vrot.lane.b32.xlu0 %v1991, 40
        %v2927 = vpop.permute.xlu0 %2926
        %2928 = vrot.lane.b32.xlu0 %v1994, 40
        %v2929 = vpop.permute.xlu0 %2928
        %2930 = vrot.lane.b32.xlu0 %v1996, 40
        %v2931 = vpop.permute.xlu0 %2930
        %2932 = vrot.lane.b32.xlu0 %v1999, 40
        %v2933 = vpop.permute.xlu0 %2932
        %2934 = vrot.lane.b32.xlu0 %v2001, 40
        %v2935 = vpop.permute.xlu0 %2934
        %2936 = vrot.lane.b32.xlu0 %v2004, 40
        %v2937 = vpop.permute.xlu0 %2936
        %2938 = vrot.lane.b32.xlu0 %v2006, 40
        %v2939 = vpop.permute.xlu0 %2938
        %2940 = vrot.lane.b32.xlu0 %v2009, 40
        %v2941 = vpop.permute.xlu0 %2940
        %2942 = vrot.lane.b32.xlu0 %v2011, 40
        %v2943 = vpop.permute.xlu0 %2942
        %2944 = vrot.lane.b32.xlu0 %v2881, 40
        %v2945 = vpop.permute.xlu0 %2944
        %2946 = vrot.lane.b32.xlu0 %v2883, 40
        %v2947 = vpop.permute.xlu0 %2946
        %vm2980 = vcmask 392512
        %2981 = vst.msk [vmem:[#allocation5] sm:$0xff] %vm2980, %v2885
        %2982 = vst.msk [vmem:[#allocation5 + $0x8] sm:$0xff] %vm2980, %v2887
        %2983 = vst.msk [vmem:[#allocation5 + $0x10] sm:$0xff] %vm2980, %v2889
        %2984 = vst.msk [vmem:[#allocation5 + $0x18] sm:$0xff] %vm2980, %v2891
        %2985 = vst.msk [vmem:[#allocation5 + $0x20] sm:$0xff] %vm2980, %v2893
        %2986 = vst.msk [vmem:[#allocation5 + $0x28] sm:$0xff] %vm2980, %v2895
        %2987 = vst.msk [vmem:[#allocation5 + $0x30] sm:$0xff] %vm2980, %v2897
        %2988 = vst.msk [vmem:[#allocation5 + $0x38] sm:$0xff] %vm2980, %v2899
        %2989 = vst.msk [vmem:[#allocation5 + $0x40] sm:$0xff] %vm2980, %v2901
        %2990 = vst.msk [vmem:[#allocation5 + $0x48] sm:$0xff] %vm2980, %v2903
        %2991 = vst.msk [vmem:[#allocation5 + $0x50] sm:$0xff] %vm2980, %v2905
        %2992 = vst.msk [vmem:[#allocation5 + $0x58] sm:$0xff] %vm2980, %v2907
        %2993 = vst.msk [vmem:[#allocation5 + $0x60] sm:$0xff] %vm2980, %v2909
        %2994 = vst.msk [vmem:[#allocation5 + $0x68] sm:$0xff] %vm2980, %v2911
        %2995 = vst.msk [vmem:[#allocation5 + $0x70] sm:$0xff] %vm2980, %v2913
        %2996 = vst.msk [vmem:[#allocation5 + $0x78] sm:$0xff] %vm2980, %v2915
        %2997 = vst.msk [vmem:[#allocation5 + $0x80] sm:$0xff] %vm2980, %v2917
        %2998 = vst.msk [vmem:[#allocation5 + $0x88] sm:$0xff] %vm2980, %v2919
        %2999 = vst.msk [vmem:[#allocation5 + $0x90] sm:$0xff] %vm2980, %v2921
        %3000 = vst.msk [vmem:[#allocation5 + $0x98] sm:$0xff] %vm2980, %v2923
        %3001 = vst.msk [vmem:[#allocation5 + $0xa0] sm:$0xff] %vm2980, %v2925
        %3002 = vst.msk [vmem:[#allocation5 + $0xa8] sm:$0xff] %vm2980, %v2927
        %3003 = vst.msk [vmem:[#allocation5 + $0xb0] sm:$0xff] %vm2980, %v2929
        %3004 = vst.msk [vmem:[#allocation5 + $0xb8] sm:$0xff] %vm2980, %v2931
        %3005 = vst.msk [vmem:[#allocation5 + $0xc0] sm:$0xff] %vm2980, %v2933
        %3006 = vst.msk [vmem:[#allocation5 + $0xc8] sm:$0xff] %vm2980, %v2935
        %3007 = vst.msk [vmem:[#allocation5 + $0xd0] sm:$0xff] %vm2980, %v2937
        %3008 = vst.msk [vmem:[#allocation5 + $0xd8] sm:$0xff] %vm2980, %v2939
        %3009 = vst.msk [vmem:[#allocation5 + $0xe0] sm:$0xff] %vm2980, %v2941
        %3010 = vst.msk [vmem:[#allocation5 + $0xe8] sm:$0xff] %vm2980, %v2943
        %3011 = vst.msk [vmem:[#allocation5 + $0xf0] sm:$0xff] %vm2980, %v2945
        %3012 = vst.msk [vmem:[#allocation5 + $0xf8] sm:$0xff] %vm2980, %v2947
        %v3013 = vrot.slane %v1347, 2
        %v3014 = vrot.slane %v1348, 2
        %v3015 = vsel %vm1931, %v3013, %v3014
        %v3016 = vrot.slane %v1349, 2
        %v3017 = vsel %vm1931, %v3014, %v3016
        %3018 = vrot.lane.b32.xlu0 %v2148, 40
        %v3019 = vpop.permute.xlu0 %3018
        %3020 = vrot.lane.b32.xlu0 %v2150, 40
        %v3021 = vpop.permute.xlu0 %3020
        %3022 = vrot.lane.b32.xlu0 %v2153, 40
        %v3023 = vpop.permute.xlu0 %3022
        %3024 = vrot.lane.b32.xlu0 %v2155, 40
        %v3025 = vpop.permute.xlu0 %3024
        %3026 = vrot.lane.b32.xlu0 %v2158, 40
        %v3027 = vpop.permute.xlu0 %3026
        %3028 = vrot.lane.b32.xlu0 %v2160, 40
        %v3029 = vpop.permute.xlu0 %3028
        %3030 = vrot.lane.b32.xlu0 %v2163, 40
        %v3031 = vpop.permute.xlu0 %3030
        %3032 = vrot.lane.b32.xlu0 %v2165, 40
        %v3033 = vpop.permute.xlu0 %3032
        %3034 = vrot.lane.b32.xlu0 %v2168, 40
        %v3035 = vpop.permute.xlu0 %3034
        %3036 = vrot.lane.b32.xlu0 %v2170, 40
        %v3037 = vpop.permute.xlu0 %3036
        %3038 = vrot.lane.b32.xlu0 %v2173, 40
        %v3039 = vpop.permute.xlu0 %3038
        %3040 = vrot.lane.b32.xlu0 %v2175, 40
        %v3041 = vpop.permute.xlu0 %3040
        %3042 = vrot.lane.b32.xlu0 %v2178, 40
        %v3043 = vpop.permute.xlu0 %3042
        %3044 = vrot.lane.b32.xlu0 %v2180, 40
        %v3045 = vpop.permute.xlu0 %3044
        %3046 = vrot.lane.b32.xlu0 %v2183, 40
        %v3047 = vpop.permute.xlu0 %3046
        %3048 = vrot.lane.b32.xlu0 %v2185, 40
        %v3049 = vpop.permute.xlu0 %3048
        %3050 = vrot.lane.b32.xlu0 %v2188, 40
        %v3051 = vpop.permute.xlu0 %3050
        %3052 = vrot.lane.b32.xlu0 %v2190, 40
        %v3053 = vpop.permute.xlu0 %3052
        %3054 = vrot.lane.b32.xlu0 %v2193, 40
        %v3055 = vpop.permute.xlu0 %3054
        %3056 = vrot.lane.b32.xlu0 %v2195, 40
        %v3057 = vpop.permute.xlu0 %3056
        %3058 = vrot.lane.b32.xlu0 %v2198, 40
        %v3059 = vpop.permute.xlu0 %3058
        %3060 = vrot.lane.b32.xlu0 %v2200, 40
        %v3061 = vpop.permute.xlu0 %3060
        %3062 = vrot.lane.b32.xlu0 %v2203, 40
        %v3063 = vpop.permute.xlu0 %3062
        %3064 = vrot.lane.b32.xlu0 %v2205, 40
        %v3065 = vpop.permute.xlu0 %3064
        %3066 = vrot.lane.b32.xlu0 %v2208, 40
        %v3067 = vpop.permute.xlu0 %3066
        %3068 = vrot.lane.b32.xlu0 %v2210, 40
        %v3069 = vpop.permute.xlu0 %3068
        %3070 = vrot.lane.b32.xlu0 %v2213, 40
        %v3071 = vpop.permute.xlu0 %3070
        %3072 = vrot.lane.b32.xlu0 %v2215, 40
        %v3073 = vpop.permute.xlu0 %3072
        %3074 = vrot.lane.b32.xlu0 %v2218, 40
        %v3075 = vpop.permute.xlu0 %3074
        %3076 = vrot.lane.b32.xlu0 %v2220, 40
        %v3077 = vpop.permute.xlu0 %3076
        %3078 = vrot.lane.b32.xlu0 %v3015, 40
        %v3079 = vpop.permute.xlu0 %3078
        %3080 = vrot.lane.b32.xlu0 %v3017, 40
        %v3081 = vpop.permute.xlu0 %3080
        %3114 = vst.msk [vmem:[#allocation6] sm:$0xff] %vm2980, %v3019
        %3115 = vst.msk [vmem:[#allocation6 + $0x8] sm:$0xff] %vm2980, %v3021
        %3116 = vst.msk [vmem:[#allocation6 + $0x10] sm:$0xff] %vm2980, %v3023
        %3117 = vst.msk [vmem:[#allocation6 + $0x18] sm:$0xff] %vm2980, %v3025
        %3118 = vst.msk [vmem:[#allocation6 + $0x20] sm:$0xff] %vm2980, %v3027
        %3119 = vst.msk [vmem:[#allocation6 + $0x28] sm:$0xff] %vm2980, %v3029
        %3120 = vst.msk [vmem:[#allocation6 + $0x30] sm:$0xff] %vm2980, %v3031
        %3121 = vst.msk [vmem:[#allocation6 + $0x38] sm:$0xff] %vm2980, %v3033
        %3122 = vst.msk [vmem:[#allocation6 + $0x40] sm:$0xff] %vm2980, %v3035
        %3123 = vst.msk [vmem:[#allocation6 + $0x48] sm:$0xff] %vm2980, %v3037
        %3124 = vst.msk [vmem:[#allocation6 + $0x50] sm:$0xff] %vm2980, %v3039
        %3125 = vst.msk [vmem:[#allocation6 + $0x58] sm:$0xff] %vm2980, %v3041
        %3126 = vst.msk [vmem:[#allocation6 + $0x60] sm:$0xff] %vm2980, %v3043
        %3127 = vst.msk [vmem:[#allocation6 + $0x68] sm:$0xff] %vm2980, %v3045
        %3128 = vst.msk [vmem:[#allocation6 + $0x70] sm:$0xff] %vm2980, %v3047
        %3129 = vst.msk [vmem:[#allocation6 + $0x78] sm:$0xff] %vm2980, %v3049
        %3130 = vst.msk [vmem:[#allocation6 + $0x80] sm:$0xff] %vm2980, %v3051
        %3131 = vst.msk [vmem:[#allocation6 + $0x88] sm:$0xff] %vm2980, %v3053
        %3132 = vst.msk [vmem:[#allocation6 + $0x90] sm:$0xff] %vm2980, %v3055
        %3133 = vst.msk [vmem:[#allocation6 + $0x98] sm:$0xff] %vm2980, %v3057
        %3134 = vst.msk [vmem:[#allocation6 + $0xa0] sm:$0xff] %vm2980, %v3059
        %3135 = vst.msk [vmem:[#allocation6 + $0xa8] sm:$0xff] %vm2980, %v3061
        %3136 = vst.msk [vmem:[#allocation6 + $0xb0] sm:$0xff] %vm2980, %v3063
        %3137 = vst.msk [vmem:[#allocation6 + $0xb8] sm:$0xff] %vm2980, %v3065
        %3138 = vst.msk [vmem:[#allocation6 + $0xc0] sm:$0xff] %vm2980, %v3067
        %3139 = vst.msk [vmem:[#allocation6 + $0xc8] sm:$0xff] %vm2980, %v3069
        %3140 = vst.msk [vmem:[#allocation6 + $0xd0] sm:$0xff] %vm2980, %v3071
        %3141 = vst.msk [vmem:[#allocation6 + $0xd8] sm:$0xff] %vm2980, %v3073
        %3142 = vst.msk [vmem:[#allocation6 + $0xe0] sm:$0xff] %vm2980, %v3075
        %3143 = vst.msk [vmem:[#allocation6 + $0xe8] sm:$0xff] %vm2980, %v3077
        %3144 = vst.msk [vmem:[#allocation6 + $0xf0] sm:$0xff] %vm2980, %v3079
        %3145 = vst.msk [vmem:[#allocation6 + $0xf8] sm:$0xff] %vm2980, %v3081
        %3148 = vrot.lane.b32.xlu0 %v1251, 48
        %v3149 = vpop.permute.xlu0 %3148
        %3150 = vrot.lane.b32.xlu0 %v1252, 48
        %v3151 = vpop.permute.xlu0 %3150
        %3152 = vrot.lane.b32.xlu0 %v1254, 48
        %v3153 = vpop.permute.xlu0 %3152
        %3154 = vrot.lane.b32.xlu0 %v1255, 48
        %v3155 = vpop.permute.xlu0 %3154
        %3156 = vrot.lane.b32.xlu0 %v1257, 48
        %v3157 = vpop.permute.xlu0 %3156
        %3158 = vrot.lane.b32.xlu0 %v1258, 48
        %v3159 = vpop.permute.xlu0 %3158
        %3160 = vrot.lane.b32.xlu0 %v1260, 48
        %v3161 = vpop.permute.xlu0 %3160
        %3162 = vrot.lane.b32.xlu0 %v1261, 48
        %v3163 = vpop.permute.xlu0 %3162
        %3164 = vrot.lane.b32.xlu0 %v1263, 48
        %v3165 = vpop.permute.xlu0 %3164
        %3166 = vrot.lane.b32.xlu0 %v1264, 48
        %v3167 = vpop.permute.xlu0 %3166
        %3168 = vrot.lane.b32.xlu0 %v1266, 48
        %v3169 = vpop.permute.xlu0 %3168
        %3170 = vrot.lane.b32.xlu0 %v1267, 48
        %v3171 = vpop.permute.xlu0 %3170
        %3172 = vrot.lane.b32.xlu0 %v1269, 48
        %v3173 = vpop.permute.xlu0 %3172
        %3174 = vrot.lane.b32.xlu0 %v1270, 48
        %v3175 = vpop.permute.xlu0 %3174
        %3176 = vrot.lane.b32.xlu0 %v1272, 48
        %v3177 = vpop.permute.xlu0 %3176
        %3178 = vrot.lane.b32.xlu0 %v1273, 48
        %v3179 = vpop.permute.xlu0 %3178
        %3180 = vrot.lane.b32.xlu0 %v1275, 48
        %v3181 = vpop.permute.xlu0 %3180
        %3182 = vrot.lane.b32.xlu0 %v1276, 48
        %v3183 = vpop.permute.xlu0 %3182
        %3184 = vrot.lane.b32.xlu0 %v1278, 48
        %v3185 = vpop.permute.xlu0 %3184
        %3186 = vrot.lane.b32.xlu0 %v1279, 48
        %v3187 = vpop.permute.xlu0 %3186
        %3188 = vrot.lane.b32.xlu0 %v1281, 48
        %v3189 = vpop.permute.xlu0 %3188
        %3190 = vrot.lane.b32.xlu0 %v1282, 48
        %v3191 = vpop.permute.xlu0 %3190
        %3192 = vrot.lane.b32.xlu0 %v1284, 48
        %v3193 = vpop.permute.xlu0 %3192
        %3194 = vrot.lane.b32.xlu0 %v1285, 48
        %v3195 = vpop.permute.xlu0 %3194
        %3196 = vrot.lane.b32.xlu0 %v1287, 48
        %v3197 = vpop.permute.xlu0 %3196
        %3198 = vrot.lane.b32.xlu0 %v1288, 48
        %v3199 = vpop.permute.xlu0 %3198
        %3200 = vrot.lane.b32.xlu0 %v1290, 48
        %v3201 = vpop.permute.xlu0 %3200
        %3202 = vrot.lane.b32.xlu0 %v1291, 48
        %v3203 = vpop.permute.xlu0 %3202
        %3204 = vrot.lane.b32.xlu0 %v1293, 48
        %v3205 = vpop.permute.xlu0 %3204
        %3206 = vrot.lane.b32.xlu0 %v1294, 48
        %v3207 = vpop.permute.xlu0 %3206
        %3208 = vrot.lane.b32.xlu0 %v1296, 48
        %v3209 = vpop.permute.xlu0 %3208
        %3210 = vrot.lane.b32.xlu0 %v1297, 48
        %v3211 = vpop.permute.xlu0 %3210
        %vm3244 = vcmask 458112
        %3245 = vst.msk [vmem:[#allocation5] sm:$0xff] %vm3244, %v3149
        %3246 = vst.msk [vmem:[#allocation5 + $0x8] sm:$0xff] %vm3244, %v3151
        %3247 = vst.msk [vmem:[#allocation5 + $0x10] sm:$0xff] %vm3244, %v3153
        %3248 = vst.msk [vmem:[#allocation5 + $0x18] sm:$0xff] %vm3244, %v3155
        %3249 = vst.msk [vmem:[#allocation5 + $0x20] sm:$0xff] %vm3244, %v3157
        %3250 = vst.msk [vmem:[#allocation5 + $0x28] sm:$0xff] %vm3244, %v3159
        %3251 = vst.msk [vmem:[#allocation5 + $0x30] sm:$0xff] %vm3244, %v3161
        %3252 = vst.msk [vmem:[#allocation5 + $0x38] sm:$0xff] %vm3244, %v3163
        %3253 = vst.msk [vmem:[#allocation5 + $0x40] sm:$0xff] %vm3244, %v3165
        %3254 = vst.msk [vmem:[#allocation5 + $0x48] sm:$0xff] %vm3244, %v3167
        %3255 = vst.msk [vmem:[#allocation5 + $0x50] sm:$0xff] %vm3244, %v3169
        %3256 = vst.msk [vmem:[#allocation5 + $0x58] sm:$0xff] %vm3244, %v3171
        %3257 = vst.msk [vmem:[#allocation5 + $0x60] sm:$0xff] %vm3244, %v3173
        %3258 = vst.msk [vmem:[#allocation5 + $0x68] sm:$0xff] %vm3244, %v3175
        %3259 = vst.msk [vmem:[#allocation5 + $0x70] sm:$0xff] %vm3244, %v3177
        %3260 = vst.msk [vmem:[#allocation5 + $0x78] sm:$0xff] %vm3244, %v3179
        %3261 = vst.msk [vmem:[#allocation5 + $0x80] sm:$0xff] %vm3244, %v3181
        %3262 = vst.msk [vmem:[#allocation5 + $0x88] sm:$0xff] %vm3244, %v3183
        %3263 = vst.msk [vmem:[#allocation5 + $0x90] sm:$0xff] %vm3244, %v3185
        %3264 = vst.msk [vmem:[#allocation5 + $0x98] sm:$0xff] %vm3244, %v3187
        %3265 = vst.msk [vmem:[#allocation5 + $0xa0] sm:$0xff] %vm3244, %v3189
        %3266 = vst.msk [vmem:[#allocation5 + $0xa8] sm:$0xff] %vm3244, %v3191
        %3267 = vst.msk [vmem:[#allocation5 + $0xb0] sm:$0xff] %vm3244, %v3193
        %3268 = vst.msk [vmem:[#allocation5 + $0xb8] sm:$0xff] %vm3244, %v3195
        %3269 = vst.msk [vmem:[#allocation5 + $0xc0] sm:$0xff] %vm3244, %v3197
        %3270 = vst.msk [vmem:[#allocation5 + $0xc8] sm:$0xff] %vm3244, %v3199
        %3271 = vst.msk [vmem:[#allocation5 + $0xd0] sm:$0xff] %vm3244, %v3201
        %3272 = vst.msk [vmem:[#allocation5 + $0xd8] sm:$0xff] %vm3244, %v3203
        %3273 = vst.msk [vmem:[#allocation5 + $0xe0] sm:$0xff] %vm3244, %v3205
        %3274 = vst.msk [vmem:[#allocation5 + $0xe8] sm:$0xff] %vm3244, %v3207
        %3275 = vst.msk [vmem:[#allocation5 + $0xf0] sm:$0xff] %vm3244, %v3209
        %3276 = vst.msk [vmem:[#allocation5 + $0xf8] sm:$0xff] %vm3244, %v3211
        %3279 = vrot.lane.b32.xlu0 %v1305, 48
        %v3280 = vpop.permute.xlu0 %3279
        %3281 = vrot.lane.b32.xlu0 %v1306, 48
        %v3282 = vpop.permute.xlu0 %3281
        %3283 = vrot.lane.b32.xlu0 %v1308, 48
        %v3284 = vpop.permute.xlu0 %3283
        %3285 = vrot.lane.b32.xlu0 %v1309, 48
        %v3286 = vpop.permute.xlu0 %3285
        %3287 = vrot.lane.b32.xlu0 %v1311, 48
        %v3288 = vpop.permute.xlu0 %3287
        %3289 = vrot.lane.b32.xlu0 %v1312, 48
        %v3290 = vpop.permute.xlu0 %3289
        %3291 = vrot.lane.b32.xlu0 %v1314, 48
        %v3292 = vpop.permute.xlu0 %3291
        %3293 = vrot.lane.b32.xlu0 %v1315, 48
        %v3294 = vpop.permute.xlu0 %3293
        %3295 = vrot.lane.b32.xlu0 %v1317, 48
        %v3296 = vpop.permute.xlu0 %3295
        %3297 = vrot.lane.b32.xlu0 %v1318, 48
        %v3298 = vpop.permute.xlu0 %3297
        %3299 = vrot.lane.b32.xlu0 %v1320, 48
        %v3300 = vpop.permute.xlu0 %3299
        %3301 = vrot.lane.b32.xlu0 %v1321, 48
        %v3302 = vpop.permute.xlu0 %3301
        %3303 = vrot.lane.b32.xlu0 %v1323, 48
        %v3304 = vpop.permute.xlu0 %3303
        %3305 = vrot.lane.b32.xlu0 %v1324, 48
        %v3306 = vpop.permute.xlu0 %3305
        %3307 = vrot.lane.b32.xlu0 %v1326, 48
        %v3308 = vpop.permute.xlu0 %3307
        %3309 = vrot.lane.b32.xlu0 %v1327, 48
        %v3310 = vpop.permute.xlu0 %3309
        %3311 = vrot.lane.b32.xlu0 %v1329, 48
        %v3312 = vpop.permute.xlu0 %3311
        %3313 = vrot.lane.b32.xlu0 %v1330, 48
        %v3314 = vpop.permute.xlu0 %3313
        %3315 = vrot.lane.b32.xlu0 %v1332, 48
        %v3316 = vpop.permute.xlu0 %3315
        %3317 = vrot.lane.b32.xlu0 %v1333, 48
        %v3318 = vpop.permute.xlu0 %3317
        %3319 = vrot.lane.b32.xlu0 %v1335, 48
        %v3320 = vpop.permute.xlu0 %3319
        %3321 = vrot.lane.b32.xlu0 %v1336, 48
        %v3322 = vpop.permute.xlu0 %3321
        %3323 = vrot.lane.b32.xlu0 %v1338, 48
        %v3324 = vpop.permute.xlu0 %3323
        %3325 = vrot.lane.b32.xlu0 %v1339, 48
        %v3326 = vpop.permute.xlu0 %3325
        %3327 = vrot.lane.b32.xlu0 %v1341, 48
        %v3328 = vpop.permute.xlu0 %3327
        %3329 = vrot.lane.b32.xlu0 %v1342, 48
        %v3330 = vpop.permute.xlu0 %3329
        %3331 = vrot.lane.b32.xlu0 %v1344, 48
        %v3332 = vpop.permute.xlu0 %3331
        %3333 = vrot.lane.b32.xlu0 %v1345, 48
        %v3334 = vpop.permute.xlu0 %3333
        %3335 = vrot.lane.b32.xlu0 %v1347, 48
        %v3336 = vpop.permute.xlu0 %3335
        %3337 = vrot.lane.b32.xlu0 %v1348, 48
        %v3338 = vpop.permute.xlu0 %3337
        %3339 = vrot.lane.b32.xlu0 %v1350, 48
        %v3340 = vpop.permute.xlu0 %3339
        %3341 = vrot.lane.b32.xlu0 %v1351, 48
        %v3342 = vpop.permute.xlu0 %3341
        %3375 = vst.msk [vmem:[#allocation6] sm:$0xff] %vm3244, %v3280
        %3376 = vst.msk [vmem:[#allocation6 + $0x8] sm:$0xff] %vm3244, %v3282
        %3377 = vst.msk [vmem:[#allocation6 + $0x10] sm:$0xff] %vm3244, %v3284
        %3378 = vst.msk [vmem:[#allocation6 + $0x18] sm:$0xff] %vm3244, %v3286
        %3379 = vst.msk [vmem:[#allocation6 + $0x20] sm:$0xff] %vm3244, %v3288
        %3380 = vst.msk [vmem:[#allocation6 + $0x28] sm:$0xff] %vm3244, %v3290
        %3381 = vst.msk [vmem:[#allocation6 + $0x30] sm:$0xff] %vm3244, %v3292
        %3382 = vst.msk [vmem:[#allocation6 + $0x38] sm:$0xff] %vm3244, %v3294
        %3383 = vst.msk [vmem:[#allocation6 + $0x40] sm:$0xff] %vm3244, %v3296
        %3384 = vst.msk [vmem:[#allocation6 + $0x48] sm:$0xff] %vm3244, %v3298
        %3385 = vst.msk [vmem:[#allocation6 + $0x50] sm:$0xff] %vm3244, %v3300
        %3386 = vst.msk [vmem:[#allocation6 + $0x58] sm:$0xff] %vm3244, %v3302
        %3387 = vst.msk [vmem:[#allocation6 + $0x60] sm:$0xff] %vm3244, %v3304
        %3388 = vst.msk [vmem:[#allocation6 + $0x68] sm:$0xff] %vm3244, %v3306
        %3389 = vst.msk [vmem:[#allocation6 + $0x70] sm:$0xff] %vm3244, %v3308
        %3390 = vst.msk [vmem:[#allocation6 + $0x78] sm:$0xff] %vm3244, %v3310
        %3391 = vst.msk [vmem:[#allocation6 + $0x80] sm:$0xff] %vm3244, %v3312
        %3392 = vst.msk [vmem:[#allocation6 + $0x88] sm:$0xff] %vm3244, %v3314
        %3393 = vst.msk [vmem:[#allocation6 + $0x90] sm:$0xff] %vm3244, %v3316
        %3394 = vst.msk [vmem:[#allocation6 + $0x98] sm:$0xff] %vm3244, %v3318
        %3395 = vst.msk [vmem:[#allocation6 + $0xa0] sm:$0xff] %vm3244, %v3320
        %3396 = vst.msk [vmem:[#allocation6 + $0xa8] sm:$0xff] %vm3244, %v3322
        %3397 = vst.msk [vmem:[#allocation6 + $0xb0] sm:$0xff] %vm3244, %v3324
        %3398 = vst.msk [vmem:[#allocation6 + $0xb8] sm:$0xff] %vm3244, %v3326
        %3399 = vst.msk [vmem:[#allocation6 + $0xc0] sm:$0xff] %vm3244, %v3328
        %3400 = vst.msk [vmem:[#allocation6 + $0xc8] sm:$0xff] %vm3244, %v3330
        %3401 = vst.msk [vmem:[#allocation6 + $0xd0] sm:$0xff] %vm3244, %v3332
        %3402 = vst.msk [vmem:[#allocation6 + $0xd8] sm:$0xff] %vm3244, %v3334
        %3403 = vst.msk [vmem:[#allocation6 + $0xe0] sm:$0xff] %vm3244, %v3336
        %3404 = vst.msk [vmem:[#allocation6 + $0xe8] sm:$0xff] %vm3244, %v3338
        %3405 = vst.msk [vmem:[#allocation6 + $0xf0] sm:$0xff] %vm3244, %v3340
        %3406 = vst.msk [vmem:[#allocation6 + $0xf8] sm:$0xff] %vm3244, %v3342
        %v3408 = vrot.slane %v1296, 1
        %v3409 = vrot.slane %v1297, 1
        %v3410 = vsel %vm1465, %v3408, %v3409
        %v3411 = vrot.slane %v1298, 1
        %v3412 = vsel %vm1465, %v3409, %v3411
        %3413 = vrot.lane.b32.xlu0 %v1478, 56
        %v3414 = vpop.permute.xlu0 %3413
        %3415 = vrot.lane.b32.xlu0 %v1480, 56
        %v3416 = vpop.permute.xlu0 %3415
        %3417 = vrot.lane.b32.xlu0 %v1483, 56
        %v3418 = vpop.permute.xlu0 %3417
        %3419 = vrot.lane.b32.xlu0 %v1485, 56
        %v3420 = vpop.permute.xlu0 %3419
        %3421 = vrot.lane.b32.xlu0 %v1488, 56
        %v3422 = vpop.permute.xlu0 %3421
        %3423 = vrot.lane.b32.xlu0 %v1490, 56
        %v3424 = vpop.permute.xlu0 %3423
        %3425 = vrot.lane.b32.xlu0 %v1493, 56
        %v3426 = vpop.permute.xlu0 %3425
        %3427 = vrot.lane.b32.xlu0 %v1495, 56
        %v3428 = vpop.permute.xlu0 %3427
        %3429 = vrot.lane.b32.xlu0 %v1498, 56
        %v3430 = vpop.permute.xlu0 %3429
        %3431 = vrot.lane.b32.xlu0 %v1500, 56
        %v3432 = vpop.permute.xlu0 %3431
        %3433 = vrot.lane.b32.xlu0 %v1503, 56
        %v3434 = vpop.permute.xlu0 %3433
        %3435 = vrot.lane.b32.xlu0 %v1505, 56
        %v3436 = vpop.permute.xlu0 %3435
        %3437 = vrot.lane.b32.xlu0 %v1508, 56
        %v3438 = vpop.permute.xlu0 %3437
        %3439 = vrot.lane.b32.xlu0 %v1510, 56
        %v3440 = vpop.permute.xlu0 %3439
        %3441 = vrot.lane.b32.xlu0 %v1513, 56
        %v3442 = vpop.permute.xlu0 %3441
        %3443 = vrot.lane.b32.xlu0 %v1515, 56
        %v3444 = vpop.permute.xlu0 %3443
        %3445 = vrot.lane.b32.xlu0 %v1518, 56
        %v3446 = vpop.permute.xlu0 %3445
        %3447 = vrot.lane.b32.xlu0 %v1520, 56
        %v3448 = vpop.permute.xlu0 %3447
        %3449 = vrot.lane.b32.xlu0 %v1523, 56
        %v3450 = vpop.permute.xlu0 %3449
        %3451 = vrot.lane.b32.xlu0 %v1525, 56
        %v3452 = vpop.permute.xlu0 %3451
        %3453 = vrot.lane.b32.xlu0 %v1528, 56
        %v3454 = vpop.permute.xlu0 %3453
        %3455 = vrot.lane.b32.xlu0 %v1530, 56
        %v3456 = vpop.permute.xlu0 %3455
        %3457 = vrot.lane.b32.xlu0 %v1533, 56
        %v3458 = vpop.permute.xlu0 %3457
        %3459 = vrot.lane.b32.xlu0 %v1535, 56
        %v3460 = vpop.permute.xlu0 %3459
        %3461 = vrot.lane.b32.xlu0 %v1538, 56
        %v3462 = vpop.permute.xlu0 %3461
        %3463 = vrot.lane.b32.xlu0 %v1540, 56
        %v3464 = vpop.permute.xlu0 %3463
        %3465 = vrot.lane.b32.xlu0 %v1543, 56
        %v3466 = vpop.permute.xlu0 %3465
        %3467 = vrot.lane.b32.xlu0 %v1545, 56
        %v3468 = vpop.permute.xlu0 %3467
        %3469 = vrot.lane.b32.xlu0 %v2613, 56
        %v3470 = vpop.permute.xlu0 %3469
        %3471 = vrot.lane.b32.xlu0 %v2615, 56
        %v3472 = vpop.permute.xlu0 %3471
        %3473 = vrot.lane.b32.xlu0 %v3410, 56
        %v3474 = vpop.permute.xlu0 %3473
        %3475 = vrot.lane.b32.xlu0 %v3412, 56
        %v3476 = vpop.permute.xlu0 %3475
        %vm3509 = vcmask 523712
        %3510 = vst.msk [vmem:[#allocation5] sm:$0xff] %vm3509, %v3414
        %3511 = vst.msk [vmem:[#allocation5 + $0x8] sm:$0xff] %vm3509, %v3416
        %3512 = vst.msk [vmem:[#allocation5 + $0x10] sm:$0xff] %vm3509, %v3418
        %3513 = vst.msk [vmem:[#allocation5 + $0x18] sm:$0xff] %vm3509, %v3420
        %3514 = vst.msk [vmem:[#allocation5 + $0x20] sm:$0xff] %vm3509, %v3422
        %3515 = vst.msk [vmem:[#allocation5 + $0x28] sm:$0xff] %vm3509, %v3424
        %3516 = vst.msk [vmem:[#allocation5 + $0x30] sm:$0xff] %vm3509, %v3426
        %3517 = vst.msk [vmem:[#allocation5 + $0x38] sm:$0xff] %vm3509, %v3428
        %3518 = vst.msk [vmem:[#allocation5 + $0x40] sm:$0xff] %vm3509, %v3430
        %3519 = vst.msk [vmem:[#allocation5 + $0x48] sm:$0xff] %vm3509, %v3432
        %3520 = vst.msk [vmem:[#allocation5 + $0x50] sm:$0xff] %vm3509, %v3434
        %3521 = vst.msk [vmem:[#allocation5 + $0x58] sm:$0xff] %vm3509, %v3436
        %3522 = vst.msk [vmem:[#allocation5 + $0x60] sm:$0xff] %vm3509, %v3438
        %3523 = vst.msk [vmem:[#allocation5 + $0x68] sm:$0xff] %vm3509, %v3440
        %3524 = vst.msk [vmem:[#allocation5 + $0x70] sm:$0xff] %vm3509, %v3442
        %3525 = vst.msk [vmem:[#allocation5 + $0x78] sm:$0xff] %vm3509, %v3444
        %3526 = vst.msk [vmem:[#allocation5 + $0x80] sm:$0xff] %vm3509, %v3446
        %3527 = vst.msk [vmem:[#allocation5 + $0x88] sm:$0xff] %vm3509, %v3448
        %3528 = vst.msk [vmem:[#allocation5 + $0x90] sm:$0xff] %vm3509, %v3450
        %3529 = vst.msk [vmem:[#allocation5 + $0x98] sm:$0xff] %vm3509, %v3452
        %3530 = vst.msk [vmem:[#allocation5 + $0xa0] sm:$0xff] %vm3509, %v3454
        %3531 = vst.msk [vmem:[#allocation5 + $0xa8] sm:$0xff] %vm3509, %v3456
        %3532 = vst.msk [vmem:[#allocation5 + $0xb0] sm:$0xff] %vm3509, %v3458
        %3533 = vst.msk [vmem:[#allocation5 + $0xb8] sm:$0xff] %vm3509, %v3460
        %3534 = vst.msk [vmem:[#allocation5 + $0xc0] sm:$0xff] %vm3509, %v3462
        %3535 = vst.msk [vmem:[#allocation5 + $0xc8] sm:$0xff] %vm3509, %v3464
        %3536 = vst.msk [vmem:[#allocation5 + $0xd0] sm:$0xff] %vm3509, %v3466
        %3537 = vst.msk [vmem:[#allocation5 + $0xd8] sm:$0xff] %vm3509, %v3468
        %3538 = vst.msk [vmem:[#allocation5 + $0xe0] sm:$0xff] %vm3509, %v3470
        %3539 = vst.msk [vmem:[#allocation5 + $0xe8] sm:$0xff] %vm3509, %v3472
        %3540 = vst.msk [vmem:[#allocation5 + $0xf0] sm:$0xff] %vm3509, %v3474
        %3541 = vst.msk [vmem:[#allocation5 + $0xf8] sm:$0xff] %vm3509, %v3476
        %v3543 = vrot.slane %v1350, 1
        %v3544 = vrot.slane %v1351, 1
        %v3545 = vsel %vm1465, %v3543, %v3544
        %v3546 = vrot.slane %v1352, 1
        %v3547 = vsel %vm1465, %v3544, %v3546
        %3548 = vrot.lane.b32.xlu0 %v1735, 56
        %v3549 = vpop.permute.xlu0 %3548
        %3550 = vrot.lane.b32.xlu0 %v1737, 56
        %v3551 = vpop.permute.xlu0 %3550
        %3552 = vrot.lane.b32.xlu0 %v1740, 56
        %v3553 = vpop.permute.xlu0 %3552
        %3554 = vrot.lane.b32.xlu0 %v1742, 56
        %v3555 = vpop.permute.xlu0 %3554
        %3556 = vrot.lane.b32.xlu0 %v1745, 56
        %v3557 = vpop.permute.xlu0 %3556
        %3558 = vrot.lane.b32.xlu0 %v1747, 56
        %v3559 = vpop.permute.xlu0 %3558
        %3560 = vrot.lane.b32.xlu0 %v1750, 56
        %v3561 = vpop.permute.xlu0 %3560
        %3562 = vrot.lane.b32.xlu0 %v1752, 56
        %v3563 = vpop.permute.xlu0 %3562
        %3564 = vrot.lane.b32.xlu0 %v1755, 56
        %v3565 = vpop.permute.xlu0 %3564
        %3566 = vrot.lane.b32.xlu0 %v1757, 56
        %v3567 = vpop.permute.xlu0 %3566
        %3568 = vrot.lane.b32.xlu0 %v1760, 56
        %v3569 = vpop.permute.xlu0 %3568
        %3570 = vrot.lane.b32.xlu0 %v1762, 56
        %v3571 = vpop.permute.xlu0 %3570
        %3572 = vrot.lane.b32.xlu0 %v1765, 56
        %v3573 = vpop.permute.xlu0 %3572
        %3574 = vrot.lane.b32.xlu0 %v1767, 56
        %v3575 = vpop.permute.xlu0 %3574
        %3576 = vrot.lane.b32.xlu0 %v1770, 56
        %v3577 = vpop.permute.xlu0 %3576
        %3578 = vrot.lane.b32.xlu0 %v1772, 56
        %v3579 = vpop.permute.xlu0 %3578
        %3580 = vrot.lane.b32.xlu0 %v1775, 56
        %v3581 = vpop.permute.xlu0 %3580
        %3582 = vrot.lane.b32.xlu0 %v1777, 56
        %v3583 = vpop.permute.xlu0 %3582
        %3584 = vrot.lane.b32.xlu0 %v1780, 56
        %v3585 = vpop.permute.xlu0 %3584
        %3586 = vrot.lane.b32.xlu0 %v1782, 56
        %v3587 = vpop.permute.xlu0 %3586
        %3588 = vrot.lane.b32.xlu0 %v1785, 56
        %v3589 = vpop.permute.xlu0 %3588
        %3590 = vrot.lane.b32.xlu0 %v1787, 56
        %v3591 = vpop.permute.xlu0 %3590
        %3592 = vrot.lane.b32.xlu0 %v1790, 56
        %v3593 = vpop.permute.xlu0 %3592
        %3594 = vrot.lane.b32.xlu0 %v1792, 56
        %v3595 = vpop.permute.xlu0 %3594
        %3596 = vrot.lane.b32.xlu0 %v1795, 56
        %v3597 = vpop.permute.xlu0 %3596
        %3598 = vrot.lane.b32.xlu0 %v1797, 56
        %v3599 = vpop.permute.xlu0 %3598
        %3600 = vrot.lane.b32.xlu0 %v1800, 56
        %v3601 = vpop.permute.xlu0 %3600
        %3602 = vrot.lane.b32.xlu0 %v1802, 56
        %v3603 = vpop.permute.xlu0 %3602
        %3604 = vrot.lane.b32.xlu0 %v2748, 56
        %v3605 = vpop.permute.xlu0 %3604
        %3606 = vrot.lane.b32.xlu0 %v2750, 56
        %v3607 = vpop.permute.xlu0 %3606
        %3608 = vrot.lane.b32.xlu0 %v3545, 56
        %v3609 = vpop.permute.xlu0 %3608
        %3610 = vrot.lane.b32.xlu0 %v3547, 56
        %v3611 = vpop.permute.xlu0 %3610
        %3644 = vst.msk [vmem:[#allocation6] sm:$0xff] %vm3509, %v3549
        %3645 = vst.msk [vmem:[#allocation6 + $0x8] sm:$0xff] %vm3509, %v3551
        %3646 = vst.msk [vmem:[#allocation6 + $0x10] sm:$0xff] %vm3509, %v3553
        %3647 = vst.msk [vmem:[#allocation6 + $0x18] sm:$0xff] %vm3509, %v3555
        %3648 = vst.msk [vmem:[#allocation6 + $0x20] sm:$0xff] %vm3509, %v3557
        %3649 = vst.msk [vmem:[#allocation6 + $0x28] sm:$0xff] %vm3509, %v3559
        %3650 = vst.msk [vmem:[#allocation6 + $0x30] sm:$0xff] %vm3509, %v3561
        %3651 = vst.msk [vmem:[#allocation6 + $0x38] sm:$0xff] %vm3509, %v3563
        %3652 = vst.msk [vmem:[#allocation6 + $0x40] sm:$0xff] %vm3509, %v3565
        %3653 = vst.msk [vmem:[#allocation6 + $0x48] sm:$0xff] %vm3509, %v3567
        %3654 = vst.msk [vmem:[#allocation6 + $0x50] sm:$0xff] %vm3509, %v3569
        %3655 = vst.msk [vmem:[#allocation6 + $0x58] sm:$0xff] %vm3509, %v3571
        %3656 = vst.msk [vmem:[#allocation6 + $0x60] sm:$0xff] %vm3509, %v3573
        %3657 = vst.msk [vmem:[#allocation6 + $0x68] sm:$0xff] %vm3509, %v3575
        %3658 = vst.msk [vmem:[#allocation6 + $0x70] sm:$0xff] %vm3509, %v3577
        %3659 = vst.msk [vmem:[#allocation6 + $0x78] sm:$0xff] %vm3509, %v3579
        %3660 = vst.msk [vmem:[#allocation6 + $0x80] sm:$0xff] %vm3509, %v3581
        %3661 = vst.msk [vmem:[#allocation6 + $0x88] sm:$0xff] %vm3509, %v3583
        %3662 = vst.msk [vmem:[#allocation6 + $0x90] sm:$0xff] %vm3509, %v3585
        %3663 = vst.msk [vmem:[#allocation6 + $0x98] sm:$0xff] %vm3509, %v3587
        %3664 = vst.msk [vmem:[#allocation6 + $0xa0] sm:$0xff] %vm3509, %v3589
        %3665 = vst.msk [vmem:[#allocation6 + $0xa8] sm:$0xff] %vm3509, %v3591
        %3666 = vst.msk [vmem:[#allocation6 + $0xb0] sm:$0xff] %vm3509, %v3593
        %3667 = vst.msk [vmem:[#allocation6 + $0xb8] sm:$0xff] %vm3509, %v3595
        %3668 = vst.msk [vmem:[#allocation6 + $0xc0] sm:$0xff] %vm3509, %v3597
        %3669 = vst.msk [vmem:[#allocation6 + $0xc8] sm:$0xff] %vm3509, %v3599
        %3670 = vst.msk [vmem:[#allocation6 + $0xd0] sm:$0xff] %vm3509, %v3601
        %3671 = vst.msk [vmem:[#allocation6 + $0xd8] sm:$0xff] %vm3509, %v3603
        %3672 = vst.msk [vmem:[#allocation6 + $0xe0] sm:$0xff] %vm3509, %v3605
        %3673 = vst.msk [vmem:[#allocation6 + $0xe8] sm:$0xff] %vm3509, %v3607
        %3674 = vst.msk [vmem:[#allocation6 + $0xf0] sm:$0xff] %vm3509, %v3609
        %3675 = vst.msk [vmem:[#allocation6 + $0xf8] sm:$0xff] %vm3509, %v3611
        %v3676 = vrot.slane %v1296, 2
        %v3677 = vrot.slane %v1297, 2
        %v3678 = vsel %vm1931, %v3676, %v3677
        %v3679 = vrot.slane %v1298, 2
        %v3680 = vsel %vm1931, %v3677, %v3679
        %3681 = vrot.lane.b32.xlu0 %v1944, 64
        %v3682 = vpop.permute.xlu0 %3681
        %3683 = vrot.lane.b32.xlu0 %v1946, 64
        %v3684 = vpop.permute.xlu0 %3683
        %3685 = vrot.lane.b32.xlu0 %v1949, 64
        %v3686 = vpop.permute.xlu0 %3685
        %3687 = vrot.lane.b32.xlu0 %v1951, 64
        %v3688 = vpop.permute.xlu0 %3687
        %3689 = vrot.lane.b32.xlu0 %v1954, 64
        %v3690 = vpop.permute.xlu0 %3689
        %3691 = vrot.lane.b32.xlu0 %v1956, 64
        %v3692 = vpop.permute.xlu0 %3691
        %3693 = vrot.lane.b32.xlu0 %v1959, 64
        %v3694 = vpop.permute.xlu0 %3693
        %3695 = vrot.lane.b32.xlu0 %v1961, 64
        %v3696 = vpop.permute.xlu0 %3695
        %3697 = vrot.lane.b32.xlu0 %v1964, 64
        %v3698 = vpop.permute.xlu0 %3697
        %3699 = vrot.lane.b32.xlu0 %v1966, 64
        %v3700 = vpop.permute.xlu0 %3699
        %3701 = vrot.lane.b32.xlu0 %v1969, 64
        %v3702 = vpop.permute.xlu0 %3701
        %3703 = vrot.lane.b32.xlu0 %v1971, 64
        %v3704 = vpop.permute.xlu0 %3703
        %3705 = vrot.lane.b32.xlu0 %v1974, 64
        %v3706 = vpop.permute.xlu0 %3705
        %3707 = vrot.lane.b32.xlu0 %v1976, 64
        %v3708 = vpop.permute.xlu0 %3707
        %3709 = vrot.lane.b32.xlu0 %v1979, 64
        %v3710 = vpop.permute.xlu0 %3709
        %3711 = vrot.lane.b32.xlu0 %v1981, 64
        %v3712 = vpop.permute.xlu0 %3711
        %3713 = vrot.lane.b32.xlu0 %v1984, 64
        %v3714 = vpop.permute.xlu0 %3713
        %3715 = vrot.lane.b32.xlu0 %v1986, 64
        %v3716 = vpop.permute.xlu0 %3715
        %3717 = vrot.lane.b32.xlu0 %v1989, 64
        %v3718 = vpop.permute.xlu0 %3717
        %3719 = vrot.lane.b32.xlu0 %v1991, 64
        %v3720 = vpop.permute.xlu0 %3719
        %3721 = vrot.lane.b32.xlu0 %v1994, 64
        %v3722 = vpop.permute.xlu0 %3721
        %3723 = vrot.lane.b32.xlu0 %v1996, 64
        %v3724 = vpop.permute.xlu0 %3723
        %3725 = vrot.lane.b32.xlu0 %v1999, 64
        %v3726 = vpop.permute.xlu0 %3725
        %3727 = vrot.lane.b32.xlu0 %v2001, 64
        %v3728 = vpop.permute.xlu0 %3727
        %3729 = vrot.lane.b32.xlu0 %v2004, 64
        %v3730 = vpop.permute.xlu0 %3729
        %3731 = vrot.lane.b32.xlu0 %v2006, 64
        %v3732 = vpop.permute.xlu0 %3731
        %3733 = vrot.lane.b32.xlu0 %v2009, 64
        %v3734 = vpop.permute.xlu0 %3733
        %3735 = vrot.lane.b32.xlu0 %v2011, 64
        %v3736 = vpop.permute.xlu0 %3735
        %3737 = vrot.lane.b32.xlu0 %v2881, 64
        %v3738 = vpop.permute.xlu0 %3737
        %3739 = vrot.lane.b32.xlu0 %v2883, 64
        %v3740 = vpop.permute.xlu0 %3739
        %3741 = vrot.lane.b32.xlu0 %v3678, 64
        %v3742 = vpop.permute.xlu0 %3741
        %3743 = vrot.lane.b32.xlu0 %v3680, 64
        %v3744 = vpop.permute.xlu0 %3743
        %vm3777 = vcmask 589312
        %3778 = vst.msk [vmem:[#allocation5] sm:$0xff] %vm3777, %v3682
        %3779 = vst.msk [vmem:[#allocation5 + $0x8] sm:$0xff] %vm3777, %v3684
        %3780 = vst.msk [vmem:[#allocation5 + $0x10] sm:$0xff] %vm3777, %v3686
        %3781 = vst.msk [vmem:[#allocation5 + $0x18] sm:$0xff] %vm3777, %v3688
        %3782 = vst.msk [vmem:[#allocation5 + $0x20] sm:$0xff] %vm3777, %v3690
        %3783 = vst.msk [vmem:[#allocation5 + $0x28] sm:$0xff] %vm3777, %v3692
        %3784 = vst.msk [vmem:[#allocation5 + $0x30] sm:$0xff] %vm3777, %v3694
        %3785 = vst.msk [vmem:[#allocation5 + $0x38] sm:$0xff] %vm3777, %v3696
        %3786 = vst.msk [vmem:[#allocation5 + $0x40] sm:$0xff] %vm3777, %v3698
        %3787 = vst.msk [vmem:[#allocation5 + $0x48] sm:$0xff] %vm3777, %v3700
        %3788 = vst.msk [vmem:[#allocation5 + $0x50] sm:$0xff] %vm3777, %v3702
        %3789 = vst.msk [vmem:[#allocation5 + $0x58] sm:$0xff] %vm3777, %v3704
        %3790 = vst.msk [vmem:[#allocation5 + $0x60] sm:$0xff] %vm3777, %v3706
        %3791 = vst.msk [vmem:[#allocation5 + $0x68] sm:$0xff] %vm3777, %v3708
        %3792 = vst.msk [vmem:[#allocation5 + $0x70] sm:$0xff] %vm3777, %v3710
        %3793 = vst.msk [vmem:[#allocation5 + $0x78] sm:$0xff] %vm3777, %v3712
        %3794 = vst.msk [vmem:[#allocation5 + $0x80] sm:$0xff] %vm3777, %v3714
        %3795 = vst.msk [vmem:[#allocation5 + $0x88] sm:$0xff] %vm3777, %v3716
        %3796 = vst.msk [vmem:[#allocation5 + $0x90] sm:$0xff] %vm3777, %v3718
        %3797 = vst.msk [vmem:[#allocation5 + $0x98] sm:$0xff] %vm3777, %v3720
        %3798 = vst.msk [vmem:[#allocation5 + $0xa0] sm:$0xff] %vm3777, %v3722
        %3799 = vst.msk [vmem:[#allocation5 + $0xa8] sm:$0xff] %vm3777, %v3724
        %3800 = vst.msk [vmem:[#allocation5 + $0xb0] sm:$0xff] %vm3777, %v3726
        %3801 = vst.msk [vmem:[#allocation5 + $0xb8] sm:$0xff] %vm3777, %v3728
        %3802 = vst.msk [vmem:[#allocation5 + $0xc0] sm:$0xff] %vm3777, %v3730
        %3803 = vst.msk [vmem:[#allocation5 + $0xc8] sm:$0xff] %vm3777, %v3732
        %3804 = vst.msk [vmem:[#allocation5 + $0xd0] sm:$0xff] %vm3777, %v3734
        %3805 = vst.msk [vmem:[#allocation5 + $0xd8] sm:$0xff] %vm3777, %v3736
        %3806 = vst.msk [vmem:[#allocation5 + $0xe0] sm:$0xff] %vm3777, %v3738
        %3807 = vst.msk [vmem:[#allocation5 + $0xe8] sm:$0xff] %vm3777, %v3740
        %3808 = vst.msk [vmem:[#allocation5 + $0xf0] sm:$0xff] %vm3777, %v3742
        %3809 = vst.msk [vmem:[#allocation5 + $0xf8] sm:$0xff] %vm3777, %v3744
        %v3810 = vrot.slane %v1350, 2
        %v3811 = vrot.slane %v1351, 2
        %v3812 = vsel %vm1931, %v3810, %v3811
        %v3813 = vrot.slane %v1352, 2
        %v3814 = vsel %vm1931, %v3811, %v3813
        %3815 = vrot.lane.b32.xlu0 %v2153, 64
        %v3816 = vpop.permute.xlu0 %3815
        %3817 = vrot.lane.b32.xlu0 %v2155, 64
        %v3818 = vpop.permute.xlu0 %3817
        %3819 = vrot.lane.b32.xlu0 %v2158, 64
        %v3820 = vpop.permute.xlu0 %3819
        %3821 = vrot.lane.b32.xlu0 %v2160, 64
        %v3822 = vpop.permute.xlu0 %3821
        %3823 = vrot.lane.b32.xlu0 %v2163, 64
        %v3824 = vpop.permute.xlu0 %3823
        %3825 = vrot.lane.b32.xlu0 %v2165, 64
        %v3826 = vpop.permute.xlu0 %3825
        %3827 = vrot.lane.b32.xlu0 %v2168, 64
        %v3828 = vpop.permute.xlu0 %3827
        %3829 = vrot.lane.b32.xlu0 %v2170, 64
        %v3830 = vpop.permute.xlu0 %3829
        %3831 = vrot.lane.b32.xlu0 %v2173, 64
        %v3832 = vpop.permute.xlu0 %3831
        %3833 = vrot.lane.b32.xlu0 %v2175, 64
        %v3834 = vpop.permute.xlu0 %3833
        %3835 = vrot.lane.b32.xlu0 %v2178, 64
        %v3836 = vpop.permute.xlu0 %3835
        %3837 = vrot.lane.b32.xlu0 %v2180, 64
        %v3838 = vpop.permute.xlu0 %3837
        %3839 = vrot.lane.b32.xlu0 %v2183, 64
        %v3840 = vpop.permute.xlu0 %3839
        %3841 = vrot.lane.b32.xlu0 %v2185, 64
        %v3842 = vpop.permute.xlu0 %3841
        %3843 = vrot.lane.b32.xlu0 %v2188, 64
        %v3844 = vpop.permute.xlu0 %3843
        %3845 = vrot.lane.b32.xlu0 %v2190, 64
        %v3846 = vpop.permute.xlu0 %3845
        %3847 = vrot.lane.b32.xlu0 %v2193, 64
        %v3848 = vpop.permute.xlu0 %3847
        %3849 = vrot.lane.b32.xlu0 %v2195, 64
        %v3850 = vpop.permute.xlu0 %3849
        %3851 = vrot.lane.b32.xlu0 %v2198, 64
        %v3852 = vpop.permute.xlu0 %3851
        %3853 = vrot.lane.b32.xlu0 %v2200, 64
        %v3854 = vpop.permute.xlu0 %3853
        %3855 = vrot.lane.b32.xlu0 %v2203, 64
        %v3856 = vpop.permute.xlu0 %3855
        %3857 = vrot.lane.b32.xlu0 %v2205, 64
        %v3858 = vpop.permute.xlu0 %3857
        %3859 = vrot.lane.b32.xlu0 %v2208, 64
        %v3860 = vpop.permute.xlu0 %3859
        %3861 = vrot.lane.b32.xlu0 %v2210, 64
        %v3862 = vpop.permute.xlu0 %3861
        %3863 = vrot.lane.b32.xlu0 %v2213, 64
        %v3864 = vpop.permute.xlu0 %3863
        %3865 = vrot.lane.b32.xlu0 %v2215, 64
        %v3866 = vpop.permute.xlu0 %3865
        %3867 = vrot.lane.b32.xlu0 %v2218, 64
        %v3868 = vpop.permute.xlu0 %3867
        %3869 = vrot.lane.b32.xlu0 %v2220, 64
        %v3870 = vpop.permute.xlu0 %3869
        %3871 = vrot.lane.b32.xlu0 %v3015, 64
        %v3872 = vpop.permute.xlu0 %3871
        %3873 = vrot.lane.b32.xlu0 %v3017, 64
        %v3874 = vpop.permute.xlu0 %3873
        %3875 = vrot.lane.b32.xlu0 %v3812, 64
        %v3876 = vpop.permute.xlu0 %3875
        %3877 = vrot.lane.b32.xlu0 %v3814, 64
        %v3878 = vpop.permute.xlu0 %3877
        %3911 = vst.msk [vmem:[#allocation6] sm:$0xff] %vm3777, %v3816
        %3912 = vst.msk [vmem:[#allocation6 + $0x8] sm:$0xff] %vm3777, %v3818
        %3913 = vst.msk [vmem:[#allocation6 + $0x10] sm:$0xff] %vm3777, %v3820
        %3914 = vst.msk [vmem:[#allocation6 + $0x18] sm:$0xff] %vm3777, %v3822
        %3915 = vst.msk [vmem:[#allocation6 + $0x20] sm:$0xff] %vm3777, %v3824
        %3916 = vst.msk [vmem:[#allocation6 + $0x28] sm:$0xff] %vm3777, %v3826
        %3917 = vst.msk [vmem:[#allocation6 + $0x30] sm:$0xff] %vm3777, %v3828
        %3918 = vst.msk [vmem:[#allocation6 + $0x38] sm:$0xff] %vm3777, %v3830
        %3919 = vst.msk [vmem:[#allocation6 + $0x40] sm:$0xff] %vm3777, %v3832
        %3920 = vst.msk [vmem:[#allocation6 + $0x48] sm:$0xff] %vm3777, %v3834
        %3921 = vst.msk [vmem:[#allocation6 + $0x50] sm:$0xff] %vm3777, %v3836
        %3922 = vst.msk [vmem:[#allocation6 + $0x58] sm:$0xff] %vm3777, %v3838
        %3923 = vst.msk [vmem:[#allocation6 + $0x60] sm:$0xff] %vm3777, %v3840
        %3924 = vst.msk [vmem:[#allocation6 + $0x68] sm:$0xff] %vm3777, %v3842
        %3925 = vst.msk [vmem:[#allocation6 + $0x70] sm:$0xff] %vm3777, %v3844
        %3926 = vst.msk [vmem:[#allocation6 + $0x78] sm:$0xff] %vm3777, %v3846
        %3927 = vst.msk [vmem:[#allocation6 + $0x80] sm:$0xff] %vm3777, %v3848
        %3928 = vst.msk [vmem:[#allocation6 + $0x88] sm:$0xff] %vm3777, %v3850
        %3929 = vst.msk [vmem:[#allocation6 + $0x90] sm:$0xff] %vm3777, %v3852
        %3930 = vst.msk [vmem:[#allocation6 + $0x98] sm:$0xff] %vm3777, %v3854
        %3931 = vst.msk [vmem:[#allocation6 + $0xa0] sm:$0xff] %vm3777, %v3856
        %3932 = vst.msk [vmem:[#allocation6 + $0xa8] sm:$0xff] %vm3777, %v3858
        %3933 = vst.msk [vmem:[#allocation6 + $0xb0] sm:$0xff] %vm3777, %v3860
        %3934 = vst.msk [vmem:[#allocation6 + $0xb8] sm:$0xff] %vm3777, %v3862
        %3935 = vst.msk [vmem:[#allocation6 + $0xc0] sm:$0xff] %vm3777, %v3864
        %3936 = vst.msk [vmem:[#allocation6 + $0xc8] sm:$0xff] %vm3777, %v3866
        %3937 = vst.msk [vmem:[#allocation6 + $0xd0] sm:$0xff] %vm3777, %v3868
        %3938 = vst.msk [vmem:[#allocation6 + $0xd8] sm:$0xff] %vm3777, %v3870
        %3939 = vst.msk [vmem:[#allocation6 + $0xe0] sm:$0xff] %vm3777, %v3872
        %3940 = vst.msk [vmem:[#allocation6 + $0xe8] sm:$0xff] %vm3777, %v3874
        %3941 = vst.msk [vmem:[#allocation6 + $0xf0] sm:$0xff] %vm3777, %v3876
        %3942 = vst.msk [vmem:[#allocation6 + $0xf8] sm:$0xff] %vm3777, %v3878
        %v3943 = vld [vmem:[#allocation5] sm:$0xff]
        %v3944 = vld [vmem:[#allocation5 + $0x8] sm:$0xff]
        %v3945 = vld [vmem:[#allocation5 + $0x10] sm:$0xff]
        %v3946 = vld [vmem:[#allocation5 + $0x18] sm:$0xff]
        %v3947 = vld [vmem:[#allocation5 + $0x20] sm:$0xff]
        %v3948 = vld [vmem:[#allocation5 + $0x28] sm:$0xff]
        %v3949 = vld [vmem:[#allocation5 + $0x30] sm:$0xff]
        %v3950 = vld [vmem:[#allocation5 + $0x38] sm:$0xff]
        %v3951 = vld [vmem:[#allocation5 + $0x40] sm:$0xff]
        %v3952 = vld [vmem:[#allocation5 + $0x48] sm:$0xff]
        %v3953 = vld [vmem:[#allocation5 + $0x50] sm:$0xff]
        %v3954 = vld [vmem:[#allocation5 + $0x58] sm:$0xff]
        %v3955 = vld [vmem:[#allocation5 + $0x60] sm:$0xff]
        %v3956 = vld [vmem:[#allocation5 + $0x68] sm:$0xff]
        %v3957 = vld [vmem:[#allocation5 + $0x70] sm:$0xff]
        %v3958 = vld [vmem:[#allocation5 + $0x78] sm:$0xff]
        %v3959 = vld [vmem:[#allocation5 + $0x80] sm:$0xff]
        %v3960 = vld [vmem:[#allocation5 + $0x88] sm:$0xff]
        %v3961 = vld [vmem:[#allocation5 + $0x90] sm:$0xff]
        %v3962 = vld [vmem:[#allocation5 + $0x98] sm:$0xff]
        %v3963 = vld [vmem:[#allocation5 + $0xa0] sm:$0xff]
        %v3964 = vld [vmem:[#allocation5 + $0xa8] sm:$0xff]
        %v3965 = vld [vmem:[#allocation5 + $0xb0] sm:$0xff]
        %v3966 = vld [vmem:[#allocation5 + $0xb8] sm:$0xff]
        %v3967 = vld [vmem:[#allocation5 + $0xc0] sm:$0xff]
        %v3968 = vld [vmem:[#allocation5 + $0xc8] sm:$0xff]
        %v3969 = vld [vmem:[#allocation5 + $0xd0] sm:$0xff]
        %v3970 = vld [vmem:[#allocation5 + $0xd8] sm:$0xff]
        %v3971 = vld [vmem:[#allocation5 + $0xe0] sm:$0xff]
        %v3972 = vld [vmem:[#allocation5 + $0xe8] sm:$0xff]
        %v3973 = vld [vmem:[#allocation5 + $0xf0] sm:$0xff]
        %v3974 = vld [vmem:[#allocation5 + $0xf8] sm:$0xff]
        %v3975 = vpack.c.bf16 %v3944, %v3943
        %v3976 = vpack.c.bf16 %v3946, %v3945
        %v3977 = vpack.c.bf16 %v3948, %v3947
        %v3978 = vpack.c.bf16 %v3950, %v3949
        %v3979 = vpack.c.bf16 %v3952, %v3951
        %v3980 = vpack.c.bf16 %v3954, %v3953
        %v3981 = vpack.c.bf16 %v3956, %v3955
        %v3982 = vpack.c.bf16 %v3958, %v3957
        %v3983 = vpack.c.bf16 %v3960, %v3959
        %v3984 = vpack.c.bf16 %v3962, %v3961
        %v3985 = vpack.c.bf16 %v3964, %v3963
        %v3986 = vpack.c.bf16 %v3966, %v3965
        %v3987 = vpack.c.bf16 %v3968, %v3967
        %v3988 = vpack.c.bf16 %v3970, %v3969
        %v3989 = vpack.c.bf16 %v3972, %v3971
        %v3990 = vpack.c.bf16 %v3974, %v3973
        %v3991 = vld [vmem:[%s4] sm:$0xf]
        %v3992 = vld [vmem:[%s4 + $0x4] sm:$0xf]
        %v3993 = vld [vmem:[%s4 + $0x8] sm:$0xf]
        %v3994 = vld [vmem:[%s4 + $0xc] sm:$0xf]
        %v3995 = vld [vmem:[%s4 + $0x10] sm:$0xf]
        %v3996 = vld [vmem:[%s4 + $0x14] sm:$0xf]
        %v3997 = vld [vmem:[%s4 + $0x18] sm:$0xf]
        %v3998 = vld [vmem:[%s4 + $0x1c] sm:$0xf]
        %v3999 = vld [vmem:[%s4 + $0x20] sm:$0xf]
        %v4009 = vunpack.c.l.b16 %v3991
        %v4010 = vunpack.c.l.b16 %v3992
        %v4011 = vunpack.c.l.b16 %v3993
        %v4012 = vunpack.c.l.b16 %v3994
        %v4013 = vunpack.c.l.b16 %v3995
        %v4014 = vunpack.c.l.b16 %v3996
        %v4015 = vunpack.c.l.b16 %v3997
        %v4016 = vunpack.c.l.b16 %v3998
        %v4017 = vunpack.c.l.b16 %v3999
        %v4018 = vpack.c.b16 %v4010, %v4009
        %v4019 = vpack.c.b16 %v4012, %v4011
        %v4020 = vpack.c.b16 %v4014, %v4013
        %v4021 = vpack.c.b16 %v4016, %v4015
        %v4022 = vpack.c.b16 %v4017, %v4017
        %vm4027 = vcmask 588800
        %v4029 = vsel %vm4027, %v3975, 0
        %v4032 = vsel %vm4027, %v3976, 0
        %v4035 = vsel %vm4027, %v3977, 0
        %v4038 = vsel %vm4027, %v3978, 0
        %v4041 = vsel %vm4027, %v3979, 0
        %v4044 = vsel %vm4027, %v3980, 0
        %v4047 = vsel %vm4027, %v3981, 0
        %v4050 = vsel %vm4027, %v3982, 0
        %v4053 = vsel %vm4027, %v3983, 0
        %v4056 = vsel %vm4027, %v3984, 0
        %v4059 = vsel %vm4027, %v3985, 0
        %v4062 = vsel %vm4027, %v3986, 0
        %v4065 = vsel %vm4027, %v3987, 0
        %v4068 = vsel %vm4027, %v3988, 0
        %v4071 = vsel %vm4027, %v3989, 0
        %v4074 = vsel %vm4027, %v3990, 0
        %v4077 = vsel %vm538, %v4022, 0
        %4079 = vmatprep.subr.bf16.mxu0 0
        %4080 = vmatpush1.bf16.msra.mxu0 0
        %4081 = vmatprep.subr.bf16.mxu0 0
        %4082 = vmatpush1.bf16.msra.mxu0 0
        %4083 = vmatprep.subr.bf16.mxu0 0
        %4084 = vmatpush1.bf16.msra.mxu0 0
        %4085 = vmatprep.subr.bf16.mxu0 0
        %4086 = vmatpush1.bf16.msra.mxu0 %v4077
        %4087 = vmatprep.subr.bf16.mxu0 0
        %4088 = vmatpush1.bf16.msra.mxu0 %v4021
        %4089 = vmatprep.subr.bf16.mxu0 0
        %4090 = vmatpush1.bf16.msra.mxu0 %v4020
        %4091 = vmatprep.subr.bf16.mxu0 0
        %4092 = vmatpush1.bf16.msra.mxu0 %v4019
        %4093 = vmatprep.subr.bf16.mxu0 0
        %4094 = vmatpush1.bf16.msra.mxu0 %v4018
        %4095 = vmatprep.subr.bf16.mxu0 0
        %4096 = vmatpush2.bf16.msra.mxu0 0
        %4097 = vmatprep.subr.bf16.mxu0 0
        %4098 = vmatpush2.bf16.msra.mxu0 0
        %4099 = vmatprep.subr.bf16.mxu0 0
        %4100 = vmatpush2.bf16.msra.mxu0 0
        %4101 = vmatprep.subr.bf16.mxu0 0
        %4102 = vmatpush2.bf16.msra.mxu0 0
        %4103 = vmatprep.subr.bf16.mxu0 0
        %4104 = vmatpush2.bf16.msra.mxu0 0
        %4105 = vmatprep.subr.bf16.mxu0 0
        %4106 = vmatpush2.bf16.msra.mxu0 0
        %4107 = vmatprep.subr.bf16.mxu0 0
        %4108 = vmatpush2.bf16.msra.mxu0 0
        %4109 = vmatprep.subr.bf16.mxu0 0
        %4110 = vmatpush2.bf16.msra.mxu0 0
        %4111 = vmatprep.mubr.bf16.mxu0 0
        %4112 = vmatmul.mubr.bf16.gmra.mxu0 %v4029
        %v4113 = vpop.f32.mrf.mxu0
        %v4114 = vadd.f32 0.0, %v4113
        %v4115 = vpop.f32.mrf.mxu0
        %v4116 = vpop.f32.mrf.mxu0
        %v4117 = vadd.f32 0.0, %v4116
        %v4118 = vpop.f32.mrf.mxu0
        %4119 = vmatprep.mubr.bf16.mxu0 0
        %4120 = vmatmul.mubr.bf16.gmra.mxu0 %v4032
        %v4121 = vpop.f32.mrf.mxu0
        %v4122 = vadd.f32 0.0, %v4121
        %v4123 = vpop.f32.mrf.mxu0
        %v4124 = vpop.f32.mrf.mxu0
        %v4125 = vadd.f32 0.0, %v4124
        %v4126 = vpop.f32.mrf.mxu0
        %4127 = vmatprep.mubr.bf16.mxu0 0
        %4128 = vmatmul.mubr.bf16.gmra.mxu0 %v4035
        %v4129 = vpop.f32.mrf.mxu0
        %v4130 = vadd.f32 0.0, %v4129
        %v4131 = vpop.f32.mrf.mxu0
        %v4132 = vpop.f32.mrf.mxu0
        %v4133 = vadd.f32 0.0, %v4132
        %v4134 = vpop.f32.mrf.mxu0
        %4135 = vmatprep.mubr.bf16.mxu0 0
        %4136 = vmatmul.mubr.bf16.gmra.mxu0 %v4038
        %v4137 = vpop.f32.mrf.mxu0
        %v4138 = vadd.f32 0.0, %v4137
        %v4139 = vpop.f32.mrf.mxu0
        %v4140 = vpop.f32.mrf.mxu0
        %v4141 = vadd.f32 0.0, %v4140
        %v4142 = vpop.f32.mrf.mxu0
        %4143 = vmatprep.mubr.bf16.mxu0 0
        %4144 = vmatmul.mubr.bf16.gmra.mxu0 %v4041
        %v4145 = vpop.f32.mrf.mxu0
        %v4146 = vadd.f32 0.0, %v4145
        %v4147 = vpop.f32.mrf.mxu0
        %v4148 = vpop.f32.mrf.mxu0
        %v4149 = vadd.f32 0.0, %v4148
        %v4150 = vpop.f32.mrf.mxu0
        %4151 = vmatprep.mubr.bf16.mxu0 0
        %4152 = vmatmul.mubr.bf16.gmra.mxu0 %v4044
        %v4153 = vpop.f32.mrf.mxu0
        %v4154 = vadd.f32 0.0, %v4153
        %v4155 = vpop.f32.mrf.mxu0
        %v4156 = vpop.f32.mrf.mxu0
        %v4157 = vadd.f32 0.0, %v4156
        %v4158 = vpop.f32.mrf.mxu0
        %4159 = vmatprep.mubr.bf16.mxu0 0
        %4160 = vmatmul.mubr.bf16.gmra.mxu0 %v4047
        %v4161 = vpop.f32.mrf.mxu0
        %v4162 = vadd.f32 0.0, %v4161
        %v4163 = vpop.f32.mrf.mxu0
        %v4164 = vpop.f32.mrf.mxu0
        %v4165 = vadd.f32 0.0, %v4164
        %v4166 = vpop.f32.mrf.mxu0
        %4167 = vmatprep.mubr.bf16.mxu0 0
        %4168 = vmatmul.mubr.bf16.gmra.mxu0 %v4050
        %v4169 = vpop.f32.mrf.mxu0
        %v4170 = vadd.f32 0.0, %v4169
        %v4171 = vpop.f32.mrf.mxu0
        %v4172 = vpop.f32.mrf.mxu0
        %v4173 = vadd.f32 0.0, %v4172
        %v4174 = vpop.f32.mrf.mxu0
        %4175 = vmatprep.mubr.bf16.mxu0 0
        %4176 = vmatmul.mubr.bf16.gmra.mxu0 %v4053
        %v4177 = vpop.f32.mrf.mxu0
        %v4178 = vadd.f32 0.0, %v4177
        %v4179 = vpop.f32.mrf.mxu0
        %v4180 = vpop.f32.mrf.mxu0
        %v4181 = vadd.f32 0.0, %v4180
        %v4182 = vpop.f32.mrf.mxu0
        %4183 = vmatprep.mubr.bf16.mxu0 0
        %4184 = vmatmul.mubr.bf16.gmra.mxu0 %v4056
        %v4185 = vpop.f32.mrf.mxu0
        %v4186 = vadd.f32 0.0, %v4185
        %v4187 = vpop.f32.mrf.mxu0
        %v4188 = vpop.f32.mrf.mxu0
        %v4189 = vadd.f32 0.0, %v4188
        %v4190 = vpop.f32.mrf.mxu0
        %4191 = vmatprep.mubr.bf16.mxu0 0
        %4192 = vmatmul.mubr.bf16.gmra.mxu0 %v4059
        %v4193 = vpop.f32.mrf.mxu0
        %v4194 = vadd.f32 0.0, %v4193
        %v4195 = vpop.f32.mrf.mxu0
        %v4196 = vpop.f32.mrf.mxu0
        %v4197 = vadd.f32 0.0, %v4196
        %v4198 = vpop.f32.mrf.mxu0
        %4199 = vmatprep.mubr.bf16.mxu0 0
        %4200 = vmatmul.mubr.bf16.gmra.mxu0 %v4062
        %v4201 = vpop.f32.mrf.mxu0
        %v4202 = vadd.f32 0.0, %v4201
        %v4203 = vpop.f32.mrf.mxu0
        %v4204 = vpop.f32.mrf.mxu0
        %v4205 = vadd.f32 0.0, %v4204
        %v4206 = vpop.f32.mrf.mxu0
        %4207 = vmatprep.mubr.bf16.mxu0 0
        %4208 = vmatmul.mubr.bf16.gmra.mxu0 %v4065
        %v4209 = vpop.f32.mrf.mxu0
        %v4210 = vadd.f32 0.0, %v4209
        %v4211 = vpop.f32.mrf.mxu0
        %v4212 = vpop.f32.mrf.mxu0
        %v4213 = vadd.f32 0.0, %v4212
        %v4214 = vpop.f32.mrf.mxu0
        %4215 = vmatprep.mubr.bf16.mxu0 0
        %4216 = vmatmul.mubr.bf16.gmra.mxu0 %v4068
        %v4217 = vpop.f32.mrf.mxu0
        %v4218 = vadd.f32 0.0, %v4217
        %v4219 = vpop.f32.mrf.mxu0
        %v4220 = vpop.f32.mrf.mxu0
        %v4221 = vadd.f32 0.0, %v4220
        %v4222 = vpop.f32.mrf.mxu0
        %4223 = vmatprep.mubr.bf16.mxu0 0
        %4224 = vmatmul.mubr.bf16.gmra.mxu0 %v4071
        %v4225 = vpop.f32.mrf.mxu0
        %v4226 = vadd.f32 0.0, %v4225
        %v4227 = vpop.f32.mrf.mxu0
        %v4228 = vpop.f32.mrf.mxu0
        %v4229 = vadd.f32 0.0, %v4228
        %v4230 = vpop.f32.mrf.mxu0
        %4231 = vmatprep.mubr.bf16.mxu0 0
        %4232 = vmatmul.mubr.bf16.gmra.mxu0 %v4074
        %v4233 = vpop.f32.mrf.mxu0
        %v4234 = vadd.f32 0.0, %v4233
        %v4235 = vpop.f32.mrf.mxu0
        %v4236 = vpop.f32.mrf.mxu0
        %v4237 = vadd.f32 0.0, %v4236
        %v4238 = vpop.f32.mrf.mxu0
        %4239 = vdwg.mxu0
        %v4240 = vld [vmem:[%s5] sm:$0x1]
        %v4242 = vlaneseq
        %v4243 = vshrl.u32 %v4242, 7
        %v4244 = vsub.s32 0, %v4243
        %v4245 = vrot.slane %v4240, %v4244
        %v4247 = vmul.f32 %v4114, %v4245
        %v4248 = vmul.f32 %v4117, %v4245
        %v4249 = vmul.f32 %v4122, %v4245
        %v4250 = vmul.f32 %v4125, %v4245
        %v4251 = vmul.f32 %v4130, %v4245
        %v4252 = vmul.f32 %v4133, %v4245
        %v4253 = vmul.f32 %v4138, %v4245
        %v4254 = vmul.f32 %v4141, %v4245
        %v4255 = vmul.f32 %v4146, %v4245
        %v4256 = vmul.f32 %v4149, %v4245
        %v4257 = vmul.f32 %v4154, %v4245
        %v4258 = vmul.f32 %v4157, %v4245
        %v4259 = vmul.f32 %v4162, %v4245
        %v4260 = vmul.f32 %v4165, %v4245
        %v4261 = vmul.f32 %v4170, %v4245
        %v4262 = vmul.f32 %v4173, %v4245
        %v4263 = vmul.f32 %v4178, %v4245
        %v4264 = vmul.f32 %v4181, %v4245
        %v4265 = vmul.f32 %v4186, %v4245
        %v4266 = vmul.f32 %v4189, %v4245
        %v4267 = vmul.f32 %v4194, %v4245
        %v4268 = vmul.f32 %v4197, %v4245
        %v4269 = vmul.f32 %v4202, %v4245
        %v4270 = vmul.f32 %v4205, %v4245
        %v4271 = vmul.f32 %v4210, %v4245
        %v4272 = vmul.f32 %v4213, %v4245
        %v4273 = vmul.f32 %v4218, %v4245
        %v4274 = vmul.f32 %v4221, %v4245
        %v4275 = vmul.f32 %v4226, %v4245
        %v4276 = vmul.f32 %v4229, %v4245
        %v4277 = vmul.f32 %v4234, %v4245
        %v4278 = vmul.f32 %v4237, %v4245
        %v4279 = vld [vmem:[%s6] sm:$0x1]
        %v4281 = vlaneseq
        %v4282 = vshrl.u32 %v4281, 7
        %v4283 = vsub.s32 0, %v4282
        %v4284 = vrot.slane %v4279, %v4283
        %v4286 = vadd.f32 %v4247, %v4284
        %v4287 = vadd.f32 %v4248, %v4284
        %v4288 = vadd.f32 %v4249, %v4284
        %v4289 = vadd.f32 %v4250, %v4284
        %v4290 = vadd.f32 %v4251, %v4284
        %v4291 = vadd.f32 %v4252, %v4284
        %v4292 = vadd.f32 %v4253, %v4284
        %v4293 = vadd.f32 %v4254, %v4284
        %v4294 = vadd.f32 %v4255, %v4284
        %v4295 = vadd.f32 %v4256, %v4284
        %v4296 = vadd.f32 %v4257, %v4284
        %v4297 = vadd.f32 %v4258, %v4284
        %v4298 = vadd.f32 %v4259, %v4284
        %v4299 = vadd.f32 %v4260, %v4284
        %v4300 = vadd.f32 %v4261, %v4284
        %v4301 = vadd.f32 %v4262, %v4284
        %v4302 = vadd.f32 %v4263, %v4284
        %v4303 = vadd.f32 %v4264, %v4284
        %v4304 = vadd.f32 %v4265, %v4284
        %v4305 = vadd.f32 %v4266, %v4284
        %v4306 = vadd.f32 %v4267, %v4284
        %v4307 = vadd.f32 %v4268, %v4284
        %v4308 = vadd.f32 %v4269, %v4284
        %v4309 = vadd.f32 %v4270, %v4284
        %v4310 = vadd.f32 %v4271, %v4284
        %v4311 = vadd.f32 %v4272, %v4284
        %v4312 = vadd.f32 %v4273, %v4284
        %v4313 = vadd.f32 %v4274, %v4284
        %v4314 = vadd.f32 %v4275, %v4284
        %v4315 = vadd.f32 %v4276, %v4284
        %v4316 = vadd.f32 %v4277, %v4284
        %v4317 = vadd.f32 %v4278, %v4284
        %4350 = vrot.lane.b32.xlu0 %v4286, 16
        %v4351 = vpop.permute.xlu0 %4350
        %4352 = vrot.lane.b32.xlu0 %v4287, 16
        %v4353 = vpop.permute.xlu0 %4352
        %4354 = vrot.lane.b32.xlu0 %v4288, 16
        %v4355 = vpop.permute.xlu0 %4354
        %4356 = vrot.lane.b32.xlu0 %v4289, 16
        %v4357 = vpop.permute.xlu0 %4356
        %4358 = vrot.lane.b32.xlu0 %v4290, 16
        %v4359 = vpop.permute.xlu0 %4358
        %4360 = vrot.lane.b32.xlu0 %v4291, 16
        %v4361 = vpop.permute.xlu0 %4360
        %4362 = vrot.lane.b32.xlu0 %v4292, 16
        %v4363 = vpop.permute.xlu0 %4362
        %4364 = vrot.lane.b32.xlu0 %v4293, 16
        %v4365 = vpop.permute.xlu0 %4364
        %4366 = vrot.lane.b32.xlu0 %v4294, 16
        %v4367 = vpop.permute.xlu0 %4366
        %4368 = vrot.lane.b32.xlu0 %v4295, 16
        %v4369 = vpop.permute.xlu0 %4368
        %4370 = vrot.lane.b32.xlu0 %v4296, 16
        %v4371 = vpop.permute.xlu0 %4370
        %4372 = vrot.lane.b32.xlu0 %v4297, 16
        %v4373 = vpop.permute.xlu0 %4372
        %4374 = vrot.lane.b32.xlu0 %v4298, 16
        %v4375 = vpop.permute.xlu0 %4374
        %4376 = vrot.lane.b32.xlu0 %v4299, 16
        %v4377 = vpop.permute.xlu0 %4376
        %4378 = vrot.lane.b32.xlu0 %v4300, 16
        %v4379 = vpop.permute.xlu0 %4378
        %4380 = vrot.lane.b32.xlu0 %v4301, 16
        %v4381 = vpop.permute.xlu0 %4380
        %4382 = vrot.lane.b32.xlu0 %v4302, 16
        %v4383 = vpop.permute.xlu0 %4382
        %4384 = vrot.lane.b32.xlu0 %v4303, 16
        %v4385 = vpop.permute.xlu0 %4384
        %4386 = vrot.lane.b32.xlu0 %v4304, 16
        %v4387 = vpop.permute.xlu0 %4386
        %4388 = vrot.lane.b32.xlu0 %v4305, 16
        %v4389 = vpop.permute.xlu0 %4388
        %4390 = vrot.lane.b32.xlu0 %v4306, 16
        %v4391 = vpop.permute.xlu0 %4390
        %4392 = vrot.lane.b32.xlu0 %v4307, 16
        %v4393 = vpop.permute.xlu0 %4392
        %4394 = vrot.lane.b32.xlu0 %v4308, 16
        %v4395 = vpop.permute.xlu0 %4394
        %4396 = vrot.lane.b32.xlu0 %v4309, 16
        %v4397 = vpop.permute.xlu0 %4396
        %4398 = vrot.lane.b32.xlu0 %v4310, 16
        %v4399 = vpop.permute.xlu0 %4398
        %4400 = vrot.lane.b32.xlu0 %v4311, 16
        %v4401 = vpop.permute.xlu0 %4400
        %4402 = vrot.lane.b32.xlu0 %v4312, 16
        %v4403 = vpop.permute.xlu0 %4402
        %4404 = vrot.lane.b32.xlu0 %v4313, 16
        %v4405 = vpop.permute.xlu0 %4404
        %4406 = vrot.lane.b32.xlu0 %v4314, 16
        %v4407 = vpop.permute.xlu0 %4406
        %4408 = vrot.lane.b32.xlu0 %v4315, 16
        %v4409 = vpop.permute.xlu0 %4408
        %4410 = vrot.lane.b32.xlu0 %v4316, 16
        %v4411 = vpop.permute.xlu0 %4410
        %4412 = vrot.lane.b32.xlu0 %v4317, 16
        %v4413 = vpop.permute.xlu0 %4412
        %vm4446 = vcmask 261248
        %4447 = vst.msk [vmem:[%s433] sm:$0xff] %vm4446, %v4351
        %4448 = vst.msk [vmem:[%s433 + $0x8] sm:$0xff] %vm4446, %v4353
        %4449 = vst.msk [vmem:[%s433 + $0x10] sm:$0xff] %vm4446, %v4355
        %4450 = vst.msk [vmem:[%s433 + $0x18] sm:$0xff] %vm4446, %v4357
        %4451 = vst.msk [vmem:[%s433 + $0x20] sm:$0xff] %vm4446, %v4359
        %4452 = vst.msk [vmem:[%s433 + $0x28] sm:$0xff] %vm4446, %v4361
        %4453 = vst.msk [vmem:[%s433 + $0x30] sm:$0xff] %vm4446, %v4363
        %4454 = vst.msk [vmem:[%s433 + $0x38] sm:$0xff] %vm4446, %v4365
        %4455 = vst.msk [vmem:[%s433 + $0x40] sm:$0xff] %vm4446, %v4367
        %4456 = vst.msk [vmem:[%s433 + $0x48] sm:$0xff] %vm4446, %v4369
        %4457 = vst.msk [vmem:[%s433 + $0x50] sm:$0xff] %vm4446, %v4371
        %4458 = vst.msk [vmem:[%s433 + $0x58] sm:$0xff] %vm4446, %v4373
        %4459 = vst.msk [vmem:[%s433 + $0x60] sm:$0xff] %vm4446, %v4375
        %4460 = vst.msk [vmem:[%s433 + $0x68] sm:$0xff] %vm4446, %v4377
        %4461 = vst.msk [vmem:[%s433 + $0x70] sm:$0xff] %vm4446, %v4379
        %4462 = vst.msk [vmem:[%s433 + $0x78] sm:$0xff] %vm4446, %v4381
        %4463 = vst.msk [vmem:[%s433 + $0x80] sm:$0xff] %vm4446, %v4383
        %4464 = vst.msk [vmem:[%s433 + $0x88] sm:$0xff] %vm4446, %v4385
        %4465 = vst.msk [vmem:[%s433 + $0x90] sm:$0xff] %vm4446, %v4387
        %4466 = vst.msk [vmem:[%s433 + $0x98] sm:$0xff] %vm4446, %v4389
        %4467 = vst.msk [vmem:[%s433 + $0xa0] sm:$0xff] %vm4446, %v4391
        %4468 = vst.msk [vmem:[%s433 + $0xa8] sm:$0xff] %vm4446, %v4393
        %4469 = vst.msk [vmem:[%s433 + $0xb0] sm:$0xff] %vm4446, %v4395
        %4470 = vst.msk [vmem:[%s433 + $0xb8] sm:$0xff] %vm4446, %v4397
        %4471 = vst.msk [vmem:[%s433 + $0xc0] sm:$0xff] %vm4446, %v4399
        %4472 = vst.msk [vmem:[%s433 + $0xc8] sm:$0xff] %vm4446, %v4401
        %4473 = vst.msk [vmem:[%s433 + $0xd0] sm:$0xff] %vm4446, %v4403
        %4474 = vst.msk [vmem:[%s433 + $0xd8] sm:$0xff] %vm4446, %v4405
        %4475 = vst.msk [vmem:[%s433 + $0xe0] sm:$0xff] %vm4446, %v4407
        %4476 = vst.msk [vmem:[%s433 + $0xe8] sm:$0xff] %vm4446, %v4409
        %4477 = vst.msk [vmem:[%s433 + $0xf0] sm:$0xff] %vm4446, %v4411
        %4478 = vst.msk [vmem:[%s433 + $0xf8] sm:$0xff] %vm4446, %v4413
        %v4479 = vld [vmem:[#allocation6] sm:$0xff]
        %v4480 = vld [vmem:[#allocation6 + $0x8] sm:$0xff]
        %v4481 = vld [vmem:[#allocation6 + $0x10] sm:$0xff]
        %v4482 = vld [vmem:[#allocation6 + $0x18] sm:$0xff]
        %v4483 = vld [vmem:[#allocation6 + $0x20] sm:$0xff]
        %v4484 = vld [vmem:[#allocation6 + $0x28] sm:$0xff]
        %v4485 = vld [vmem:[#allocation6 + $0x30] sm:$0xff]
        %v4486 = vld [vmem:[#allocation6 + $0x38] sm:$0xff]
        %v4487 = vld [vmem:[#allocation6 + $0x40] sm:$0xff]
        %v4488 = vld [vmem:[#allocation6 + $0x48] sm:$0xff]
        %v4489 = vld [vmem:[#allocation6 + $0x50] sm:$0xff]
        %v4490 = vld [vmem:[#allocation6 + $0x58] sm:$0xff]
        %v4491 = vld [vmem:[#allocation6 + $0x60] sm:$0xff]
        %v4492 = vld [vmem:[#allocation6 + $0x68] sm:$0xff]
        %v4493 = vld [vmem:[#allocation6 + $0x70] sm:$0xff]
        %v4494 = vld [vmem:[#allocation6 + $0x78] sm:$0xff]
        %v4495 = vld [vmem:[#allocation6 + $0x80] sm:$0xff]
        %v4496 = vld [vmem:[#allocation6 + $0x88] sm:$0xff]
        %v4497 = vld [vmem:[#allocation6 + $0x90] sm:$0xff]
        %v4498 = vld [vmem:[#allocation6 + $0x98] sm:$0xff]
        %v4499 = vld [vmem:[#allocation6 + $0xa0] sm:$0xff]
        %v4500 = vld [vmem:[#allocation6 + $0xa8] sm:$0xff]
        %v4501 = vld [vmem:[#allocation6 + $0xb0] sm:$0xff]
        %v4502 = vld [vmem:[#allocation6 + $0xb8] sm:$0xff]
        %v4503 = vld [vmem:[#allocation6 + $0xc0] sm:$0xff]
        %v4504 = vld [vmem:[#allocation6 + $0xc8] sm:$0xff]
        %v4505 = vld [vmem:[#allocation6 + $0xd0] sm:$0xff]
        %v4506 = vld [vmem:[#allocation6 + $0xd8] sm:$0xff]
        %v4507 = vld [vmem:[#allocation6 + $0xe0] sm:$0xff]
        %v4508 = vld [vmem:[#allocation6 + $0xe8] sm:$0xff]
        %v4509 = vld [vmem:[#allocation6 + $0xf0] sm:$0xff]
        %v4510 = vld [vmem:[#allocation6 + $0xf8] sm:$0xff]
        %v4511 = vpack.c.bf16 %v4480, %v4479
        %v4512 = vpack.c.bf16 %v4482, %v4481
        %v4513 = vpack.c.bf16 %v4484, %v4483
        %v4514 = vpack.c.bf16 %v4486, %v4485
        %v4515 = vpack.c.bf16 %v4488, %v4487
        %v4516 = vpack.c.bf16 %v4490, %v4489
        %v4517 = vpack.c.bf16 %v4492, %v4491
        %v4518 = vpack.c.bf16 %v4494, %v4493
        %v4519 = vpack.c.bf16 %v4496, %v4495
        %v4520 = vpack.c.bf16 %v4498, %v4497
        %v4521 = vpack.c.bf16 %v4500, %v4499
        %v4522 = vpack.c.bf16 %v4502, %v4501
        %v4523 = vpack.c.bf16 %v4504, %v4503
        %v4524 = vpack.c.bf16 %v4506, %v4505
        %v4525 = vpack.c.bf16 %v4508, %v4507
        %v4526 = vpack.c.bf16 %v4510, %v4509
        %v4527 = vld [vmem:[%s7] sm:$0xf]
        %v4528 = vld [vmem:[%s7 + $0x4] sm:$0xf]
        %v4529 = vld [vmem:[%s7 + $0x8] sm:$0xf]
        %v4530 = vld [vmem:[%s7 + $0xc] sm:$0xf]
        %v4531 = vld [vmem:[%s7 + $0x10] sm:$0xf]
        %v4532 = vld [vmem:[%s7 + $0x14] sm:$0xf]
        %v4533 = vld [vmem:[%s7 + $0x18] sm:$0xf]
        %v4534 = vld [vmem:[%s7 + $0x1c] sm:$0xf]
        %v4535 = vld [vmem:[%s7 + $0x20] sm:$0xf]
        %v4545 = vunpack.c.l.b16 %v4527
        %v4546 = vunpack.c.l.b16 %v4528
        %v4547 = vunpack.c.l.b16 %v4529
        %v4548 = vunpack.c.l.b16 %v4530
        %v4549 = vunpack.c.l.b16 %v4531
        %v4550 = vunpack.c.l.b16 %v4532
        %v4551 = vunpack.c.l.b16 %v4533
        %v4552 = vunpack.c.l.b16 %v4534
        %v4553 = vunpack.c.l.b16 %v4535
        %v4554 = vpack.c.b16 %v4546, %v4545
        %v4555 = vpack.c.b16 %v4548, %v4547
        %v4556 = vpack.c.b16 %v4550, %v4549
        %v4557 = vpack.c.b16 %v4552, %v4551
        %v4558 = vpack.c.b16 %v4553, %v4553
        %v4564 = vsel %vm4027, %v4511, 0
        %v4567 = vsel %vm4027, %v4512, 0
        %v4570 = vsel %vm4027, %v4513, 0
        %v4573 = vsel %vm4027, %v4514, 0
        %v4576 = vsel %vm4027, %v4515, 0
        %v4579 = vsel %vm4027, %v4516, 0
        %v4582 = vsel %vm4027, %v4517, 0
        %v4585 = vsel %vm4027, %v4518, 0
        %v4588 = vsel %vm4027, %v4519, 0
        %v4591 = vsel %vm4027, %v4520, 0
        %v4594 = vsel %vm4027, %v4521, 0
        %v4597 = vsel %vm4027, %v4522, 0
        %v4600 = vsel %vm4027, %v4523, 0
        %v4603 = vsel %vm4027, %v4524, 0
        %v4606 = vsel %vm4027, %v4525, 0
        %v4609 = vsel %vm4027, %v4526, 0
        %v4612 = vsel %vm538, %v4558, 0
        %4614 = vmatprep.subr.bf16.mxu0 0
        %4615 = vmatpush1.bf16.msra.mxu0 0
        %4616 = vmatprep.subr.bf16.mxu0 0
        %4617 = vmatpush1.bf16.msra.mxu0 0
        %4618 = vmatprep.subr.bf16.mxu0 0
        %4619 = vmatpush1.bf16.msra.mxu0 0
        %4620 = vmatprep.subr.bf16.mxu0 0
        %4621 = vmatpush1.bf16.msra.mxu0 %v4612
        %4622 = vmatprep.subr.bf16.mxu0 0
        %4623 = vmatpush1.bf16.msra.mxu0 %v4557
        %4624 = vmatprep.subr.bf16.mxu0 0
        %4625 = vmatpush1.bf16.msra.mxu0 %v4556
        %4626 = vmatprep.subr.bf16.mxu0 0
        %4627 = vmatpush1.bf16.msra.mxu0 %v4555
        %4628 = vmatprep.subr.bf16.mxu0 0
        %4629 = vmatpush1.bf16.msra.mxu0 %v4554
        %4630 = vmatprep.subr.bf16.mxu0 0
        %4631 = vmatpush2.bf16.msra.mxu0 0
        %4632 = vmatprep.subr.bf16.mxu0 0
        %4633 = vmatpush2.bf16.msra.mxu0 0
        %4634 = vmatprep.subr.bf16.mxu0 0
        %4635 = vmatpush2.bf16.msra.mxu0 0
        %4636 = vmatprep.subr.bf16.mxu0 0
        %4637 = vmatpush2.bf16.msra.mxu0 0
        %4638 = vmatprep.subr.bf16.mxu0 0
        %4639 = vmatpush2.bf16.msra.mxu0 0
        %4640 = vmatprep.subr.bf16.mxu0 0
        %4641 = vmatpush2.bf16.msra.mxu0 0
        %4642 = vmatprep.subr.bf16.mxu0 0
        %4643 = vmatpush2.bf16.msra.mxu0 0
        %4644 = vmatprep.subr.bf16.mxu0 0
        %4645 = vmatpush2.bf16.msra.mxu0 0
        %4646 = vmatprep.mubr.bf16.mxu0 0
        %4647 = vmatmul.mubr.bf16.gmra.mxu0 %v4564
        %v4648 = vpop.f32.mrf.mxu0
        %v4649 = vadd.f32 0.0, %v4648
        %v4650 = vpop.f32.mrf.mxu0
        %v4651 = vpop.f32.mrf.mxu0
        %v4652 = vadd.f32 0.0, %v4651
        %v4653 = vpop.f32.mrf.mxu0
        %4654 = vmatprep.mubr.bf16.mxu0 0
        %4655 = vmatmul.mubr.bf16.gmra.mxu0 %v4567
        %v4656 = vpop.f32.mrf.mxu0
        %v4657 = vadd.f32 0.0, %v4656
        %v4658 = vpop.f32.mrf.mxu0
        %v4659 = vpop.f32.mrf.mxu0
        %v4660 = vadd.f32 0.0, %v4659
        %v4661 = vpop.f32.mrf.mxu0
        %4662 = vmatprep.mubr.bf16.mxu0 0
        %4663 = vmatmul.mubr.bf16.gmra.mxu0 %v4570
        %v4664 = vpop.f32.mrf.mxu0
        %v4665 = vadd.f32 0.0, %v4664
        %v4666 = vpop.f32.mrf.mxu0
        %v4667 = vpop.f32.mrf.mxu0
        %v4668 = vadd.f32 0.0, %v4667
        %v4669 = vpop.f32.mrf.mxu0
        %4670 = vmatprep.mubr.bf16.mxu0 0
        %4671 = vmatmul.mubr.bf16.gmra.mxu0 %v4573
        %v4672 = vpop.f32.mrf.mxu0
        %v4673 = vadd.f32 0.0, %v4672
        %v4674 = vpop.f32.mrf.mxu0
        %v4675 = vpop.f32.mrf.mxu0
        %v4676 = vadd.f32 0.0, %v4675
        %v4677 = vpop.f32.mrf.mxu0
        %4678 = vmatprep.mubr.bf16.mxu0 0
        %4679 = vmatmul.mubr.bf16.gmra.mxu0 %v4576
        %v4680 = vpop.f32.mrf.mxu0
        %v4681 = vadd.f32 0.0, %v4680
        %v4682 = vpop.f32.mrf.mxu0
        %v4683 = vpop.f32.mrf.mxu0
        %v4684 = vadd.f32 0.0, %v4683
        %v4685 = vpop.f32.mrf.mxu0
        %4686 = vmatprep.mubr.bf16.mxu0 0
        %4687 = vmatmul.mubr.bf16.gmra.mxu0 %v4579
        %v4688 = vpop.f32.mrf.mxu0
        %v4689 = vadd.f32 0.0, %v4688
        %v4690 = vpop.f32.mrf.mxu0
        %v4691 = vpop.f32.mrf.mxu0
        %v4692 = vadd.f32 0.0, %v4691
        %v4693 = vpop.f32.mrf.mxu0
        %4694 = vmatprep.mubr.bf16.mxu0 0
        %4695 = vmatmul.mubr.bf16.gmra.mxu0 %v4582
        %v4696 = vpop.f32.mrf.mxu0
        %v4697 = vadd.f32 0.0, %v4696
        %v4698 = vpop.f32.mrf.mxu0
        %v4699 = vpop.f32.mrf.mxu0
        %v4700 = vadd.f32 0.0, %v4699
        %v4701 = vpop.f32.mrf.mxu0
        %4702 = vmatprep.mubr.bf16.mxu0 0
        %4703 = vmatmul.mubr.bf16.gmra.mxu0 %v4585
        %v4704 = vpop.f32.mrf.mxu0
        %v4705 = vadd.f32 0.0, %v4704
        %v4706 = vpop.f32.mrf.mxu0
        %v4707 = vpop.f32.mrf.mxu0
        %v4708 = vadd.f32 0.0, %v4707
        %v4709 = vpop.f32.mrf.mxu0
        %4710 = vmatprep.mubr.bf16.mxu0 0
        %4711 = vmatmul.mubr.bf16.gmra.mxu0 %v4588
        %v4712 = vpop.f32.mrf.mxu0
        %v4713 = vadd.f32 0.0, %v4712
        %v4714 = vpop.f32.mrf.mxu0
        %v4715 = vpop.f32.mrf.mxu0
        %v4716 = vadd.f32 0.0, %v4715
        %v4717 = vpop.f32.mrf.mxu0
        %4718 = vmatprep.mubr.bf16.mxu0 0
        %4719 = vmatmul.mubr.bf16.gmra.mxu0 %v4591
        %v4720 = vpop.f32.mrf.mxu0
        %v4721 = vadd.f32 0.0, %v4720
        %v4722 = vpop.f32.mrf.mxu0
        %v4723 = vpop.f32.mrf.mxu0
        %v4724 = vadd.f32 0.0, %v4723
        %v4725 = vpop.f32.mrf.mxu0
        %4726 = vmatprep.mubr.bf16.mxu0 0
        %4727 = vmatmul.mubr.bf16.gmra.mxu0 %v4594
        %v4728 = vpop.f32.mrf.mxu0
        %v4729 = vadd.f32 0.0, %v4728
        %v4730 = vpop.f32.mrf.mxu0
        %v4731 = vpop.f32.mrf.mxu0
        %v4732 = vadd.f32 0.0, %v4731
        %v4733 = vpop.f32.mrf.mxu0
        %4734 = vmatprep.mubr.bf16.mxu0 0
        %4735 = vmatmul.mubr.bf16.gmra.mxu0 %v4597
        %v4736 = vpop.f32.mrf.mxu0
        %v4737 = vadd.f32 0.0, %v4736
        %v4738 = vpop.f32.mrf.mxu0
        %v4739 = vpop.f32.mrf.mxu0
        %v4740 = vadd.f32 0.0, %v4739
        %v4741 = vpop.f32.mrf.mxu0
        %4742 = vmatprep.mubr.bf16.mxu0 0
        %4743 = vmatmul.mubr.bf16.gmra.mxu0 %v4600
        %v4744 = vpop.f32.mrf.mxu0
        %v4745 = vadd.f32 0.0, %v4744
        %v4746 = vpop.f32.mrf.mxu0
        %v4747 = vpop.f32.mrf.mxu0
        %v4748 = vadd.f32 0.0, %v4747
        %v4749 = vpop.f32.mrf.mxu0
        %4750 = vmatprep.mubr.bf16.mxu0 0
        %4751 = vmatmul.mubr.bf16.gmra.mxu0 %v4603
        %v4752 = vpop.f32.mrf.mxu0
        %v4753 = vadd.f32 0.0, %v4752
        %v4754 = vpop.f32.mrf.mxu0
        %v4755 = vpop.f32.mrf.mxu0
        %v4756 = vadd.f32 0.0, %v4755
        %v4757 = vpop.f32.mrf.mxu0
        %4758 = vmatprep.mubr.bf16.mxu0 0
        %4759 = vmatmul.mubr.bf16.gmra.mxu0 %v4606
        %v4760 = vpop.f32.mrf.mxu0
        %v4761 = vadd.f32 0.0, %v4760
        %v4762 = vpop.f32.mrf.mxu0
        %v4763 = vpop.f32.mrf.mxu0
        %v4764 = vadd.f32 0.0, %v4763
        %v4765 = vpop.f32.mrf.mxu0
        %4766 = vmatprep.mubr.bf16.mxu0 0
        %4767 = vmatmul.mubr.bf16.gmra.mxu0 %v4609
        %v4768 = vpop.f32.mrf.mxu0
        %v4769 = vadd.f32 0.0, %v4768
        %v4770 = vpop.f32.mrf.mxu0
        %v4771 = vpop.f32.mrf.mxu0
        %v4772 = vadd.f32 0.0, %v4771
        %v4773 = vpop.f32.mrf.mxu0
        %4774 = vdwg.mxu0
        %v4775 = vld [vmem:[%s8] sm:$0x1]
        %v4777 = vlaneseq
        %v4778 = vshrl.u32 %v4777, 7
        %v4779 = vsub.s32 0, %v4778
        %v4780 = vrot.slane %v4775, %v4779
        %v4782 = vmul.f32 %v4649, %v4780
        %v4783 = vmul.f32 %v4652, %v4780
        %v4784 = vmul.f32 %v4657, %v4780
        %v4785 = vmul.f32 %v4660, %v4780
        %v4786 = vmul.f32 %v4665, %v4780
        %v4787 = vmul.f32 %v4668, %v4780
        %v4788 = vmul.f32 %v4673, %v4780
        %v4789 = vmul.f32 %v4676, %v4780
        %v4790 = vmul.f32 %v4681, %v4780
        %v4791 = vmul.f32 %v4684, %v4780
        %v4792 = vmul.f32 %v4689, %v4780
        %v4793 = vmul.f32 %v4692, %v4780
        %v4794 = vmul.f32 %v4697, %v4780
        %v4795 = vmul.f32 %v4700, %v4780
        %v4796 = vmul.f32 %v4705, %v4780
        %v4797 = vmul.f32 %v4708, %v4780
        %v4798 = vmul.f32 %v4713, %v4780
        %v4799 = vmul.f32 %v4716, %v4780
        %v4800 = vmul.f32 %v4721, %v4780
        %v4801 = vmul.f32 %v4724, %v4780
        %v4802 = vmul.f32 %v4729, %v4780
        %v4803 = vmul.f32 %v4732, %v4780
        %v4804 = vmul.f32 %v4737, %v4780
        %v4805 = vmul.f32 %v4740, %v4780
        %v4806 = vmul.f32 %v4745, %v4780
        %v4807 = vmul.f32 %v4748, %v4780
        %v4808 = vmul.f32 %v4753, %v4780
        %v4809 = vmul.f32 %v4756, %v4780
        %v4810 = vmul.f32 %v4761, %v4780
        %v4811 = vmul.f32 %v4764, %v4780
        %v4812 = vmul.f32 %v4769, %v4780
        %v4813 = vmul.f32 %v4772, %v4780
        %v4814 = vld [vmem:[%s9] sm:$0x1]
        %v4816 = vlaneseq
        %v4817 = vshrl.u32 %v4816, 7
        %v4818 = vsub.s32 0, %v4817
        %v4819 = vrot.slane %v4814, %v4818
        %v4821 = vadd.f32 %v4782, %v4819
        %v4822 = vadd.f32 %v4783, %v4819
        %v4823 = vadd.f32 %v4784, %v4819
        %v4824 = vadd.f32 %v4785, %v4819
        %v4825 = vadd.f32 %v4786, %v4819
        %v4826 = vadd.f32 %v4787, %v4819
        %v4827 = vadd.f32 %v4788, %v4819
        %v4828 = vadd.f32 %v4789, %v4819
        %v4829 = vadd.f32 %v4790, %v4819
        %v4830 = vadd.f32 %v4791, %v4819
        %v4831 = vadd.f32 %v4792, %v4819
        %v4832 = vadd.f32 %v4793, %v4819
        %v4833 = vadd.f32 %v4794, %v4819
        %v4834 = vadd.f32 %v4795, %v4819
        %v4835 = vadd.f32 %v4796, %v4819
        %v4836 = vadd.f32 %v4797, %v4819
        %v4837 = vadd.f32 %v4798, %v4819
        %v4838 = vadd.f32 %v4799, %v4819
        %v4839 = vadd.f32 %v4800, %v4819
        %v4840 = vadd.f32 %v4801, %v4819
        %v4841 = vadd.f32 %v4802, %v4819
        %v4842 = vadd.f32 %v4803, %v4819
        %v4843 = vadd.f32 %v4804, %v4819
        %v4844 = vadd.f32 %v4805, %v4819
        %v4845 = vadd.f32 %v4806, %v4819
        %v4846 = vadd.f32 %v4807, %v4819
        %v4847 = vadd.f32 %v4808, %v4819
        %v4848 = vadd.f32 %v4809, %v4819
        %v4849 = vadd.f32 %v4810, %v4819
        %v4850 = vadd.f32 %v4811, %v4819
        %v4851 = vadd.f32 %v4812, %v4819
        %v4852 = vadd.f32 %v4813, %v4819
        %4885 = vrot.lane.b32.xlu0 %v4821, 32
        %v4886 = vpop.permute.xlu0 %4885
        %4887 = vrot.lane.b32.xlu0 %v4822, 32
        %v4888 = vpop.permute.xlu0 %4887
        %4889 = vrot.lane.b32.xlu0 %v4823, 32
        %v4890 = vpop.permute.xlu0 %4889
        %4891 = vrot.lane.b32.xlu0 %v4824, 32
        %v4892 = vpop.permute.xlu0 %4891
        %4893 = vrot.lane.b32.xlu0 %v4825, 32
        %v4894 = vpop.permute.xlu0 %4893
        %4895 = vrot.lane.b32.xlu0 %v4826, 32
        %v4896 = vpop.permute.xlu0 %4895
        %4897 = vrot.lane.b32.xlu0 %v4827, 32
        %v4898 = vpop.permute.xlu0 %4897
        %4899 = vrot.lane.b32.xlu0 %v4828, 32
        %v4900 = vpop.permute.xlu0 %4899
        %4901 = vrot.lane.b32.xlu0 %v4829, 32
        %v4902 = vpop.permute.xlu0 %4901
        %4903 = vrot.lane.b32.xlu0 %v4830, 32
        %v4904 = vpop.permute.xlu0 %4903
        %4905 = vrot.lane.b32.xlu0 %v4831, 32
        %v4906 = vpop.permute.xlu0 %4905
        %4907 = vrot.lane.b32.xlu0 %v4832, 32
        %v4908 = vpop.permute.xlu0 %4907
        %4909 = vrot.lane.b32.xlu0 %v4833, 32
        %v4910 = vpop.permute.xlu0 %4909
        %4911 = vrot.lane.b32.xlu0 %v4834, 32
        %v4912 = vpop.permute.xlu0 %4911
        %4913 = vrot.lane.b32.xlu0 %v4835, 32
        %v4914 = vpop.permute.xlu0 %4913
        %4915 = vrot.lane.b32.xlu0 %v4836, 32
        %v4916 = vpop.permute.xlu0 %4915
        %4917 = vrot.lane.b32.xlu0 %v4837, 32
        %v4918 = vpop.permute.xlu0 %4917
        %4919 = vrot.lane.b32.xlu0 %v4838, 32
        %v4920 = vpop.permute.xlu0 %4919
        %4921 = vrot.lane.b32.xlu0 %v4839, 32
        %v4922 = vpop.permute.xlu0 %4921
        %4923 = vrot.lane.b32.xlu0 %v4840, 32
        %v4924 = vpop.permute.xlu0 %4923
        %4925 = vrot.lane.b32.xlu0 %v4841, 32
        %v4926 = vpop.permute.xlu0 %4925
        %4927 = vrot.lane.b32.xlu0 %v4842, 32
        %v4928 = vpop.permute.xlu0 %4927
        %4929 = vrot.lane.b32.xlu0 %v4843, 32
        %v4930 = vpop.permute.xlu0 %4929
        %4931 = vrot.lane.b32.xlu0 %v4844, 32
        %v4932 = vpop.permute.xlu0 %4931
        %4933 = vrot.lane.b32.xlu0 %v4845, 32
        %v4934 = vpop.permute.xlu0 %4933
        %4935 = vrot.lane.b32.xlu0 %v4846, 32
        %v4936 = vpop.permute.xlu0 %4935
        %4937 = vrot.lane.b32.xlu0 %v4847, 32
        %v4938 = vpop.permute.xlu0 %4937
        %4939 = vrot.lane.b32.xlu0 %v4848, 32
        %v4940 = vpop.permute.xlu0 %4939
        %4941 = vrot.lane.b32.xlu0 %v4849, 32
        %v4942 = vpop.permute.xlu0 %4941
        %4943 = vrot.lane.b32.xlu0 %v4850, 32
        %v4944 = vpop.permute.xlu0 %4943
        %4945 = vrot.lane.b32.xlu0 %v4851, 32
        %v4946 = vpop.permute.xlu0 %4945
        %4947 = vrot.lane.b32.xlu0 %v4852, 32
        %v4948 = vpop.permute.xlu0 %4947
        %vm4981 = vcmask 392448
        %4982 = vst.msk [vmem:[%s433] sm:$0xff] %vm4981, %v4886
        %4983 = vst.msk [vmem:[%s433 + $0x8] sm:$0xff] %vm4981, %v4888
        %4984 = vst.msk [vmem:[%s433 + $0x10] sm:$0xff] %vm4981, %v4890
        %4985 = vst.msk [vmem:[%s433 + $0x18] sm:$0xff] %vm4981, %v4892
        %4986 = vst.msk [vmem:[%s433 + $0x20] sm:$0xff] %vm4981, %v4894
        %4987 = vst.msk [vmem:[%s433 + $0x28] sm:$0xff] %vm4981, %v4896
        %4988 = vst.msk [vmem:[%s433 + $0x30] sm:$0xff] %vm4981, %v4898
        %4989 = vst.msk [vmem:[%s433 + $0x38] sm:$0xff] %vm4981, %v4900
        %4990 = vst.msk [vmem:[%s433 + $0x40] sm:$0xff] %vm4981, %v4902
        %4991 = vst.msk [vmem:[%s433 + $0x48] sm:$0xff] %vm4981, %v4904
        %4992 = vst.msk [vmem:[%s433 + $0x50] sm:$0xff] %vm4981, %v4906
        %4993 = vst.msk [vmem:[%s433 + $0x58] sm:$0xff] %vm4981, %v4908
        %4994 = vst.msk [vmem:[%s433 + $0x60] sm:$0xff] %vm4981, %v4910
        %4995 = vst.msk [vmem:[%s433 + $0x68] sm:$0xff] %vm4981, %v4912
        %4996 = vst.msk [vmem:[%s433 + $0x70] sm:$0xff] %vm4981, %v4914
        %4997 = vst.msk [vmem:[%s433 + $0x78] sm:$0xff] %vm4981, %v4916
        %4998 = vst.msk [vmem:[%s433 + $0x80] sm:$0xff] %vm4981, %v4918
        %4999 = vst.msk [vmem:[%s433 + $0x88] sm:$0xff] %vm4981, %v4920
        %5000 = vst.msk [vmem:[%s433 + $0x90] sm:$0xff] %vm4981, %v4922
        %5001 = vst.msk [vmem:[%s433 + $0x98] sm:$0xff] %vm4981, %v4924
        %5002 = vst.msk [vmem:[%s433 + $0xa0] sm:$0xff] %vm4981, %v4926
        %5003 = vst.msk [vmem:[%s433 + $0xa8] sm:$0xff] %vm4981, %v4928
        %5004 = vst.msk [vmem:[%s433 + $0xb0] sm:$0xff] %vm4981, %v4930
        %5005 = vst.msk [vmem:[%s433 + $0xb8] sm:$0xff] %vm4981, %v4932
        %5006 = vst.msk [vmem:[%s433 + $0xc0] sm:$0xff] %vm4981, %v4934
        %5007 = vst.msk [vmem:[%s433 + $0xc8] sm:$0xff] %vm4981, %v4936
        %5008 = vst.msk [vmem:[%s433 + $0xd0] sm:$0xff] %vm4981, %v4938
        %5009 = vst.msk [vmem:[%s433 + $0xd8] sm:$0xff] %vm4981, %v4940
        %5010 = vst.msk [vmem:[%s433 + $0xe0] sm:$0xff] %vm4981, %v4942
        %5011 = vst.msk [vmem:[%s433 + $0xe8] sm:$0xff] %vm4981, %v4944
        %5012 = vst.msk [vmem:[%s433 + $0xf0] sm:$0xff] %vm4981, %v4946
        %5013 = vst.msk [vmem:[%s433 + $0xf8] sm:$0xff] %vm4981, %v4948
        %5014 = vst.msk [vmem:[#allocation4] sm:$0xff] %vm489, -inf
        %5015 = vst.msk [vmem:[#allocation4 + $0x8] sm:$0xff] %vm489, -inf
        %5016 = vst.msk [vmem:[#allocation4 + $0x10] sm:$0x3] %vm848, -inf
        %5017 = vst.msk [vmem:[#allocation4 + $0x18] sm:$0xff] %vm489, -inf
        %5018 = vst.msk [vmem:[#allocation4 + $0x20] sm:$0xff] %vm489, -inf
        %5019 = vst.msk [vmem:[#allocation4 + $0x28] sm:$0x3] %vm848, -inf
        %5020 = vst.msk [vmem:[#allocation4 + $0x30] sm:$0xff] %vm489, -inf
        %5021 = vst.msk [vmem:[#allocation4 + $0x38] sm:$0xff] %vm489, -inf
        %5022 = vst.msk [vmem:[#allocation4 + $0x40] sm:$0x3] %vm848, -inf
        %5023 = vst.msk [vmem:[#allocation4 + $0x48] sm:$0xff] %vm489, -inf
        %5024 = vst.msk [vmem:[#allocation4 + $0x50] sm:$0xff] %vm489, -inf
        %5025 = vst.msk [vmem:[#allocation4 + $0x58] sm:$0x3] %vm848, -inf
        %5026 = vst.msk [vmem:[#allocation4 + $0x60] sm:$0xff] %vm489, -inf
        %5027 = vst.msk [vmem:[#allocation4 + $0x68] sm:$0xff] %vm489, -inf
        %5028 = vst.msk [vmem:[#allocation4 + $0x70] sm:$0x3] %vm848, -inf
        %5029 = vst.msk [vmem:[#allocation4 + $0x78] sm:$0xff] %vm489, -inf
        %5030 = vst.msk [vmem:[#allocation4 + $0x80] sm:$0xff] %vm489, -inf
        %5031 = vst.msk [vmem:[#allocation4 + $0x88] sm:$0x3] %vm848, -inf
        %5032 = vst.msk [vmem:[#allocation4 + $0x90] sm:$0xff] %vm489, -inf
        %5033 = vst.msk [vmem:[#allocation4 + $0x98] sm:$0xff] %vm489, -inf
        %5034 = vst.msk [vmem:[#allocation4 + $0xa0] sm:$0x3] %vm848, -inf
        %5035 = vst.msk [vmem:[#allocation4 + $0xa8] sm:$0xff] %vm489, -inf
        %5036 = vst.msk [vmem:[#allocation4 + $0xb0] sm:$0xff] %vm489, -inf
        %5037 = vst.msk [vmem:[#allocation4 + $0xb8] sm:$0x3] %vm848, -inf
        %5038 = vst.msk [vmem:[#allocation4 + $0xc0] sm:$0xff] %vm489, -inf
        %5039 = vst.msk [vmem:[#allocation4 + $0xc8] sm:$0xff] %vm489, -inf
        %5040 = vst.msk [vmem:[#allocation4 + $0xd0] sm:$0x3] %vm848, -inf
        %5041 = vst.msk [vmem:[#allocation4 + $0xd8] sm:$0xff] %vm489, -inf
        %5042 = vst.msk [vmem:[#allocation4 + $0xe0] sm:$0xff] %vm489, -inf
        %5043 = vst.msk [vmem:[#allocation4 + $0xe8] sm:$0x3] %vm848, -inf
        %5044 = vst.msk [vmem:[#allocation4 + $0xf0] sm:$0xff] %vm489, -inf
        %5045 = vst.msk [vmem:[#allocation4 + $0xf8] sm:$0xff] %vm489, -inf
        %5046 = vst.msk [vmem:[#allocation4 + $0x100] sm:$0x3] %vm848, -inf
        %5047 = vst.msk [vmem:[#allocation4 + $0x108] sm:$0xff] %vm489, -inf
        %5048 = vst.msk [vmem:[#allocation4 + $0x110] sm:$0xff] %vm489, -inf
        %5049 = vst.msk [vmem:[#allocation4 + $0x118] sm:$0x3] %vm848, -inf
        %5050 = vst.msk [vmem:[#allocation4 + $0x120] sm:$0xff] %vm489, -inf
        %5051 = vst.msk [vmem:[#allocation4 + $0x128] sm:$0xff] %vm489, -inf
        %5052 = vst.msk [vmem:[#allocation4 + $0x130] sm:$0x3] %vm848, -inf
        %5053 = vst.msk [vmem:[#allocation4 + $0x138] sm:$0xff] %vm489, -inf
        %5054 = vst.msk [vmem:[#allocation4 + $0x140] sm:$0xff] %vm489, -inf
        %5055 = vst.msk [vmem:[#allocation4 + $0x148] sm:$0x3] %vm848, -inf
        %5056 = vst.msk [vmem:[#allocation4 + $0x150] sm:$0xff] %vm489, -inf
        %5057 = vst.msk [vmem:[#allocation4 + $0x158] sm:$0xff] %vm489, -inf
        %5058 = vst.msk [vmem:[#allocation4 + $0x160] sm:$0x3] %vm848, -inf
        %5059 = vst.msk [vmem:[#allocation4 + $0x168] sm:$0xff] %vm489, -inf
        %5060 = vst.msk [vmem:[#allocation4 + $0x170] sm:$0xff] %vm489, -inf
        %5061 = vst.msk [vmem:[#allocation4 + $0x178] sm:$0x3] %vm848, -inf
        %5062 = vst.msk [vmem:[#allocation4 + $0x180] sm:$0xff] %vm489, -inf
        %5063 = vst.msk [vmem:[#allocation4 + $0x188] sm:$0xff] %vm489, -inf
        %5064 = vst.msk [vmem:[#allocation4 + $0x190] sm:$0x3] %vm848, -inf
        %5065 = vst.msk [vmem:[#allocation4 + $0x198] sm:$0xff] %vm489, -inf
        %5066 = vst.msk [vmem:[#allocation4 + $0x1a0] sm:$0xff] %vm489, -inf
        %5067 = vst.msk [vmem:[#allocation4 + $0x1a8] sm:$0x3] %vm848, -inf
        %s5068 = scalar_lea.vmem [#allocation4], 24
        %5069 = vst.msk [vmem:[%s5068 + $0x1] sm:$0xff] %vm489, %v440
        %5070 = vst.msk [vmem:[%s5068 + $0x9] sm:$0xff] %vm489, %v441
        %5071 = vst.msk [vmem:[%s5068 + $0x19] sm:$0xff] %vm489, %v442
        %5072 = vst.msk [vmem:[%s5068 + $0x21] sm:$0xff] %vm489, %v443
        %5073 = vst.msk [vmem:[%s5068 + $0x31] sm:$0xff] %vm489, %v444
        %5074 = vst.msk [vmem:[%s5068 + $0x39] sm:$0xff] %vm489, %v445
        %5075 = vst.msk [vmem:[%s5068 + $0x49] sm:$0xff] %vm489, %v446
        %5076 = vst.msk [vmem:[%s5068 + $0x51] sm:$0xff] %vm489, %v447
        %5077 = vst.msk [vmem:[%s5068 + $0x61] sm:$0xff] %vm489, %v448
        %5078 = vst.msk [vmem:[%s5068 + $0x69] sm:$0xff] %vm489, %v449
        %5079 = vst.msk [vmem:[%s5068 + $0x79] sm:$0xff] %vm489, %v450
        %5080 = vst.msk [vmem:[%s5068 + $0x81] sm:$0xff] %vm489, %v451
        %5081 = vst.msk [vmem:[%s5068 + $0x91] sm:$0xff] %vm489, %v452
        %5082 = vst.msk [vmem:[%s5068 + $0x99] sm:$0xff] %vm489, %v453
        %5083 = vst.msk [vmem:[%s5068 + $0xa9] sm:$0xff] %vm489, %v454
        %5084 = vst.msk [vmem:[%s5068 + $0xb1] sm:$0xff] %vm489, %v455
        %5085 = vst.msk [vmem:[%s5068 + $0xc1] sm:$0xff] %vm489, %v456
        %5086 = vst.msk [vmem:[%s5068 + $0xc9] sm:$0xff] %vm489, %v457
        %5087 = vst.msk [vmem:[%s5068 + $0xd9] sm:$0xff] %vm489, %v458
        %5088 = vst.msk [vmem:[%s5068 + $0xe1] sm:$0xff] %vm489, %v459
        %5089 = vst.msk [vmem:[%s5068 + $0xf1] sm:$0xff] %vm489, %v460
        %5090 = vst.msk [vmem:[%s5068 + $0xf9] sm:$0xff] %vm489, %v461
        %5091 = vst.msk [vmem:[%s5068 + $0x109] sm:$0xff] %vm489, %v462
        %5092 = vst.msk [vmem:[%s5068 + $0x111] sm:$0xff] %vm489, %v463
        %5093 = vst.msk [vmem:[%s5068 + $0x121] sm:$0xff] %vm489, %v464
        %5094 = vst.msk [vmem:[%s5068 + $0x129] sm:$0xff] %vm489, %v465
        %5095 = vst.msk [vmem:[%s5068 + $0x139] sm:$0xff] %vm489, %v466
        %5096 = vst.msk [vmem:[%s5068 + $0x141] sm:$0xff] %vm489, %v467
        %5097 = vst.msk [vmem:[%s5068 + $0x151] sm:$0xff] %vm489, %v468
        %5098 = vst.msk [vmem:[%s5068 + $0x159] sm:$0xff] %vm489, %v469
        %5099 = vst.msk [vmem:[%s5068 + $0x169] sm:$0xff] %vm489, %v470
        %5100 = vst.msk [vmem:[%s5068 + $0x171] sm:$0xff] %vm489, %v471
        %v5101 = vld [vmem:[#allocation4] sm:$0xff]
        %v5102 = vld [vmem:[#allocation4 + $0x8] sm:$0xff]
        %v5103 = vld [vmem:[#allocation4 + $0x10] sm:$0x3]
        %v5104 = vld [vmem:[#allocation4 + $0x18] sm:$0xff]
        %v5105 = vld [vmem:[#allocation4 + $0x20] sm:$0xff]
        %v5106 = vld [vmem:[#allocation4 + $0x28] sm:$0x3]
        %v5107 = vld [vmem:[#allocation4 + $0x30] sm:$0xff]
        %v5108 = vld [vmem:[#allocation4 + $0x38] sm:$0xff]
        %v5109 = vld [vmem:[#allocation4 + $0x40] sm:$0x3]
        %v5110 = vld [vmem:[#allocation4 + $0x48] sm:$0xff]
        %v5111 = vld [vmem:[#allocation4 + $0x50] sm:$0xff]
        %v5112 = vld [vmem:[#allocation4 + $0x58] sm:$0x3]
        %v5113 = vld [vmem:[#allocation4 + $0x60] sm:$0xff]
        %v5114 = vld [vmem:[#allocation4 + $0x68] sm:$0xff]
        %v5115 = vld [vmem:[#allocation4 + $0x70] sm:$0x3]
        %v5116 = vld [vmem:[#allocation4 + $0x78] sm:$0xff]
        %v5117 = vld [vmem:[#allocation4 + $0x80] sm:$0xff]
        %v5118 = vld [vmem:[#allocation4 + $0x88] sm:$0x3]
        %v5119 = vld [vmem:[#allocation4 + $0x90] sm:$0xff]
        %v5120 = vld [vmem:[#allocation4 + $0x98] sm:$0xff]
        %v5121 = vld [vmem:[#allocation4 + $0xa0] sm:$0x3]
        %v5122 = vld [vmem:[#allocation4 + $0xa8] sm:$0xff]
        %v5123 = vld [vmem:[#allocation4 + $0xb0] sm:$0xff]
        %v5124 = vld [vmem:[#allocation4 + $0xb8] sm:$0x3]
        %v5125 = vld [vmem:[#allocation4 + $0xc0] sm:$0xff]
        %v5126 = vld [vmem:[#allocation4 + $0xc8] sm:$0xff]
        %v5127 = vld [vmem:[#allocation4 + $0xd0] sm:$0x3]
        %v5128 = vld [vmem:[#allocation4 + $0xd8] sm:$0xff]
        %v5129 = vld [vmem:[#allocation4 + $0xe0] sm:$0xff]
        %v5130 = vld [vmem:[#allocation4 + $0xe8] sm:$0x3]
        %v5131 = vld [vmem:[#allocation4 + $0xf0] sm:$0xff]
        %v5132 = vld [vmem:[#allocation4 + $0xf8] sm:$0xff]
        %v5133 = vld [vmem:[#allocation4 + $0x100] sm:$0x3]
        %v5134 = vld [vmem:[#allocation4 + $0x108] sm:$0xff]
        %v5135 = vld [vmem:[#allocation4 + $0x110] sm:$0xff]
        %v5136 = vld [vmem:[#allocation4 + $0x118] sm:$0x3]
        %v5137 = vld [vmem:[#allocation4 + $0x120] sm:$0xff]
        %v5138 = vld [vmem:[#allocation4 + $0x128] sm:$0xff]
        %v5139 = vld [vmem:[#allocation4 + $0x130] sm:$0x3]
        %v5140 = vld [vmem:[#allocation4 + $0x138] sm:$0xff]
        %v5141 = vld [vmem:[#allocation4 + $0x140] sm:$0xff]
        %v5142 = vld [vmem:[#allocation4 + $0x148] sm:$0x3]
        %v5143 = vld [vmem:[#allocation4 + $0x150] sm:$0xff]
        %v5144 = vld [vmem:[#allocation4 + $0x158] sm:$0xff]
        %v5145 = vld [vmem:[#allocation4 + $0x160] sm:$0x3]
        %v5146 = vld [vmem:[#allocation4 + $0x168] sm:$0xff]
        %v5147 = vld [vmem:[#allocation4 + $0x170] sm:$0xff]
        %v5148 = vld [vmem:[#allocation4 + $0x178] sm:$0x3]
        %v5149 = vld [vmem:[#allocation4 + $0x180] sm:$0xff]
        %v5150 = vld [vmem:[#allocation4 + $0x188] sm:$0xff]
        %v5151 = vld [vmem:[#allocation4 + $0x190] sm:$0x3]
        %v5152 = vld [vmem:[#allocation4 + $0x198] sm:$0xff]
        %v5153 = vld [vmem:[#allocation4 + $0x1a0] sm:$0xff]
        %v5154 = vld [vmem:[#allocation4 + $0x1a8] sm:$0x3]
        %v5209 = vrot.slane %v5101, 1
        %v5210 = vrot.slane %v5102, 1
        %v5211 = vsel %vm1465, %v5209, %v5210
        %v5212 = vrot.slane %v5103, 1
        %v5213 = vsel %vm1465, %v5210, %v5212
        %v5214 = vrot.slane %v5104, 1
        %v5215 = vrot.slane %v5105, 1
        %v5216 = vsel %vm1465, %v5214, %v5215
        %v5217 = vrot.slane %v5106, 1
        %v5218 = vsel %vm1465, %v5215, %v5217
        %v5219 = vrot.slane %v5107, 1
        %v5220 = vrot.slane %v5108, 1
        %v5221 = vsel %vm1465, %v5219, %v5220
        %v5222 = vrot.slane %v5109, 1
        %v5223 = vsel %vm1465, %v5220, %v5222
        %v5224 = vrot.slane %v5110, 1
        %v5225 = vrot.slane %v5111, 1
        %v5226 = vsel %vm1465, %v5224, %v5225
        %v5227 = vrot.slane %v5112, 1
        %v5228 = vsel %vm1465, %v5225, %v5227
        %v5229 = vrot.slane %v5113, 1
        %v5230 = vrot.slane %v5114, 1
        %v5231 = vsel %vm1465, %v5229, %v5230
        %v5232 = vrot.slane %v5115, 1
        %v5233 = vsel %vm1465, %v5230, %v5232
        %v5234 = vrot.slane %v5116, 1
        %v5235 = vrot.slane %v5117, 1
        %v5236 = vsel %vm1465, %v5234, %v5235
        %v5237 = vrot.slane %v5118, 1
        %v5238 = vsel %vm1465, %v5235, %v5237
        %v5239 = vrot.slane %v5119, 1
        %v5240 = vrot.slane %v5120, 1
        %v5241 = vsel %vm1465, %v5239, %v5240
        %v5242 = vrot.slane %v5121, 1
        %v5243 = vsel %vm1465, %v5240, %v5242
        %v5244 = vrot.slane %v5122, 1
        %v5245 = vrot.slane %v5123, 1
        %v5246 = vsel %vm1465, %v5244, %v5245
        %v5247 = vrot.slane %v5124, 1
        %v5248 = vsel %vm1465, %v5245, %v5247
        %v5249 = vrot.slane %v5125, 1
        %v5250 = vrot.slane %v5126, 1
        %v5251 = vsel %vm1465, %v5249, %v5250
        %v5252 = vrot.slane %v5127, 1
        %v5253 = vsel %vm1465, %v5250, %v5252
        %v5254 = vrot.slane %v5128, 1
        %v5255 = vrot.slane %v5129, 1
        %v5256 = vsel %vm1465, %v5254, %v5255
        %v5257 = vrot.slane %v5130, 1
        %v5258 = vsel %vm1465, %v5255, %v5257
        %v5259 = vrot.slane %v5131, 1
        %v5260 = vrot.slane %v5132, 1
        %v5261 = vsel %vm1465, %v5259, %v5260
        %v5262 = vrot.slane %v5133, 1
        %v5263 = vsel %vm1465, %v5260, %v5262
        %v5264 = vrot.slane %v5134, 1
        %v5265 = vrot.slane %v5135, 1
        %v5266 = vsel %vm1465, %v5264, %v5265
        %v5267 = vrot.slane %v5136, 1
        %v5268 = vsel %vm1465, %v5265, %v5267
        %v5269 = vrot.slane %v5137, 1
        %v5270 = vrot.slane %v5138, 1
        %v5271 = vsel %vm1465, %v5269, %v5270
        %v5272 = vrot.slane %v5139, 1
        %v5273 = vsel %vm1465, %v5270, %v5272
        %v5274 = vrot.slane %v5140, 1
        %v5275 = vrot.slane %v5141, 1
        %v5276 = vsel %vm1465, %v5274, %v5275
        %v5277 = vrot.slane %v5142, 1
        %v5278 = vsel %vm1465, %v5275, %v5277
        %v5279 = vrot.slane %v5143, 1
        %v5280 = vrot.slane %v5144, 1
        %v5281 = vsel %vm1465, %v5279, %v5280
        %v5282 = vrot.slane %v5145, 1
        %v5283 = vsel %vm1465, %v5280, %v5282
        %v5284 = vrot.slane %v5146, 1
        %v5285 = vrot.slane %v5147, 1
        %v5286 = vsel %vm1465, %v5284, %v5285
        %v5287 = vrot.slane %v5148, 1
        %v5288 = vsel %vm1465, %v5285, %v5287
        %v5289 = vrot.slane %v5149, 1
        %v5290 = vrot.slane %v5150, 1
        %v5291 = vsel %vm1465, %v5289, %v5290
        %v5292 = vrot.slane %v5151, 1
        %v5293 = vsel %vm1465, %v5290, %v5292
        %v5294 = vrot.slane %v5152, 1
        %v5295 = vrot.slane %v5153, 1
        %v5296 = vsel %vm1465, %v5294, %v5295
        %v5297 = vrot.slane %v5154, 1
        %v5298 = vsel %vm1465, %v5295, %v5297
        %v5335 = vmax.f32 %v5101, %v5211
        %v5336 = vmax.f32 %v5102, %v5213
        %v5337 = vmax.f32 %v5104, %v5216
        %v5338 = vmax.f32 %v5105, %v5218
        %v5339 = vmax.f32 %v5107, %v5221
        %v5340 = vmax.f32 %v5108, %v5223
        %v5341 = vmax.f32 %v5110, %v5226
        %v5342 = vmax.f32 %v5111, %v5228
        %v5343 = vmax.f32 %v5113, %v5231
        %v5344 = vmax.f32 %v5114, %v5233
        %v5345 = vmax.f32 %v5116, %v5236
        %v5346 = vmax.f32 %v5117, %v5238
        %v5347 = vmax.f32 %v5119, %v5241
        %v5348 = vmax.f32 %v5120, %v5243
        %v5349 = vmax.f32 %v5122, %v5246
        %v5350 = vmax.f32 %v5123, %v5248
        %v5351 = vmax.f32 %v5125, %v5251
        %v5352 = vmax.f32 %v5126, %v5253
        %v5353 = vmax.f32 %v5128, %v5256
        %v5354 = vmax.f32 %v5129, %v5258
        %v5355 = vmax.f32 %v5131, %v5261
        %v5356 = vmax.f32 %v5132, %v5263
        %v5357 = vmax.f32 %v5134, %v5266
        %v5358 = vmax.f32 %v5135, %v5268
        %v5359 = vmax.f32 %v5137, %v5271
        %v5360 = vmax.f32 %v5138, %v5273
        %v5361 = vmax.f32 %v5140, %v5276
        %v5362 = vmax.f32 %v5141, %v5278
        %v5363 = vmax.f32 %v5143, %v5281
        %v5364 = vmax.f32 %v5144, %v5283
        %v5365 = vmax.f32 %v5146, %v5286
        %v5366 = vmax.f32 %v5147, %v5288
        %v5367 = vmax.f32 %v5149, %v5291
        %v5368 = vmax.f32 %v5150, %v5293
        %v5369 = vmax.f32 %v5152, %v5296
        %v5370 = vmax.f32 %v5153, %v5298
        %v5371 = vrot.slane %v5101, 2
        %v5372 = vrot.slane %v5102, 2
        %v5373 = vsel %vm1931, %v5371, %v5372
        %v5374 = vrot.slane %v5103, 2
        %v5375 = vsel %vm1931, %v5372, %v5374
        %v5376 = vrot.slane %v5104, 2
        %v5377 = vrot.slane %v5105, 2
        %v5378 = vsel %vm1931, %v5376, %v5377
        %v5379 = vrot.slane %v5106, 2
        %v5380 = vsel %vm1931, %v5377, %v5379
        %v5381 = vrot.slane %v5107, 2
        %v5382 = vrot.slane %v5108, 2
        %v5383 = vsel %vm1931, %v5381, %v5382
        %v5384 = vrot.slane %v5109, 2
        %v5385 = vsel %vm1931, %v5382, %v5384
        %v5386 = vrot.slane %v5110, 2
        %v5387 = vrot.slane %v5111, 2
        %v5388 = vsel %vm1931, %v5386, %v5387
        %v5389 = vrot.slane %v5112, 2
        %v5390 = vsel %vm1931, %v5387, %v5389
        %v5391 = vrot.slane %v5113, 2
        %v5392 = vrot.slane %v5114, 2
        %v5393 = vsel %vm1931, %v5391, %v5392
        %v5394 = vrot.slane %v5115, 2
        %v5395 = vsel %vm1931, %v5392, %v5394
        %v5396 = vrot.slane %v5116, 2
        %v5397 = vrot.slane %v5117, 2
        %v5398 = vsel %vm1931, %v5396, %v5397
        %v5399 = vrot.slane %v5118, 2
        %v5400 = vsel %vm1931, %v5397, %v5399
        %v5401 = vrot.slane %v5119, 2
        %v5402 = vrot.slane %v5120, 2
        %v5403 = vsel %vm1931, %v5401, %v5402
        %v5404 = vrot.slane %v5121, 2
        %v5405 = vsel %vm1931, %v5402, %v5404
        %v5406 = vrot.slane %v5122, 2
        %v5407 = vrot.slane %v5123, 2
        %v5408 = vsel %vm1931, %v5406, %v5407
        %v5409 = vrot.slane %v5124, 2
        %v5410 = vsel %vm1931, %v5407, %v5409
        %v5411 = vrot.slane %v5125, 2
        %v5412 = vrot.slane %v5126, 2
        %v5413 = vsel %vm1931, %v5411, %v5412
        %v5414 = vrot.slane %v5127, 2
        %v5415 = vsel %vm1931, %v5412, %v5414
        %v5416 = vrot.slane %v5128, 2
        %v5417 = vrot.slane %v5129, 2
        %v5418 = vsel %vm1931, %v5416, %v5417
        %v5419 = vrot.slane %v5130, 2
        %v5420 = vsel %vm1931, %v5417, %v5419
        %v5421 = vrot.slane %v5131, 2
        %v5422 = vrot.slane %v5132, 2
        %v5423 = vsel %vm1931, %v5421, %v5422
        %v5424 = vrot.slane %v5133, 2
        %v5425 = vsel %vm1931, %v5422, %v5424
        %v5426 = vrot.slane %v5134, 2
        %v5427 = vrot.slane %v5135, 2
        %v5428 = vsel %vm1931, %v5426, %v5427
        %v5429 = vrot.slane %v5136, 2
        %v5430 = vsel %vm1931, %v5427, %v5429
        %v5431 = vrot.slane %v5137, 2
        %v5432 = vrot.slane %v5138, 2
        %v5433 = vsel %vm1931, %v5431, %v5432
        %v5434 = vrot.slane %v5139, 2
        %v5435 = vsel %vm1931, %v5432, %v5434
        %v5436 = vrot.slane %v5140, 2
        %v5437 = vrot.slane %v5141, 2
        %v5438 = vsel %vm1931, %v5436, %v5437
        %v5439 = vrot.slane %v5142, 2
        %v5440 = vsel %vm1931, %v5437, %v5439
        %v5441 = vrot.slane %v5143, 2
        %v5442 = vrot.slane %v5144, 2
        %v5443 = vsel %vm1931, %v5441, %v5442
        %v5444 = vrot.slane %v5145, 2
        %v5445 = vsel %vm1931, %v5442, %v5444
        %v5446 = vrot.slane %v5146, 2
        %v5447 = vrot.slane %v5147, 2
        %v5448 = vsel %vm1931, %v5446, %v5447
        %v5449 = vrot.slane %v5148, 2
        %v5450 = vsel %vm1931, %v5447, %v5449
        %v5451 = vrot.slane %v5149, 2
        %v5452 = vrot.slane %v5150, 2
        %v5453 = vsel %vm1931, %v5451, %v5452
        %v5454 = vrot.slane %v5151, 2
        %v5455 = vsel %vm1931, %v5452, %v5454
        %v5456 = vrot.slane %v5152, 2
        %v5457 = vrot.slane %v5153, 2
        %v5458 = vsel %vm1931, %v5456, %v5457
        %v5459 = vrot.slane %v5154, 2
        %v5460 = vsel %vm1931, %v5457, %v5459
        %v5497 = vmax.f32 %v5335, %v5373
        %v5498 = vmax.f32 %v5336, %v5375
        %v5499 = vmax.f32 %v5337, %v5378
        %v5500 = vmax.f32 %v5338, %v5380
        %v5501 = vmax.f32 %v5339, %v5383
        %v5502 = vmax.f32 %v5340, %v5385
        %v5503 = vmax.f32 %v5341, %v5388
        %v5504 = vmax.f32 %v5342, %v5390
        %v5505 = vmax.f32 %v5343, %v5393
        %v5506 = vmax.f32 %v5344, %v5395
        %v5507 = vmax.f32 %v5345, %v5398
        %v5508 = vmax.f32 %v5346, %v5400
        %v5509 = vmax.f32 %v5347, %v5403
        %v5510 = vmax.f32 %v5348, %v5405
        %v5511 = vmax.f32 %v5349, %v5408
        %v5512 = vmax.f32 %v5350, %v5410
        %v5513 = vmax.f32 %v5351, %v5413
        %v5514 = vmax.f32 %v5352, %v5415
        %v5515 = vmax.f32 %v5353, %v5418
        %v5516 = vmax.f32 %v5354, %v5420
        %v5517 = vmax.f32 %v5355, %v5423
        %v5518 = vmax.f32 %v5356, %v5425
        %v5519 = vmax.f32 %v5357, %v5428
        %v5520 = vmax.f32 %v5358, %v5430
        %v5521 = vmax.f32 %v5359, %v5433
        %v5522 = vmax.f32 %v5360, %v5435
        %v5523 = vmax.f32 %v5361, %v5438
        %v5524 = vmax.f32 %v5362, %v5440
        %v5525 = vmax.f32 %v5363, %v5443
        %v5526 = vmax.f32 %v5364, %v5445
        %v5527 = vmax.f32 %v5365, %v5448
        %v5528 = vmax.f32 %v5366, %v5450
        %v5529 = vmax.f32 %v5367, %v5453
        %v5530 = vmax.f32 %v5368, %v5455
        %v5531 = vmax.f32 %v5369, %v5458
        %v5532 = vmax.f32 %v5370, %v5460
        %v5533 = vmax.f32 %v5497, %v5499
        %v5534 = vmax.f32 %v5498, %v5500
        %v5535 = vmax.f32 %v5499, %v5501
        %v5536 = vmax.f32 %v5500, %v5502
        %v5537 = vmax.f32 %v5501, %v5503
        %v5538 = vmax.f32 %v5502, %v5504
        %v5539 = vmax.f32 %v5503, %v5505
        %v5540 = vmax.f32 %v5504, %v5506
        %v5541 = vmax.f32 %v5505, %v5507
        %v5542 = vmax.f32 %v5506, %v5508
        %v5543 = vmax.f32 %v5507, %v5509
        %v5544 = vmax.f32 %v5508, %v5510
        %v5545 = vmax.f32 %v5509, %v5511
        %v5546 = vmax.f32 %v5510, %v5512
        %v5547 = vmax.f32 %v5511, %v5513
        %v5548 = vmax.f32 %v5512, %v5514
        %v5549 = vmax.f32 %v5513, %v5515
        %v5550 = vmax.f32 %v5514, %v5516
        %v5551 = vmax.f32 %v5515, %v5517
        %v5552 = vmax.f32 %v5516, %v5518
        %v5553 = vmax.f32 %v5517, %v5519
        %v5554 = vmax.f32 %v5518, %v5520
        %v5555 = vmax.f32 %v5519, %v5521
        %v5556 = vmax.f32 %v5520, %v5522
        %v5557 = vmax.f32 %v5521, %v5523
        %v5558 = vmax.f32 %v5522, %v5524
        %v5559 = vmax.f32 %v5523, %v5525
        %v5560 = vmax.f32 %v5524, %v5526
        %v5561 = vmax.f32 %v5525, %v5527
        %v5562 = vmax.f32 %v5526, %v5528
        %v5563 = vmax.f32 %v5527, %v5529
        %v5564 = vmax.f32 %v5528, %v5530
        %v5565 = vmax.f32 %v5533, %v5501
        %v5566 = vmax.f32 %v5534, %v5502
        %v5567 = vmax.f32 %v5535, %v5503
        %v5568 = vmax.f32 %v5536, %v5504
        %v5569 = vmax.f32 %v5537, %v5505
        %v5570 = vmax.f32 %v5538, %v5506
        %v5571 = vmax.f32 %v5539, %v5507
        %v5572 = vmax.f32 %v5540, %v5508
        %v5573 = vmax.f32 %v5541, %v5509
        %v5574 = vmax.f32 %v5542, %v5510
        %v5575 = vmax.f32 %v5543, %v5511
        %v5576 = vmax.f32 %v5544, %v5512
        %v5577 = vmax.f32 %v5545, %v5513
        %v5578 = vmax.f32 %v5546, %v5514
        %v5579 = vmax.f32 %v5547, %v5515
        %v5580 = vmax.f32 %v5548, %v5516
        %v5581 = vmax.f32 %v5549, %v5517
        %v5582 = vmax.f32 %v5550, %v5518
        %v5583 = vmax.f32 %v5551, %v5519
        %v5584 = vmax.f32 %v5552, %v5520
        %v5585 = vmax.f32 %v5553, %v5521
        %v5586 = vmax.f32 %v5554, %v5522
        %v5587 = vmax.f32 %v5555, %v5523
        %v5588 = vmax.f32 %v5556, %v5524
        %v5589 = vmax.f32 %v5557, %v5525
        %v5590 = vmax.f32 %v5558, %v5526
        %v5591 = vmax.f32 %v5559, %v5527
        %v5592 = vmax.f32 %v5560, %v5528
        %v5593 = vmax.f32 %v5561, %v5529
        %v5594 = vmax.f32 %v5562, %v5530
        %v5595 = vmax.f32 %v5563, %v5531
        %v5596 = vmax.f32 %v5564, %v5532
        %v5597 = vpack.c.bf16 %v5566, %v5565
        %v5598 = vpack.c.bf16 %v5568, %v5567
        %v5599 = vpack.c.bf16 %v5570, %v5569
        %v5600 = vpack.c.bf16 %v5572, %v5571
        %v5601 = vpack.c.bf16 %v5574, %v5573
        %v5602 = vpack.c.bf16 %v5576, %v5575
        %v5603 = vpack.c.bf16 %v5578, %v5577
        %v5604 = vpack.c.bf16 %v5580, %v5579
        %v5605 = vpack.c.bf16 %v5582, %v5581
        %v5606 = vpack.c.bf16 %v5584, %v5583
        %v5607 = vpack.c.bf16 %v5586, %v5585
        %v5608 = vpack.c.bf16 %v5588, %v5587
        %v5609 = vpack.c.bf16 %v5590, %v5589
        %v5610 = vpack.c.bf16 %v5592, %v5591
        %v5611 = vpack.c.bf16 %v5594, %v5593
        %v5612 = vpack.c.bf16 %v5596, %v5595
        %v5613 = vld [vmem:[%s10] sm:$0xf]
        %v5615 = vsel %vm489, %v5597, 0
        %v5618 = vsel %vm489, %v5598, 0
        %v5621 = vsel %vm489, %v5599, 0
        %v5624 = vsel %vm489, %v5600, 0
        %v5627 = vsel %vm489, %v5601, 0
        %v5630 = vsel %vm489, %v5602, 0
        %v5633 = vsel %vm489, %v5603, 0
        %v5636 = vsel %vm489, %v5604, 0
        %v5639 = vsel %vm489, %v5605, 0
        %v5642 = vsel %vm489, %v5606, 0
        %v5645 = vsel %vm489, %v5607, 0
        %v5648 = vsel %vm489, %v5608, 0
        %v5651 = vsel %vm489, %v5609, 0
        %v5654 = vsel %vm489, %v5610, 0
        %v5657 = vsel %vm489, %v5611, 0
        %v5660 = vsel %vm489, %v5612, 0
        %v5663 = vsel %vm538, %v5613, 0
        %5665 = vmatprep.subr.bf16.mxu0 0
        %5666 = vmatpush1.bf16.msra.mxu0 0
        %5667 = vmatprep.subr.bf16.mxu0 0
        %5668 = vmatpush1.bf16.msra.mxu0 0
        %5669 = vmatprep.subr.bf16.mxu0 0
        %5670 = vmatpush1.bf16.msra.mxu0 0
        %5671 = vmatprep.subr.bf16.mxu0 0
        %5672 = vmatpush1.bf16.msra.mxu0 0
        %5673 = vmatprep.subr.bf16.mxu0 0
        %5674 = vmatpush1.bf16.msra.mxu0 0
        %5675 = vmatprep.subr.bf16.mxu0 0
        %5676 = vmatpush1.bf16.msra.mxu0 0
        %5677 = vmatprep.subr.bf16.mxu0 0
        %5678 = vmatpush1.bf16.msra.mxu0 0
        %5679 = vmatprep.subr.bf16.mxu0 0
        %5680 = vmatpush1.bf16.msra.mxu0 %v5663
        %5681 = vmatprep.subr.bf16.mxu0 0
        %5682 = vmatpush2.bf16.msra.mxu0 0
        %5683 = vmatprep.subr.bf16.mxu0 0
        %5684 = vmatpush2.bf16.msra.mxu0 0
        %5685 = vmatprep.subr.bf16.mxu0 0
        %5686 = vmatpush2.bf16.msra.mxu0 0
        %5687 = vmatprep.subr.bf16.mxu0 0
        %5688 = vmatpush2.bf16.msra.mxu0 0
        %5689 = vmatprep.subr.bf16.mxu0 0
        %5690 = vmatpush2.bf16.msra.mxu0 0
        %5691 = vmatprep.subr.bf16.mxu0 0
        %5692 = vmatpush2.bf16.msra.mxu0 0
        %5693 = vmatprep.subr.bf16.mxu0 0
        %5694 = vmatpush2.bf16.msra.mxu0 0
        %5695 = vmatprep.subr.bf16.mxu0 0
        %5696 = vmatpush2.bf16.msra.mxu0 0
        %5697 = vmatprep.mubr.bf16.mxu0 0
        %5698 = vmatmul.mubr.bf16.gmra.mxu0 %v5615
        %v5699 = vpop.f32.mrf.mxu0
        %v5700 = vadd.f32 0.0, %v5699
        %v5701 = vpop.f32.mrf.mxu0
        %v5702 = vpop.f32.mrf.mxu0
        %v5703 = vadd.f32 0.0, %v5702
        %v5704 = vpop.f32.mrf.mxu0
        %5705 = vmatprep.mubr.bf16.mxu0 0
        %5706 = vmatmul.mubr.bf16.gmra.mxu0 %v5618
        %v5707 = vpop.f32.mrf.mxu0
        %v5708 = vadd.f32 0.0, %v5707
        %v5709 = vpop.f32.mrf.mxu0
        %v5710 = vpop.f32.mrf.mxu0
        %v5711 = vadd.f32 0.0, %v5710
        %v5712 = vpop.f32.mrf.mxu0
        %5713 = vmatprep.mubr.bf16.mxu0 0
        %5714 = vmatmul.mubr.bf16.gmra.mxu0 %v5621
        %v5715 = vpop.f32.mrf.mxu0
        %v5716 = vadd.f32 0.0, %v5715
        %v5717 = vpop.f32.mrf.mxu0
        %v5718 = vpop.f32.mrf.mxu0
        %v5719 = vadd.f32 0.0, %v5718
        %v5720 = vpop.f32.mrf.mxu0
        %5721 = vmatprep.mubr.bf16.mxu0 0
        %5722 = vmatmul.mubr.bf16.gmra.mxu0 %v5624
        %v5723 = vpop.f32.mrf.mxu0
        %v5724 = vadd.f32 0.0, %v5723
        %v5725 = vpop.f32.mrf.mxu0
        %v5726 = vpop.f32.mrf.mxu0
        %v5727 = vadd.f32 0.0, %v5726
        %v5728 = vpop.f32.mrf.mxu0
        %5729 = vmatprep.mubr.bf16.mxu0 0
        %5730 = vmatmul.mubr.bf16.gmra.mxu0 %v5627
        %v5731 = vpop.f32.mrf.mxu0
        %v5732 = vadd.f32 0.0, %v5731
        %v5733 = vpop.f32.mrf.mxu0
        %v5734 = vpop.f32.mrf.mxu0
        %v5735 = vadd.f32 0.0, %v5734
        %v5736 = vpop.f32.mrf.mxu0
        %5737 = vmatprep.mubr.bf16.mxu0 0
        %5738 = vmatmul.mubr.bf16.gmra.mxu0 %v5630
        %v5739 = vpop.f32.mrf.mxu0
        %v5740 = vadd.f32 0.0, %v5739
        %v5741 = vpop.f32.mrf.mxu0
        %v5742 = vpop.f32.mrf.mxu0
        %v5743 = vadd.f32 0.0, %v5742
        %v5744 = vpop.f32.mrf.mxu0
        %5745 = vmatprep.mubr.bf16.mxu0 0
        %5746 = vmatmul.mubr.bf16.gmra.mxu0 %v5633
        %v5747 = vpop.f32.mrf.mxu0
        %v5748 = vadd.f32 0.0, %v5747
        %v5749 = vpop.f32.mrf.mxu0
        %v5750 = vpop.f32.mrf.mxu0
        %v5751 = vadd.f32 0.0, %v5750
        %v5752 = vpop.f32.mrf.mxu0
        %5753 = vmatprep.mubr.bf16.mxu0 0
        %5754 = vmatmul.mubr.bf16.gmra.mxu0 %v5636
        %v5755 = vpop.f32.mrf.mxu0
        %v5756 = vadd.f32 0.0, %v5755
        %v5757 = vpop.f32.mrf.mxu0
        %v5758 = vpop.f32.mrf.mxu0
        %v5759 = vadd.f32 0.0, %v5758
        %v5760 = vpop.f32.mrf.mxu0
        %5761 = vmatprep.mubr.bf16.mxu0 0
        %5762 = vmatmul.mubr.bf16.gmra.mxu0 %v5639
        %v5763 = vpop.f32.mrf.mxu0
        %v5764 = vadd.f32 0.0, %v5763
        %v5765 = vpop.f32.mrf.mxu0
        %v5766 = vpop.f32.mrf.mxu0
        %v5767 = vadd.f32 0.0, %v5766
        %v5768 = vpop.f32.mrf.mxu0
        %5769 = vmatprep.mubr.bf16.mxu0 0
        %5770 = vmatmul.mubr.bf16.gmra.mxu0 %v5642
        %v5771 = vpop.f32.mrf.mxu0
        %v5772 = vadd.f32 0.0, %v5771
        %v5773 = vpop.f32.mrf.mxu0
        %v5774 = vpop.f32.mrf.mxu0
        %v5775 = vadd.f32 0.0, %v5774
        %v5776 = vpop.f32.mrf.mxu0
        %5777 = vmatprep.mubr.bf16.mxu0 0
        %5778 = vmatmul.mubr.bf16.gmra.mxu0 %v5645
        %v5779 = vpop.f32.mrf.mxu0
        %v5780 = vadd.f32 0.0, %v5779
        %v5781 = vpop.f32.mrf.mxu0
        %v5782 = vpop.f32.mrf.mxu0
        %v5783 = vadd.f32 0.0, %v5782
        %v5784 = vpop.f32.mrf.mxu0
        %5785 = vmatprep.mubr.bf16.mxu0 0
        %5786 = vmatmul.mubr.bf16.gmra.mxu0 %v5648
        %v5787 = vpop.f32.mrf.mxu0
        %v5788 = vadd.f32 0.0, %v5787
        %v5789 = vpop.f32.mrf.mxu0
        %v5790 = vpop.f32.mrf.mxu0
        %v5791 = vadd.f32 0.0, %v5790
        %v5792 = vpop.f32.mrf.mxu0
        %5793 = vmatprep.mubr.bf16.mxu0 0
        %5794 = vmatmul.mubr.bf16.gmra.mxu0 %v5651
        %v5795 = vpop.f32.mrf.mxu0
        %v5796 = vadd.f32 0.0, %v5795
        %v5797 = vpop.f32.mrf.mxu0
        %v5798 = vpop.f32.mrf.mxu0
        %v5799 = vadd.f32 0.0, %v5798
        %v5800 = vpop.f32.mrf.mxu0
        %5801 = vmatprep.mubr.bf16.mxu0 0
        %5802 = vmatmul.mubr.bf16.gmra.mxu0 %v5654
        %v5803 = vpop.f32.mrf.mxu0
        %v5804 = vadd.f32 0.0, %v5803
        %v5805 = vpop.f32.mrf.mxu0
        %v5806 = vpop.f32.mrf.mxu0
        %v5807 = vadd.f32 0.0, %v5806
        %v5808 = vpop.f32.mrf.mxu0
        %5809 = vmatprep.mubr.bf16.mxu0 0
        %5810 = vmatmul.mubr.bf16.gmra.mxu0 %v5657
        %v5811 = vpop.f32.mrf.mxu0
        %v5812 = vadd.f32 0.0, %v5811
        %v5813 = vpop.f32.mrf.mxu0
        %v5814 = vpop.f32.mrf.mxu0
        %v5815 = vadd.f32 0.0, %v5814
        %v5816 = vpop.f32.mrf.mxu0
        %5817 = vmatprep.mubr.bf16.mxu0 0
        %5818 = vmatmul.mubr.bf16.gmra.mxu0 %v5660
        %v5819 = vpop.f32.mrf.mxu0
        %v5820 = vadd.f32 0.0, %v5819
        %v5821 = vpop.f32.mrf.mxu0
        %v5822 = vpop.f32.mrf.mxu0
        %v5823 = vadd.f32 0.0, %v5822
        %v5824 = vpop.f32.mrf.mxu0
        %5825 = vdwg.mxu0
        %v5826 = vld [vmem:[%s11] sm:$0x1]
        %v5828 = vlaneseq
        %v5829 = vshrl.u32 %v5828, 7
        %v5830 = vsub.s32 0, %v5829
        %v5831 = vrot.slane %v5826, %v5830
        %v5833 = vmul.f32 %v5700, %v5831
        %v5834 = vmul.f32 %v5703, %v5831
        %v5835 = vmul.f32 %v5708, %v5831
        %v5836 = vmul.f32 %v5711, %v5831
        %v5837 = vmul.f32 %v5716, %v5831
        %v5838 = vmul.f32 %v5719, %v5831
        %v5839 = vmul.f32 %v5724, %v5831
        %v5840 = vmul.f32 %v5727, %v5831
        %v5841 = vmul.f32 %v5732, %v5831
        %v5842 = vmul.f32 %v5735, %v5831
        %v5843 = vmul.f32 %v5740, %v5831
        %v5844 = vmul.f32 %v5743, %v5831
        %v5845 = vmul.f32 %v5748, %v5831
        %v5846 = vmul.f32 %v5751, %v5831
        %v5847 = vmul.f32 %v5756, %v5831
        %v5848 = vmul.f32 %v5759, %v5831
        %v5849 = vmul.f32 %v5764, %v5831
        %v5850 = vmul.f32 %v5767, %v5831
        %v5851 = vmul.f32 %v5772, %v5831
        %v5852 = vmul.f32 %v5775, %v5831
        %v5853 = vmul.f32 %v5780, %v5831
        %v5854 = vmul.f32 %v5783, %v5831
        %v5855 = vmul.f32 %v5788, %v5831
        %v5856 = vmul.f32 %v5791, %v5831
        %v5857 = vmul.f32 %v5796, %v5831
        %v5858 = vmul.f32 %v5799, %v5831
        %v5859 = vmul.f32 %v5804, %v5831
        %v5860 = vmul.f32 %v5807, %v5831
        %v5861 = vmul.f32 %v5812, %v5831
        %v5862 = vmul.f32 %v5815, %v5831
        %v5863 = vmul.f32 %v5820, %v5831
        %v5864 = vmul.f32 %v5823, %v5831
        %v5865 = vld [vmem:[%s12] sm:$0x1]
        %v5867 = vlaneseq
        %v5868 = vshrl.u32 %v5867, 7
        %v5869 = vsub.s32 0, %v5868
        %v5870 = vrot.slane %v5865, %v5869
        %v5872 = vadd.f32 %v5833, %v5870
        %v5873 = vadd.f32 %v5834, %v5870
        %v5874 = vadd.f32 %v5835, %v5870
        %v5875 = vadd.f32 %v5836, %v5870
        %v5876 = vadd.f32 %v5837, %v5870
        %v5877 = vadd.f32 %v5838, %v5870
        %v5878 = vadd.f32 %v5839, %v5870
        %v5879 = vadd.f32 %v5840, %v5870
        %v5880 = vadd.f32 %v5841, %v5870
        %v5881 = vadd.f32 %v5842, %v5870
        %v5882 = vadd.f32 %v5843, %v5870
        %v5883 = vadd.f32 %v5844, %v5870
        %v5884 = vadd.f32 %v5845, %v5870
        %v5885 = vadd.f32 %v5846, %v5870
        %v5886 = vadd.f32 %v5847, %v5870
        %v5887 = vadd.f32 %v5848, %v5870
        %v5888 = vadd.f32 %v5849, %v5870
        %v5889 = vadd.f32 %v5850, %v5870
        %v5890 = vadd.f32 %v5851, %v5870
        %v5891 = vadd.f32 %v5852, %v5870
        %v5892 = vadd.f32 %v5853, %v5870
        %v5893 = vadd.f32 %v5854, %v5870
        %v5894 = vadd.f32 %v5855, %v5870
        %v5895 = vadd.f32 %v5856, %v5870
        %v5896 = vadd.f32 %v5857, %v5870
        %v5897 = vadd.f32 %v5858, %v5870
        %v5898 = vadd.f32 %v5859, %v5870
        %v5899 = vadd.f32 %v5860, %v5870
        %v5900 = vadd.f32 %v5861, %v5870
        %v5901 = vadd.f32 %v5862, %v5870
        %v5902 = vadd.f32 %v5863, %v5870
        %v5903 = vadd.f32 %v5864, %v5870
        %5936 = vrot.lane.b32.xlu0 %v5872, 48
        %v5937 = vpop.permute.xlu0 %5936
        %5938 = vrot.lane.b32.xlu0 %v5873, 48
        %v5939 = vpop.permute.xlu0 %5938
        %5940 = vrot.lane.b32.xlu0 %v5874, 48
        %v5941 = vpop.permute.xlu0 %5940
        %5942 = vrot.lane.b32.xlu0 %v5875, 48
        %v5943 = vpop.permute.xlu0 %5942
        %5944 = vrot.lane.b32.xlu0 %v5876, 48
        %v5945 = vpop.permute.xlu0 %5944
        %5946 = vrot.lane.b32.xlu0 %v5877, 48
        %v5947 = vpop.permute.xlu0 %5946
        %5948 = vrot.lane.b32.xlu0 %v5878, 48
        %v5949 = vpop.permute.xlu0 %5948
        %5950 = vrot.lane.b32.xlu0 %v5879, 48
        %v5951 = vpop.permute.xlu0 %5950
        %5952 = vrot.lane.b32.xlu0 %v5880, 48
        %v5953 = vpop.permute.xlu0 %5952
        %5954 = vrot.lane.b32.xlu0 %v5881, 48
        %v5955 = vpop.permute.xlu0 %5954
        %5956 = vrot.lane.b32.xlu0 %v5882, 48
        %v5957 = vpop.permute.xlu0 %5956
        %5958 = vrot.lane.b32.xlu0 %v5883, 48
        %v5959 = vpop.permute.xlu0 %5958
        %5960 = vrot.lane.b32.xlu0 %v5884, 48
        %v5961 = vpop.permute.xlu0 %5960
        %5962 = vrot.lane.b32.xlu0 %v5885, 48
        %v5963 = vpop.permute.xlu0 %5962
        %5964 = vrot.lane.b32.xlu0 %v5886, 48
        %v5965 = vpop.permute.xlu0 %5964
        %5966 = vrot.lane.b32.xlu0 %v5887, 48
        %v5967 = vpop.permute.xlu0 %5966
        %5968 = vrot.lane.b32.xlu0 %v5888, 48
        %v5969 = vpop.permute.xlu0 %5968
        %5970 = vrot.lane.b32.xlu0 %v5889, 48
        %v5971 = vpop.permute.xlu0 %5970
        %5972 = vrot.lane.b32.xlu0 %v5890, 48
        %v5973 = vpop.permute.xlu0 %5972
        %5974 = vrot.lane.b32.xlu0 %v5891, 48
        %v5975 = vpop.permute.xlu0 %5974
        %5976 = vrot.lane.b32.xlu0 %v5892, 48
        %v5977 = vpop.permute.xlu0 %5976
        %5978 = vrot.lane.b32.xlu0 %v5893, 48
        %v5979 = vpop.permute.xlu0 %5978
        %5980 = vrot.lane.b32.xlu0 %v5894, 48
        %v5981 = vpop.permute.xlu0 %5980
        %5982 = vrot.lane.b32.xlu0 %v5895, 48
        %v5983 = vpop.permute.xlu0 %5982
        %5984 = vrot.lane.b32.xlu0 %v5896, 48
        %v5985 = vpop.permute.xlu0 %5984
        %5986 = vrot.lane.b32.xlu0 %v5897, 48
        %v5987 = vpop.permute.xlu0 %5986
        %5988 = vrot.lane.b32.xlu0 %v5898, 48
        %v5989 = vpop.permute.xlu0 %5988
        %5990 = vrot.lane.b32.xlu0 %v5899, 48
        %v5991 = vpop.permute.xlu0 %5990
        %5992 = vrot.lane.b32.xlu0 %v5900, 48
        %v5993 = vpop.permute.xlu0 %5992
        %5994 = vrot.lane.b32.xlu0 %v5901, 48
        %v5995 = vpop.permute.xlu0 %5994
        %5996 = vrot.lane.b32.xlu0 %v5902, 48
        %v5997 = vpop.permute.xlu0 %5996
        %5998 = vrot.lane.b32.xlu0 %v5903, 48
        %v5999 = vpop.permute.xlu0 %5998
        %vm6032 = vcmask 523648
        %6033 = vst.msk [vmem:[%s433] sm:$0xff] %vm6032, %v5937
        %6034 = vst.msk [vmem:[%s433 + $0x8] sm:$0xff] %vm6032, %v5939
        %6035 = vst.msk [vmem:[%s433 + $0x10] sm:$0xff] %vm6032, %v5941
        %6036 = vst.msk [vmem:[%s433 + $0x18] sm:$0xff] %vm6032, %v5943
        %6037 = vst.msk [vmem:[%s433 + $0x20] sm:$0xff] %vm6032, %v5945
        %6038 = vst.msk [vmem:[%s433 + $0x28] sm:$0xff] %vm6032, %v5947
        %6039 = vst.msk [vmem:[%s433 + $0x30] sm:$0xff] %vm6032, %v5949
        %6040 = vst.msk [vmem:[%s433 + $0x38] sm:$0xff] %vm6032, %v5951
        %6041 = vst.msk [vmem:[%s433 + $0x40] sm:$0xff] %vm6032, %v5953
        %6042 = vst.msk [vmem:[%s433 + $0x48] sm:$0xff] %vm6032, %v5955
        %6043 = vst.msk [vmem:[%s433 + $0x50] sm:$0xff] %vm6032, %v5957
        %6044 = vst.msk [vmem:[%s433 + $0x58] sm:$0xff] %vm6032, %v5959
        %6045 = vst.msk [vmem:[%s433 + $0x60] sm:$0xff] %vm6032, %v5961
        %6046 = vst.msk [vmem:[%s433 + $0x68] sm:$0xff] %vm6032, %v5963
        %6047 = vst.msk [vmem:[%s433 + $0x70] sm:$0xff] %vm6032, %v5965
        %6048 = vst.msk [vmem:[%s433 + $0x78] sm:$0xff] %vm6032, %v5967
        %6049 = vst.msk [vmem:[%s433 + $0x80] sm:$0xff] %vm6032, %v5969
        %6050 = vst.msk [vmem:[%s433 + $0x88] sm:$0xff] %vm6032, %v5971
        %6051 = vst.msk [vmem:[%s433 + $0x90] sm:$0xff] %vm6032, %v5973
        %6052 = vst.msk [vmem:[%s433 + $0x98] sm:$0xff] %vm6032, %v5975
        %6053 = vst.msk [vmem:[%s433 + $0xa0] sm:$0xff] %vm6032, %v5977
        %6054 = vst.msk [vmem:[%s433 + $0xa8] sm:$0xff] %vm6032, %v5979
        %6055 = vst.msk [vmem:[%s433 + $0xb0] sm:$0xff] %vm6032, %v5981
        %6056 = vst.msk [vmem:[%s433 + $0xb8] sm:$0xff] %vm6032, %v5983
        %6057 = vst.msk [vmem:[%s433 + $0xc0] sm:$0xff] %vm6032, %v5985
        %6058 = vst.msk [vmem:[%s433 + $0xc8] sm:$0xff] %vm6032, %v5987
        %6059 = vst.msk [vmem:[%s433 + $0xd0] sm:$0xff] %vm6032, %v5989
        %6060 = vst.msk [vmem:[%s433 + $0xd8] sm:$0xff] %vm6032, %v5991
        %6061 = vst.msk [vmem:[%s433 + $0xe0] sm:$0xff] %vm6032, %v5993
        %6062 = vst.msk [vmem:[%s433 + $0xe8] sm:$0xff] %vm6032, %v5995
        %6063 = vst.msk [vmem:[%s433 + $0xf0] sm:$0xff] %vm6032, %v5997
        %6064 = vst.msk [vmem:[%s433 + $0xf8] sm:$0xff] %vm6032, %v5999
        %s6065 = sand.u32 %s313, 1
        %s6066 = scalar_lea.sflag [#allocation8], %s6065
        %s6067 = sand.u32 %s313, 1
        %s6068 = smul.addr %s6067, 256
        %s6069 = scalar_lea.vmem [#allocation7], %s6068
        // Predicated region
        $region73: #{inception_forward.1} parent=71 // pred_check
          %p6070 = pneg %p323
        $region74: #{inception_forward.1} parent=71 // pred_check_branch
          %6072 = sbr.rel (%p6070) target = $region76
        $region75: #{inception_forward.1} parent=71 // pred_region
          %s6074 = ssub.s32 4096, 4096
          %6075 = vsyncadd %s6066, %s6074
          %s6076 = smul.addr %s27, 32
          %s6077 = smul.addr %s6076, 128
          %s6078 = scalar_lea.hbm %s13, %s6077
          %s6079 = sshll.u32 %s6069, 4
          %s6080 = int_to_ptr.vmem [resolvable:$true] %s6079
          %6085 = dma.vmem_to_hbm [thread:$0]  %s6080, 4096, %s6078, %s6066, 128, 128, 8
        $region76: #{inception_forward.1} parent=71 // pred_fallthru
          _
      $region72: #{inception_forward.1} parent=5 // pred_fallthru
        _
      %p6086 = scmp.le.s32.totalorder 2, %s22
      // Predicated region
      $region77: #{inception_forward.1} parent=5 // pred_check
        %p6087 = pneg %p6086
      $region78: #{inception_forward.1} parent=5 // pred_check_branch
        %6089 = sbr.rel (%p6087) target = $region80
      $region79: #{inception_forward.1} parent=5 // pred_region
        %s6090 = ssub.s32 %s22, 2
        // Predicated region
        $region81: #{inception_forward.1} parent=79 // pred_check
          %p6091 = pneg %p329
        $region82: #{inception_forward.1} parent=79 // pred_check_branch
          %6093 = sbr.rel (%p6091) target = $region84
        $region83: #{inception_forward.1} parent=79 // pred_region
          %s6094 = sand.u32 %s314, 1
          %s6095 = scalar_lea.sflag [#allocation8], %s6094
          %s6096 = sand.u32 %s314, 1
          %s6097 = smul.addr %s6096, 256
          %s6098 = scalar_lea.vmem [#allocation7], %s6097
          %6099 = dma.done %s6095, 4096
        $region84: #{inception_forward.1} parent=79 // pred_fallthru
          _
      $region80: #{inception_forward.1} parent=5 // pred_fallthru
        _
    $region6: #{inception_forward.1} parent=1 // loop_footer
      %s26 = sadd.s32 1, %s22
    $region7: #{inception_forward.1} parent=1 // loop_footer_branch
      %21 = sbr.rel target = $region3
    $region8: #{inception_forward.1} parent=1 // loop_exit
      _
    %6100 = vsyncpa [#allocation8], 1
    %s6101 = scalar_lea.sflag [#allocation8], 1
    %6102 = vsyncpa %s6101, 1

</llo_original>
